<compile_context>
chip_gen: v7x
topology: tpu7x:2x2x1
jax: 0.10.0
libtpu: 0.0.40
codegen_flags: <defaults>
</compile_context>

<pallas_src>
import math

import jax
import jax.numpy as jnp
from jax import lax
from jax.experimental import pallas as pl
from jax.experimental.pallas import tpu as pltpu

# Small, TPU-friendly configuration consistent with the module
# (module default is embed_dim=256 / num_heads=8; scaled down per instructions).
EMBED_DIM = 128
NUM_HEADS = 4
HEAD_DIM = EMBED_DIM // NUM_HEADS
MAX_LEN = 256
LN_EPS = 1e-5  # nn.LayerNorm default eps


# ---------------------------------------------------------------------------
# In-kernel helpers (traced inside the Pallas kernel body)
# ---------------------------------------------------------------------------
def _layernorm(x, g, b):
    """Row-wise LayerNorm in f32. x: (rows, C)."""
    mu = jnp.mean(x, axis=-1, keepdims=True)
    var = jnp.mean((x - mu) ** 2, axis=-1, keepdims=True)
    return (x - mu) * lax.rsqrt(var + LN_EPS) * g + b


def _mha(x2d, batch, seq, wqkv, bqkv, wo, bo):
    """Multi-head attention on a fused (batch*seq, C) slab.

    wqkv / wo are bf16; the 1/sqrt(head_dim) query scale is pre-folded into
    the query columns of wqkv (and bqkv) on the host, so no score scaling is
    done here.  All matmuls take bf16 inputs and accumulate in f32 on the MXU.
    """
    C = EMBED_DIM
    qkv = jnp.dot(x2d.astype(jnp.bfloat16), wqkv,
                  preferred_element_type=jnp.float32) + bqkv        # (BS, 3C) f32

    # Lane-aligned 128-wide q/k/v slabs, cast to bf16 once (not per head).
    q_bf = qkv[:, :C].astype(jnp.bfloat16)
    k_bf = qkv[:, C:2 * C].astype(jnp.bfloat16)
    v_bf = qkv[:, 2 * C:].astype(jnp.bfloat16)

    per_batch = []
    for b in range(batch):               # static unroll; attention is per batch elem
        r0 = b * seq
        att = None
        for h in range(NUM_HEADS):       # static unroll over heads
            lo = h * HEAD_DIM
            qh = q_bf[r0:r0 + seq, lo:lo + HEAD_DIM]                # (seq, Dh)
            kh = k_bf[r0:r0 + seq, lo:lo + HEAD_DIM]
            vh = v_bf[r0:r0 + seq, lo:lo + HEAD_DIM]

            # q @ k^T via dot_general contracting the last dims — no explicit .T
            s = lax.dot_general(qh, kh, (((1,), (1,)), ((), ())),
                                preferred_element_type=jnp.float32)  # (seq, seq) f32
            m = jnp.max(s, axis=-1, keepdims=True)
            p = jnp.exp(s - m)
            a = p * pl.reciprocal(jnp.sum(p, axis=-1, keepdims=True), approx=True)

            ho = jnp.dot(a.astype(jnp.bfloat16), vh,
                         preferred_element_type=jnp.float32)         # (seq, Dh)

            # Per-head accumulation of the output projection — removes the
            # lane-axis concatenate of 32-wide head chunks.
            contrib = jnp.dot(ho.astype(jnp.bfloat16), wo[lo:lo + HEAD_DIM, :],
                              preferred_element_type=jnp.float32)    # (seq, C)
            att = contrib if att is None else att + contrib
        per_batch.append(att)

    out = jnp.concatenate(per_batch, axis=0) if batch > 1 else per_batch[0]
    return out + bo                                                  # (BS, C) f32


# ---------------------------------------------------------------------------
# Pallas kernel: full double-attention block, whole batch in one step
# ---------------------------------------------------------------------------
def double_attention_kernel(x_ref, pe_ref,
                            wqkv1_ref, bqkv1_ref, wo1_ref, bo1_ref, g1_ref, be1_ref,
                            wqkv2_ref, bqkv2_ref, wo2_ref, bo2_ref, g2_ref, be2_ref,
                            wf1_ref, bf1_ref, wf2_ref, bf2_ref,
                            o_ref):
    B, S, C = x_ref.shape

    # x + positional encoding; fuse batch into the matmul M dimension.
    x = (x_ref[...] + pe_ref[...]).reshape(B * S, C)                 # (BS, C) f32

    # attention1 -> norm1   (LayerNorm applied directly to attention output,
    # matching the module: only the FFN has a residual connection)
    a1 = _mha(x, B, S, wqkv1_ref[...], bqkv1_ref[...], wo1_ref[...], bo1_ref[...])
    x1 = _layernorm(a1, g1_ref[...], be1_ref[...])

    # attention2 -> norm2
    a2 = _mha(x1, B, S, wqkv2_ref[...], bqkv2_ref[...], wo2_ref[...], bo2_ref[...])
    x2 = _layernorm(a2, g2_ref[...], be2_ref[...])

    # x + feedforward(x):  Linear(C, 2C) -> ReLU -> Linear(2C, C)
    hid = jnp.maximum(
        jnp.dot(x2.astype(jnp.bfloat16), wf1_ref[...],
                preferred_element_type=jnp.float32) + bf1_ref[...], 0.0)
    ff = jnp.dot(hid.astype(jnp.bfloat16), wf2_ref[...],
                 preferred_element_type=jnp.float32) + bf2_ref[...]

    o_ref[...] = (x2 + ff).reshape(B, S, C).astype(o_ref.dtype)


# ---------------------------------------------------------------------------
# Wrapper
# ---------------------------------------------------------------------------
def double_attention_forward(x_nchw, params):
    B, C, H, W = x_nchw.shape
    assert C == EMBED_DIM and C % NUM_HEADS == 0
    S = H * W
    assert S <= MAX_LEN

    # NCHW -> (B, S, C): sequence on sublanes, channels on the lane axis.
    x_bsc = x_nchw.reshape(B, C, S).transpose(0, 2, 1)
    pe = params["pe"][:S]  # (S, C), broadcast over batch inside the kernel

    # Host-side weight prep (one-time cost in practice): fold 1/sqrt(head_dim)
    # into the query columns of wqkv/bqkv and cast matmul weights to bf16.
    scale = 1.0 / math.sqrt(HEAD_DIM)

    def fold_qkv(w, b):
        return (w.at[:, :C].multiply(scale).astype(jnp.bfloat16),
                b.at[:, :C].multiply(scale))

    wqkv1, bqkv1 = fold_qkv(params["wqkv1"], params["bqkv1"])
    wqkv2, bqkv2 = fold_qkv(params["wqkv2"], params["bqkv2"])

    weights = [
        wqkv1, bqkv1, params["wo1"].astype(jnp.bfloat16), params["bo1"],
        params["g1"], params["be1"],
        wqkv2, bqkv2, params["wo2"].astype(jnp.bfloat16), params["bo2"],
        params["g2"], params["be2"],
        params["wf1"].astype(jnp.bfloat16), params["bf1"],
        params["wf2"].astype(jnp.bfloat16), params["bf2"],
    ]

    def full_spec(a):
        nd = a.ndim
        return pl.BlockSpec(a.shape, lambda i, _nd=nd: (0,) * _nd)

    in_specs = [full_spec(x_bsc), full_spec(pe)] + [full_spec(w) for w in weights]

    out = pl.pallas_call(
        double_attention_kernel,
        out_shape=jax.ShapeDtypeStruct((B, S, C), jnp.float32),
        grid=(1,),  # whole problem (B*S = 128 rows) in a single fused step
        in_specs=in_specs,
        out_specs=pl.BlockSpec((B, S, C), lambda i: (0, 0, 0)),
        compiler_params=pltpu.CompilerParams(dimension_semantics=("arbitrary",)),
    )(x_bsc, pe, *weights)

    # (B, S, C) -> NCHW
    return out.transpose(0, 2, 1).reshape(B, C, H, W)


# ---------------------------------------------------------------------------
# Deterministic parameter construction (synthetic, no checkpoint loading)
# ---------------------------------------------------------------------------
def make_positional_encoding(embed_dim, max_len):
    pos = jnp.arange(max_len, dtype=jnp.float32)[:, None]
    div = jnp.exp(jnp.arange(0, embed_dim, 2, dtype=jnp.float32)
                  * (-math.log(10000.0) / embed_dim))
    pe = jnp.zeros((max_len, embed_dim), jnp.float32)
    pe = pe.at[:, 0::2].set(jnp.sin(pos * div))
    pe = pe.at[:, 1::2].set(jnp.cos(pos * div))
    return pe  # (max_len, C)


def make_params(key):
    C = EMBED_DIM
    ks = jax.random.split(key, 12)

    def lin(k, shape, scale=0.02):
        return (scale * jax.random.normal(k, shape)).astype(jnp.float32)

    # Weights stored pre-transposed (in_features, out_features): y = x @ W + b.
    return {
        "wqkv1": lin(ks[0], (C, 3 * C)), "bqkv1": lin(ks[1], (1, 3 * C)),
        "wo1":   lin(ks[2], (C, C)),     "bo1":   lin(ks[3], (1, C)),
        "g1": jnp.ones((1, C), jnp.float32), "be1": jnp.zeros((1, C), jnp.float32),
        "wqkv2": lin(ks[4], (C, 3 * C)), "bqkv2": lin(ks[5], (1, 3 * C)),
        "wo2":   lin(ks[6], (C, C)),     "bo2":   lin(ks[7], (1, C)),
        "g2": jnp.ones((1, C), jnp.float32), "be2": jnp.zeros((1, C), jnp.float32),
        "wf1": lin(ks[8], (C, 2 * C)),   "bf1": lin(ks[9], (1, 2 * C)),
        "wf2": lin(ks[10], (2 * C, C)),  "bf2": lin(ks[11], (1, C)),
        "pe": make_positional_encoding(C, MAX_LEN),
    }


# ---------------------------------------------------------------------------
# Pure-JAX f32 reference (for correctness check only)
# ---------------------------------------------------------------------------
def reference_forward(x_nchw, params):
    B, C, H, W = x_nchw.shape
    S = H * W
    x = x_nchw.reshape(B, C, S).transpose(0, 2, 1) + params["pe"][:S][None]

    def mha(x, wqkv, bqkv, wo, bo):
        qkv = x @ wqkv + bqkv
        q, k, v = jnp.split(qkv, 3, axis=-1)

        def sh(t):
            return t.reshape(B, S, NUM_HEADS, HEAD_DIM).transpose(0, 2, 1, 3)

        q, k, v = sh(q), sh(k), sh(v)
        s = jnp.einsum("bhqd,bhkd->bhqk", q, k) / math.sqrt(HEAD_DIM)
        a = jax.nn.softmax(s, axis=-1)
        o = jnp.einsum("bhqk,bhkd->bhqd", a, v).transpose(0, 2, 1, 3).reshape(B, S, C)
        return o @ wo + bo

    def ln(x, g, b):
        mu = x.mean(-1, keepdims=True)
        var = ((x - mu) ** 2).mean(-1, keepdims=True)
        return (x - mu) / jnp.sqrt(var + LN_EPS) * g + b

    x = ln(mha(x, params["wqkv1"], params["bqkv1"], params["wo1"], params["bo1"]),
           params["g1"], params["be1"])
    x = ln(mha(x, params["wqkv2"], params["bqkv2"], params["wo2"], params["bo2"]),
           params["g2"], params["be2"])
    ff = jnp.maximum(x @ params["wf1"] + params["bf1"], 0.0) @ params["wf2"] + params["bf2"]
    x = x + ff
    return x.transpose(0, 2, 1).reshape(B, C, H, W)


if __name__ == "__main__":
    key = jax.random.PRNGKey(0)
    k_x, k_p = jax.random.split(key)

    B, C, H, W = 2, EMBED_DIM, 8, 8          # S = 64  ->  fused M = B*S = 128
    x = jax.random.normal(k_x, (B, C, H, W), dtype=jnp.float32)
    params = make_params(k_p)

    out = jax.block_until_ready(double_attention_forward(x, params))
    ref = reference_forward(x, params)

    assert out.shape == (B, C, H, W)
    # bf16 MXU inputs + approximate reciprocal vs. an f32 reference -> loose
    # elementwise tolerance, tight aggregate (Frobenius) tolerance.
    max_abs = float(jnp.max(jnp.abs(out - ref)))
    rel_fro = float(jnp.linalg.norm(out - ref) / jnp.linalg.norm(ref))
    assert max_abs < 1e-1 and rel_fro < 3e-2, (max_abs, rel_fro)

    print("KERNEL_OK")
</pallas_src>

<mosaic_0001>
module attributes {stable_mosaic.version = 11 : i64} {
  func.func @double_attention_kernel(%arg0: i32, %arg1: memref<2x64x128xf32, #tpu.memory_space<vmem>>, %arg2: memref<64x128xf32, #tpu.memory_space<vmem>>, %arg3: memref<128x384xbf16, #tpu.memory_space<vmem>>, %arg4: memref<1x384xf32, #tpu.memory_space<vmem>>, %arg5: memref<128x128xbf16, #tpu.memory_space<vmem>>, %arg6: memref<1x128xf32, #tpu.memory_space<vmem>>, %arg7: memref<1x128xf32, #tpu.memory_space<vmem>>, %arg8: memref<1x128xf32, #tpu.memory_space<vmem>>, %arg9: memref<128x384xbf16, #tpu.memory_space<vmem>>, %arg10: memref<1x384xf32, #tpu.memory_space<vmem>>, %arg11: memref<128x128xbf16, #tpu.memory_space<vmem>>, %arg12: memref<1x128xf32, #tpu.memory_space<vmem>>, %arg13: memref<1x128xf32, #tpu.memory_space<vmem>>, %arg14: memref<1x128xf32, #tpu.memory_space<vmem>>, %arg15: memref<128x256xbf16, #tpu.memory_space<vmem>>, %arg16: memref<1x256xf32, #tpu.memory_space<vmem>>, %arg17: memref<256x128xbf16, #tpu.memory_space<vmem>>, %arg18: memref<1x128xf32, #tpu.memory_space<vmem>>, %arg19: memref<2x64x128xf32, #tpu.memory_space<vmem>>) attributes {dimension_semantics = [#tpu.dimension_semantics<arbitrary>], iteration_bounds = array<i64: 1>, scalar_prefetch = 0 : i64, scratch_operands = 0 : i64, tpu.core_type = #tpu.core_type<tc>, window_params = [{pipeline_mode = #tpu.pipeline_mode<synchronous>, transform_indices = @transform_0, window_bounds = array<i64: 2, 64, 128>}, {pipeline_mode = #tpu.pipeline_mode<synchronous>, transform_indices = @transform_1, window_bounds = array<i64: 64, 128>}, {pipeline_mode = #tpu.pipeline_mode<synchronous>, transform_indices = @transform_2, window_bounds = array<i64: 128, 384>}, {pipeline_mode = #tpu.pipeline_mode<synchronous>, transform_indices = @transform_3, window_bounds = array<i64: 1, 384>}, {pipeline_mode = #tpu.pipeline_mode<synchronous>, transform_indices = @transform_4, window_bounds = array<i64: 128, 128>}, {pipeline_mode = #tpu.pipeline_mode<synchronous>, transform_indices = @transform_5, window_bounds = array<i64: 1, 128>}, {pipeline_mode = #tpu.pipeline_mode<synchronous>, transform_indices = @transform_6, window_bounds = array<i64: 1, 128>}, {pipeline_mode = #tpu.pipeline_mode<synchronous>, transform_indices = @transform_7, window_bounds = array<i64: 1, 128>}, {pipeline_mode = #tpu.pipeline_mode<synchronous>, transform_indices = @transform_8, window_bounds = array<i64: 128, 384>}, {pipeline_mode = #tpu.pipeline_mode<synchronous>, transform_indices = @transform_9, window_bounds = array<i64: 1, 384>}, {pipeline_mode = #tpu.pipeline_mode<synchronous>, transform_indices = @transform_10, window_bounds = array<i64: 128, 128>}, {pipeline_mode = #tpu.pipeline_mode<synchronous>, transform_indices = @transform_11, window_bounds = array<i64: 1, 128>}, {pipeline_mode = #tpu.pipeline_mode<synchronous>, transform_indices = @transform_12, window_bounds = array<i64: 1, 128>}, {pipeline_mode = #tpu.pipeline_mode<synchronous>, transform_indices = @transform_13, window_bounds = array<i64: 1, 128>}, {pipeline_mode = #tpu.pipeline_mode<synchronous>, transform_indices = @transform_14, window_bounds = array<i64: 128, 256>}, {pipeline_mode = #tpu.pipeline_mode<synchronous>, transform_indices = @transform_15, window_bounds = array<i64: 1, 256>}, {pipeline_mode = #tpu.pipeline_mode<synchronous>, transform_indices = @transform_16, window_bounds = array<i64: 256, 128>}, {pipeline_mode = #tpu.pipeline_mode<synchronous>, transform_indices = @transform_17, window_bounds = array<i64: 1, 128>}, {pipeline_mode = #tpu.pipeline_mode<synchronous>, transform_indices = @transform_18, window_bounds = array<i64: 2, 64, 128>}]} {
    %c0 = arith.constant 0 : index
    %c0_0 = arith.constant 0 : index
    %c0_1 = arith.constant 0 : index
    %0 = vector.load %arg1[%c0, %c0_0, %c0_1] : memref<2x64x128xf32, #tpu.memory_space<vmem>>, vector<2x64x128xf32>
    %c0_2 = arith.constant 0 : index
    %c0_3 = arith.constant 0 : index
    %1 = vector.load %arg2[%c0_2, %c0_3] : memref<64x128xf32, #tpu.memory_space<vmem>>, vector<64x128xf32>
    %2 = vector.shape_cast %1 : vector<64x128xf32> to vector<1x64x128xf32>
    %3 = vector.broadcast %2 : vector<1x64x128xf32> to vector<2x64x128xf32>
    %4 = arith.addf %0, %3 : vector<2x64x128xf32>
    %5 = vector.shape_cast %4 : vector<2x64x128xf32> to vector<128x128xf32>
    %c0_4 = arith.constant 0 : index
    %c0_5 = arith.constant 0 : index
    %6 = vector.load %arg3[%c0_4, %c0_5] : memref<128x384xbf16, #tpu.memory_space<vmem>>, vector<128x384xbf16>
    %c0_6 = arith.constant 0 : index
    %c0_7 = arith.constant 0 : index
    %7 = vector.load %arg4[%c0_6, %c0_7] : memref<1x384xf32, #tpu.memory_space<vmem>>, vector<1x384xf32>
    %c0_8 = arith.constant 0 : index
    %c0_9 = arith.constant 0 : index
    %8 = vector.load %arg5[%c0_8, %c0_9] : memref<128x128xbf16, #tpu.memory_space<vmem>>, vector<128x128xbf16>
    %c0_10 = arith.constant 0 : index
    %c0_11 = arith.constant 0 : index
    %9 = vector.load %arg6[%c0_10, %c0_11] : memref<1x128xf32, #tpu.memory_space<vmem>>, vector<1x128xf32>
    %10 = arith.truncf %5 : vector<128x128xf32> to vector<128x128xbf16>
    %cst = arith.constant dense<0.000000e+00> : vector<128x384xf32>
    %11 = tpu.matmul %10, %6, %cst {dimension_numbers = #tpu.dot_dimension_numbers<[1], [0], [0], [1], [0, 0, 1, 1], [], []>} : vector<128x128xbf16>, vector<128x384xbf16>, vector<128x384xf32> -> vector<128x384xf32>
    %12 = vector.broadcast %7 : vector<1x384xf32> to vector<128x384xf32>
    %13 = arith.addf %11, %12 : vector<128x384xf32>
    %14 = vector.extract_strided_slice %13 {offsets = [0, 0], sizes = [128, 128], strides = [1, 1]} : vector<128x384xf32> to vector<128x128xf32>
    %15 = arith.truncf %14 : vector<128x128xf32> to vector<128x128xbf16>
    %16 = vector.extract_strided_slice %13 {offsets = [0, 128], sizes = [128, 128], strides = [1, 1]} : vector<128x384xf32> to vector<128x128xf32>
    %17 = arith.truncf %16 : vector<128x128xf32> to vector<128x128xbf16>
    %18 = vector.extract_strided_slice %13 {offsets = [0, 256], sizes = [128, 128], strides = [1, 1]} : vector<128x384xf32> to vector<128x128xf32>
    %19 = arith.truncf %18 : vector<128x128xf32> to vector<128x128xbf16>
    %20 = vector.extract_strided_slice %15 {offsets = [0, 0], sizes = [64, 32], strides = [1, 1]} : vector<128x128xbf16> to vector<64x32xbf16>
    %21 = vector.extract_strided_slice %17 {offsets = [0, 0], sizes = [64, 32], strides = [1, 1]} : vector<128x128xbf16> to vector<64x32xbf16>
    %22 = vector.extract_strided_slice %19 {offsets = [0, 0], sizes = [64, 32], strides = [1, 1]} : vector<128x128xbf16> to vector<64x32xbf16>
    %cst_12 = arith.constant dense<0.000000e+00> : vector<64x64xf32>
    %23 = tpu.matmul %20, %21, %cst_12 {dimension_numbers = #tpu.dot_dimension_numbers<[1], [1], [0], [0], [0, 0, 1, 0], [], []>} : vector<64x32xbf16>, vector<64x32xbf16>, vector<64x64xf32> -> vector<64x64xf32>
    %cst_13 = arith.constant dense<0xFF800000> : vector<64xf32>
    %24 = vector.multi_reduction <maximumf>, %23, %cst_13 [1] : vector<64x64xf32> to vector<64xf32>
    %25 = vector.shape_cast %24 : vector<64xf32> to vector<64x1xf32>
    %26 = vector.broadcast %25 : vector<64x1xf32> to vector<64x64xf32>
    %27 = arith.subf %23, %26 : vector<64x64xf32>
    %28 = math.exp %27 : vector<64x64xf32>
    %cst_14 = arith.constant dense<0.000000e+00> : vector<64xf32>
    %29 = vector.multi_reduction <add>, %28, %cst_14 [1] : vector<64x64xf32> to vector<64xf32>
    %30 = vector.shape_cast %29 : vector<64xf32> to vector<64x1xf32>
    %31 = tpu.reciprocal %30 {approx = true} : vector<64x1xf32> -> vector<64x1xf32>
    %32 = vector.broadcast %31 : vector<64x1xf32> to vector<64x64xf32>
    %33 = arith.mulf %28, %32 : vector<64x64xf32>
    %34 = arith.truncf %33 : vector<64x64xf32> to vector<64x64xbf16>
    %cst_15 = arith.constant dense<0.000000e+00> : vector<64x32xf32>
    %35 = tpu.matmul %34, %22, %cst_15 {dimension_numbers = #tpu.dot_dimension_numbers<[1], [0], [0], [1], [0, 0, 1, 1], [], []>} : vector<64x64xbf16>, vector<64x32xbf16>, vector<64x32xf32> -> vector<64x32xf32>
    %36 = arith.truncf %35 : vector<64x32xf32> to vector<64x32xbf16>
    %37 = vector.extract_strided_slice %8 {offsets = [0, 0], sizes = [32, 128], strides = [1, 1]} : vector<128x128xbf16> to vector<32x128xbf16>
    %cst_16 = arith.constant dense<0.000000e+00> : vector<64x128xf32>
    %38 = tpu.matmul %36, %37, %cst_16 {dimension_numbers = #tpu.dot_dimension_numbers<[1], [0], [0], [1], [0, 0, 1, 1], [], []>} : vector<64x32xbf16>, vector<32x128xbf16>, vector<64x128xf32> -> vector<64x128xf32>
    %39 = vector.extract_strided_slice %15 {offsets = [0, 32], sizes = [64, 32], strides = [1, 1]} : vector<128x128xbf16> to vector<64x32xbf16>
    %40 = vector.extract_strided_slice %17 {offsets = [0, 32], sizes = [64, 32], strides = [1, 1]} : vector<128x128xbf16> to vector<64x32xbf16>
    %41 = vector.extract_strided_slice %19 {offsets = [0, 32], sizes = [64, 32], strides = [1, 1]} : vector<128x128xbf16> to vector<64x32xbf16>
    %cst_17 = arith.constant dense<0.000000e+00> : vector<64x64xf32>
    %42 = tpu.matmul %39, %40, %cst_17 {dimension_numbers = #tpu.dot_dimension_numbers<[1], [1], [0], [0], [0, 0, 1, 0], [], []>} : vector<64x32xbf16>, vector<64x32xbf16>, vector<64x64xf32> -> vector<64x64xf32>
    %cst_18 = arith.constant dense<0xFF800000> : vector<64xf32>
    %43 = vector.multi_reduction <maximumf>, %42, %cst_18 [1] : vector<64x64xf32> to vector<64xf32>
    %44 = vector.shape_cast %43 : vector<64xf32> to vector<64x1xf32>
    %45 = vector.broadcast %44 : vector<64x1xf32> to vector<64x64xf32>
    %46 = arith.subf %42, %45 : vector<64x64xf32>
    %47 = math.exp %46 : vector<64x64xf32>
    %cst_19 = arith.constant dense<0.000000e+00> : vector<64xf32>
    %48 = vector.multi_reduction <add>, %47, %cst_19 [1] : vector<64x64xf32> to vector<64xf32>
    %49 = vector.shape_cast %48 : vector<64xf32> to vector<64x1xf32>
    %50 = tpu.reciprocal %49 {approx = true} : vector<64x1xf32> -> vector<64x1xf32>
    %51 = vector.broadcast %50 : vector<64x1xf32> to vector<64x64xf32>
    %52 = arith.mulf %47, %51 : vector<64x64xf32>
    %53 = arith.truncf %52 : vector<64x64xf32> to vector<64x64xbf16>
    %cst_20 = arith.constant dense<0.000000e+00> : vector<64x32xf32>
    %54 = tpu.matmul %53, %41, %cst_20 {dimension_numbers = #tpu.dot_dimension_numbers<[1], [0], [0], [1], [0, 0, 1, 1], [], []>} : vector<64x64xbf16>, vector<64x32xbf16>, vector<64x32xf32> -> vector<64x32xf32>
    %55 = arith.truncf %54 : vector<64x32xf32> to vector<64x32xbf16>
    %56 = vector.extract_strided_slice %8 {offsets = [32, 0], sizes = [32, 128], strides = [1, 1]} : vector<128x128xbf16> to vector<32x128xbf16>
    %cst_21 = arith.constant dense<0.000000e+00> : vector<64x128xf32>
    %57 = tpu.matmul %55, %56, %cst_21 {dimension_numbers = #tpu.dot_dimension_numbers<[1], [0], [0], [1], [0, 0, 1, 1], [], []>} : vector<64x32xbf16>, vector<32x128xbf16>, vector<64x128xf32> -> vector<64x128xf32>
    %58 = arith.addf %38, %57 : vector<64x128xf32>
    %59 = vector.extract_strided_slice %15 {offsets = [0, 64], sizes = [64, 32], strides = [1, 1]} : vector<128x128xbf16> to vector<64x32xbf16>
    %60 = vector.extract_strided_slice %17 {offsets = [0, 64], sizes = [64, 32], strides = [1, 1]} : vector<128x128xbf16> to vector<64x32xbf16>
    %61 = vector.extract_strided_slice %19 {offsets = [0, 64], sizes = [64, 32], strides = [1, 1]} : vector<128x128xbf16> to vector<64x32xbf16>
    %cst_22 = arith.constant dense<0.000000e+00> : vector<64x64xf32>
    %62 = tpu.matmul %59, %60, %cst_22 {dimension_numbers = #tpu.dot_dimension_numbers<[1], [1], [0], [0], [0, 0, 1, 0], [], []>} : vector<64x32xbf16>, vector<64x32xbf16>, vector<64x64xf32> -> vector<64x64xf32>
    %cst_23 = arith.constant dense<0xFF800000> : vector<64xf32>
    %63 = vector.multi_reduction <maximumf>, %62, %cst_23 [1] : vector<64x64xf32> to vector<64xf32>
    %64 = vector.shape_cast %63 : vector<64xf32> to vector<64x1xf32>
    %65 = vector.broadcast %64 : vector<64x1xf32> to vector<64x64xf32>
    %66 = arith.subf %62, %65 : vector<64x64xf32>
    %67 = math.exp %66 : vector<64x64xf32>
    %cst_24 = arith.constant dense<0.000000e+00> : vector<64xf32>
    %68 = vector.multi_reduction <add>, %67, %cst_24 [1] : vector<64x64xf32> to vector<64xf32>
    %69 = vector.shape_cast %68 : vector<64xf32> to vector<64x1xf32>
    %70 = tpu.reciprocal %69 {approx = true} : vector<64x1xf32> -> vector<64x1xf32>
    %71 = vector.broadcast %70 : vector<64x1xf32> to vector<64x64xf32>
    %72 = arith.mulf %67, %71 : vector<64x64xf32>
    %73 = arith.truncf %72 : vector<64x64xf32> to vector<64x64xbf16>
    %cst_25 = arith.constant dense<0.000000e+00> : vector<64x32xf32>
    %74 = tpu.matmul %73, %61, %cst_25 {dimension_numbers = #tpu.dot_dimension_numbers<[1], [0], [0], [1], [0, 0, 1, 1], [], []>} : vector<64x64xbf16>, vector<64x32xbf16>, vector<64x32xf32> -> vector<64x32xf32>
    %75 = arith.truncf %74 : vector<64x32xf32> to vector<64x32xbf16>
    %76 = vector.extract_strided_slice %8 {offsets = [64, 0], sizes = [32, 128], strides = [1, 1]} : vector<128x128xbf16> to vector<32x128xbf16>
    %cst_26 = arith.constant dense<0.000000e+00> : vector<64x128xf32>
    %77 = tpu.matmul %75, %76, %cst_26 {dimension_numbers = #tpu.dot_dimension_numbers<[1], [0], [0], [1], [0, 0, 1, 1], [], []>} : vector<64x32xbf16>, vector<32x128xbf16>, vector<64x128xf32> -> vector<64x128xf32>
    %78 = arith.addf %58, %77 : vector<64x128xf32>
    %79 = vector.extract_strided_slice %15 {offsets = [0, 96], sizes = [64, 32], strides = [1, 1]} : vector<128x128xbf16> to vector<64x32xbf16>
    %80 = vector.extract_strided_slice %17 {offsets = [0, 96], sizes = [64, 32], strides = [1, 1]} : vector<128x128xbf16> to vector<64x32xbf16>
    %81 = vector.extract_strided_slice %19 {offsets = [0, 96], sizes = [64, 32], strides = [1, 1]} : vector<128x128xbf16> to vector<64x32xbf16>
    %cst_27 = arith.constant dense<0.000000e+00> : vector<64x64xf32>
    %82 = tpu.matmul %79, %80, %cst_27 {dimension_numbers = #tpu.dot_dimension_numbers<[1], [1], [0], [0], [0, 0, 1, 0], [], []>} : vector<64x32xbf16>, vector<64x32xbf16>, vector<64x64xf32> -> vector<64x64xf32>
    %cst_28 = arith.constant dense<0xFF800000> : vector<64xf32>
    %83 = vector.multi_reduction <maximumf>, %82, %cst_28 [1] : vector<64x64xf32> to vector<64xf32>
    %84 = vector.shape_cast %83 : vector<64xf32> to vector<64x1xf32>
    %85 = vector.broadcast %84 : vector<64x1xf32> to vector<64x64xf32>
    %86 = arith.subf %82, %85 : vector<64x64xf32>
    %87 = math.exp %86 : vector<64x64xf32>
    %cst_29 = arith.constant dense<0.000000e+00> : vector<64xf32>
    %88 = vector.multi_reduction <add>, %87, %cst_29 [1] : vector<64x64xf32> to vector<64xf32>
    %89 = vector.shape_cast %88 : vector<64xf32> to vector<64x1xf32>
    %90 = tpu.reciprocal %89 {approx = true} : vector<64x1xf32> -> vector<64x1xf32>
    %91 = vector.broadcast %90 : vector<64x1xf32> to vector<64x64xf32>
    %92 = arith.mulf %87, %91 : vector<64x64xf32>
    %93 = arith.truncf %92 : vector<64x64xf32> to vector<64x64xbf16>
    %cst_30 = arith.constant dense<0.000000e+00> : vector<64x32xf32>
    %94 = tpu.matmul %93, %81, %cst_30 {dimension_numbers = #tpu.dot_dimension_numbers<[1], [0], [0], [1], [0, 0, 1, 1], [], []>} : vector<64x64xbf16>, vector<64x32xbf16>, vector<64x32xf32> -> vector<64x32xf32>
    %95 = arith.truncf %94 : vector<64x32xf32> to vector<64x32xbf16>
    %96 = vector.extract_strided_slice %8 {offsets = [96, 0], sizes = [32, 128], strides = [1, 1]} : vector<128x128xbf16> to vector<32x128xbf16>
    %cst_31 = arith.constant dense<0.000000e+00> : vector<64x128xf32>
    %97 = tpu.matmul %95, %96, %cst_31 {dimension_numbers = #tpu.dot_dimension_numbers<[1], [0], [0], [1], [0, 0, 1, 1], [], []>} : vector<64x32xbf16>, vector<32x128xbf16>, vector<64x128xf32> -> vector<64x128xf32>
    %98 = arith.addf %78, %97 : vector<64x128xf32>
    %99 = vector.extract_strided_slice %15 {offsets = [64, 0], sizes = [64, 32], strides = [1, 1]} : vector<128x128xbf16> to vector<64x32xbf16>
    %100 = vector.extract_strided_slice %17 {offsets = [64, 0], sizes = [64, 32], strides = [1, 1]} : vector<128x128xbf16> to vector<64x32xbf16>
    %101 = vector.extract_strided_slice %19 {offsets = [64, 0], sizes = [64, 32], strides = [1, 1]} : vector<128x128xbf16> to vector<64x32xbf16>
    %cst_32 = arith.constant dense<0.000000e+00> : vector<64x64xf32>
    %102 = tpu.matmul %99, %100, %cst_32 {dimension_numbers = #tpu.dot_dimension_numbers<[1], [1], [0], [0], [0, 0, 1, 0], [], []>} : vector<64x32xbf16>, vector<64x32xbf16>, vector<64x64xf32> -> vector<64x64xf32>
    %cst_33 = arith.constant dense<0xFF800000> : vector<64xf32>
    %103 = vector.multi_reduction <maximumf>, %102, %cst_33 [1] : vector<64x64xf32> to vector<64xf32>
    %104 = vector.shape_cast %103 : vector<64xf32> to vector<64x1xf32>
    %105 = vector.broadcast %104 : vector<64x1xf32> to vector<64x64xf32>
    %106 = arith.subf %102, %105 : vector<64x64xf32>
    %107 = math.exp %106 : vector<64x64xf32>
    %cst_34 = arith.constant dense<0.000000e+00> : vector<64xf32>
    %108 = vector.multi_reduction <add>, %107, %cst_34 [1] : vector<64x64xf32> to vector<64xf32>
    %109 = vector.shape_cast %108 : vector<64xf32> to vector<64x1xf32>
    %110 = tpu.reciprocal %109 {approx = true} : vector<64x1xf32> -> vector<64x1xf32>
    %111 = vector.broadcast %110 : vector<64x1xf32> to vector<64x64xf32>
    %112 = arith.mulf %107, %111 : vector<64x64xf32>
    %113 = arith.truncf %112 : vector<64x64xf32> to vector<64x64xbf16>
    %cst_35 = arith.constant dense<0.000000e+00> : vector<64x32xf32>
    %114 = tpu.matmul %113, %101, %cst_35 {dimension_numbers = #tpu.dot_dimension_numbers<[1], [0], [0], [1], [0, 0, 1, 1], [], []>} : vector<64x64xbf16>, vector<64x32xbf16>, vector<64x32xf32> -> vector<64x32xf32>
    %115 = arith.truncf %114 : vector<64x32xf32> to vector<64x32xbf16>
    %116 = vector.extract_strided_slice %8 {offsets = [0, 0], sizes = [32, 128], strides = [1, 1]} : vector<128x128xbf16> to vector<32x128xbf16>
    %cst_36 = arith.constant dense<0.000000e+00> : vector<64x128xf32>
    %117 = tpu.matmul %115, %116, %cst_36 {dimension_numbers = #tpu.dot_dimension_numbers<[1], [0], [0], [1], [0, 0, 1, 1], [], []>} : vector<64x32xbf16>, vector<32x128xbf16>, vector<64x128xf32> -> vector<64x128xf32>
    %118 = vector.extract_strided_slice %15 {offsets = [64, 32], sizes = [64, 32], strides = [1, 1]} : vector<128x128xbf16> to vector<64x32xbf16>
    %119 = vector.extract_strided_slice %17 {offsets = [64, 32], sizes = [64, 32], strides = [1, 1]} : vector<128x128xbf16> to vector<64x32xbf16>
    %120 = vector.extract_strided_slice %19 {offsets = [64, 32], sizes = [64, 32], strides = [1, 1]} : vector<128x128xbf16> to vector<64x32xbf16>
    %cst_37 = arith.constant dense<0.000000e+00> : vector<64x64xf32>
    %121 = tpu.matmul %118, %119, %cst_37 {dimension_numbers = #tpu.dot_dimension_numbers<[1], [1], [0], [0], [0, 0, 1, 0], [], []>} : vector<64x32xbf16>, vector<64x32xbf16>, vector<64x64xf32> -> vector<64x64xf32>
    %cst_38 = arith.constant dense<0xFF800000> : vector<64xf32>
    %122 = vector.multi_reduction <maximumf>, %121, %cst_38 [1] : vector<64x64xf32> to vector<64xf32>
    %123 = vector.shape_cast %122 : vector<64xf32> to vector<64x1xf32>
    %124 = vector.broadcast %123 : vector<64x1xf32> to vector<64x64xf32>
    %125 = arith.subf %121, %124 : vector<64x64xf32>
    %126 = math.exp %125 : vector<64x64xf32>
    %cst_39 = arith.constant dense<0.000000e+00> : vector<64xf32>
    %127 = vector.multi_reduction <add>, %126, %cst_39 [1] : vector<64x64xf32> to vector<64xf32>
    %128 = vector.shape_cast %127 : vector<64xf32> to vector<64x1xf32>
    %129 = tpu.reciprocal %128 {approx = true} : vector<64x1xf32> -> vector<64x1xf32>
    %130 = vector.broadcast %129 : vector<64x1xf32> to vector<64x64xf32>
    %131 = arith.mulf %126, %130 : vector<64x64xf32>
    %132 = arith.truncf %131 : vector<64x64xf32> to vector<64x64xbf16>
    %cst_40 = arith.constant dense<0.000000e+00> : vector<64x32xf32>
    %133 = tpu.matmul %132, %120, %cst_40 {dimension_numbers = #tpu.dot_dimension_numbers<[1], [0], [0], [1], [0, 0, 1, 1], [], []>} : vector<64x64xbf16>, vector<64x32xbf16>, vector<64x32xf32> -> vector<64x32xf32>
    %134 = arith.truncf %133 : vector<64x32xf32> to vector<64x32xbf16>
    %135 = vector.extract_strided_slice %8 {offsets = [32, 0], sizes = [32, 128], strides = [1, 1]} : vector<128x128xbf16> to vector<32x128xbf16>
    %cst_41 = arith.constant dense<0.000000e+00> : vector<64x128xf32>
    %136 = tpu.matmul %134, %135, %cst_41 {dimension_numbers = #tpu.dot_dimension_numbers<[1], [0], [0], [1], [0, 0, 1, 1], [], []>} : vector<64x32xbf16>, vector<32x128xbf16>, vector<64x128xf32> -> vector<64x128xf32>
    %137 = arith.addf %117, %136 : vector<64x128xf32>
    %138 = vector.extract_strided_slice %15 {offsets = [64, 64], sizes = [64, 32], strides = [1, 1]} : vector<128x128xbf16> to vector<64x32xbf16>
    %139 = vector.extract_strided_slice %17 {offsets = [64, 64], sizes = [64, 32], strides = [1, 1]} : vector<128x128xbf16> to vector<64x32xbf16>
    %140 = vector.extract_strided_slice %19 {offsets = [64, 64], sizes = [64, 32], strides = [1, 1]} : vector<128x128xbf16> to vector<64x32xbf16>
    %cst_42 = arith.constant dense<0.000000e+00> : vector<64x64xf32>
    %141 = tpu.matmul %138, %139, %cst_42 {dimension_numbers = #tpu.dot_dimension_numbers<[1], [1], [0], [0], [0, 0, 1, 0], [], []>} : vector<64x32xbf16>, vector<64x32xbf16>, vector<64x64xf32> -> vector<64x64xf32>
    %cst_43 = arith.constant dense<0xFF800000> : vector<64xf32>
    %142 = vector.multi_reduction <maximumf>, %141, %cst_43 [1] : vector<64x64xf32> to vector<64xf32>
    %143 = vector.shape_cast %142 : vector<64xf32> to vector<64x1xf32>
    %144 = vector.broadcast %143 : vector<64x1xf32> to vector<64x64xf32>
    %145 = arith.subf %141, %144 : vector<64x64xf32>
    %146 = math.exp %145 : vector<64x64xf32>
    %cst_44 = arith.constant dense<0.000000e+00> : vector<64xf32>
    %147 = vector.multi_reduction <add>, %146, %cst_44 [1] : vector<64x64xf32> to vector<64xf32>
    %148 = vector.shape_cast %147 : vector<64xf32> to vector<64x1xf32>
    %149 = tpu.reciprocal %148 {approx = true} : vector<64x1xf32> -> vector<64x1xf32>
    %150 = vector.broadcast %149 : vector<64x1xf32> to vector<64x64xf32>
    %151 = arith.mulf %146, %150 : vector<64x64xf32>
    %152 = arith.truncf %151 : vector<64x64xf32> to vector<64x64xbf16>
    %cst_45 = arith.constant dense<0.000000e+00> : vector<64x32xf32>
    %153 = tpu.matmul %152, %140, %cst_45 {dimension_numbers = #tpu.dot_dimension_numbers<[1], [0], [0], [1], [0, 0, 1, 1], [], []>} : vector<64x64xbf16>, vector<64x32xbf16>, vector<64x32xf32> -> vector<64x32xf32>
    %154 = arith.truncf %153 : vector<64x32xf32> to vector<64x32xbf16>
    %155 = vector.extract_strided_slice %8 {offsets = [64, 0], sizes = [32, 128], strides = [1, 1]} : vector<128x128xbf16> to vector<32x128xbf16>
    %cst_46 = arith.constant dense<0.000000e+00> : vector<64x128xf32>
    %156 = tpu.matmul %154, %155, %cst_46 {dimension_numbers = #tpu.dot_dimension_numbers<[1], [0], [0], [1], [0, 0, 1, 1], [], []>} : vector<64x32xbf16>, vector<32x128xbf16>, vector<64x128xf32> -> vector<64x128xf32>
    %157 = arith.addf %137, %156 : vector<64x128xf32>
    %158 = vector.extract_strided_slice %15 {offsets = [64, 96], sizes = [64, 32], strides = [1, 1]} : vector<128x128xbf16> to vector<64x32xbf16>
    %159 = vector.extract_strided_slice %17 {offsets = [64, 96], sizes = [64, 32], strides = [1, 1]} : vector<128x128xbf16> to vector<64x32xbf16>
    %160 = vector.extract_strided_slice %19 {offsets = [64, 96], sizes = [64, 32], strides = [1, 1]} : vector<128x128xbf16> to vector<64x32xbf16>
    %cst_47 = arith.constant dense<0.000000e+00> : vector<64x64xf32>
    %161 = tpu.matmul %158, %159, %cst_47 {dimension_numbers = #tpu.dot_dimension_numbers<[1], [1], [0], [0], [0, 0, 1, 0], [], []>} : vector<64x32xbf16>, vector<64x32xbf16>, vector<64x64xf32> -> vector<64x64xf32>
    %cst_48 = arith.constant dense<0xFF800000> : vector<64xf32>
    %162 = vector.multi_reduction <maximumf>, %161, %cst_48 [1] : vector<64x64xf32> to vector<64xf32>
    %163 = vector.shape_cast %162 : vector<64xf32> to vector<64x1xf32>
    %164 = vector.broadcast %163 : vector<64x1xf32> to vector<64x64xf32>
    %165 = arith.subf %161, %164 : vector<64x64xf32>
    %166 = math.exp %165 : vector<64x64xf32>
    %cst_49 = arith.constant dense<0.000000e+00> : vector<64xf32>
    %167 = vector.multi_reduction <add>, %166, %cst_49 [1] : vector<64x64xf32> to vector<64xf32>
    %168 = vector.shape_cast %167 : vector<64xf32> to vector<64x1xf32>
    %169 = tpu.reciprocal %168 {approx = true} : vector<64x1xf32> -> vector<64x1xf32>
    %170 = vector.broadcast %169 : vector<64x1xf32> to vector<64x64xf32>
    %171 = arith.mulf %166, %170 : vector<64x64xf32>
    %172 = arith.truncf %171 : vector<64x64xf32> to vector<64x64xbf16>
    %cst_50 = arith.constant dense<0.000000e+00> : vector<64x32xf32>
    %173 = tpu.matmul %172, %160, %cst_50 {dimension_numbers = #tpu.dot_dimension_numbers<[1], [0], [0], [1], [0, 0, 1, 1], [], []>} : vector<64x64xbf16>, vector<64x32xbf16>, vector<64x32xf32> -> vector<64x32xf32>
    %174 = arith.truncf %173 : vector<64x32xf32> to vector<64x32xbf16>
    %175 = vector.extract_strided_slice %8 {offsets = [96, 0], sizes = [32, 128], strides = [1, 1]} : vector<128x128xbf16> to vector<32x128xbf16>
    %cst_51 = arith.constant dense<0.000000e+00> : vector<64x128xf32>
    %176 = tpu.matmul %174, %175, %cst_51 {dimension_numbers = #tpu.dot_dimension_numbers<[1], [0], [0], [1], [0, 0, 1, 1], [], []>} : vector<64x32xbf16>, vector<32x128xbf16>, vector<64x128xf32> -> vector<64x128xf32>
    %177 = arith.addf %157, %176 : vector<64x128xf32>
    %178 = tpu.concatenate %98, %177 in 0 : vector<64x128xf32>, vector<64x128xf32> -> vector<128x128xf32>
    %179 = vector.broadcast %9 : vector<1x128xf32> to vector<128x128xf32>
    %180 = arith.addf %178, %179 : vector<128x128xf32>
    %c0_52 = arith.constant 0 : index
    %c0_53 = arith.constant 0 : index
    %181 = vector.load %arg7[%c0_52, %c0_53] : memref<1x128xf32, #tpu.memory_space<vmem>>, vector<1x128xf32>
    %c0_54 = arith.constant 0 : index
    %c0_55 = arith.constant 0 : index
    %182 = vector.load %arg8[%c0_54, %c0_55] : memref<1x128xf32, #tpu.memory_space<vmem>>, vector<1x128xf32>
    %cst_56 = arith.constant dense<0.000000e+00> : vector<128xf32>
    %183 = vector.multi_reduction <add>, %180, %cst_56 [1] : vector<128x128xf32> to vector<128xf32>
    %184 = vector.shape_cast %183 : vector<128xf32> to vector<128x1xf32>
    %cst_57 = arith.constant 1.280000e+02 : f32
    %185 = vector.broadcast %cst_57 : f32 to vector<128x1xf32>
    %186 = arith.divf %184, %185 : vector<128x1xf32>
    %187 = vector.broadcast %186 : vector<128x1xf32> to vector<128x128xf32>
    %188 = arith.subf %180, %187 : vector<128x128xf32>
    %189 = arith.mulf %188, %188 : vector<128x128xf32>
    %cst_58 = arith.constant dense<0.000000e+00> : vector<128xf32>
    %190 = vector.multi_reduction <add>, %189, %cst_58 [1] : vector<128x128xf32> to vector<128xf32>
    %191 = vector.shape_cast %190 : vector<128xf32> to vector<128x1xf32>
    %cst_59 = arith.constant 1.280000e+02 : f32
    %192 = vector.broadcast %cst_59 : f32 to vector<128x1xf32>
    %193 = arith.divf %191, %192 : vector<128x1xf32>
    %194 = vector.broadcast %186 : vector<128x1xf32> to vector<128x128xf32>
    %195 = arith.subf %180, %194 : vector<128x128xf32>
    %cst_60 = arith.constant 9.99999974E-6 : f32
    %196 = vector.broadcast %cst_60 : f32 to vector<128x1xf32>
    %197 = arith.addf %193, %196 : vector<128x1xf32>
    %198 = math.rsqrt %197 : vector<128x1xf32>
    %199 = vector.broadcast %198 : vector<128x1xf32> to vector<128x128xf32>
    %200 = arith.mulf %195, %199 : vector<128x128xf32>
    %201 = vector.broadcast %181 : vector<1x128xf32> to vector<128x128xf32>
    %202 = arith.mulf %200, %201 : vector<128x128xf32>
    %203 = vector.broadcast %182 : vector<1x128xf32> to vector<128x128xf32>
    %204 = arith.addf %202, %203 : vector<128x128xf32>
    %c0_61 = arith.constant 0 : index
    %c0_62 = arith.constant 0 : index
    %205 = vector.load %arg9[%c0_61, %c0_62] : memref<128x384xbf16, #tpu.memory_space<vmem>>, vector<128x384xbf16>
    %c0_63 = arith.constant 0 : index
    %c0_64 = arith.constant 0 : index
    %206 = vector.load %arg10[%c0_63, %c0_64] : memref<1x384xf32, #tpu.memory_space<vmem>>, vector<1x384xf32>
    %c0_65 = arith.constant 0 : index
    %c0_66 = arith.constant 0 : index
    %207 = vector.load %arg11[%c0_65, %c0_66] : memref<128x128xbf16, #tpu.memory_space<vmem>>, vector<128x128xbf16>
    %c0_67 = arith.constant 0 : index
    %c0_68 = arith.constant 0 : index
    %208 = vector.load %arg12[%c0_67, %c0_68] : memref<1x128xf32, #tpu.memory_space<vmem>>, vector<1x128xf32>
    %209 = arith.truncf %204 : vector<128x128xf32> to vector<128x128xbf16>
    %cst_69 = arith.constant dense<0.000000e+00> : vector<128x384xf32>
    %210 = tpu.matmul %209, %205, %cst_69 {dimension_numbers = #tpu.dot_dimension_numbers<[1], [0], [0], [1], [0, 0, 1, 1], [], []>} : vector<128x128xbf16>, vector<128x384xbf16>, vector<128x384xf32> -> vector<128x384xf32>
    %211 = vector.broadcast %206 : vector<1x384xf32> to vector<128x384xf32>
    %212 = arith.addf %210, %211 : vector<128x384xf32>
    %213 = vector.extract_strided_slice %212 {offsets = [0, 0], sizes = [128, 128], strides = [1, 1]} : vector<128x384xf32> to vector<128x128xf32>
    %214 = arith.truncf %213 : vector<128x128xf32> to vector<128x128xbf16>
    %215 = vector.extract_strided_slice %212 {offsets = [0, 128], sizes = [128, 128], strides = [1, 1]} : vector<128x384xf32> to vector<128x128xf32>
    %216 = arith.truncf %215 : vector<128x128xf32> to vector<128x128xbf16>
    %217 = vector.extract_strided_slice %212 {offsets = [0, 256], sizes = [128, 128], strides = [1, 1]} : vector<128x384xf32> to vector<128x128xf32>
    %218 = arith.truncf %217 : vector<128x128xf32> to vector<128x128xbf16>
    %219 = vector.extract_strided_slice %214 {offsets = [0, 0], sizes = [64, 32], strides = [1, 1]} : vector<128x128xbf16> to vector<64x32xbf16>
    %220 = vector.extract_strided_slice %216 {offsets = [0, 0], sizes = [64, 32], strides = [1, 1]} : vector<128x128xbf16> to vector<64x32xbf16>
    %221 = vector.extract_strided_slice %218 {offsets = [0, 0], sizes = [64, 32], strides = [1, 1]} : vector<128x128xbf16> to vector<64x32xbf16>
    %cst_70 = arith.constant dense<0.000000e+00> : vector<64x64xf32>
    %222 = tpu.matmul %219, %220, %cst_70 {dimension_numbers = #tpu.dot_dimension_numbers<[1], [1], [0], [0], [0, 0, 1, 0], [], []>} : vector<64x32xbf16>, vector<64x32xbf16>, vector<64x64xf32> -> vector<64x64xf32>
    %cst_71 = arith.constant dense<0xFF800000> : vector<64xf32>
    %223 = vector.multi_reduction <maximumf>, %222, %cst_71 [1] : vector<64x64xf32> to vector<64xf32>
    %224 = vector.shape_cast %223 : vector<64xf32> to vector<64x1xf32>
    %225 = vector.broadcast %224 : vector<64x1xf32> to vector<64x64xf32>
    %226 = arith.subf %222, %225 : vector<64x64xf32>
    %227 = math.exp %226 : vector<64x64xf32>
    %cst_72 = arith.constant dense<0.000000e+00> : vector<64xf32>
    %228 = vector.multi_reduction <add>, %227, %cst_72 [1] : vector<64x64xf32> to vector<64xf32>
    %229 = vector.shape_cast %228 : vector<64xf32> to vector<64x1xf32>
    %230 = tpu.reciprocal %229 {approx = true} : vector<64x1xf32> -> vector<64x1xf32>
    %231 = vector.broadcast %230 : vector<64x1xf32> to vector<64x64xf32>
    %232 = arith.mulf %227, %231 : vector<64x64xf32>
    %233 = arith.truncf %232 : vector<64x64xf32> to vector<64x64xbf16>
    %cst_73 = arith.constant dense<0.000000e+00> : vector<64x32xf32>
    %234 = tpu.matmul %233, %221, %cst_73 {dimension_numbers = #tpu.dot_dimension_numbers<[1], [0], [0], [1], [0, 0, 1, 1], [], []>} : vector<64x64xbf16>, vector<64x32xbf16>, vector<64x32xf32> -> vector<64x32xf32>
    %235 = arith.truncf %234 : vector<64x32xf32> to vector<64x32xbf16>
    %236 = vector.extract_strided_slice %207 {offsets = [0, 0], sizes = [32, 128], strides = [1, 1]} : vector<128x128xbf16> to vector<32x128xbf16>
    %cst_74 = arith.constant dense<0.000000e+00> : vector<64x128xf32>
    %237 = tpu.matmul %235, %236, %cst_74 {dimension_numbers = #tpu.dot_dimension_numbers<[1], [0], [0], [1], [0, 0, 1, 1], [], []>} : vector<64x32xbf16>, vector<32x128xbf16>, vector<64x128xf32> -> vector<64x128xf32>
    %238 = vector.extract_strided_slice %214 {offsets = [0, 32], sizes = [64, 32], strides = [1, 1]} : vector<128x128xbf16> to vector<64x32xbf16>
    %239 = vector.extract_strided_slice %216 {offsets = [0, 32], sizes = [64, 32], strides = [1, 1]} : vector<128x128xbf16> to vector<64x32xbf16>
    %240 = vector.extract_strided_slice %218 {offsets = [0, 32], sizes = [64, 32], strides = [1, 1]} : vector<128x128xbf16> to vector<64x32xbf16>
    %cst_75 = arith.constant dense<0.000000e+00> : vector<64x64xf32>
    %241 = tpu.matmul %238, %239, %cst_75 {dimension_numbers = #tpu.dot_dimension_numbers<[1], [1], [0], [0], [0, 0, 1, 0], [], []>} : vector<64x32xbf16>, vector<64x32xbf16>, vector<64x64xf32> -> vector<64x64xf32>
    %cst_76 = arith.constant dense<0xFF800000> : vector<64xf32>
    %242 = vector.multi_reduction <maximumf>, %241, %cst_76 [1] : vector<64x64xf32> to vector<64xf32>
    %243 = vector.shape_cast %242 : vector<64xf32> to vector<64x1xf32>
    %244 = vector.broadcast %243 : vector<64x1xf32> to vector<64x64xf32>
    %245 = arith.subf %241, %244 : vector<64x64xf32>
    %246 = math.exp %245 : vector<64x64xf32>
    %cst_77 = arith.constant dense<0.000000e+00> : vector<64xf32>
    %247 = vector.multi_reduction <add>, %246, %cst_77 [1] : vector<64x64xf32> to vector<64xf32>
    %248 = vector.shape_cast %247 : vector<64xf32> to vector<64x1xf32>
    %249 = tpu.reciprocal %248 {approx = true} : vector<64x1xf32> -> vector<64x1xf32>
    %250 = vector.broadcast %249 : vector<64x1xf32> to vector<64x64xf32>
    %251 = arith.mulf %246, %250 : vector<64x64xf32>
    %252 = arith.truncf %251 : vector<64x64xf32> to vector<64x64xbf16>
    %cst_78 = arith.constant dense<0.000000e+00> : vector<64x32xf32>
    %253 = tpu.matmul %252, %240, %cst_78 {dimension_numbers = #tpu.dot_dimension_numbers<[1], [0], [0], [1], [0, 0, 1, 1], [], []>} : vector<64x64xbf16>, vector<64x32xbf16>, vector<64x32xf32> -> vector<64x32xf32>
    %254 = arith.truncf %253 : vector<64x32xf32> to vector<64x32xbf16>
    %255 = vector.extract_strided_slice %207 {offsets = [32, 0], sizes = [32, 128], strides = [1, 1]} : vector<128x128xbf16> to vector<32x128xbf16>
    %cst_79 = arith.constant dense<0.000000e+00> : vector<64x128xf32>
    %256 = tpu.matmul %254, %255, %cst_79 {dimension_numbers = #tpu.dot_dimension_numbers<[1], [0], [0], [1], [0, 0, 1, 1], [], []>} : vector<64x32xbf16>, vector<32x128xbf16>, vector<64x128xf32> -> vector<64x128xf32>
    %257 = arith.addf %237, %256 : vector<64x128xf32>
    %258 = vector.extract_strided_slice %214 {offsets = [0, 64], sizes = [64, 32], strides = [1, 1]} : vector<128x128xbf16> to vector<64x32xbf16>
    %259 = vector.extract_strided_slice %216 {offsets = [0, 64], sizes = [64, 32], strides = [1, 1]} : vector<128x128xbf16> to vector<64x32xbf16>
    %260 = vector.extract_strided_slice %218 {offsets = [0, 64], sizes = [64, 32], strides = [1, 1]} : vector<128x128xbf16> to vector<64x32xbf16>
    %cst_80 = arith.constant dense<0.000000e+00> : vector<64x64xf32>
    %261 = tpu.matmul %258, %259, %cst_80 {dimension_numbers = #tpu.dot_dimension_numbers<[1], [1], [0], [0], [0, 0, 1, 0], [], []>} : vector<64x32xbf16>, vector<64x32xbf16>, vector<64x64xf32> -> vector<64x64xf32>
    %cst_81 = arith.constant dense<0xFF800000> : vector<64xf32>
    %262 = vector.multi_reduction <maximumf>, %261, %cst_81 [1] : vector<64x64xf32> to vector<64xf32>
    %263 = vector.shape_cast %262 : vector<64xf32> to vector<64x1xf32>
    %264 = vector.broadcast %263 : vector<64x1xf32> to vector<64x64xf32>
    %265 = arith.subf %261, %264 : vector<64x64xf32>
    %266 = math.exp %265 : vector<64x64xf32>
    %cst_82 = arith.constant dense<0.000000e+00> : vector<64xf32>
    %267 = vector.multi_reduction <add>, %266, %cst_82 [1] : vector<64x64xf32> to vector<64xf32>
    %268 = vector.shape_cast %267 : vector<64xf32> to vector<64x1xf32>
    %269 = tpu.reciprocal %268 {approx = true} : vector<64x1xf32> -> vector<64x1xf32>
    %270 = vector.broadcast %269 : vector<64x1xf32> to vector<64x64xf32>
    %271 = arith.mulf %266, %270 : vector<64x64xf32>
    %272 = arith.truncf %271 : vector<64x64xf32> to vector<64x64xbf16>
    %cst_83 = arith.constant dense<0.000000e+00> : vector<64x32xf32>
    %273 = tpu.matmul %272, %260, %cst_83 {dimension_numbers = #tpu.dot_dimension_numbers<[1], [0], [0], [1], [0, 0, 1, 1], [], []>} : vector<64x64xbf16>, vector<64x32xbf16>, vector<64x32xf32> -> vector<64x32xf32>
    %274 = arith.truncf %273 : vector<64x32xf32> to vector<64x32xbf16>
    %275 = vector.extract_strided_slice %207 {offsets = [64, 0], sizes = [32, 128], strides = [1, 1]} : vector<128x128xbf16> to vector<32x128xbf16>
    %cst_84 = arith.constant dense<0.000000e+00> : vector<64x128xf32>
    %276 = tpu.matmul %274, %275, %cst_84 {dimension_numbers = #tpu.dot_dimension_numbers<[1], [0], [0], [1], [0, 0, 1, 1], [], []>} : vector<64x32xbf16>, vector<32x128xbf16>, vector<64x128xf32> -> vector<64x128xf32>
    %277 = arith.addf %257, %276 : vector<64x128xf32>
    %278 = vector.extract_strided_slice %214 {offsets = [0, 96], sizes = [64, 32], strides = [1, 1]} : vector<128x128xbf16> to vector<64x32xbf16>
    %279 = vector.extract_strided_slice %216 {offsets = [0, 96], sizes = [64, 32], strides = [1, 1]} : vector<128x128xbf16> to vector<64x32xbf16>
    %280 = vector.extract_strided_slice %218 {offsets = [0, 96], sizes = [64, 32], strides = [1, 1]} : vector<128x128xbf16> to vector<64x32xbf16>
    %cst_85 = arith.constant dense<0.000000e+00> : vector<64x64xf32>
    %281 = tpu.matmul %278, %279, %cst_85 {dimension_numbers = #tpu.dot_dimension_numbers<[1], [1], [0], [0], [0, 0, 1, 0], [], []>} : vector<64x32xbf16>, vector<64x32xbf16>, vector<64x64xf32> -> vector<64x64xf32>
    %cst_86 = arith.constant dense<0xFF800000> : vector<64xf32>
    %282 = vector.multi_reduction <maximumf>, %281, %cst_86 [1] : vector<64x64xf32> to vector<64xf32>
    %283 = vector.shape_cast %282 : vector<64xf32> to vector<64x1xf32>
    %284 = vector.broadcast %283 : vector<64x1xf32> to vector<64x64xf32>
    %285 = arith.subf %281, %284 : vector<64x64xf32>
    %286 = math.exp %285 : vector<64x64xf32>
    %cst_87 = arith.constant dense<0.000000e+00> : vector<64xf32>
    %287 = vector.multi_reduction <add>, %286, %cst_87 [1] : vector<64x64xf32> to vector<64xf32>
    %288 = vector.shape_cast %287 : vector<64xf32> to vector<64x1xf32>
    %289 = tpu.reciprocal %288 {approx = true} : vector<64x1xf32> -> vector<64x1xf32>
    %290 = vector.broadcast %289 : vector<64x1xf32> to vector<64x64xf32>
    %291 = arith.mulf %286, %290 : vector<64x64xf32>
    %292 = arith.truncf %291 : vector<64x64xf32> to vector<64x64xbf16>
    %cst_88 = arith.constant dense<0.000000e+00> : vector<64x32xf32>
    %293 = tpu.matmul %292, %280, %cst_88 {dimension_numbers = #tpu.dot_dimension_numbers<[1], [0], [0], [1], [0, 0, 1, 1], [], []>} : vector<64x64xbf16>, vector<64x32xbf16>, vector<64x32xf32> -> vector<64x32xf32>
    %294 = arith.truncf %293 : vector<64x32xf32> to vector<64x32xbf16>
    %295 = vector.extract_strided_slice %207 {offsets = [96, 0], sizes = [32, 128], strides = [1, 1]} : vector<128x128xbf16> to vector<32x128xbf16>
    %cst_89 = arith.constant dense<0.000000e+00> : vector<64x128xf32>
    %296 = tpu.matmul %294, %295, %cst_89 {dimension_numbers = #tpu.dot_dimension_numbers<[1], [0], [0], [1], [0, 0, 1, 1], [], []>} : vector<64x32xbf16>, vector<32x128xbf16>, vector<64x128xf32> -> vector<64x128xf32>
    %297 = arith.addf %277, %296 : vector<64x128xf32>
    %298 = vector.extract_strided_slice %214 {offsets = [64, 0], sizes = [64, 32], strides = [1, 1]} : vector<128x128xbf16> to vector<64x32xbf16>
    %299 = vector.extract_strided_slice %216 {offsets = [64, 0], sizes = [64, 32], strides = [1, 1]} : vector<128x128xbf16> to vector<64x32xbf16>
    %300 = vector.extract_strided_slice %218 {offsets = [64, 0], sizes = [64, 32], strides = [1, 1]} : vector<128x128xbf16> to vector<64x32xbf16>
    %cst_90 = arith.constant dense<0.000000e+00> : vector<64x64xf32>
    %301 = tpu.matmul %298, %299, %cst_90 {dimension_numbers = #tpu.dot_dimension_numbers<[1], [1], [0], [0], [0, 0, 1, 0], [], []>} : vector<64x32xbf16>, vector<64x32xbf16>, vector<64x64xf32> -> vector<64x64xf32>
    %cst_91 = arith.constant dense<0xFF800000> : vector<64xf32>
    %302 = vector.multi_reduction <maximumf>, %301, %cst_91 [1] : vector<64x64xf32> to vector<64xf32>
    %303 = vector.shape_cast %302 : vector<64xf32> to vector<64x1xf32>
    %304 = vector.broadcast %303 : vector<64x1xf32> to vector<64x64xf32>
    %305 = arith.subf %301, %304 : vector<64x64xf32>
    %306 = math.exp %305 : vector<64x64xf32>
    %cst_92 = arith.constant dense<0.000000e+00> : vector<64xf32>
    %307 = vector.multi_reduction <add>, %306, %cst_92 [1] : vector<64x64xf32> to vector<64xf32>
    %308 = vector.shape_cast %307 : vector<64xf32> to vector<64x1xf32>
    %309 = tpu.reciprocal %308 {approx = true} : vector<64x1xf32> -> vector<64x1xf32>
    %310 = vector.broadcast %309 : vector<64x1xf32> to vector<64x64xf32>
    %311 = arith.mulf %306, %310 : vector<64x64xf32>
    %312 = arith.truncf %311 : vector<64x64xf32> to vector<64x64xbf16>
    %cst_93 = arith.constant dense<0.000000e+00> : vector<64x32xf32>
    %313 = tpu.matmul %312, %300, %cst_93 {dimension_numbers = #tpu.dot_dimension_numbers<[1], [0], [0], [1], [0, 0, 1, 1], [], []>} : vector<64x64xbf16>, vector<64x32xbf16>, vector<64x32xf32> -> vector<64x32xf32>
    %314 = arith.truncf %313 : vector<64x32xf32> to vector<64x32xbf16>
    %315 = vector.extract_strided_slice %207 {offsets = [0, 0], sizes = [32, 128], strides = [1, 1]} : vector<128x128xbf16> to vector<32x128xbf16>
    %cst_94 = arith.constant dense<0.000000e+00> : vector<64x128xf32>
    %316 = tpu.matmul %314, %315, %cst_94 {dimension_numbers = #tpu.dot_dimension_numbers<[1], [0], [0], [1], [0, 0, 1, 1], [], []>} : vector<64x32xbf16>, vector<32x128xbf16>, vector<64x128xf32> -> vector<64x128xf32>
    %317 = vector.extract_strided_slice %214 {offsets = [64, 32], sizes = [64, 32], strides = [1, 1]} : vector<128x128xbf16> to vector<64x32xbf16>
    %318 = vector.extract_strided_slice %216 {offsets = [64, 32], sizes = [64, 32], strides = [1, 1]} : vector<128x128xbf16> to vector<64x32xbf16>
    %319 = vector.extract_strided_slice %218 {offsets = [64, 32], sizes = [64, 32], strides = [1, 1]} : vector<128x128xbf16> to vector<64x32xbf16>
    %cst_95 = arith.constant dense<0.000000e+00> : vector<64x64xf32>
    %320 = tpu.matmul %317, %318, %cst_95 {dimension_numbers = #tpu.dot_dimension_numbers<[1], [1], [0], [0], [0, 0, 1, 0], [], []>} : vector<64x32xbf16>, vector<64x32xbf16>, vector<64x64xf32> -> vector<64x64xf32>
    %cst_96 = arith.constant dense<0xFF800000> : vector<64xf32>
    %321 = vector.multi_reduction <maximumf>, %320, %cst_96 [1] : vector<64x64xf32> to vector<64xf32>
    %322 = vector.shape_cast %321 : vector<64xf32> to vector<64x1xf32>
    %323 = vector.broadcast %322 : vector<64x1xf32> to vector<64x64xf32>
    %324 = arith.subf %320, %323 : vector<64x64xf32>
    %325 = math.exp %324 : vector<64x64xf32>
    %cst_97 = arith.constant dense<0.000000e+00> : vector<64xf32>
    %326 = vector.multi_reduction <add>, %325, %cst_97 [1] : vector<64x64xf32> to vector<64xf32>
    %327 = vector.shape_cast %326 : vector<64xf32> to vector<64x1xf32>
    %328 = tpu.reciprocal %327 {approx = true} : vector<64x1xf32> -> vector<64x1xf32>
    %329 = vector.broadcast %328 : vector<64x1xf32> to vector<64x64xf32>
    %330 = arith.mulf %325, %329 : vector<64x64xf32>
    %331 = arith.truncf %330 : vector<64x64xf32> to vector<64x64xbf16>
    %cst_98 = arith.constant dense<0.000000e+00> : vector<64x32xf32>
    %332 = tpu.matmul %331, %319, %cst_98 {dimension_numbers = #tpu.dot_dimension_numbers<[1], [0], [0], [1], [0, 0, 1, 1], [], []>} : vector<64x64xbf16>, vector<64x32xbf16>, vector<64x32xf32> -> vector<64x32xf32>
    %333 = arith.truncf %332 : vector<64x32xf32> to vector<64x32xbf16>
    %334 = vector.extract_strided_slice %207 {offsets = [32, 0], sizes = [32, 128], strides = [1, 1]} : vector<128x128xbf16> to vector<32x128xbf16>
    %cst_99 = arith.constant dense<0.000000e+00> : vector<64x128xf32>
    %335 = tpu.matmul %333, %334, %cst_99 {dimension_numbers = #tpu.dot_dimension_numbers<[1], [0], [0], [1], [0, 0, 1, 1], [], []>} : vector<64x32xbf16>, vector<32x128xbf16>, vector<64x128xf32> -> vector<64x128xf32>
    %336 = arith.addf %316, %335 : vector<64x128xf32>
    %337 = vector.extract_strided_slice %214 {offsets = [64, 64], sizes = [64, 32], strides = [1, 1]} : vector<128x128xbf16> to vector<64x32xbf16>
    %338 = vector.extract_strided_slice %216 {offsets = [64, 64], sizes = [64, 32], strides = [1, 1]} : vector<128x128xbf16> to vector<64x32xbf16>
    %339 = vector.extract_strided_slice %218 {offsets = [64, 64], sizes = [64, 32], strides = [1, 1]} : vector<128x128xbf16> to vector<64x32xbf16>
    %cst_100 = arith.constant dense<0.000000e+00> : vector<64x64xf32>
    %340 = tpu.matmul %337, %338, %cst_100 {dimension_numbers = #tpu.dot_dimension_numbers<[1], [1], [0], [0], [0, 0, 1, 0], [], []>} : vector<64x32xbf16>, vector<64x32xbf16>, vector<64x64xf32> -> vector<64x64xf32>
    %cst_101 = arith.constant dense<0xFF800000> : vector<64xf32>
    %341 = vector.multi_reduction <maximumf>, %340, %cst_101 [1] : vector<64x64xf32> to vector<64xf32>
    %342 = vector.shape_cast %341 : vector<64xf32> to vector<64x1xf32>
    %343 = vector.broadcast %342 : vector<64x1xf32> to vector<64x64xf32>
    %344 = arith.subf %340, %343 : vector<64x64xf32>
    %345 = math.exp %344 : vector<64x64xf32>
    %cst_102 = arith.constant dense<0.000000e+00> : vector<64xf32>
    %346 = vector.multi_reduction <add>, %345, %cst_102 [1] : vector<64x64xf32> to vector<64xf32>
    %347 = vector.shape_cast %346 : vector<64xf32> to vector<64x1xf32>
    %348 = tpu.reciprocal %347 {approx = true} : vector<64x1xf32> -> vector<64x1xf32>
    %349 = vector.broadcast %348 : vector<64x1xf32> to vector<64x64xf32>
    %350 = arith.mulf %345, %349 : vector<64x64xf32>
    %351 = arith.truncf %350 : vector<64x64xf32> to vector<64x64xbf16>
    %cst_103 = arith.constant dense<0.000000e+00> : vector<64x32xf32>
    %352 = tpu.matmul %351, %339, %cst_103 {dimension_numbers = #tpu.dot_dimension_numbers<[1], [0], [0], [1], [0, 0, 1, 1], [], []>} : vector<64x64xbf16>, vector<64x32xbf16>, vector<64x32xf32> -> vector<64x32xf32>
    %353 = arith.truncf %352 : vector<64x32xf32> to vector<64x32xbf16>
    %354 = vector.extract_strided_slice %207 {offsets = [64, 0], sizes = [32, 128], strides = [1, 1]} : vector<128x128xbf16> to vector<32x128xbf16>
    %cst_104 = arith.constant dense<0.000000e+00> : vector<64x128xf32>
    %355 = tpu.matmul %353, %354, %cst_104 {dimension_numbers = #tpu.dot_dimension_numbers<[1], [0], [0], [1], [0, 0, 1, 1], [], []>} : vector<64x32xbf16>, vector<32x128xbf16>, vector<64x128xf32> -> vector<64x128xf32>
    %356 = arith.addf %336, %355 : vector<64x128xf32>
    %357 = vector.extract_strided_slice %214 {offsets = [64, 96], sizes = [64, 32], strides = [1, 1]} : vector<128x128xbf16> to vector<64x32xbf16>
    %358 = vector.extract_strided_slice %216 {offsets = [64, 96], sizes = [64, 32], strides = [1, 1]} : vector<128x128xbf16> to vector<64x32xbf16>
    %359 = vector.extract_strided_slice %218 {offsets = [64, 96], sizes = [64, 32], strides = [1, 1]} : vector<128x128xbf16> to vector<64x32xbf16>
    %cst_105 = arith.constant dense<0.000000e+00> : vector<64x64xf32>
    %360 = tpu.matmul %357, %358, %cst_105 {dimension_numbers = #tpu.dot_dimension_numbers<[1], [1], [0], [0], [0, 0, 1, 0], [], []>} : vector<64x32xbf16>, vector<64x32xbf16>, vector<64x64xf32> -> vector<64x64xf32>
    %cst_106 = arith.constant dense<0xFF800000> : vector<64xf32>
    %361 = vector.multi_reduction <maximumf>, %360, %cst_106 [1] : vector<64x64xf32> to vector<64xf32>
    %362 = vector.shape_cast %361 : vector<64xf32> to vector<64x1xf32>
    %363 = vector.broadcast %362 : vector<64x1xf32> to vector<64x64xf32>
    %364 = arith.subf %360, %363 : vector<64x64xf32>
    %365 = math.exp %364 : vector<64x64xf32>
    %cst_107 = arith.constant dense<0.000000e+00> : vector<64xf32>
    %366 = vector.multi_reduction <add>, %365, %cst_107 [1] : vector<64x64xf32> to vector<64xf32>
    %367 = vector.shape_cast %366 : vector<64xf32> to vector<64x1xf32>
    %368 = tpu.reciprocal %367 {approx = true} : vector<64x1xf32> -> vector<64x1xf32>
    %369 = vector.broadcast %368 : vector<64x1xf32> to vector<64x64xf32>
    %370 = arith.mulf %365, %369 : vector<64x64xf32>
    %371 = arith.truncf %370 : vector<64x64xf32> to vector<64x64xbf16>
    %cst_108 = arith.constant dense<0.000000e+00> : vector<64x32xf32>
    %372 = tpu.matmul %371, %359, %cst_108 {dimension_numbers = #tpu.dot_dimension_numbers<[1], [0], [0], [1], [0, 0, 1, 1], [], []>} : vector<64x64xbf16>, vector<64x32xbf16>, vector<64x32xf32> -> vector<64x32xf32>
    %373 = arith.truncf %372 : vector<64x32xf32> to vector<64x32xbf16>
    %374 = vector.extract_strided_slice %207 {offsets = [96, 0], sizes = [32, 128], strides = [1, 1]} : vector<128x128xbf16> to vector<32x128xbf16>
    %cst_109 = arith.constant dense<0.000000e+00> : vector<64x128xf32>
    %375 = tpu.matmul %373, %374, %cst_109 {dimension_numbers = #tpu.dot_dimension_numbers<[1], [0], [0], [1], [0, 0, 1, 1], [], []>} : vector<64x32xbf16>, vector<32x128xbf16>, vector<64x128xf32> -> vector<64x128xf32>
    %376 = arith.addf %356, %375 : vector<64x128xf32>
    %377 = tpu.concatenate %297, %376 in 0 : vector<64x128xf32>, vector<64x128xf32> -> vector<128x128xf32>
    %378 = vector.broadcast %208 : vector<1x128xf32> to vector<128x128xf32>
    %379 = arith.addf %377, %378 : vector<128x128xf32>
    %c0_110 = arith.constant 0 : index
    %c0_111 = arith.constant 0 : index
    %380 = vector.load %arg13[%c0_110, %c0_111] : memref<1x128xf32, #tpu.memory_space<vmem>>, vector<1x128xf32>
    %c0_112 = arith.constant 0 : index
    %c0_113 = arith.constant 0 : index
    %381 = vector.load %arg14[%c0_112, %c0_113] : memref<1x128xf32, #tpu.memory_space<vmem>>, vector<1x128xf32>
    %cst_114 = arith.constant dense<0.000000e+00> : vector<128xf32>
    %382 = vector.multi_reduction <add>, %379, %cst_114 [1] : vector<128x128xf32> to vector<128xf32>
    %383 = vector.shape_cast %382 : vector<128xf32> to vector<128x1xf32>
    %cst_115 = arith.constant 1.280000e+02 : f32
    %384 = vector.broadcast %cst_115 : f32 to vector<128x1xf32>
    %385 = arith.divf %383, %384 : vector<128x1xf32>
    %386 = vector.broadcast %385 : vector<128x1xf32> to vector<128x128xf32>
    %387 = arith.subf %379, %386 : vector<128x128xf32>
    %388 = arith.mulf %387, %387 : vector<128x128xf32>
    %cst_116 = arith.constant dense<0.000000e+00> : vector<128xf32>
    %389 = vector.multi_reduction <add>, %388, %cst_116 [1] : vector<128x128xf32> to vector<128xf32>
    %390 = vector.shape_cast %389 : vector<128xf32> to vector<128x1xf32>
    %cst_117 = arith.constant 1.280000e+02 : f32
    %391 = vector.broadcast %cst_117 : f32 to vector<128x1xf32>
    %392 = arith.divf %390, %391 : vector<128x1xf32>
    %393 = vector.broadcast %385 : vector<128x1xf32> to vector<128x128xf32>
    %394 = arith.subf %379, %393 : vector<128x128xf32>
    %cst_118 = arith.constant 9.99999974E-6 : f32
    %395 = vector.broadcast %cst_118 : f32 to vector<128x1xf32>
    %396 = arith.addf %392, %395 : vector<128x1xf32>
    %397 = math.rsqrt %396 : vector<128x1xf32>
    %398 = vector.broadcast %397 : vector<128x1xf32> to vector<128x128xf32>
    %399 = arith.mulf %394, %398 : vector<128x128xf32>
    %400 = vector.broadcast %380 : vector<1x128xf32> to vector<128x128xf32>
    %401 = arith.mulf %399, %400 : vector<128x128xf32>
    %402 = vector.broadcast %381 : vector<1x128xf32> to vector<128x128xf32>
    %403 = arith.addf %401, %402 : vector<128x128xf32>
    %404 = arith.truncf %403 : vector<128x128xf32> to vector<128x128xbf16>
    %c0_119 = arith.constant 0 : index
    %c0_120 = arith.constant 0 : index
    %405 = vector.load %arg15[%c0_119, %c0_120] : memref<128x256xbf16, #tpu.memory_space<vmem>>, vector<128x256xbf16>
    %cst_121 = arith.constant dense<0.000000e+00> : vector<128x256xf32>
    %406 = tpu.matmul %404, %405, %cst_121 {dimension_numbers = #tpu.dot_dimension_numbers<[1], [0], [0], [1], [0, 0, 1, 1], [], []>} : vector<128x128xbf16>, vector<128x256xbf16>, vector<128x256xf32> -> vector<128x256xf32>
    %c0_122 = arith.constant 0 : index
    %c0_123 = arith.constant 0 : index
    %407 = vector.load %arg16[%c0_122, %c0_123] : memref<1x256xf32, #tpu.memory_space<vmem>>, vector<1x256xf32>
    %408 = vector.broadcast %407 : vector<1x256xf32> to vector<128x256xf32>
    %409 = arith.addf %406, %408 : vector<128x256xf32>
    %cst_124 = arith.constant 0.000000e+00 : f32
    %410 = vector.broadcast %cst_124 : f32 to vector<128x256xf32>
    %411 = arith.maximumf %409, %410 : vector<128x256xf32>
    %412 = arith.truncf %411 : vector<128x256xf32> to vector<128x256xbf16>
    %c0_125 = arith.constant 0 : index
    %c0_126 = arith.constant 0 : index
    %413 = vector.load %arg17[%c0_125, %c0_126] : memref<256x128xbf16, #tpu.memory_space<vmem>>, vector<256x128xbf16>
    %cst_127 = arith.constant dense<0.000000e+00> : vector<128x128xf32>
    %414 = tpu.matmul %412, %413, %cst_127 {dimension_numbers = #tpu.dot_dimension_numbers<[1], [0], [0], [1], [0, 0, 1, 1], [], []>} : vector<128x256xbf16>, vector<256x128xbf16>, vector<128x128xf32> -> vector<128x128xf32>
    %c0_128 = arith.constant 0 : index
    %c0_129 = arith.constant 0 : index
    %415 = vector.load %arg18[%c0_128, %c0_129] : memref<1x128xf32, #tpu.memory_space<vmem>>, vector<1x128xf32>
    %416 = vector.broadcast %415 : vector<1x128xf32> to vector<128x128xf32>
    %417 = arith.addf %414, %416 : vector<128x128xf32>
    %418 = arith.addf %403, %417 : vector<128x128xf32>
    %419 = vector.shape_cast %418 : vector<128x128xf32> to vector<2x64x128xf32>
    %c0_130 = arith.constant 0 : index
    %c0_131 = arith.constant 0 : index
    %c0_132 = arith.constant 0 : index
    %420 = vector.load %arg19[%c0_130, %c0_131, %c0_132] : memref<2x64x128xf32, #tpu.memory_space<vmem>>, vector<2x64x128xf32>
    tpu.vector_store %arg19[%c0_130, %c0_131, %c0_132], %419 {strides = array<i32>} : memref<2x64x128xf32, #tpu.memory_space<vmem>>, vector<2x64x128xf32>,
    return
  }
  func.func @transform_0(%arg0: i32) -> (i32, i32, i32) {
    %c0_i32 = arith.constant 0 : i32
    %c0_i32_0 = arith.constant 0 : i32
    %c0_i32_1 = arith.constant 0 : i32
    %c0_i32_2 = arith.constant 0 : i32
    return %c0_i32, %c0_i32_0, %c0_i32_1 : i32, i32, i32
  }
  func.func @transform_1(%arg0: i32) -> (i32, i32) {
    %c0_i32 = arith.constant 0 : i32
    %c0_i32_0 = arith.constant 0 : i32
    %c0_i32_1 = arith.constant 0 : i32
    return %c0_i32, %c0_i32_0 : i32, i32
  }
  func.func @transform_2(%arg0: i32) -> (i32, i32) {
    %c0_i32 = arith.constant 0 : i32
    %c0_i32_0 = arith.constant 0 : i32
    %c0_i32_1 = arith.constant 0 : i32
    return %c0_i32, %c0_i32_0 : i32, i32
  }
  func.func @transform_3(%arg0: i32) -> (i32, i32) {
    %c0_i32 = arith.constant 0 : i32
    %c0_i32_0 = arith.constant 0 : i32
    %c0_i32_1 = arith.constant 0 : i32
    return %c0_i32, %c0_i32_0 : i32, i32
  }
  func.func @transform_4(%arg0: i32) -> (i32, i32) {
    %c0_i32 = arith.constant 0 : i32
    %c0_i32_0 = arith.constant 0 : i32
    %c0_i32_1 = arith.constant 0 : i32
    return %c0_i32, %c0_i32_0 : i32, i32
  }
  func.func @transform_5(%arg0: i32) -> (i32, i32) {
    %c0_i32 = arith.constant 0 : i32
    %c0_i32_0 = arith.constant 0 : i32
    %c0_i32_1 = arith.constant 0 : i32
    return %c0_i32, %c0_i32_0 : i32, i32
  }
  func.func @transform_6(%arg0: i32) -> (i32, i32) {
    %c0_i32 = arith.constant 0 : i32
    %c0_i32_0 = arith.constant 0 : i32
    %c0_i32_1 = arith.constant 0 : i32
    return %c0_i32, %c0_i32_0 : i32, i32
  }
  func.func @transform_7(%arg0: i32) -> (i32, i32) {
    %c0_i32 = arith.constant 0 : i32
    %c0_i32_0 = arith.constant 0 : i32
    %c0_i32_1 = arith.constant 0 : i32
    return %c0_i32, %c0_i32_0 : i32, i32
  }
  func.func @transform_8(%arg0: i32) -> (i32, i32) {
    %c0_i32 = arith.constant 0 : i32
    %c0_i32_0 = arith.constant 0 : i32
    %c0_i32_1 = arith.constant 0 : i32
    return %c0_i32, %c0_i32_0 : i32, i32
  }
  func.func @transform_9(%arg0: i32) -> (i32, i32) {
    %c0_i32 = arith.constant 0 : i32
    %c0_i32_0 = arith.constant 0 : i32
    %c0_i32_1 = arith.constant 0 : i32
    return %c0_i32, %c0_i32_0 : i32, i32
  }
  func.func @transform_10(%arg0: i32) -> (i32, i32) {
    %c0_i32 = arith.constant 0 : i32
    %c0_i32_0 = arith.constant 0 : i32
    %c0_i32_1 = arith.constant 0 : i32
    return %c0_i32, %c0_i32_0 : i32, i32
  }
  func.func @transform_11(%arg0: i32) -> (i32, i32) {
    %c0_i32 = arith.constant 0 : i32
    %c0_i32_0 = arith.constant 0 : i32
    %c0_i32_1 = arith.constant 0 : i32
    return %c0_i32, %c0_i32_0 : i32, i32
  }
  func.func @transform_12(%arg0: i32) -> (i32, i32) {
    %c0_i32 = arith.constant 0 : i32
    %c0_i32_0 = arith.constant 0 : i32
    %c0_i32_1 = arith.constant 0 : i32
    return %c0_i32, %c0_i32_0 : i32, i32
  }
  func.func @transform_13(%arg0: i32) -> (i32, i32) {
    %c0_i32 = arith.constant 0 : i32
    %c0_i32_0 = arith.constant 0 : i32
    %c0_i32_1 = arith.constant 0 : i32
    return %c0_i32, %c0_i32_0 : i32, i32
  }
  func.func @transform_14(%arg0: i32) -> (i32, i32) {
    %c0_i32 = arith.constant 0 : i32
    %c0_i32_0 = arith.constant 0 : i32
    %c0_i32_1 = arith.constant 0 : i32
    return %c0_i32, %c0_i32_0 : i32, i32
  }
  func.func @transform_15(%arg0: i32) -> (i32, i32) {
    %c0_i32 = arith.constant 0 : i32
    %c0_i32_0 = arith.constant 0 : i32
    %c0_i32_1 = arith.constant 0 : i32
    return %c0_i32, %c0_i32_0 : i32, i32
  }
  func.func @transform_16(%arg0: i32) -> (i32, i32) {
    %c0_i32 = arith.constant 0 : i32
    %c0_i32_0 = arith.constant 0 : i32
    %c0_i32_1 = arith.constant 0 : i32
    return %c0_i32, %c0_i32_0 : i32, i32
  }
  func.func @transform_17(%arg0: i32) -> (i32, i32) {
    %c0_i32 = arith.constant 0 : i32
    %c0_i32_0 = arith.constant 0 : i32
    %c0_i32_1 = arith.constant 0 : i32
    return %c0_i32, %c0_i32_0 : i32, i32
  }
  func.func @transform_18(%arg0: i32) -> (i32, i32, i32) {
    %c0_i32 = arith.constant 0 : i32
    %c0_i32_0 = arith.constant 0 : i32
    %c0_i32_1 = arith.constant 0 : i32
    %c0_i32_2 = arith.constant 0 : i32
    return %c0_i32, %c0_i32_0, %c0_i32_1 : i32, i32, i32
  }
}

</mosaic_0001>

<llo_original>
// kernel: tpu_custom_call.1
$region0: #{tpu_custom_call.1}
  #allocation0 [shape = 'u32[]', space=smem, size = 0x4, offset = 0x4, fixed_abs, tag = 'smem constant byte address 0x4 - core index']
  #allocation1 [shape = 'u32[144,128]{1,0:T(1,128)}', space=vmem, size = 0x12000, scoped, tag = 'internal scratch']
  %s0 = inlined_call_operand.hbm [shape: f32[2,64,128], index: 0, kind: input, shape index: {}]
  %s1 = inlined_call_operand.hbm [shape: f32[64,128], index: 1, kind: input, shape index: {}]
  %s2 = inlined_call_operand.hbm [shape: bf16[128,384], index: 2, kind: input, shape index: {}]
  %s3 = inlined_call_operand.vmem [shape: f32[1,384], index: 3, kind: input, shape index: {}]
  %s4 = inlined_call_operand.hbm [shape: bf16[128,128], index: 4, kind: input, shape index: {}]
  %s5 = inlined_call_operand.vmem [shape: f32[1,128], index: 5, kind: input, shape index: {}]
  %s6 = inlined_call_operand.vmem [shape: f32[1,128], index: 6, kind: input, shape index: {}]
  %s7 = inlined_call_operand.vmem [shape: f32[1,128], index: 7, kind: input, shape index: {}]
  %s8 = inlined_call_operand.hbm [shape: bf16[128,384], index: 8, kind: input, shape index: {}]
  %s9 = inlined_call_operand.vmem [shape: f32[1,384], index: 9, kind: input, shape index: {}]
  %s10 = inlined_call_operand.hbm [shape: bf16[128,128], index: 10, kind: input, shape index: {}]
  %s11 = inlined_call_operand.vmem [shape: f32[1,128], index: 11, kind: input, shape index: {}]
  %s12 = inlined_call_operand.vmem [shape: f32[1,128], index: 12, kind: input, shape index: {}]
  %s13 = inlined_call_operand.vmem [shape: f32[1,128], index: 13, kind: input, shape index: {}]
  %s14 = inlined_call_operand.hbm [shape: bf16[128,256], index: 14, kind: input, shape index: {}]
  %s15 = inlined_call_operand.vmem [shape: f32[1,256], index: 15, kind: input, shape index: {}]
  %s16 = inlined_call_operand.hbm [shape: bf16[256,128], index: 16, kind: input, shape index: {}]
  %s17 = inlined_call_operand.vmem [shape: f32[1,128], index: 17, kind: input, shape index: {}]
  %s18 = inlined_call_operand.hbm [shape: f32[2,64,128], index: 18, kind: output, shape index: {}]
  %s19 = sld [smem:[#allocation0]]
  $region114: #{tpu_custom_call.1} parent=0
    _
  %s21 = ssub.s32 1, %s19
  %s22 = scalar_select 0, %s21, %s19
  $region1: #{tpu_custom_call.1} parent=0
    #allocation2 [shape = 'u8[65536]{0}', space=vmem, size = 0x10000, scoped, tag = 'input window, operand 0, single buffered']
    #allocation3 [shape = 's32[1]{0}', space=sflag, size = 0x4, scoped, tag = 'scoped memory for tpu_custom_call.1']
    #allocation4 [shape = 's32[1]{0}', space=sflag, size = 0x4, scoped, tag = 'scoped memory for tpu_custom_call.1']
    #allocation5 [shape = 'u8[32768]{0}', space=vmem, size = 0x8000, scoped, tag = 'input window, operand 1, single buffered']
    #allocation6 [shape = 's32[1]{0}', space=sflag, size = 0x4, scoped, tag = 'scoped memory for tpu_custom_call.1']
    #allocation7 [shape = 'u8[98304]{0}', space=vmem, size = 0x18000, scoped, tag = 'input window, operand 2, single buffered']
    #allocation8 [shape = 'u8[32768]{0}', space=vmem, size = 0x8000, scoped, tag = 'input window, operand 4, single buffered']
    #allocation9 [shape = 's32[1]{0}', space=sflag, size = 0x4, scoped, tag = 'scoped memory for tpu_custom_call.1']
    #allocation10 [shape = 'u8[98304]{0}', space=vmem, size = 0x18000, scoped, tag = 'input window, operand 8, single buffered']
    #allocation11 [shape = 'u8[32768]{0}', space=vmem, size = 0x8000, scoped, tag = 'input window, operand 10, single buffered']
    #allocation12 [shape = 's32[1]{0}', space=sflag, size = 0x4, scoped, tag = 'scoped memory for tpu_custom_call.1']
    #allocation13 [shape = 'u8[65536]{0}', space=vmem, size = 0x10000, scoped, tag = 'input window, operand 14, single buffered']
    #allocation14 [shape = 'u8[65536]{0}', space=vmem, size = 0x10000, scoped, tag = 'input window, operand 16, single buffered']
    #allocation15 [shape = 's32[1]{0}', space=sflag, size = 0x4, scoped, tag = 'scoped memory for tpu_custom_call.1']
    #allocation16 [shape = 'u8[65536]{0}', space=vmem, size = 0x10000, scoped, tag = 'output window, operand 0, single buffered']
    %23 = vsyncpa [#allocation3], 0
    %24 = vsyncpa [#allocation6], 0
    %25 = vsyncpa [#allocation9], 0
    %26 = vsyncpa [#allocation12], 0
    %27 = vsyncpa [#allocation15], 0
    %28 = vsyncpa [#allocation4], 0
    // Predicated region
    $region2: #{tpu_custom_call.1} parent=1 // pred_check
      _
    $region3: #{tpu_custom_call.1} parent=1 // pred_check_branch
      %30 = sbr.rel (0) target = $region5
    $region4: #{tpu_custom_call.1} parent=1 // pred_region
      %s32 = ssub.s32 2048, 2048
      %33 = vsyncadd [#allocation3], %s32
      %s34 = sshll.u32 [#allocation2], 4
      %s35 = int_to_ptr.vmem [resolvable:$true] %s34
      %40 = dma.hbm_to_vmem [thread:$0]  %s0, 2048, %s35, [#allocation3], 128, 128, 8
    $region5: #{tpu_custom_call.1} parent=1 // pred_fallthru
      _
    // Predicated region
    $region6: #{tpu_custom_call.1} parent=1 // pred_check
      _
    $region7: #{tpu_custom_call.1} parent=1 // pred_check_branch
      %42 = sbr.rel (0) target = $region9
    $region8: #{tpu_custom_call.1} parent=1 // pred_region
      %s44 = ssub.s32 1024, 1024
      %45 = vsyncadd [#allocation6], %s44
      %s46 = sshll.u32 [#allocation5], 4
      %s47 = int_to_ptr.vmem [resolvable:$true] %s46
      %52 = dma.hbm_to_vmem [thread:$0]  %s1, 1024, %s47, [#allocation6], 128, 128, 8
    $region9: #{tpu_custom_call.1} parent=1 // pred_fallthru
      _
    // Predicated region
    $region10: #{tpu_custom_call.1} parent=1 // pred_check
      _
    $region11: #{tpu_custom_call.1} parent=1 // pred_check_branch
      %54 = sbr.rel (0) target = $region13
    $region12: #{tpu_custom_call.1} parent=1 // pred_region
      %s56 = ssub.s32 3072, 3072
      %57 = vsyncadd [#allocation6], %s56
      %s58 = sshll.u32 [#allocation7], 4
      %s59 = int_to_ptr.vmem [resolvable:$true] %s58
      %64 = dma.hbm_to_vmem [thread:$0]  %s2, 3072, %s59, [#allocation6], 192, 192, 12
    $region13: #{tpu_custom_call.1} parent=1 // pred_fallthru
      _
    // Predicated region
    $region14: #{tpu_custom_call.1} parent=1 // pred_check
      _
    $region15: #{tpu_custom_call.1} parent=1 // pred_check_branch
      %66 = sbr.rel (0) target = $region17
    $region16: #{tpu_custom_call.1} parent=1 // pred_region
      _
    $region17: #{tpu_custom_call.1} parent=1 // pred_fallthru
      _
    // Predicated region
    $region18: #{tpu_custom_call.1} parent=1 // pred_check
      _
    $region19: #{tpu_custom_call.1} parent=1 // pred_check_branch
      %68 = sbr.rel (0) target = $region21
    $region20: #{tpu_custom_call.1} parent=1 // pred_region
      %s70 = ssub.s32 1024, 1024
      %71 = vsyncadd [#allocation9], %s70
      %s72 = sshll.u32 [#allocation8], 4
      %s73 = int_to_ptr.vmem [resolvable:$true] %s72
      %78 = dma.hbm_to_vmem [thread:$0]  %s4, 1024, %s73, [#allocation9], 64, 64, 4
    $region21: #{tpu_custom_call.1} parent=1 // pred_fallthru
      _
    // Predicated region
    $region22: #{tpu_custom_call.1} parent=1 // pred_check
      _
    $region23: #{tpu_custom_call.1} parent=1 // pred_check_branch
      %80 = sbr.rel (0) target = $region25
    $region24: #{tpu_custom_call.1} parent=1 // pred_region
      _
    $region25: #{tpu_custom_call.1} parent=1 // pred_fallthru
      _
    // Predicated region
    $region26: #{tpu_custom_call.1} parent=1 // pred_check
      _
    $region27: #{tpu_custom_call.1} parent=1 // pred_check_branch
      %82 = sbr.rel (0) target = $region29
    $region28: #{tpu_custom_call.1} parent=1 // pred_region
      _
    $region29: #{tpu_custom_call.1} parent=1 // pred_fallthru
      _
    // Predicated region
    $region30: #{tpu_custom_call.1} parent=1 // pred_check
      _
    $region31: #{tpu_custom_call.1} parent=1 // pred_check_branch
      %84 = sbr.rel (0) target = $region33
    $region32: #{tpu_custom_call.1} parent=1 // pred_region
      _
    $region33: #{tpu_custom_call.1} parent=1 // pred_fallthru
      _
    // Predicated region
    $region34: #{tpu_custom_call.1} parent=1 // pred_check
      _
    $region35: #{tpu_custom_call.1} parent=1 // pred_check_branch
      %86 = sbr.rel (0) target = $region37
    $region36: #{tpu_custom_call.1} parent=1 // pred_region
      %s88 = ssub.s32 3072, 3072
      %89 = vsyncadd [#allocation9], %s88
      %s90 = sshll.u32 [#allocation10], 4
      %s91 = int_to_ptr.vmem [resolvable:$true] %s90
      %96 = dma.hbm_to_vmem [thread:$0]  %s8, 3072, %s91, [#allocation9], 192, 192, 12
    $region37: #{tpu_custom_call.1} parent=1 // pred_fallthru
      _
    // Predicated region
    $region38: #{tpu_custom_call.1} parent=1 // pred_check
      _
    $region39: #{tpu_custom_call.1} parent=1 // pred_check_branch
      %98 = sbr.rel (0) target = $region41
    $region40: #{tpu_custom_call.1} parent=1 // pred_region
      _
    $region41: #{tpu_custom_call.1} parent=1 // pred_fallthru
      _
    // Predicated region
    $region42: #{tpu_custom_call.1} parent=1 // pred_check
      _
    $region43: #{tpu_custom_call.1} parent=1 // pred_check_branch
      %100 = sbr.rel (0) target = $region45
    $region44: #{tpu_custom_call.1} parent=1 // pred_region
      %s102 = ssub.s32 1024, 1024
      %103 = vsyncadd [#allocation12], %s102
      %s104 = sshll.u32 [#allocation11], 4
      %s105 = int_to_ptr.vmem [resolvable:$true] %s104
      %110 = dma.hbm_to_vmem [thread:$0]  %s10, 1024, %s105, [#allocation12], 64, 64, 4
    $region45: #{tpu_custom_call.1} parent=1 // pred_fallthru
      _
    // Predicated region
    $region46: #{tpu_custom_call.1} parent=1 // pred_check
      _
    $region47: #{tpu_custom_call.1} parent=1 // pred_check_branch
      %112 = sbr.rel (0) target = $region49
    $region48: #{tpu_custom_call.1} parent=1 // pred_region
      _
    $region49: #{tpu_custom_call.1} parent=1 // pred_fallthru
      _
    // Predicated region
    $region50: #{tpu_custom_call.1} parent=1 // pred_check
      _
    $region51: #{tpu_custom_call.1} parent=1 // pred_check_branch
      %114 = sbr.rel (0) target = $region53
    $region52: #{tpu_custom_call.1} parent=1 // pred_region
      _
    $region53: #{tpu_custom_call.1} parent=1 // pred_fallthru
      _
    // Predicated region
    $region54: #{tpu_custom_call.1} parent=1 // pred_check
      _
    $region55: #{tpu_custom_call.1} parent=1 // pred_check_branch
      %116 = sbr.rel (0) target = $region57
    $region56: #{tpu_custom_call.1} parent=1 // pred_region
      _
    $region57: #{tpu_custom_call.1} parent=1 // pred_fallthru
      _
    // Predicated region
    $region58: #{tpu_custom_call.1} parent=1 // pred_check
      _
    $region59: #{tpu_custom_call.1} parent=1 // pred_check_branch
      %118 = sbr.rel (0) target = $region61
    $region60: #{tpu_custom_call.1} parent=1 // pred_region
      %s120 = ssub.s32 2048, 2048
      %121 = vsyncadd [#allocation12], %s120
      %s122 = sshll.u32 [#allocation13], 4
      %s123 = int_to_ptr.vmem [resolvable:$true] %s122
      %128 = dma.hbm_to_vmem [thread:$0]  %s14, 2048, %s123, [#allocation12], 128, 128, 8
    $region61: #{tpu_custom_call.1} parent=1 // pred_fallthru
      _
    // Predicated region
    $region62: #{tpu_custom_call.1} parent=1 // pred_check
      _
    $region63: #{tpu_custom_call.1} parent=1 // pred_check_branch
      %130 = sbr.rel (0) target = $region65
    $region64: #{tpu_custom_call.1} parent=1 // pred_region
      _
    $region65: #{tpu_custom_call.1} parent=1 // pred_fallthru
      _
    // Predicated region
    $region66: #{tpu_custom_call.1} parent=1 // pred_check
      _
    $region67: #{tpu_custom_call.1} parent=1 // pred_check_branch
      %132 = sbr.rel (0) target = $region69
    $region68: #{tpu_custom_call.1} parent=1 // pred_region
      %s134 = ssub.s32 2048, 2048
      %135 = vsyncadd [#allocation15], %s134
      %s136 = sshll.u32 [#allocation14], 4
      %s137 = int_to_ptr.vmem [resolvable:$true] %s136
      %142 = dma.hbm_to_vmem [thread:$0]  %s16, 2048, %s137, [#allocation15], 64, 64, 4
    $region69: #{tpu_custom_call.1} parent=1 // pred_fallthru
      _
    // Predicated region
    $region70: #{tpu_custom_call.1} parent=1 // pred_check
      _
    $region71: #{tpu_custom_call.1} parent=1 // pred_check_branch
      %144 = sbr.rel (0) target = $region73
    $region72: #{tpu_custom_call.1} parent=1 // pred_region
      _
    $region73: #{tpu_custom_call.1} parent=1 // pred_fallthru
      _
    // Predicated region
    $region74: #{tpu_custom_call.1} parent=1 // pred_check
      _
    $region75: #{tpu_custom_call.1} parent=1 // pred_check_branch
      %146 = sbr.rel (0) target = $region77
    $region76: #{tpu_custom_call.1} parent=1 // pred_region
      %147 = dma.done [#allocation3], 2048
    $region77: #{tpu_custom_call.1} parent=1 // pred_fallthru
      _
    // Predicated region
    $region78: #{tpu_custom_call.1} parent=1 // pred_check
      _
    $region79: #{tpu_custom_call.1} parent=1 // pred_check_branch
      %149 = sbr.rel (0) target = $region81
    $region80: #{tpu_custom_call.1} parent=1 // pred_region
      %150 = dma.done [#allocation6], 1024
    $region81: #{tpu_custom_call.1} parent=1 // pred_fallthru
      _
    // Predicated region
    $region82: #{tpu_custom_call.1} parent=1 // pred_check
      _
    $region83: #{tpu_custom_call.1} parent=1 // pred_check_branch
      %152 = sbr.rel (0) target = $region85
    $region84: #{tpu_custom_call.1} parent=1 // pred_region
      %153 = dma.done [#allocation6], 3072
    $region85: #{tpu_custom_call.1} parent=1 // pred_fallthru
      _
    // Predicated region
    $region86: #{tpu_custom_call.1} parent=1 // pred_check
      _
    $region87: #{tpu_custom_call.1} parent=1 // pred_check_branch
      %155 = sbr.rel (0) target = $region89
    $region88: #{tpu_custom_call.1} parent=1 // pred_region
      %156 = dma.done [#allocation9], 1024
    $region89: #{tpu_custom_call.1} parent=1 // pred_fallthru
      _
    // Predicated region
    $region90: #{tpu_custom_call.1} parent=1 // pred_check
      _
    $region91: #{tpu_custom_call.1} parent=1 // pred_check_branch
      %158 = sbr.rel (0) target = $region93
    $region92: #{tpu_custom_call.1} parent=1 // pred_region
      %159 = dma.done [#allocation9], 3072
    $region93: #{tpu_custom_call.1} parent=1 // pred_fallthru
      _
    // Predicated region
    $region94: #{tpu_custom_call.1} parent=1 // pred_check
      _
    $region95: #{tpu_custom_call.1} parent=1 // pred_check_branch
      %161 = sbr.rel (0) target = $region97
    $region96: #{tpu_custom_call.1} parent=1 // pred_region
      %162 = dma.done [#allocation12], 1024
    $region97: #{tpu_custom_call.1} parent=1 // pred_fallthru
      _
    // Predicated region
    $region98: #{tpu_custom_call.1} parent=1 // pred_check
      _
    $region99: #{tpu_custom_call.1} parent=1 // pred_check_branch
      %164 = sbr.rel (0) target = $region101
    $region100: #{tpu_custom_call.1} parent=1 // pred_region
      %165 = dma.done [#allocation12], 2048
    $region101: #{tpu_custom_call.1} parent=1 // pred_fallthru
      _
    // Predicated region
    $region102: #{tpu_custom_call.1} parent=1 // pred_check
      _
    $region103: #{tpu_custom_call.1} parent=1 // pred_check_branch
      %167 = sbr.rel (0) target = $region105
    $region104: #{tpu_custom_call.1} parent=1 // pred_region
      %168 = dma.done [#allocation15], 2048
    $region105: #{tpu_custom_call.1} parent=1 // pred_fallthru
      _
    %v170 = vld [vmem:[#allocation2] sm:$0xff]
    %v171 = vld [vmem:[#allocation2 + $0x8] sm:$0xff]
    %v172 = vld [vmem:[#allocation2 + $0x10] sm:$0xff]
    %v173 = vld [vmem:[#allocation2 + $0x18] sm:$0xff]
    %v174 = vld [vmem:[#allocation2 + $0x20] sm:$0xff]
    %v175 = vld [vmem:[#allocation2 + $0x28] sm:$0xff]
    %v176 = vld [vmem:[#allocation2 + $0x30] sm:$0xff]
    %v177 = vld [vmem:[#allocation2 + $0x38] sm:$0xff]
    %v178 = vld [vmem:[#allocation2 + $0x40] sm:$0xff]
    %v179 = vld [vmem:[#allocation2 + $0x48] sm:$0xff]
    %v180 = vld [vmem:[#allocation2 + $0x50] sm:$0xff]
    %v181 = vld [vmem:[#allocation2 + $0x58] sm:$0xff]
    %v182 = vld [vmem:[#allocation2 + $0x60] sm:$0xff]
    %v183 = vld [vmem:[#allocation2 + $0x68] sm:$0xff]
    %v184 = vld [vmem:[#allocation2 + $0x70] sm:$0xff]
    %v185 = vld [vmem:[#allocation2 + $0x78] sm:$0xff]
    %v186 = vld [vmem:[#allocation5] sm:$0xff]
    %v187 = vld [vmem:[#allocation5 + $0x8] sm:$0xff]
    %v188 = vld [vmem:[#allocation5 + $0x10] sm:$0xff]
    %v189 = vld [vmem:[#allocation5 + $0x18] sm:$0xff]
    %v190 = vld [vmem:[#allocation5 + $0x20] sm:$0xff]
    %v191 = vld [vmem:[#allocation5 + $0x28] sm:$0xff]
    %v192 = vld [vmem:[#allocation5 + $0x30] sm:$0xff]
    %v193 = vld [vmem:[#allocation5 + $0x38] sm:$0xff]
    %v194 = vadd.f32 %v170, %v186
    %v195 = vadd.f32 %v171, %v187
    %v196 = vadd.f32 %v172, %v188
    %v197 = vadd.f32 %v173, %v189
    %v198 = vadd.f32 %v174, %v190
    %v199 = vadd.f32 %v175, %v191
    %v200 = vadd.f32 %v176, %v192
    %v201 = vadd.f32 %v177, %v193
    %v202 = vadd.f32 %v178, %v186
    %v203 = vadd.f32 %v179, %v187
    %v204 = vadd.f32 %v180, %v188
    %v205 = vadd.f32 %v181, %v189
    %v206 = vadd.f32 %v182, %v190
    %v207 = vadd.f32 %v183, %v191
    %v208 = vadd.f32 %v184, %v192
    %v209 = vadd.f32 %v185, %v193
    %v210 = vld [vmem:[#allocation7] sm:$0xff]
    %v211 = vld [vmem:[#allocation7 + $0x8] sm:$0xf]
    %v212 = vld [vmem:[#allocation7 + $0xc] sm:$0xff]
    %v213 = vld [vmem:[#allocation7 + $0x14] sm:$0xf]
    %v214 = vld [vmem:[#allocation7 + $0x18] sm:$0xff]
    %v215 = vld [vmem:[#allocation7 + $0x20] sm:$0xf]
    %v216 = vld [vmem:[#allocation7 + $0x24] sm:$0xff]
    %v217 = vld [vmem:[#allocation7 + $0x2c] sm:$0xf]
    %v218 = vld [vmem:[#allocation7 + $0x30] sm:$0xff]
    %v219 = vld [vmem:[#allocation7 + $0x38] sm:$0xf]
    %v220 = vld [vmem:[#allocation7 + $0x3c] sm:$0xff]
    %v221 = vld [vmem:[#allocation7 + $0x44] sm:$0xf]
    %v222 = vld [vmem:[#allocation7 + $0x48] sm:$0xff]
    %v223 = vld [vmem:[#allocation7 + $0x50] sm:$0xf]
    %v224 = vld [vmem:[#allocation7 + $0x54] sm:$0xff]
    %v225 = vld [vmem:[#allocation7 + $0x5c] sm:$0xf]
    %v226 = vld [vmem:[#allocation7 + $0x60] sm:$0xff]
    %v227 = vld [vmem:[#allocation7 + $0x68] sm:$0xf]
    %v228 = vld [vmem:[#allocation7 + $0x6c] sm:$0xff]
    %v229 = vld [vmem:[#allocation7 + $0x74] sm:$0xf]
    %v230 = vld [vmem:[#allocation7 + $0x78] sm:$0xff]
    %v231 = vld [vmem:[#allocation7 + $0x80] sm:$0xf]
    %v232 = vld [vmem:[#allocation7 + $0x84] sm:$0xff]
    %v233 = vld [vmem:[#allocation7 + $0x8c] sm:$0xf]
    %v234 = vld [vmem:[#allocation7 + $0x90] sm:$0xff]
    %v235 = vld [vmem:[#allocation7 + $0x98] sm:$0xf]
    %v236 = vld [vmem:[#allocation7 + $0x9c] sm:$0xff]
    %v237 = vld [vmem:[#allocation7 + $0xa4] sm:$0xf]
    %v238 = vld [vmem:[#allocation7 + $0xa8] sm:$0xff]
    %v239 = vld [vmem:[#allocation7 + $0xb0] sm:$0xf]
    %v240 = vld [vmem:[#allocation7 + $0xb4] sm:$0xff]
    %v241 = vld [vmem:[#allocation7 + $0xbc] sm:$0xf]
    %v242 = vld [vmem:[%s3] sm:$0x7]
    %v243 = vld [vmem:[#allocation8] sm:$0xf]
    %v244 = vld [vmem:[#allocation8 + $0x4] sm:$0xf]
    %v245 = vld [vmem:[#allocation8 + $0x8] sm:$0xf]
    %v246 = vld [vmem:[#allocation8 + $0xc] sm:$0xf]
    %v247 = vld [vmem:[#allocation8 + $0x10] sm:$0xf]
    %v248 = vld [vmem:[#allocation8 + $0x14] sm:$0xf]
    %v249 = vld [vmem:[#allocation8 + $0x18] sm:$0xf]
    %v250 = vld [vmem:[#allocation8 + $0x1c] sm:$0xf]
    %v251 = vld [vmem:[#allocation8 + $0x20] sm:$0xf]
    %v252 = vld [vmem:[#allocation8 + $0x24] sm:$0xf]
    %v253 = vld [vmem:[#allocation8 + $0x28] sm:$0xf]
    %v254 = vld [vmem:[#allocation8 + $0x2c] sm:$0xf]
    %v255 = vld [vmem:[#allocation8 + $0x30] sm:$0xf]
    %v256 = vld [vmem:[#allocation8 + $0x34] sm:$0xf]
    %v257 = vld [vmem:[#allocation8 + $0x38] sm:$0xf]
    %v258 = vld [vmem:[#allocation8 + $0x3c] sm:$0xf]
    %v259 = vld [vmem:[%s5] sm:$0x1]
    %v260 = vpack.c.bf16 %v195, %v194
    %v261 = vpack.c.bf16 %v197, %v196
    %v262 = vpack.c.bf16 %v199, %v198
    %v263 = vpack.c.bf16 %v201, %v200
    %v264 = vpack.c.bf16 %v203, %v202
    %v265 = vpack.c.bf16 %v205, %v204
    %v266 = vpack.c.bf16 %v207, %v206
    %v267 = vpack.c.bf16 %v209, %v208
    %v269 = vlaneseq
    %v270 = vshrl.u32 %v269, 7
    %v271 = vsub.s32 0, %v270
    %v272 = vrot.slane %v242, %v271
    %v273 = vlaneseq
    %v274 = vshrl.u32 %v273, 7
    %v275 = vsub.s32 1, %v274
    %v276 = vrot.slane %v242, %v275
    %v277 = vlaneseq
    %v278 = vshrl.u32 %v277, 7
    %v279 = vsub.s32 2, %v278
    %v280 = vrot.slane %v242, %v279
    %v316 = vunpack.c.l.b16 %v210
    %v317 = vunpack.c.h.b16 %v210
    %v318 = vunpack.c.l.b16 %v211
    %v319 = vunpack.c.l.b16 %v212
    %v320 = vunpack.c.h.b16 %v212
    %v321 = vunpack.c.l.b16 %v213
    %v322 = vunpack.c.l.b16 %v214
    %v323 = vunpack.c.h.b16 %v214
    %v324 = vunpack.c.l.b16 %v215
    %v325 = vunpack.c.l.b16 %v216
    %v326 = vunpack.c.h.b16 %v216
    %v327 = vunpack.c.l.b16 %v217
    %v328 = vunpack.c.l.b16 %v218
    %v329 = vunpack.c.h.b16 %v218
    %v330 = vunpack.c.l.b16 %v219
    %v331 = vunpack.c.l.b16 %v220
    %v332 = vunpack.c.h.b16 %v220
    %v333 = vunpack.c.l.b16 %v221
    %v334 = vunpack.c.l.b16 %v222
    %v335 = vunpack.c.h.b16 %v222
    %v336 = vunpack.c.l.b16 %v223
    %v337 = vunpack.c.l.b16 %v224
    %v338 = vunpack.c.h.b16 %v224
    %v339 = vunpack.c.l.b16 %v225
    %v340 = vunpack.c.l.b16 %v226
    %v341 = vunpack.c.h.b16 %v226
    %v342 = vunpack.c.l.b16 %v227
    %v343 = vunpack.c.l.b16 %v228
    %v344 = vunpack.c.h.b16 %v228
    %v345 = vunpack.c.l.b16 %v229
    %v346 = vunpack.c.l.b16 %v230
    %v347 = vunpack.c.h.b16 %v230
    %v348 = vunpack.c.l.b16 %v231
    %v349 = vunpack.c.l.b16 %v232
    %v350 = vunpack.c.h.b16 %v232
    %v351 = vunpack.c.l.b16 %v233
    %v352 = vunpack.c.l.b16 %v234
    %v353 = vunpack.c.h.b16 %v234
    %v354 = vunpack.c.l.b16 %v235
    %v355 = vunpack.c.l.b16 %v236
    %v356 = vunpack.c.h.b16 %v236
    %v357 = vunpack.c.l.b16 %v237
    %v358 = vunpack.c.l.b16 %v238
    %v359 = vunpack.c.h.b16 %v238
    %v360 = vunpack.c.l.b16 %v239
    %v361 = vunpack.c.l.b16 %v240
    %v362 = vunpack.c.h.b16 %v240
    %v363 = vunpack.c.l.b16 %v241
    %v364 = vpack.c.b16 %v319, %v316
    %v365 = vpack.c.b16 %v320, %v317
    %v366 = vpack.c.b16 %v321, %v318
    %v367 = vpack.c.b16 %v325, %v322
    %v368 = vpack.c.b16 %v326, %v323
    %v369 = vpack.c.b16 %v327, %v324
    %v370 = vpack.c.b16 %v331, %v328
    %v371 = vpack.c.b16 %v332, %v329
    %v372 = vpack.c.b16 %v333, %v330
    %v373 = vpack.c.b16 %v337, %v334
    %v374 = vpack.c.b16 %v338, %v335
    %v375 = vpack.c.b16 %v339, %v336
    %v376 = vpack.c.b16 %v343, %v340
    %v377 = vpack.c.b16 %v344, %v341
    %v378 = vpack.c.b16 %v345, %v342
    %v379 = vpack.c.b16 %v349, %v346
    %v380 = vpack.c.b16 %v350, %v347
    %v381 = vpack.c.b16 %v351, %v348
    %v382 = vpack.c.b16 %v355, %v352
    %v383 = vpack.c.b16 %v356, %v353
    %v384 = vpack.c.b16 %v357, %v354
    %v385 = vpack.c.b16 %v361, %v358
    %v386 = vpack.c.b16 %v362, %v359
    %v387 = vpack.c.b16 %v363, %v360
    %412 = vmatprep.subr.bf16.mxu0 %v365
    %413 = vmatpush1.bf16.msra.mxu0 %v364
    %414 = vmatprep.subr.bf16.mxu0 %v368
    %415 = vmatpush1.bf16.msra.mxu0 %v367
    %416 = vmatprep.subr.bf16.mxu0 %v371
    %417 = vmatpush1.bf16.msra.mxu0 %v370
    %418 = vmatprep.subr.bf16.mxu0 %v374
    %419 = vmatpush1.bf16.msra.mxu0 %v373
    %420 = vmatprep.subr.bf16.mxu0 %v377
    %421 = vmatpush1.bf16.msra.mxu0 %v376
    %422 = vmatprep.subr.bf16.mxu0 %v380
    %423 = vmatpush1.bf16.msra.mxu0 %v379
    %424 = vmatprep.subr.bf16.mxu0 %v383
    %425 = vmatpush1.bf16.msra.mxu0 %v382
    %426 = vmatprep.subr.bf16.mxu0 %v386
    %427 = vmatpush1.bf16.msra.mxu0 %v385
    %428 = vmatprep.subr.bf16.mxu0 0
    %429 = vmatpush1.bf16.msra.mxu0 0
    %430 = vmatprep.subr.bf16.mxu0 0
    %431 = vmatpush1.bf16.msra.mxu0 0
    %432 = vmatprep.subr.bf16.mxu0 0
    %433 = vmatpush1.bf16.msra.mxu0 0
    %434 = vmatprep.subr.bf16.mxu0 0
    %435 = vmatpush1.bf16.msra.mxu0 0
    %436 = vmatprep.subr.bf16.mxu0 0
    %437 = vmatpush1.bf16.msra.mxu0 0
    %438 = vmatprep.subr.bf16.mxu0 0
    %439 = vmatpush1.bf16.msra.mxu0 0
    %440 = vmatprep.subr.bf16.mxu0 0
    %441 = vmatpush1.bf16.msra.mxu0 0
    %442 = vmatprep.subr.bf16.mxu0 0
    %443 = vmatpush1.bf16.msra.mxu0 0
    %444 = vmatprep.mubr.bf16.mxu0 0
    %445 = vmatmul.mubr.bf16.gmra.mrb[0].mxu0 %v260
    %v446 = vpop.f32.mrb[0].mxu0
    %v447 = vadd.f32 %v272, %v446
    %v448 = vpop.f32.mrb[0].mxu0
    %v449 = vadd.f32 %v276, %v448
    %v450 = vpop.f32.mrb[0].mxu0
    %v451 = vadd.f32 %v272, %v450
    %v452 = vpop.f32.mrb[0].mxu0
    %v453 = vadd.f32 %v276, %v452
    %454 = vmatprep.mubr.bf16.mxu0 0
    %455 = vmatmul.mubr.bf16.gmra.mrb[0].mxu0 %v261
    %v456 = vpop.f32.mrb[0].mxu0
    %v457 = vadd.f32 %v272, %v456
    %v458 = vpop.f32.mrb[0].mxu0
    %v459 = vadd.f32 %v276, %v458
    %v460 = vpop.f32.mrb[0].mxu0
    %v461 = vadd.f32 %v272, %v460
    %v462 = vpop.f32.mrb[0].mxu0
    %v463 = vadd.f32 %v276, %v462
    %464 = vmatprep.mubr.bf16.mxu0 0
    %465 = vmatmul.mubr.bf16.gmra.mrb[0].mxu0 %v262
    %v466 = vpop.f32.mrb[0].mxu0
    %v467 = vadd.f32 %v272, %v466
    %v468 = vpop.f32.mrb[0].mxu0
    %v469 = vadd.f32 %v276, %v468
    %v470 = vpop.f32.mrb[0].mxu0
    %v471 = vadd.f32 %v272, %v470
    %v472 = vpop.f32.mrb[0].mxu0
    %v473 = vadd.f32 %v276, %v472
    %474 = vmatprep.mubr.bf16.mxu0 0
    %475 = vmatmul.mubr.bf16.gmra.mrb[0].mxu0 %v263
    %v476 = vpop.f32.mrb[0].mxu0
    %v477 = vadd.f32 %v272, %v476
    %v478 = vpop.f32.mrb[0].mxu0
    %v479 = vadd.f32 %v276, %v478
    %v480 = vpop.f32.mrb[0].mxu0
    %v481 = vadd.f32 %v272, %v480
    %v482 = vpop.f32.mrb[0].mxu0
    %v483 = vadd.f32 %v276, %v482
    %484 = vmatprep.mubr.bf16.mxu0 0
    %485 = vmatmul.mubr.bf16.gmra.mrb[0].mxu0 %v264
    %v486 = vpop.f32.mrb[0].mxu0
    %v487 = vadd.f32 %v272, %v486
    %v488 = vpop.f32.mrb[0].mxu0
    %v489 = vadd.f32 %v276, %v488
    %v490 = vpop.f32.mrb[0].mxu0
    %v491 = vadd.f32 %v272, %v490
    %v492 = vpop.f32.mrb[0].mxu0
    %v493 = vadd.f32 %v276, %v492
    %494 = vmatprep.mubr.bf16.mxu0 0
    %495 = vmatmul.mubr.bf16.gmra.mrb[0].mxu0 %v265
    %v496 = vpop.f32.mrb[0].mxu0
    %v497 = vadd.f32 %v272, %v496
    %v498 = vpop.f32.mrb[0].mxu0
    %v499 = vadd.f32 %v276, %v498
    %v500 = vpop.f32.mrb[0].mxu0
    %v501 = vadd.f32 %v272, %v500
    %v502 = vpop.f32.mrb[0].mxu0
    %v503 = vadd.f32 %v276, %v502
    %504 = vmatprep.mubr.bf16.mxu0 0
    %505 = vmatmul.mubr.bf16.gmra.mrb[0].mxu0 %v266
    %v506 = vpop.f32.mrb[0].mxu0
    %v507 = vadd.f32 %v272, %v506
    %v508 = vpop.f32.mrb[0].mxu0
    %v509 = vadd.f32 %v276, %v508
    %v510 = vpop.f32.mrb[0].mxu0
    %v511 = vadd.f32 %v272, %v510
    %v512 = vpop.f32.mrb[0].mxu0
    %v513 = vadd.f32 %v276, %v512
    %514 = vmatprep.mubr.bf16.mxu0 0
    %515 = vmatmul.mubr.bf16.gmra.mrb[0].mxu0 %v267
    %v516 = vpop.f32.mrb[0].mxu0
    %v517 = vadd.f32 %v272, %v516
    %v518 = vpop.f32.mrb[0].mxu0
    %v519 = vadd.f32 %v276, %v518
    %v520 = vpop.f32.mrb[0].mxu0
    %v521 = vadd.f32 %v272, %v520
    %v522 = vpop.f32.mrb[0].mxu0
    %v523 = vadd.f32 %v276, %v522
    %524 = vdwg.mxu0
    %525 = vmatprep.subr.bf16.mxu0 0
    %526 = vmatpush1.bf16.msra.mxu0 %v366
    %527 = vmatprep.subr.bf16.mxu0 0
    %528 = vmatpush1.bf16.msra.mxu0 %v369
    %529 = vmatprep.subr.bf16.mxu0 0
    %530 = vmatpush1.bf16.msra.mxu0 %v372
    %531 = vmatprep.subr.bf16.mxu0 0
    %532 = vmatpush1.bf16.msra.mxu0 %v375
    %533 = vmatprep.subr.bf16.mxu0 0
    %534 = vmatpush1.bf16.msra.mxu0 %v378
    %535 = vmatprep.subr.bf16.mxu0 0
    %536 = vmatpush1.bf16.msra.mxu0 %v381
    %537 = vmatprep.subr.bf16.mxu0 0
    %538 = vmatpush1.bf16.msra.mxu0 %v384
    %539 = vmatprep.subr.bf16.mxu0 0
    %540 = vmatpush1.bf16.msra.mxu0 %v387
    %541 = vmatprep.subr.bf16.mxu0 0
    %542 = vmatpush1.bf16.msra.mxu0 0
    %543 = vmatprep.subr.bf16.mxu0 0
    %544 = vmatpush1.bf16.msra.mxu0 0
    %545 = vmatprep.subr.bf16.mxu0 0
    %546 = vmatpush1.bf16.msra.mxu0 0
    %547 = vmatprep.subr.bf16.mxu0 0
    %548 = vmatpush1.bf16.msra.mxu0 0
    %549 = vmatprep.subr.bf16.mxu0 0
    %550 = vmatpush1.bf16.msra.mxu0 0
    %551 = vmatprep.subr.bf16.mxu0 0
    %552 = vmatpush1.bf16.msra.mxu0 0
    %553 = vmatprep.subr.bf16.mxu0 0
    %554 = vmatpush1.bf16.msra.mxu0 0
    %555 = vmatprep.subr.bf16.mxu0 0
    %556 = vmatpush1.bf16.msra.mxu0 0
    %557 = vmatprep.mubr.bf16.mxu0 0
    %558 = vmatmul.mubr.bf16.gmra.mrb[0].mxu0 %v260
    %v559 = vpop.f32.mrb[0].mxu0
    %v560 = vadd.f32 %v280, %v559
    %v561 = vpop.f32.mrb[0].mxu0
    %v562 = vpop.f32.mrb[0].mxu0
    %v563 = vadd.f32 %v280, %v562
    %v564 = vpop.f32.mrb[0].mxu0
    %565 = vmatprep.mubr.bf16.mxu0 0
    %566 = vmatmul.mubr.bf16.gmra.mrb[0].mxu0 %v261
    %v567 = vpop.f32.mrb[0].mxu0
    %v568 = vadd.f32 %v280, %v567
    %v569 = vpop.f32.mrb[0].mxu0
    %v570 = vpop.f32.mrb[0].mxu0
    %v571 = vadd.f32 %v280, %v570
    %v572 = vpop.f32.mrb[0].mxu0
    %573 = vmatprep.mubr.bf16.mxu0 0
    %574 = vmatmul.mubr.bf16.gmra.mrb[0].mxu0 %v262
    %v575 = vpop.f32.mrb[0].mxu0
    %v576 = vadd.f32 %v280, %v575
    %v577 = vpop.f32.mrb[0].mxu0
    %v578 = vpop.f32.mrb[0].mxu0
    %v579 = vadd.f32 %v280, %v578
    %v580 = vpop.f32.mrb[0].mxu0
    %581 = vmatprep.mubr.bf16.mxu0 0
    %582 = vmatmul.mubr.bf16.gmra.mrb[0].mxu0 %v263
    %v583 = vpop.f32.mrb[0].mxu0
    %v584 = vadd.f32 %v280, %v583
    %v585 = vpop.f32.mrb[0].mxu0
    %v586 = vpop.f32.mrb[0].mxu0
    %v587 = vadd.f32 %v280, %v586
    %v588 = vpop.f32.mrb[0].mxu0
    %589 = vmatprep.mubr.bf16.mxu0 0
    %590 = vmatmul.mubr.bf16.gmra.mrb[0].mxu0 %v264
    %v591 = vpop.f32.mrb[0].mxu0
    %v592 = vadd.f32 %v280, %v591
    %v593 = vpop.f32.mrb[0].mxu0
    %v594 = vpop.f32.mrb[0].mxu0
    %v595 = vadd.f32 %v280, %v594
    %v596 = vpop.f32.mrb[0].mxu0
    %597 = vmatprep.mubr.bf16.mxu0 0
    %598 = vmatmul.mubr.bf16.gmra.mrb[0].mxu0 %v265
    %v599 = vpop.f32.mrb[0].mxu0
    %v600 = vadd.f32 %v280, %v599
    %v601 = vpop.f32.mrb[0].mxu0
    %v602 = vpop.f32.mrb[0].mxu0
    %v603 = vadd.f32 %v280, %v602
    %v604 = vpop.f32.mrb[0].mxu0
    %605 = vmatprep.mubr.bf16.mxu0 0
    %606 = vmatmul.mubr.bf16.gmra.mrb[0].mxu0 %v266
    %v607 = vpop.f32.mrb[0].mxu0
    %v608 = vadd.f32 %v280, %v607
    %v609 = vpop.f32.mrb[0].mxu0
    %v610 = vpop.f32.mrb[0].mxu0
    %v611 = vadd.f32 %v280, %v610
    %v612 = vpop.f32.mrb[0].mxu0
    %613 = vmatprep.mubr.bf16.mxu0 0
    %614 = vmatmul.mubr.bf16.gmra.mrb[0].mxu0 %v267
    %v615 = vpop.f32.mrb[0].mxu0
    %v616 = vadd.f32 %v280, %v615
    %v617 = vpop.f32.mrb[0].mxu0
    %v618 = vpop.f32.mrb[0].mxu0
    %v619 = vadd.f32 %v280, %v618
    %v620 = vpop.f32.mrb[0].mxu0
    %621 = vdwg.mxu0
    %v622 = vpack.c.bf16 %v451, %v447
    %v623 = vpack.c.bf16 %v461, %v457
    %v624 = vpack.c.bf16 %v471, %v467
    %v625 = vpack.c.bf16 %v481, %v477
    %v626 = vpack.c.bf16 %v491, %v487
    %v627 = vpack.c.bf16 %v501, %v497
    %v628 = vpack.c.bf16 %v511, %v507
    %v629 = vpack.c.bf16 %v521, %v517
    %v630 = vpack.c.bf16 %v453, %v449
    %v631 = vpack.c.bf16 %v463, %v459
    %v632 = vpack.c.bf16 %v473, %v469
    %v633 = vpack.c.bf16 %v483, %v479
    %v634 = vpack.c.bf16 %v493, %v489
    %v635 = vpack.c.bf16 %v503, %v499
    %v636 = vpack.c.bf16 %v513, %v509
    %v637 = vpack.c.bf16 %v523, %v519
    %v638 = vpack.c.bf16 %v563, %v560
    %v639 = vpack.c.bf16 %v571, %v568
    %v640 = vpack.c.bf16 %v579, %v576
    %v641 = vpack.c.bf16 %v587, %v584
    %v642 = vpack.c.bf16 %v595, %v592
    %v643 = vpack.c.bf16 %v603, %v600
    %v644 = vpack.c.bf16 %v611, %v608
    %v645 = vpack.c.bf16 %v619, %v616
    %vm646 = vcmask 261120
    %v648 = vsel %vm646, %v622, 0
    %v651 = vsel %vm646, %v623, 0
    %v654 = vsel %vm646, %v624, 0
    %v657 = vsel %vm646, %v625, 0
    %v660 = vsel %vm646, %v630, 0
    %v663 = vsel %vm646, %v631, 0
    %v666 = vsel %vm646, %v632, 0
    %v669 = vsel %vm646, %v633, 0
    %671 = vmatprep.subr.bf16.mxu0 0
    %672 = vmatpush1.bf16.xpose.msra.mxu0 %v660
    %673 = vmatprep.subr.bf16.mxu0 0
    %674 = vmatpush1.bf16.xpose.msra.mxu0 %v663
    %675 = vmatprep.subr.bf16.mxu0 0
    %676 = vmatpush1.bf16.xpose.msra.mxu0 %v666
    %677 = vmatprep.subr.bf16.mxu0 0
    %678 = vmatpush1.bf16.xpose.msra.mxu0 %v669
    %679 = vmatprep.subr.bf16.mxu0 0
    %680 = vmatpush1.bf16.xpose.msra.mxu0 0
    %681 = vmatprep.subr.bf16.mxu0 0
    %682 = vmatpush1.bf16.xpose.msra.mxu0 0
    %683 = vmatprep.subr.bf16.mxu0 0
    %684 = vmatpush1.bf16.xpose.msra.mxu0 0
    %685 = vmatprep.subr.bf16.mxu0 0
    %686 = vmatpush1.bf16.xpose.msra.mxu0 0
    %687 = vmatprep.subr.bf16.mxu0 0
    %688 = vmatpush1.bf16.xpose.msra.mxu0 0
    %689 = vmatprep.subr.bf16.mxu0 0
    %690 = vmatpush1.bf16.xpose.msra.mxu0 0
    %691 = vmatprep.subr.bf16.mxu0 0
    %692 = vmatpush1.bf16.xpose.msra.mxu0 0
    %693 = vmatprep.subr.bf16.mxu0 0
    %694 = vmatpush1.bf16.xpose.msra.mxu0 0
    %695 = vmatprep.subr.bf16.mxu0 0
    %696 = vmatpush1.bf16.xpose.msra.mxu0 0
    %697 = vmatprep.subr.bf16.mxu0 0
    %698 = vmatpush1.bf16.xpose.msra.mxu0 0
    %699 = vmatprep.subr.bf16.mxu0 0
    %700 = vmatpush1.bf16.xpose.msra.mxu0 0
    %701 = vmatprep.subr.bf16.mxu0 0
    %702 = vmatpush1.bf16.xpose.msra.mxu0 0
    %703 = vmatprep.mubr.bf16.mxu0 0
    %704 = vmatmul.mubr.bf16.gmra.mrb[0].mxu0 %v648
    %v705 = vpop.f32.mrb[0].mxu0
    %v706 = vadd.f32 0.0, %v705
    %v707 = vpop.f32.mrb[0].mxu0
    %v708 = vpop.f32.mrb[0].mxu0
    %v709 = vadd.f32 0.0, %v708
    %v710 = vpop.f32.mrb[0].mxu0
    %711 = vmatprep.mubr.bf16.mxu0 0
    %712 = vmatmul.mubr.bf16.gmra.mrb[0].mxu0 %v651
    %v713 = vpop.f32.mrb[0].mxu0
    %v714 = vadd.f32 0.0, %v713
    %v715 = vpop.f32.mrb[0].mxu0
    %v716 = vpop.f32.mrb[0].mxu0
    %v717 = vadd.f32 0.0, %v716
    %v718 = vpop.f32.mrb[0].mxu0
    %719 = vmatprep.mubr.bf16.mxu0 0
    %720 = vmatmul.mubr.bf16.gmra.mrb[0].mxu0 %v654
    %v721 = vpop.f32.mrb[0].mxu0
    %v722 = vadd.f32 0.0, %v721
    %v723 = vpop.f32.mrb[0].mxu0
    %v724 = vpop.f32.mrb[0].mxu0
    %v725 = vadd.f32 0.0, %v724
    %v726 = vpop.f32.mrb[0].mxu0
    %727 = vmatprep.mubr.bf16.mxu0 0
    %728 = vmatmul.mubr.bf16.gmra.mrb[0].mxu0 %v657
    %v729 = vpop.f32.mrb[0].mxu0
    %v730 = vadd.f32 0.0, %v729
    %v731 = vpop.f32.mrb[0].mxu0
    %v732 = vpop.f32.mrb[0].mxu0
    %v733 = vadd.f32 0.0, %v732
    %v734 = vpop.f32.mrb[0].mxu0
    %735 = vdwg.mxu0
    %vm736 = vcmask 523264
    %v737 = vsel %vm736, %v706, -inf
    %738 = vmax.xlane.f32.xlu0 %v737
    %v739 = vpop.xlane.xlu0 %738
    %v740 = vsel %vm736, %v709, -inf
    %741 = vmax.xlane.f32.xlu0 %v740
    %v742 = vpop.xlane.xlu0 %741
    %v743 = vsel %vm736, %v714, -inf
    %744 = vmax.xlane.f32.xlu0 %v743
    %v745 = vpop.xlane.xlu0 %744
    %v746 = vsel %vm736, %v717, -inf
    %747 = vmax.xlane.f32.xlu0 %v746
    %v748 = vpop.xlane.xlu0 %747
    %v749 = vsel %vm736, %v722, -inf
    %750 = vmax.xlane.f32.xlu0 %v749
    %v751 = vpop.xlane.xlu0 %750
    %v752 = vsel %vm736, %v725, -inf
    %753 = vmax.xlane.f32.xlu0 %v752
    %v754 = vpop.xlane.xlu0 %753
    %v755 = vsel %vm736, %v730, -inf
    %756 = vmax.xlane.f32.xlu0 %v755
    %v757 = vpop.xlane.xlu0 %756
    %v758 = vsel %vm736, %v733, -inf
    %759 = vmax.xlane.f32.xlu0 %v758
    %v760 = vpop.xlane.xlu0 %759
    %v761 = vsub.f32 %v706, %v739
    %v762 = vsub.f32 %v709, %v742
    %v763 = vsub.f32 %v714, %v745
    %v764 = vsub.f32 %v717, %v748
    %v765 = vsub.f32 %v722, %v751
    %v766 = vsub.f32 %v725, %v754
    %v767 = vsub.f32 %v730, %v757
    %v768 = vsub.f32 %v733, %v760
    %v769 = vmul.f32 %v761, 1.442695
    %v770 = vpow.pop %v769
    %v771 = vmul.f32 %v762, 1.442695
    %v772 = vpow.pop %v771
    %v773 = vmul.f32 %v763, 1.442695
    %v774 = vpow.pop %v773
    %v775 = vmul.f32 %v764, 1.442695
    %v776 = vpow.pop %v775
    %v777 = vmul.f32 %v765, 1.442695
    %v778 = vpow.pop %v777
    %v779 = vmul.f32 %v766, 1.442695
    %v780 = vpow.pop %v779
    %v781 = vmul.f32 %v767, 1.442695
    %v782 = vpow.pop %v781
    %v783 = vmul.f32 %v768, 1.442695
    %v784 = vpow.pop %v783
    %v785 = vsel %vm736, %v770, 0.0
    %786 = vadd.xlane.f32.xlu0 %v785
    %v787 = vpop.xlane.xlu0 %786
    %v788 = vsel %vm736, %v772, 0.0
    %789 = vadd.xlane.f32.xlu0 %v788
    %v790 = vpop.xlane.xlu0 %789
    %v791 = vsel %vm736, %v774, 0.0
    %792 = vadd.xlane.f32.xlu0 %v791
    %v793 = vpop.xlane.xlu0 %792
    %v794 = vsel %vm736, %v776, 0.0
    %795 = vadd.xlane.f32.xlu0 %v794
    %v796 = vpop.xlane.xlu0 %795
    %v797 = vsel %vm736, %v778, 0.0
    %798 = vadd.xlane.f32.xlu0 %v797
    %v799 = vpop.xlane.xlu0 %798
    %v800 = vsel %vm736, %v780, 0.0
    %801 = vadd.xlane.f32.xlu0 %v800
    %v802 = vpop.xlane.xlu0 %801
    %v803 = vsel %vm736, %v782, 0.0
    %804 = vadd.xlane.f32.xlu0 %v803
    %v805 = vpop.xlane.xlu0 %804
    %v806 = vsel %vm736, %v784, 0.0
    %807 = vadd.xlane.f32.xlu0 %v806
    %v808 = vpop.xlane.xlu0 %807
    %v809 = vrcp.pop %v787
    %v810 = vrcp.pop %v790
    %v811 = vrcp.pop %v793
    %v812 = vrcp.pop %v796
    %v813 = vrcp.pop %v799
    %v814 = vrcp.pop %v802
    %v815 = vrcp.pop %v805
    %v816 = vrcp.pop %v808
    %v817 = vmul.f32 %v770, %v809
    %v818 = vmul.f32 %v772, %v810
    %v819 = vmul.f32 %v774, %v811
    %v820 = vmul.f32 %v776, %v812
    %v821 = vmul.f32 %v778, %v813
    %v822 = vmul.f32 %v780, %v814
    %v823 = vmul.f32 %v782, %v815
    %v824 = vmul.f32 %v784, %v816
    %v825 = vpack.c.bf16 %v818, %v817
    %v826 = vpack.c.bf16 %v820, %v819
    %v827 = vpack.c.bf16 %v822, %v821
    %v828 = vpack.c.bf16 %v824, %v823
    %v830 = vsel %vm736, %v825, 0
    %v833 = vsel %vm736, %v826, 0
    %v836 = vsel %vm736, %v827, 0
    %v839 = vsel %vm736, %v828, 0
    %841 = vmatprep.subr.bf16.mxu0 0
    %842 = vmatpush1.bf16.msra.mxu0 %v638
    %843 = vmatprep.subr.bf16.mxu0 0
    %844 = vmatpush1.bf16.msra.mxu0 %v639
    %845 = vmatprep.subr.bf16.mxu0 0
    %846 = vmatpush1.bf16.msra.mxu0 %v640
    %847 = vmatprep.subr.bf16.mxu0 0
    %848 = vmatpush1.bf16.msra.mxu0 %v641
    %849 = vmatprep.subr.bf16.mxu0 0
    %850 = vmatpush1.bf16.msra.mxu0 0
    %851 = vmatprep.subr.bf16.mxu0 0
    %852 = vmatpush1.bf16.msra.mxu0 0
    %853 = vmatprep.subr.bf16.mxu0 0
    %854 = vmatpush1.bf16.msra.mxu0 0
    %855 = vmatprep.subr.bf16.mxu0 0
    %856 = vmatpush1.bf16.msra.mxu0 0
    %857 = vmatprep.subr.bf16.mxu0 0
    %858 = vmatpush1.bf16.msra.mxu0 0
    %859 = vmatprep.subr.bf16.mxu0 0
    %860 = vmatpush1.bf16.msra.mxu0 0
    %861 = vmatprep.subr.bf16.mxu0 0
    %862 = vmatpush1.bf16.msra.mxu0 0
    %863 = vmatprep.subr.bf16.mxu0 0
    %864 = vmatpush1.bf16.msra.mxu0 0
    %865 = vmatprep.subr.bf16.mxu0 0
    %866 = vmatpush1.bf16.msra.mxu0 0
    %867 = vmatprep.subr.bf16.mxu0 0
    %868 = vmatpush1.bf16.msra.mxu0 0
    %869 = vmatprep.subr.bf16.mxu0 0
    %870 = vmatpush1.bf16.msra.mxu0 0
    %871 = vmatprep.subr.bf16.mxu0 0
    %872 = vmatpush1.bf16.msra.mxu0 0
    %873 = vmatprep.mubr.bf16.mxu0 0
    %874 = vmatmul.mubr.bf16.gmra.mrb[0].mxu0 %v830
    %v875 = vpop.f32.mrb[0].mxu0
    %v876 = vadd.f32 0.0, %v875
    %v877 = vpop.f32.mrb[0].mxu0
    %v878 = vpop.f32.mrb[0].mxu0
    %v879 = vadd.f32 0.0, %v878
    %v880 = vpop.f32.mrb[0].mxu0
    %881 = vmatprep.mubr.bf16.mxu0 0
    %882 = vmatmul.mubr.bf16.gmra.mrb[0].mxu0 %v833
    %v883 = vpop.f32.mrb[0].mxu0
    %v884 = vadd.f32 0.0, %v883
    %v885 = vpop.f32.mrb[0].mxu0
    %v886 = vpop.f32.mrb[0].mxu0
    %v887 = vadd.f32 0.0, %v886
    %v888 = vpop.f32.mrb[0].mxu0
    %889 = vmatprep.mubr.bf16.mxu0 0
    %890 = vmatmul.mubr.bf16.gmra.mrb[0].mxu0 %v836
    %v891 = vpop.f32.mrb[0].mxu0
    %v892 = vadd.f32 0.0, %v891
    %v893 = vpop.f32.mrb[0].mxu0
    %v894 = vpop.f32.mrb[0].mxu0
    %v895 = vadd.f32 0.0, %v894
    %v896 = vpop.f32.mrb[0].mxu0
    %897 = vmatprep.mubr.bf16.mxu0 0
    %898 = vmatmul.mubr.bf16.gmra.mrb[0].mxu0 %v839
    %v899 = vpop.f32.mrb[0].mxu0
    %v900 = vadd.f32 0.0, %v899
    %v901 = vpop.f32.mrb[0].mxu0
    %v902 = vpop.f32.mrb[0].mxu0
    %v903 = vadd.f32 0.0, %v902
    %v904 = vpop.f32.mrb[0].mxu0
    %905 = vdwg.mxu0
    %v906 = vpack.c.bf16 %v879, %v876
    %v907 = vpack.c.bf16 %v887, %v884
    %v908 = vpack.c.bf16 %v895, %v892
    %v909 = vpack.c.bf16 %v903, %v900
    %914 = vrot.lane.b32.xlu0 %v622, 96
    %v915 = vpop.permute.xlu0 %914
    %916 = vrot.lane.b32.xlu0 %v623, 96
    %v917 = vpop.permute.xlu0 %916
    %918 = vrot.lane.b32.xlu0 %v624, 96
    %v919 = vpop.permute.xlu0 %918
    %920 = vrot.lane.b32.xlu0 %v625, 96
    %v921 = vpop.permute.xlu0 %920
    %926 = vrot.lane.b32.xlu0 %v630, 96
    %v927 = vpop.permute.xlu0 %926
    %928 = vrot.lane.b32.xlu0 %v631, 96
    %v929 = vpop.permute.xlu0 %928
    %930 = vrot.lane.b32.xlu0 %v632, 96
    %v931 = vpop.permute.xlu0 %930
    %932 = vrot.lane.b32.xlu0 %v633, 96
    %v933 = vpop.permute.xlu0 %932
    %v935 = vsel %vm646, %v915, 0
    %v938 = vsel %vm646, %v917, 0
    %v941 = vsel %vm646, %v919, 0
    %v944 = vsel %vm646, %v921, 0
    %v947 = vsel %vm646, %v927, 0
    %v950 = vsel %vm646, %v929, 0
    %v953 = vsel %vm646, %v931, 0
    %v956 = vsel %vm646, %v933, 0
    %958 = vmatprep.subr.bf16.mxu0 0
    %959 = vmatpush1.bf16.xpose.msra.mxu0 %v947
    %960 = vmatprep.subr.bf16.mxu0 0
    %961 = vmatpush1.bf16.xpose.msra.mxu0 %v950
    %962 = vmatprep.subr.bf16.mxu0 0
    %963 = vmatpush1.bf16.xpose.msra.mxu0 %v953
    %964 = vmatprep.subr.bf16.mxu0 0
    %965 = vmatpush1.bf16.xpose.msra.mxu0 %v956
    %966 = vmatprep.subr.bf16.mxu0 0
    %967 = vmatpush1.bf16.xpose.msra.mxu0 0
    %968 = vmatprep.subr.bf16.mxu0 0
    %969 = vmatpush1.bf16.xpose.msra.mxu0 0
    %970 = vmatprep.subr.bf16.mxu0 0
    %971 = vmatpush1.bf16.xpose.msra.mxu0 0
    %972 = vmatprep.subr.bf16.mxu0 0
    %973 = vmatpush1.bf16.xpose.msra.mxu0 0
    %974 = vmatprep.subr.bf16.mxu0 0
    %975 = vmatpush1.bf16.xpose.msra.mxu0 0
    %976 = vmatprep.subr.bf16.mxu0 0
    %977 = vmatpush1.bf16.xpose.msra.mxu0 0
    %978 = vmatprep.subr.bf16.mxu0 0
    %979 = vmatpush1.bf16.xpose.msra.mxu0 0
    %980 = vmatprep.subr.bf16.mxu0 0
    %981 = vmatpush1.bf16.xpose.msra.mxu0 0
    %982 = vmatprep.subr.bf16.mxu0 0
    %983 = vmatpush1.bf16.xpose.msra.mxu0 0
    %984 = vmatprep.subr.bf16.mxu0 0
    %985 = vmatpush1.bf16.xpose.msra.mxu0 0
    %986 = vmatprep.subr.bf16.mxu0 0
    %987 = vmatpush1.bf16.xpose.msra.mxu0 0
    %988 = vmatprep.subr.bf16.mxu0 0
    %989 = vmatpush1.bf16.xpose.msra.mxu0 0
    %990 = vmatprep.mubr.bf16.mxu0 0
    %991 = vmatmul.mubr.bf16.gmra.mrb[0].mxu0 %v935
    %v992 = vpop.f32.mrb[0].mxu0
    %v993 = vadd.f32 0.0, %v992
    %v994 = vpop.f32.mrb[0].mxu0
    %v995 = vpop.f32.mrb[0].mxu0
    %v996 = vadd.f32 0.0, %v995
    %v997 = vpop.f32.mrb[0].mxu0
    %998 = vmatprep.mubr.bf16.mxu0 0
    %999 = vmatmul.mubr.bf16.gmra.mrb[0].mxu0 %v938
    %v1000 = vpop.f32.mrb[0].mxu0
    %v1001 = vadd.f32 0.0, %v1000
    %v1002 = vpop.f32.mrb[0].mxu0
    %v1003 = vpop.f32.mrb[0].mxu0
    %v1004 = vadd.f32 0.0, %v1003
    %v1005 = vpop.f32.mrb[0].mxu0
    %1006 = vmatprep.mubr.bf16.mxu0 0
    %1007 = vmatmul.mubr.bf16.gmra.mrb[0].mxu0 %v941
    %v1008 = vpop.f32.mrb[0].mxu0
    %v1009 = vadd.f32 0.0, %v1008
    %v1010 = vpop.f32.mrb[0].mxu0
    %v1011 = vpop.f32.mrb[0].mxu0
    %v1012 = vadd.f32 0.0, %v1011
    %v1013 = vpop.f32.mrb[0].mxu0
    %1014 = vmatprep.mubr.bf16.mxu0 0
    %1015 = vmatmul.mubr.bf16.gmra.mrb[0].mxu0 %v944
    %v1016 = vpop.f32.mrb[0].mxu0
    %v1017 = vadd.f32 0.0, %v1016
    %v1018 = vpop.f32.mrb[0].mxu0
    %v1019 = vpop.f32.mrb[0].mxu0
    %v1020 = vadd.f32 0.0, %v1019
    %v1021 = vpop.f32.mrb[0].mxu0
    %1022 = vdwg.mxu0
    %v1023 = vsel %vm736, %v993, -inf
    %1024 = vmax.xlane.f32.xlu0 %v1023
    %v1025 = vpop.xlane.xlu0 %1024
    %v1026 = vsel %vm736, %v996, -inf
    %1027 = vmax.xlane.f32.xlu0 %v1026
    %v1028 = vpop.xlane.xlu0 %1027
    %v1029 = vsel %vm736, %v1001, -inf
    %1030 = vmax.xlane.f32.xlu0 %v1029
    %v1031 = vpop.xlane.xlu0 %1030
    %v1032 = vsel %vm736, %v1004, -inf
    %1033 = vmax.xlane.f32.xlu0 %v1032
    %v1034 = vpop.xlane.xlu0 %1033
    %v1035 = vsel %vm736, %v1009, -inf
    %1036 = vmax.xlane.f32.xlu0 %v1035
    %v1037 = vpop.xlane.xlu0 %1036
    %v1038 = vsel %vm736, %v1012, -inf
    %1039 = vmax.xlane.f32.xlu0 %v1038
    %v1040 = vpop.xlane.xlu0 %1039
    %v1041 = vsel %vm736, %v1017, -inf
    %1042 = vmax.xlane.f32.xlu0 %v1041
    %v1043 = vpop.xlane.xlu0 %1042
    %v1044 = vsel %vm736, %v1020, -inf
    %1045 = vmax.xlane.f32.xlu0 %v1044
    %v1046 = vpop.xlane.xlu0 %1045
    %v1047 = vsub.f32 %v993, %v1025
    %v1048 = vsub.f32 %v996, %v1028
    %v1049 = vsub.f32 %v1001, %v1031
    %v1050 = vsub.f32 %v1004, %v1034
    %v1051 = vsub.f32 %v1009, %v1037
    %v1052 = vsub.f32 %v1012, %v1040
    %v1053 = vsub.f32 %v1017, %v1043
    %v1054 = vsub.f32 %v1020, %v1046
    %v1055 = vmul.f32 %v1047, 1.442695
    %v1056 = vpow.pop %v1055
    %v1057 = vmul.f32 %v1048, 1.442695
    %v1058 = vpow.pop %v1057
    %v1059 = vmul.f32 %v1049, 1.442695
    %v1060 = vpow.pop %v1059
    %v1061 = vmul.f32 %v1050, 1.442695
    %v1062 = vpow.pop %v1061
    %v1063 = vmul.f32 %v1051, 1.442695
    %v1064 = vpow.pop %v1063
    %v1065 = vmul.f32 %v1052, 1.442695
    %v1066 = vpow.pop %v1065
    %v1067 = vmul.f32 %v1053, 1.442695
    %v1068 = vpow.pop %v1067
    %v1069 = vmul.f32 %v1054, 1.442695
    %v1070 = vpow.pop %v1069
    %v1071 = vsel %vm736, %v1056, 0.0
    %1072 = vadd.xlane.f32.xlu0 %v1071
    %v1073 = vpop.xlane.xlu0 %1072
    %v1074 = vsel %vm736, %v1058, 0.0
    %1075 = vadd.xlane.f32.xlu0 %v1074
    %v1076 = vpop.xlane.xlu0 %1075
    %v1077 = vsel %vm736, %v1060, 0.0
    %1078 = vadd.xlane.f32.xlu0 %v1077
    %v1079 = vpop.xlane.xlu0 %1078
    %v1080 = vsel %vm736, %v1062, 0.0
    %1081 = vadd.xlane.f32.xlu0 %v1080
    %v1082 = vpop.xlane.xlu0 %1081
    %v1083 = vsel %vm736, %v1064, 0.0
    %1084 = vadd.xlane.f32.xlu0 %v1083
    %v1085 = vpop.xlane.xlu0 %1084
    %v1086 = vsel %vm736, %v1066, 0.0
    %1087 = vadd.xlane.f32.xlu0 %v1086
    %v1088 = vpop.xlane.xlu0 %1087
    %v1089 = vsel %vm736, %v1068, 0.0
    %1090 = vadd.xlane.f32.xlu0 %v1089
    %v1091 = vpop.xlane.xlu0 %1090
    %v1092 = vsel %vm736, %v1070, 0.0
    %1093 = vadd.xlane.f32.xlu0 %v1092
    %v1094 = vpop.xlane.xlu0 %1093
    %v1095 = vrcp.pop %v1073
    %v1096 = vrcp.pop %v1076
    %v1097 = vrcp.pop %v1079
    %v1098 = vrcp.pop %v1082
    %v1099 = vrcp.pop %v1085
    %v1100 = vrcp.pop %v1088
    %v1101 = vrcp.pop %v1091
    %v1102 = vrcp.pop %v1094
    %v1103 = vmul.f32 %v1056, %v1095
    %v1104 = vmul.f32 %v1058, %v1096
    %v1105 = vmul.f32 %v1060, %v1097
    %v1106 = vmul.f32 %v1062, %v1098
    %v1107 = vmul.f32 %v1064, %v1099
    %v1108 = vmul.f32 %v1066, %v1100
    %v1109 = vmul.f32 %v1068, %v1101
    %v1110 = vmul.f32 %v1070, %v1102
    %v1111 = vpack.c.bf16 %v1104, %v1103
    %v1112 = vpack.c.bf16 %v1106, %v1105
    %v1113 = vpack.c.bf16 %v1108, %v1107
    %v1114 = vpack.c.bf16 %v1110, %v1109
    %1119 = vrot.lane.b32.xlu0 %v638, 96
    %v1120 = vpop.permute.xlu0 %1119
    %1121 = vrot.lane.b32.xlu0 %v639, 96
    %v1122 = vpop.permute.xlu0 %1121
    %1123 = vrot.lane.b32.xlu0 %v640, 96
    %v1124 = vpop.permute.xlu0 %1123
    %1125 = vrot.lane.b32.xlu0 %v641, 96
    %v1126 = vpop.permute.xlu0 %1125
    %v1132 = vsel %vm736, %v1111, 0
    %v1135 = vsel %vm736, %v1112, 0
    %v1138 = vsel %vm736, %v1113, 0
    %v1141 = vsel %vm736, %v1114, 0
    %1143 = vmatprep.subr.bf16.mxu0 0
    %1144 = vmatpush1.bf16.msra.mxu0 %v1120
    %1145 = vmatprep.subr.bf16.mxu0 0
    %1146 = vmatpush1.bf16.msra.mxu0 %v1122
    %1147 = vmatprep.subr.bf16.mxu0 0
    %1148 = vmatpush1.bf16.msra.mxu0 %v1124
    %1149 = vmatprep.subr.bf16.mxu0 0
    %1150 = vmatpush1.bf16.msra.mxu0 %v1126
    %1151 = vmatprep.subr.bf16.mxu0 0
    %1152 = vmatpush1.bf16.msra.mxu0 0
    %1153 = vmatprep.subr.bf16.mxu0 0
    %1154 = vmatpush1.bf16.msra.mxu0 0
    %1155 = vmatprep.subr.bf16.mxu0 0
    %1156 = vmatpush1.bf16.msra.mxu0 0
    %1157 = vmatprep.subr.bf16.mxu0 0
    %1158 = vmatpush1.bf16.msra.mxu0 0
    %1159 = vmatprep.subr.bf16.mxu0 0
    %1160 = vmatpush1.bf16.msra.mxu0 0
    %1161 = vmatprep.subr.bf16.mxu0 0
    %1162 = vmatpush1.bf16.msra.mxu0 0
    %1163 = vmatprep.subr.bf16.mxu0 0
    %1164 = vmatpush1.bf16.msra.mxu0 0
    %1165 = vmatprep.subr.bf16.mxu0 0
    %1166 = vmatpush1.bf16.msra.mxu0 0
    %1167 = vmatprep.subr.bf16.mxu0 0
    %1168 = vmatpush1.bf16.msra.mxu0 0
    %1169 = vmatprep.subr.bf16.mxu0 0
    %1170 = vmatpush1.bf16.msra.mxu0 0
    %1171 = vmatprep.subr.bf16.mxu0 0
    %1172 = vmatpush1.bf16.msra.mxu0 0
    %1173 = vmatprep.subr.bf16.mxu0 0
    %1174 = vmatpush1.bf16.msra.mxu0 0
    %1175 = vmatprep.mubr.bf16.mxu0 0
    %1176 = vmatmul.mubr.bf16.gmra.mrb[0].mxu0 %v1132
    %v1177 = vpop.f32.mrb[0].mxu0
    %v1178 = vadd.f32 0.0, %v1177
    %v1179 = vpop.f32.mrb[0].mxu0
    %v1180 = vpop.f32.mrb[0].mxu0
    %v1181 = vadd.f32 0.0, %v1180
    %v1182 = vpop.f32.mrb[0].mxu0
    %1183 = vmatprep.mubr.bf16.mxu0 0
    %1184 = vmatmul.mubr.bf16.gmra.mrb[0].mxu0 %v1135
    %v1185 = vpop.f32.mrb[0].mxu0
    %v1186 = vadd.f32 0.0, %v1185
    %v1187 = vpop.f32.mrb[0].mxu0
    %v1188 = vpop.f32.mrb[0].mxu0
    %v1189 = vadd.f32 0.0, %v1188
    %v1190 = vpop.f32.mrb[0].mxu0
    %1191 = vmatprep.mubr.bf16.mxu0 0
    %1192 = vmatmul.mubr.bf16.gmra.mrb[0].mxu0 %v1138
    %v1193 = vpop.f32.mrb[0].mxu0
    %v1194 = vadd.f32 0.0, %v1193
    %v1195 = vpop.f32.mrb[0].mxu0
    %v1196 = vpop.f32.mrb[0].mxu0
    %v1197 = vadd.f32 0.0, %v1196
    %v1198 = vpop.f32.mrb[0].mxu0
    %1199 = vmatprep.mubr.bf16.mxu0 0
    %1200 = vmatmul.mubr.bf16.gmra.mrb[0].mxu0 %v1141
    %v1201 = vpop.f32.mrb[0].mxu0
    %v1202 = vadd.f32 0.0, %v1201
    %v1203 = vpop.f32.mrb[0].mxu0
    %v1204 = vpop.f32.mrb[0].mxu0
    %v1205 = vadd.f32 0.0, %v1204
    %v1206 = vpop.f32.mrb[0].mxu0
    %1207 = vdwg.mxu0
    %v1208 = vpack.c.bf16 %v1181, %v1178
    %v1209 = vpack.c.bf16 %v1189, %v1186
    %v1210 = vpack.c.bf16 %v1197, %v1194
    %v1211 = vpack.c.bf16 %v1205, %v1202
    %v1216 = vunpack.c.l.b16 %v247
    %v1217 = vunpack.c.l.b16 %v248
    %v1218 = vunpack.c.l.b16 %v249
    %v1219 = vunpack.c.l.b16 %v250
    %v1220 = vpack.c.b16 %v1217, %v1216
    %v1221 = vpack.c.b16 %v1219, %v1218
    %v1225 = vsel %vm646, %v1208, 0
    %v1228 = vsel %vm646, %v1209, 0
    %v1231 = vsel %vm646, %v1210, 0
    %v1234 = vsel %vm646, %v1211, 0
    %1236 = vmatprep.subr.bf16.mxu0 0
    %1237 = vmatpush1.bf16.msra.mxu0 %v1220
    %1238 = vmatprep.subr.bf16.mxu0 0
    %1239 = vmatpush1.bf16.msra.mxu0 %v1221
    %1240 = vmatprep.subr.bf16.mxu0 0
    %1241 = vmatpush1.bf16.msra.mxu0 0
    %1242 = vmatprep.subr.bf16.mxu0 0
    %1243 = vmatpush1.bf16.msra.mxu0 0
    %1244 = vmatprep.subr.bf16.mxu0 0
    %1245 = vmatpush1.bf16.msra.mxu0 0
    %1246 = vmatprep.subr.bf16.mxu0 0
    %1247 = vmatpush1.bf16.msra.mxu0 0
    %1248 = vmatprep.subr.bf16.mxu0 0
    %1249 = vmatpush1.bf16.msra.mxu0 0
    %1250 = vmatprep.subr.bf16.mxu0 0
    %1251 = vmatpush1.bf16.msra.mxu0 0
    %1252 = vmatprep.subr.bf16.mxu0 0
    %1253 = vmatpush1.bf16.msra.mxu0 0
    %1254 = vmatprep.subr.bf16.mxu0 0
    %1255 = vmatpush1.bf16.msra.mxu0 0
    %1256 = vmatprep.subr.bf16.mxu0 0
    %1257 = vmatpush1.bf16.msra.mxu0 0
    %1258 = vmatprep.subr.bf16.mxu0 0
    %1259 = vmatpush1.bf16.msra.mxu0 0
    %1260 = vmatprep.subr.bf16.mxu0 0
    %1261 = vmatpush1.bf16.msra.mxu0 0
    %1262 = vmatprep.subr.bf16.mxu0 0
    %1263 = vmatpush1.bf16.msra.mxu0 0
    %1264 = vmatprep.subr.bf16.mxu0 0
    %1265 = vmatpush1.bf16.msra.mxu0 0
    %1266 = vmatprep.subr.bf16.mxu0 0
    %1267 = vmatpush1.bf16.msra.mxu0 0
    %1268 = vmatprep.mubr.bf16.mxu0 0
    %1269 = vmatmul.mubr.bf16.gmra.mrb[0].mxu0 %v1225
    %v1270 = vpop.f32.mrb[0].mxu0
    %v1271 = vadd.f32 0.0, %v1270
    %v1272 = vpop.f32.mrb[0].mxu0
    %v1273 = vpop.f32.mrb[0].mxu0
    %v1274 = vadd.f32 0.0, %v1273
    %v1275 = vpop.f32.mrb[0].mxu0
    %1276 = vmatprep.mubr.bf16.mxu0 0
    %1277 = vmatmul.mubr.bf16.gmra.mrb[0].mxu0 %v1228
    %v1278 = vpop.f32.mrb[0].mxu0
    %v1279 = vadd.f32 0.0, %v1278
    %v1280 = vpop.f32.mrb[0].mxu0
    %v1281 = vpop.f32.mrb[0].mxu0
    %v1282 = vadd.f32 0.0, %v1281
    %v1283 = vpop.f32.mrb[0].mxu0
    %1284 = vmatprep.mubr.bf16.mxu0 0
    %1285 = vmatmul.mubr.bf16.gmra.mrb[0].mxu0 %v1231
    %v1286 = vpop.f32.mrb[0].mxu0
    %v1287 = vadd.f32 0.0, %v1286
    %v1288 = vpop.f32.mrb[0].mxu0
    %v1289 = vpop.f32.mrb[0].mxu0
    %v1290 = vadd.f32 0.0, %v1289
    %v1291 = vpop.f32.mrb[0].mxu0
    %1292 = vmatprep.mubr.bf16.mxu0 0
    %1293 = vmatmul.mubr.bf16.gmra.mrb[0].mxu0 %v1234
    %v1294 = vpop.f32.mrb[0].mxu0
    %v1295 = vadd.f32 0.0, %v1294
    %v1296 = vpop.f32.mrb[0].mxu0
    %v1297 = vpop.f32.mrb[0].mxu0
    %v1298 = vadd.f32 0.0, %v1297
    %v1299 = vpop.f32.mrb[0].mxu0
    %1300 = vdwg.mxu0
    %v1305 = vunpack.c.l.b16 %v243
    %v1306 = vunpack.c.l.b16 %v244
    %v1307 = vunpack.c.l.b16 %v245
    %v1308 = vunpack.c.l.b16 %v246
    %v1309 = vpack.c.b16 %v1306, %v1305
    %v1310 = vpack.c.b16 %v1308, %v1307
    %v1314 = vsel %vm646, %v906, 0
    %v1317 = vsel %vm646, %v907, 0
    %v1320 = vsel %vm646, %v908, 0
    %v1323 = vsel %vm646, %v909, 0
    %1325 = vmatprep.subr.bf16.mxu0 0
    %1326 = vmatpush1.bf16.msra.mxu0 %v1309
    %1327 = vmatprep.subr.bf16.mxu0 0
    %1328 = vmatpush1.bf16.msra.mxu0 %v1310
    %1329 = vmatprep.subr.bf16.mxu0 0
    %1330 = vmatpush1.bf16.msra.mxu0 0
    %1331 = vmatprep.subr.bf16.mxu0 0
    %1332 = vmatpush1.bf16.msra.mxu0 0
    %1333 = vmatprep.subr.bf16.mxu0 0
    %1334 = vmatpush1.bf16.msra.mxu0 0
    %1335 = vmatprep.subr.bf16.mxu0 0
    %1336 = vmatpush1.bf16.msra.mxu0 0
    %1337 = vmatprep.subr.bf16.mxu0 0
    %1338 = vmatpush1.bf16.msra.mxu0 0
    %1339 = vmatprep.subr.bf16.mxu0 0
    %1340 = vmatpush1.bf16.msra.mxu0 0
    %1341 = vmatprep.subr.bf16.mxu0 0
    %1342 = vmatpush1.bf16.msra.mxu0 0
    %1343 = vmatprep.subr.bf16.mxu0 0
    %1344 = vmatpush1.bf16.msra.mxu0 0
    %1345 = vmatprep.subr.bf16.mxu0 0
    %1346 = vmatpush1.bf16.msra.mxu0 0
    %1347 = vmatprep.subr.bf16.mxu0 0
    %1348 = vmatpush1.bf16.msra.mxu0 0
    %1349 = vmatprep.subr.bf16.mxu0 0
    %1350 = vmatpush1.bf16.msra.mxu0 0
    %1351 = vmatprep.subr.bf16.mxu0 0
    %1352 = vmatpush1.bf16.msra.mxu0 0
    %1353 = vmatprep.subr.bf16.mxu0 0
    %1354 = vmatpush1.bf16.msra.mxu0 0
    %1355 = vmatprep.subr.bf16.mxu0 0
    %1356 = vmatpush1.bf16.msra.mxu0 0
    %1357 = vmatprep.mubr.bf16.mxu0 0
    %1358 = vmatmul.mubr.bf16.gmra.mrb[0].mxu0 %v1314
    %v1359 = vpop.f32.mrb[0].mxu0
    %v1360 = vadd.f32 %v1271, %v1359
    %v1361 = vpop.f32.mrb[0].mxu0
    %v1362 = vpop.f32.mrb[0].mxu0
    %v1363 = vadd.f32 %v1274, %v1362
    %v1364 = vpop.f32.mrb[0].mxu0
    %1365 = vmatprep.mubr.bf16.mxu0 0
    %1366 = vmatmul.mubr.bf16.gmra.mrb[0].mxu0 %v1317
    %v1367 = vpop.f32.mrb[0].mxu0
    %v1368 = vadd.f32 %v1279, %v1367
    %v1369 = vpop.f32.mrb[0].mxu0
    %v1370 = vpop.f32.mrb[0].mxu0
    %v1371 = vadd.f32 %v1282, %v1370
    %v1372 = vpop.f32.mrb[0].mxu0
    %1373 = vmatprep.mubr.bf16.mxu0 0
    %1374 = vmatmul.mubr.bf16.gmra.mrb[0].mxu0 %v1320
    %v1375 = vpop.f32.mrb[0].mxu0
    %v1376 = vadd.f32 %v1287, %v1375
    %v1377 = vpop.f32.mrb[0].mxu0
    %v1378 = vpop.f32.mrb[0].mxu0
    %v1379 = vadd.f32 %v1290, %v1378
    %v1380 = vpop.f32.mrb[0].mxu0
    %1381 = vmatprep.mubr.bf16.mxu0 0
    %1382 = vmatmul.mubr.bf16.gmra.mrb[0].mxu0 %v1323
    %v1383 = vpop.f32.mrb[0].mxu0
    %v1384 = vadd.f32 %v1295, %v1383
    %v1385 = vpop.f32.mrb[0].mxu0
    %v1386 = vpop.f32.mrb[0].mxu0
    %v1387 = vadd.f32 %v1298, %v1386
    %v1388 = vpop.f32.mrb[0].mxu0
    %1389 = vdwg.mxu0
    %1390 = vrot.lane.b32.xlu0 %v622, 64
    %v1391 = vpop.permute.xlu0 %1390
    %1392 = vrot.lane.b32.xlu0 %v623, 64
    %v1393 = vpop.permute.xlu0 %1392
    %1394 = vrot.lane.b32.xlu0 %v624, 64
    %v1395 = vpop.permute.xlu0 %1394
    %1396 = vrot.lane.b32.xlu0 %v625, 64
    %v1397 = vpop.permute.xlu0 %1396
    %1398 = vrot.lane.b32.xlu0 %v630, 64
    %v1399 = vpop.permute.xlu0 %1398
    %1400 = vrot.lane.b32.xlu0 %v631, 64
    %v1401 = vpop.permute.xlu0 %1400
    %1402 = vrot.lane.b32.xlu0 %v632, 64
    %v1403 = vpop.permute.xlu0 %1402
    %1404 = vrot.lane.b32.xlu0 %v633, 64
    %v1405 = vpop.permute.xlu0 %1404
    %v1407 = vsel %vm646, %v1391, 0
    %v1410 = vsel %vm646, %v1393, 0
    %v1413 = vsel %vm646, %v1395, 0
    %v1416 = vsel %vm646, %v1397, 0
    %v1419 = vsel %vm646, %v1399, 0
    %v1422 = vsel %vm646, %v1401, 0
    %v1425 = vsel %vm646, %v1403, 0
    %v1428 = vsel %vm646, %v1405, 0
    %1430 = vmatprep.subr.bf16.mxu0 0
    %1431 = vmatpush1.bf16.xpose.msra.mxu0 %v1419
    %1432 = vmatprep.subr.bf16.mxu0 0
    %1433 = vmatpush1.bf16.xpose.msra.mxu0 %v1422
    %1434 = vmatprep.subr.bf16.mxu0 0
    %1435 = vmatpush1.bf16.xpose.msra.mxu0 %v1425
    %1436 = vmatprep.subr.bf16.mxu0 0
    %1437 = vmatpush1.bf16.xpose.msra.mxu0 %v1428
    %1438 = vmatprep.subr.bf16.mxu0 0
    %1439 = vmatpush1.bf16.xpose.msra.mxu0 0
    %1440 = vmatprep.subr.bf16.mxu0 0
    %1441 = vmatpush1.bf16.xpose.msra.mxu0 0
    %1442 = vmatprep.subr.bf16.mxu0 0
    %1443 = vmatpush1.bf16.xpose.msra.mxu0 0
    %1444 = vmatprep.subr.bf16.mxu0 0
    %1445 = vmatpush1.bf16.xpose.msra.mxu0 0
    %1446 = vmatprep.subr.bf16.mxu0 0
    %1447 = vmatpush1.bf16.xpose.msra.mxu0 0
    %1448 = vmatprep.subr.bf16.mxu0 0
    %1449 = vmatpush1.bf16.xpose.msra.mxu0 0
    %1450 = vmatprep.subr.bf16.mxu0 0
    %1451 = vmatpush1.bf16.xpose.msra.mxu0 0
    %1452 = vmatprep.subr.bf16.mxu0 0
    %1453 = vmatpush1.bf16.xpose.msra.mxu0 0
    %1454 = vmatprep.subr.bf16.mxu0 0
    %1455 = vmatpush1.bf16.xpose.msra.mxu0 0
    %1456 = vmatprep.subr.bf16.mxu0 0
    %1457 = vmatpush1.bf16.xpose.msra.mxu0 0
    %1458 = vmatprep.subr.bf16.mxu0 0
    %1459 = vmatpush1.bf16.xpose.msra.mxu0 0
    %1460 = vmatprep.subr.bf16.mxu0 0
    %1461 = vmatpush1.bf16.xpose.msra.mxu0 0
    %1462 = vmatprep.mubr.bf16.mxu0 0
    %1463 = vmatmul.mubr.bf16.gmra.mrb[0].mxu0 %v1407
    %v1464 = vpop.f32.mrb[0].mxu0
    %v1465 = vadd.f32 0.0, %v1464
    %v1466 = vpop.f32.mrb[0].mxu0
    %v1467 = vpop.f32.mrb[0].mxu0
    %v1468 = vadd.f32 0.0, %v1467
    %v1469 = vpop.f32.mrb[0].mxu0
    %1470 = vmatprep.mubr.bf16.mxu0 0
    %1471 = vmatmul.mubr.bf16.gmra.mrb[0].mxu0 %v1410
    %v1472 = vpop.f32.mrb[0].mxu0
    %v1473 = vadd.f32 0.0, %v1472
    %v1474 = vpop.f32.mrb[0].mxu0
    %v1475 = vpop.f32.mrb[0].mxu0
    %v1476 = vadd.f32 0.0, %v1475
    %v1477 = vpop.f32.mrb[0].mxu0
    %1478 = vmatprep.mubr.bf16.mxu0 0
    %1479 = vmatmul.mubr.bf16.gmra.mrb[0].mxu0 %v1413
    %v1480 = vpop.f32.mrb[0].mxu0
    %v1481 = vadd.f32 0.0, %v1480
    %v1482 = vpop.f32.mrb[0].mxu0
    %v1483 = vpop.f32.mrb[0].mxu0
    %v1484 = vadd.f32 0.0, %v1483
    %v1485 = vpop.f32.mrb[0].mxu0
    %1486 = vmatprep.mubr.bf16.mxu0 0
    %1487 = vmatmul.mubr.bf16.gmra.mrb[0].mxu0 %v1416
    %v1488 = vpop.f32.mrb[0].mxu0
    %v1489 = vadd.f32 0.0, %v1488
    %v1490 = vpop.f32.mrb[0].mxu0
    %v1491 = vpop.f32.mrb[0].mxu0
    %v1492 = vadd.f32 0.0, %v1491
    %v1493 = vpop.f32.mrb[0].mxu0
    %1494 = vdwg.mxu0
    %v1495 = vsel %vm736, %v1465, -inf
    %1496 = vmax.xlane.f32.xlu0 %v1495
    %v1497 = vpop.xlane.xlu0 %1496
    %v1498 = vsel %vm736, %v1468, -inf
    %1499 = vmax.xlane.f32.xlu0 %v1498
    %v1500 = vpop.xlane.xlu0 %1499
    %v1501 = vsel %vm736, %v1473, -inf
    %1502 = vmax.xlane.f32.xlu0 %v1501
    %v1503 = vpop.xlane.xlu0 %1502
    %v1504 = vsel %vm736, %v1476, -inf
    %1505 = vmax.xlane.f32.xlu0 %v1504
    %v1506 = vpop.xlane.xlu0 %1505
    %v1507 = vsel %vm736, %v1481, -inf
    %1508 = vmax.xlane.f32.xlu0 %v1507
    %v1509 = vpop.xlane.xlu0 %1508
    %v1510 = vsel %vm736, %v1484, -inf
    %1511 = vmax.xlane.f32.xlu0 %v1510
    %v1512 = vpop.xlane.xlu0 %1511
    %v1513 = vsel %vm736, %v1489, -inf
    %1514 = vmax.xlane.f32.xlu0 %v1513
    %v1515 = vpop.xlane.xlu0 %1514
    %v1516 = vsel %vm736, %v1492, -inf
    %1517 = vmax.xlane.f32.xlu0 %v1516
    %v1518 = vpop.xlane.xlu0 %1517
    %v1519 = vsub.f32 %v1465, %v1497
    %v1520 = vsub.f32 %v1468, %v1500
    %v1521 = vsub.f32 %v1473, %v1503
    %v1522 = vsub.f32 %v1476, %v1506
    %v1523 = vsub.f32 %v1481, %v1509
    %v1524 = vsub.f32 %v1484, %v1512
    %v1525 = vsub.f32 %v1489, %v1515
    %v1526 = vsub.f32 %v1492, %v1518
    %v1527 = vmul.f32 %v1519, 1.442695
    %v1528 = vpow.pop %v1527
    %v1529 = vmul.f32 %v1520, 1.442695
    %v1530 = vpow.pop %v1529
    %v1531 = vmul.f32 %v1521, 1.442695
    %v1532 = vpow.pop %v1531
    %v1533 = vmul.f32 %v1522, 1.442695
    %v1534 = vpow.pop %v1533
    %v1535 = vmul.f32 %v1523, 1.442695
    %v1536 = vpow.pop %v1535
    %v1537 = vmul.f32 %v1524, 1.442695
    %v1538 = vpow.pop %v1537
    %v1539 = vmul.f32 %v1525, 1.442695
    %v1540 = vpow.pop %v1539
    %v1541 = vmul.f32 %v1526, 1.442695
    %v1542 = vpow.pop %v1541
    %v1543 = vsel %vm736, %v1528, 0.0
    %1544 = vadd.xlane.f32.xlu0 %v1543
    %v1545 = vpop.xlane.xlu0 %1544
    %v1546 = vsel %vm736, %v1530, 0.0
    %1547 = vadd.xlane.f32.xlu0 %v1546
    %v1548 = vpop.xlane.xlu0 %1547
    %v1549 = vsel %vm736, %v1532, 0.0
    %1550 = vadd.xlane.f32.xlu0 %v1549
    %v1551 = vpop.xlane.xlu0 %1550
    %v1552 = vsel %vm736, %v1534, 0.0
    %1553 = vadd.xlane.f32.xlu0 %v1552
    %v1554 = vpop.xlane.xlu0 %1553
    %v1555 = vsel %vm736, %v1536, 0.0
    %1556 = vadd.xlane.f32.xlu0 %v1555
    %v1557 = vpop.xlane.xlu0 %1556
    %v1558 = vsel %vm736, %v1538, 0.0
    %1559 = vadd.xlane.f32.xlu0 %v1558
    %v1560 = vpop.xlane.xlu0 %1559
    %v1561 = vsel %vm736, %v1540, 0.0
    %1562 = vadd.xlane.f32.xlu0 %v1561
    %v1563 = vpop.xlane.xlu0 %1562
    %v1564 = vsel %vm736, %v1542, 0.0
    %1565 = vadd.xlane.f32.xlu0 %v1564
    %v1566 = vpop.xlane.xlu0 %1565
    %v1567 = vrcp.pop %v1545
    %v1568 = vrcp.pop %v1548
    %v1569 = vrcp.pop %v1551
    %v1570 = vrcp.pop %v1554
    %v1571 = vrcp.pop %v1557
    %v1572 = vrcp.pop %v1560
    %v1573 = vrcp.pop %v1563
    %v1574 = vrcp.pop %v1566
    %v1575 = vmul.f32 %v1528, %v1567
    %v1576 = vmul.f32 %v1530, %v1568
    %v1577 = vmul.f32 %v1532, %v1569
    %v1578 = vmul.f32 %v1534, %v1570
    %v1579 = vmul.f32 %v1536, %v1571
    %v1580 = vmul.f32 %v1538, %v1572
    %v1581 = vmul.f32 %v1540, %v1573
    %v1582 = vmul.f32 %v1542, %v1574
    %v1583 = vpack.c.bf16 %v1576, %v1575
    %v1584 = vpack.c.bf16 %v1578, %v1577
    %v1585 = vpack.c.bf16 %v1580, %v1579
    %v1586 = vpack.c.bf16 %v1582, %v1581
    %1587 = vrot.lane.b32.xlu0 %v638, 64
    %v1588 = vpop.permute.xlu0 %1587
    %1589 = vrot.lane.b32.xlu0 %v639, 64
    %v1590 = vpop.permute.xlu0 %1589
    %1591 = vrot.lane.b32.xlu0 %v640, 64
    %v1592 = vpop.permute.xlu0 %1591
    %1593 = vrot.lane.b32.xlu0 %v641, 64
    %v1594 = vpop.permute.xlu0 %1593
    %v1600 = vsel %vm736, %v1583, 0
    %v1603 = vsel %vm736, %v1584, 0
    %v1606 = vsel %vm736, %v1585, 0
    %v1609 = vsel %vm736, %v1586, 0
    %1611 = vmatprep.subr.bf16.mxu0 0
    %1612 = vmatpush1.bf16.msra.mxu0 %v1588
    %1613 = vmatprep.subr.bf16.mxu0 0
    %1614 = vmatpush1.bf16.msra.mxu0 %v1590
    %1615 = vmatprep.subr.bf16.mxu0 0
    %1616 = vmatpush1.bf16.msra.mxu0 %v1592
    %1617 = vmatprep.subr.bf16.mxu0 0
    %1618 = vmatpush1.bf16.msra.mxu0 %v1594
    %1619 = vmatprep.subr.bf16.mxu0 0
    %1620 = vmatpush1.bf16.msra.mxu0 0
    %1621 = vmatprep.subr.bf16.mxu0 0
    %1622 = vmatpush1.bf16.msra.mxu0 0
    %1623 = vmatprep.subr.bf16.mxu0 0
    %1624 = vmatpush1.bf16.msra.mxu0 0
    %1625 = vmatprep.subr.bf16.mxu0 0
    %1626 = vmatpush1.bf16.msra.mxu0 0
    %1627 = vmatprep.subr.bf16.mxu0 0
    %1628 = vmatpush1.bf16.msra.mxu0 0
    %1629 = vmatprep.subr.bf16.mxu0 0
    %1630 = vmatpush1.bf16.msra.mxu0 0
    %1631 = vmatprep.subr.bf16.mxu0 0
    %1632 = vmatpush1.bf16.msra.mxu0 0
    %1633 = vmatprep.subr.bf16.mxu0 0
    %1634 = vmatpush1.bf16.msra.mxu0 0
    %1635 = vmatprep.subr.bf16.mxu0 0
    %1636 = vmatpush1.bf16.msra.mxu0 0
    %1637 = vmatprep.subr.bf16.mxu0 0
    %1638 = vmatpush1.bf16.msra.mxu0 0
    %1639 = vmatprep.subr.bf16.mxu0 0
    %1640 = vmatpush1.bf16.msra.mxu0 0
    %1641 = vmatprep.subr.bf16.mxu0 0
    %1642 = vmatpush1.bf16.msra.mxu0 0
    %1643 = vmatprep.mubr.bf16.mxu0 0
    %1644 = vmatmul.mubr.bf16.gmra.mrb[0].mxu0 %v1600
    %v1645 = vpop.f32.mrb[0].mxu0
    %v1646 = vadd.f32 0.0, %v1645
    %v1647 = vpop.f32.mrb[0].mxu0
    %v1648 = vpop.f32.mrb[0].mxu0
    %v1649 = vadd.f32 0.0, %v1648
    %v1650 = vpop.f32.mrb[0].mxu0
    %1651 = vmatprep.mubr.bf16.mxu0 0
    %1652 = vmatmul.mubr.bf16.gmra.mrb[0].mxu0 %v1603
    %v1653 = vpop.f32.mrb[0].mxu0
    %v1654 = vadd.f32 0.0, %v1653
    %v1655 = vpop.f32.mrb[0].mxu0
    %v1656 = vpop.f32.mrb[0].mxu0
    %v1657 = vadd.f32 0.0, %v1656
    %v1658 = vpop.f32.mrb[0].mxu0
    %1659 = vmatprep.mubr.bf16.mxu0 0
    %1660 = vmatmul.mubr.bf16.gmra.mrb[0].mxu0 %v1606
    %v1661 = vpop.f32.mrb[0].mxu0
    %v1662 = vadd.f32 0.0, %v1661
    %v1663 = vpop.f32.mrb[0].mxu0
    %v1664 = vpop.f32.mrb[0].mxu0
    %v1665 = vadd.f32 0.0, %v1664
    %v1666 = vpop.f32.mrb[0].mxu0
    %1667 = vmatprep.mubr.bf16.mxu0 0
    %1668 = vmatmul.mubr.bf16.gmra.mrb[0].mxu0 %v1609
    %v1669 = vpop.f32.mrb[0].mxu0
    %v1670 = vadd.f32 0.0, %v1669
    %v1671 = vpop.f32.mrb[0].mxu0
    %v1672 = vpop.f32.mrb[0].mxu0
    %v1673 = vadd.f32 0.0, %v1672
    %v1674 = vpop.f32.mrb[0].mxu0
    %1675 = vdwg.mxu0
    %v1676 = vpack.c.bf16 %v1649, %v1646
    %v1677 = vpack.c.bf16 %v1657, %v1654
    %v1678 = vpack.c.bf16 %v1665, %v1662
    %v1679 = vpack.c.bf16 %v1673, %v1670
    %v1684 = vunpack.c.l.b16 %v251
    %v1685 = vunpack.c.l.b16 %v252
    %v1686 = vunpack.c.l.b16 %v253
    %v1687 = vunpack.c.l.b16 %v254
    %v1688 = vpack.c.b16 %v1685, %v1684
    %v1689 = vpack.c.b16 %v1687, %v1686
    %v1693 = vsel %vm646, %v1676, 0
    %v1696 = vsel %vm646, %v1677, 0
    %v1699 = vsel %vm646, %v1678, 0
    %v1702 = vsel %vm646, %v1679, 0
    %1704 = vmatprep.subr.bf16.mxu0 0
    %1705 = vmatpush1.bf16.msra.mxu0 %v1688
    %1706 = vmatprep.subr.bf16.mxu0 0
    %1707 = vmatpush1.bf16.msra.mxu0 %v1689
    %1708 = vmatprep.subr.bf16.mxu0 0
    %1709 = vmatpush1.bf16.msra.mxu0 0
    %1710 = vmatprep.subr.bf16.mxu0 0
    %1711 = vmatpush1.bf16.msra.mxu0 0
    %1712 = vmatprep.subr.bf16.mxu0 0
    %1713 = vmatpush1.bf16.msra.mxu0 0
    %1714 = vmatprep.subr.bf16.mxu0 0
    %1715 = vmatpush1.bf16.msra.mxu0 0
    %1716 = vmatprep.subr.bf16.mxu0 0
    %1717 = vmatpush1.bf16.msra.mxu0 0
    %1718 = vmatprep.subr.bf16.mxu0 0
    %1719 = vmatpush1.bf16.msra.mxu0 0
    %1720 = vmatprep.subr.bf16.mxu0 0
    %1721 = vmatpush1.bf16.msra.mxu0 0
    %1722 = vmatprep.subr.bf16.mxu0 0
    %1723 = vmatpush1.bf16.msra.mxu0 0
    %1724 = vmatprep.subr.bf16.mxu0 0
    %1725 = vmatpush1.bf16.msra.mxu0 0
    %1726 = vmatprep.subr.bf16.mxu0 0
    %1727 = vmatpush1.bf16.msra.mxu0 0
    %1728 = vmatprep.subr.bf16.mxu0 0
    %1729 = vmatpush1.bf16.msra.mxu0 0
    %1730 = vmatprep.subr.bf16.mxu0 0
    %1731 = vmatpush1.bf16.msra.mxu0 0
    %1732 = vmatprep.subr.bf16.mxu0 0
    %1733 = vmatpush1.bf16.msra.mxu0 0
    %1734 = vmatprep.subr.bf16.mxu0 0
    %1735 = vmatpush1.bf16.msra.mxu0 0
    %1736 = vmatprep.mubr.bf16.mxu0 0
    %1737 = vmatmul.mubr.bf16.gmra.mrb[0].mxu0 %v1693
    %v1738 = vpop.f32.mrb[0].mxu0
    %v1739 = vadd.f32 0.0, %v1738
    %v1740 = vpop.f32.mrb[0].mxu0
    %v1741 = vpop.f32.mrb[0].mxu0
    %v1742 = vadd.f32 0.0, %v1741
    %v1743 = vpop.f32.mrb[0].mxu0
    %1744 = vmatprep.mubr.bf16.mxu0 0
    %1745 = vmatmul.mubr.bf16.gmra.mrb[0].mxu0 %v1696
    %v1746 = vpop.f32.mrb[0].mxu0
    %v1747 = vadd.f32 0.0, %v1746
    %v1748 = vpop.f32.mrb[0].mxu0
    %v1749 = vpop.f32.mrb[0].mxu0
    %v1750 = vadd.f32 0.0, %v1749
    %v1751 = vpop.f32.mrb[0].mxu0
    %1752 = vmatprep.mubr.bf16.mxu0 0
    %1753 = vmatmul.mubr.bf16.gmra.mrb[0].mxu0 %v1699
    %v1754 = vpop.f32.mrb[0].mxu0
    %v1755 = vadd.f32 0.0, %v1754
    %v1756 = vpop.f32.mrb[0].mxu0
    %v1757 = vpop.f32.mrb[0].mxu0
    %v1758 = vadd.f32 0.0, %v1757
    %v1759 = vpop.f32.mrb[0].mxu0
    %1760 = vmatprep.mubr.bf16.mxu0 0
    %1761 = vmatmul.mubr.bf16.gmra.mrb[0].mxu0 %v1702
    %v1762 = vpop.f32.mrb[0].mxu0
    %v1763 = vadd.f32 0.0, %v1762
    %v1764 = vpop.f32.mrb[0].mxu0
    %v1765 = vpop.f32.mrb[0].mxu0
    %v1766 = vadd.f32 0.0, %v1765
    %v1767 = vpop.f32.mrb[0].mxu0
    %1768 = vdwg.mxu0
    %v1769 = vadd.f32 %v1360, %v1739
    %v1770 = vadd.f32 %v1363, %v1742
    %v1771 = vadd.f32 %v1368, %v1747
    %v1772 = vadd.f32 %v1371, %v1750
    %v1773 = vadd.f32 %v1376, %v1755
    %v1774 = vadd.f32 %v1379, %v1758
    %v1775 = vadd.f32 %v1384, %v1763
    %v1776 = vadd.f32 %v1387, %v1766
    %1777 = vrot.lane.b32.xlu0 %v622, 32
    %v1778 = vpop.permute.xlu0 %1777
    %1779 = vrot.lane.b32.xlu0 %v623, 32
    %v1780 = vpop.permute.xlu0 %1779
    %1781 = vrot.lane.b32.xlu0 %v624, 32
    %v1782 = vpop.permute.xlu0 %1781
    %1783 = vrot.lane.b32.xlu0 %v625, 32
    %v1784 = vpop.permute.xlu0 %1783
    %1785 = vrot.lane.b32.xlu0 %v630, 32
    %v1786 = vpop.permute.xlu0 %1785
    %1787 = vrot.lane.b32.xlu0 %v631, 32
    %v1788 = vpop.permute.xlu0 %1787
    %1789 = vrot.lane.b32.xlu0 %v632, 32
    %v1790 = vpop.permute.xlu0 %1789
    %1791 = vrot.lane.b32.xlu0 %v633, 32
    %v1792 = vpop.permute.xlu0 %1791
    %v1794 = vsel %vm646, %v1778, 0
    %v1797 = vsel %vm646, %v1780, 0
    %v1800 = vsel %vm646, %v1782, 0
    %v1803 = vsel %vm646, %v1784, 0
    %v1806 = vsel %vm646, %v1786, 0
    %v1809 = vsel %vm646, %v1788, 0
    %v1812 = vsel %vm646, %v1790, 0
    %v1815 = vsel %vm646, %v1792, 0
    %1817 = vmatprep.subr.bf16.mxu0 0
    %1818 = vmatpush1.bf16.xpose.msra.mxu0 %v1806
    %1819 = vmatprep.subr.bf16.mxu0 0
    %1820 = vmatpush1.bf16.xpose.msra.mxu0 %v1809
    %1821 = vmatprep.subr.bf16.mxu0 0
    %1822 = vmatpush1.bf16.xpose.msra.mxu0 %v1812
    %1823 = vmatprep.subr.bf16.mxu0 0
    %1824 = vmatpush1.bf16.xpose.msra.mxu0 %v1815
    %1825 = vmatprep.subr.bf16.mxu0 0
    %1826 = vmatpush1.bf16.xpose.msra.mxu0 0
    %1827 = vmatprep.subr.bf16.mxu0 0
    %1828 = vmatpush1.bf16.xpose.msra.mxu0 0
    %1829 = vmatprep.subr.bf16.mxu0 0
    %1830 = vmatpush1.bf16.xpose.msra.mxu0 0
    %1831 = vmatprep.subr.bf16.mxu0 0
    %1832 = vmatpush1.bf16.xpose.msra.mxu0 0
    %1833 = vmatprep.subr.bf16.mxu0 0
    %1834 = vmatpush1.bf16.xpose.msra.mxu0 0
    %1835 = vmatprep.subr.bf16.mxu0 0
    %1836 = vmatpush1.bf16.xpose.msra.mxu0 0
    %1837 = vmatprep.subr.bf16.mxu0 0
    %1838 = vmatpush1.bf16.xpose.msra.mxu0 0
    %1839 = vmatprep.subr.bf16.mxu0 0
    %1840 = vmatpush1.bf16.xpose.msra.mxu0 0
    %1841 = vmatprep.subr.bf16.mxu0 0
    %1842 = vmatpush1.bf16.xpose.msra.mxu0 0
    %1843 = vmatprep.subr.bf16.mxu0 0
    %1844 = vmatpush1.bf16.xpose.msra.mxu0 0
    %1845 = vmatprep.subr.bf16.mxu0 0
    %1846 = vmatpush1.bf16.xpose.msra.mxu0 0
    %1847 = vmatprep.subr.bf16.mxu0 0
    %1848 = vmatpush1.bf16.xpose.msra.mxu0 0
    %1849 = vmatprep.mubr.bf16.mxu0 0
    %1850 = vmatmul.mubr.bf16.gmra.mrb[0].mxu0 %v1794
    %v1851 = vpop.f32.mrb[0].mxu0
    %v1852 = vadd.f32 0.0, %v1851
    %v1853 = vpop.f32.mrb[0].mxu0
    %v1854 = vpop.f32.mrb[0].mxu0
    %v1855 = vadd.f32 0.0, %v1854
    %v1856 = vpop.f32.mrb[0].mxu0
    %1857 = vmatprep.mubr.bf16.mxu0 0
    %1858 = vmatmul.mubr.bf16.gmra.mrb[0].mxu0 %v1797
    %v1859 = vpop.f32.mrb[0].mxu0
    %v1860 = vadd.f32 0.0, %v1859
    %v1861 = vpop.f32.mrb[0].mxu0
    %v1862 = vpop.f32.mrb[0].mxu0
    %v1863 = vadd.f32 0.0, %v1862
    %v1864 = vpop.f32.mrb[0].mxu0
    %1865 = vmatprep.mubr.bf16.mxu0 0
    %1866 = vmatmul.mubr.bf16.gmra.mrb[0].mxu0 %v1800
    %v1867 = vpop.f32.mrb[0].mxu0
    %v1868 = vadd.f32 0.0, %v1867
    %v1869 = vpop.f32.mrb[0].mxu0
    %v1870 = vpop.f32.mrb[0].mxu0
    %v1871 = vadd.f32 0.0, %v1870
    %v1872 = vpop.f32.mrb[0].mxu0
    %1873 = vmatprep.mubr.bf16.mxu0 0
    %1874 = vmatmul.mubr.bf16.gmra.mrb[0].mxu0 %v1803
    %v1875 = vpop.f32.mrb[0].mxu0
    %v1876 = vadd.f32 0.0, %v1875
    %v1877 = vpop.f32.mrb[0].mxu0
    %v1878 = vpop.f32.mrb[0].mxu0
    %v1879 = vadd.f32 0.0, %v1878
    %v1880 = vpop.f32.mrb[0].mxu0
    %1881 = vdwg.mxu0
    %v1882 = vsel %vm736, %v1852, -inf
    %1883 = vmax.xlane.f32.xlu0 %v1882
    %v1884 = vpop.xlane.xlu0 %1883
    %v1885 = vsel %vm736, %v1855, -inf
    %1886 = vmax.xlane.f32.xlu0 %v1885
    %v1887 = vpop.xlane.xlu0 %1886
    %v1888 = vsel %vm736, %v1860, -inf
    %1889 = vmax.xlane.f32.xlu0 %v1888
    %v1890 = vpop.xlane.xlu0 %1889
    %v1891 = vsel %vm736, %v1863, -inf
    %1892 = vmax.xlane.f32.xlu0 %v1891
    %v1893 = vpop.xlane.xlu0 %1892
    %v1894 = vsel %vm736, %v1868, -inf
    %1895 = vmax.xlane.f32.xlu0 %v1894
    %v1896 = vpop.xlane.xlu0 %1895
    %v1897 = vsel %vm736, %v1871, -inf
    %1898 = vmax.xlane.f32.xlu0 %v1897
    %v1899 = vpop.xlane.xlu0 %1898
    %v1900 = vsel %vm736, %v1876, -inf
    %1901 = vmax.xlane.f32.xlu0 %v1900
    %v1902 = vpop.xlane.xlu0 %1901
    %v1903 = vsel %vm736, %v1879, -inf
    %1904 = vmax.xlane.f32.xlu0 %v1903
    %v1905 = vpop.xlane.xlu0 %1904
    %v1906 = vsub.f32 %v1852, %v1884
    %v1907 = vsub.f32 %v1855, %v1887
    %v1908 = vsub.f32 %v1860, %v1890
    %v1909 = vsub.f32 %v1863, %v1893
    %v1910 = vsub.f32 %v1868, %v1896
    %v1911 = vsub.f32 %v1871, %v1899
    %v1912 = vsub.f32 %v1876, %v1902
    %v1913 = vsub.f32 %v1879, %v1905
    %v1914 = vmul.f32 %v1906, 1.442695
    %v1915 = vpow.pop %v1914
    %v1916 = vmul.f32 %v1907, 1.442695
    %v1917 = vpow.pop %v1916
    %v1918 = vmul.f32 %v1908, 1.442695
    %v1919 = vpow.pop %v1918
    %v1920 = vmul.f32 %v1909, 1.442695
    %v1921 = vpow.pop %v1920
    %v1922 = vmul.f32 %v1910, 1.442695
    %v1923 = vpow.pop %v1922
    %v1924 = vmul.f32 %v1911, 1.442695
    %v1925 = vpow.pop %v1924
    %v1926 = vmul.f32 %v1912, 1.442695
    %v1927 = vpow.pop %v1926
    %v1928 = vmul.f32 %v1913, 1.442695
    %v1929 = vpow.pop %v1928
    %v1930 = vsel %vm736, %v1915, 0.0
    %1931 = vadd.xlane.f32.xlu0 %v1930
    %v1932 = vpop.xlane.xlu0 %1931
    %v1933 = vsel %vm736, %v1917, 0.0
    %1934 = vadd.xlane.f32.xlu0 %v1933
    %v1935 = vpop.xlane.xlu0 %1934
    %v1936 = vsel %vm736, %v1919, 0.0
    %1937 = vadd.xlane.f32.xlu0 %v1936
    %v1938 = vpop.xlane.xlu0 %1937
    %v1939 = vsel %vm736, %v1921, 0.0
    %1940 = vadd.xlane.f32.xlu0 %v1939
    %v1941 = vpop.xlane.xlu0 %1940
    %v1942 = vsel %vm736, %v1923, 0.0
    %1943 = vadd.xlane.f32.xlu0 %v1942
    %v1944 = vpop.xlane.xlu0 %1943
    %v1945 = vsel %vm736, %v1925, 0.0
    %1946 = vadd.xlane.f32.xlu0 %v1945
    %v1947 = vpop.xlane.xlu0 %1946
    %v1948 = vsel %vm736, %v1927, 0.0
    %1949 = vadd.xlane.f32.xlu0 %v1948
    %v1950 = vpop.xlane.xlu0 %1949
    %v1951 = vsel %vm736, %v1929, 0.0
    %1952 = vadd.xlane.f32.xlu0 %v1951
    %v1953 = vpop.xlane.xlu0 %1952
    %v1954 = vrcp.pop %v1932
    %v1955 = vrcp.pop %v1935
    %v1956 = vrcp.pop %v1938
    %v1957 = vrcp.pop %v1941
    %v1958 = vrcp.pop %v1944
    %v1959 = vrcp.pop %v1947
    %v1960 = vrcp.pop %v1950
    %v1961 = vrcp.pop %v1953
    %v1962 = vmul.f32 %v1915, %v1954
    %v1963 = vmul.f32 %v1917, %v1955
    %v1964 = vmul.f32 %v1919, %v1956
    %v1965 = vmul.f32 %v1921, %v1957
    %v1966 = vmul.f32 %v1923, %v1958
    %v1967 = vmul.f32 %v1925, %v1959
    %v1968 = vmul.f32 %v1927, %v1960
    %v1969 = vmul.f32 %v1929, %v1961
    %v1970 = vpack.c.bf16 %v1963, %v1962
    %v1971 = vpack.c.bf16 %v1965, %v1964
    %v1972 = vpack.c.bf16 %v1967, %v1966
    %v1973 = vpack.c.bf16 %v1969, %v1968
    %1974 = vrot.lane.b32.xlu0 %v638, 32
    %v1975 = vpop.permute.xlu0 %1974
    %1976 = vrot.lane.b32.xlu0 %v639, 32
    %v1977 = vpop.permute.xlu0 %1976
    %1978 = vrot.lane.b32.xlu0 %v640, 32
    %v1979 = vpop.permute.xlu0 %1978
    %1980 = vrot.lane.b32.xlu0 %v641, 32
    %v1981 = vpop.permute.xlu0 %1980
    %v1987 = vsel %vm736, %v1970, 0
    %v1990 = vsel %vm736, %v1971, 0
    %v1993 = vsel %vm736, %v1972, 0
    %v1996 = vsel %vm736, %v1973, 0
    %1998 = vmatprep.subr.bf16.mxu0 0
    %1999 = vmatpush1.bf16.msra.mxu0 %v1975
    %2000 = vmatprep.subr.bf16.mxu0 0
    %2001 = vmatpush1.bf16.msra.mxu0 %v1977
    %2002 = vmatprep.subr.bf16.mxu0 0
    %2003 = vmatpush1.bf16.msra.mxu0 %v1979
    %2004 = vmatprep.subr.bf16.mxu0 0
    %2005 = vmatpush1.bf16.msra.mxu0 %v1981
    %2006 = vmatprep.subr.bf16.mxu0 0
    %2007 = vmatpush1.bf16.msra.mxu0 0
    %2008 = vmatprep.subr.bf16.mxu0 0
    %2009 = vmatpush1.bf16.msra.mxu0 0
    %2010 = vmatprep.subr.bf16.mxu0 0
    %2011 = vmatpush1.bf16.msra.mxu0 0
    %2012 = vmatprep.subr.bf16.mxu0 0
    %2013 = vmatpush1.bf16.msra.mxu0 0
    %2014 = vmatprep.subr.bf16.mxu0 0
    %2015 = vmatpush1.bf16.msra.mxu0 0
    %2016 = vmatprep.subr.bf16.mxu0 0
    %2017 = vmatpush1.bf16.msra.mxu0 0
    %2018 = vmatprep.subr.bf16.mxu0 0
    %2019 = vmatpush1.bf16.msra.mxu0 0
    %2020 = vmatprep.subr.bf16.mxu0 0
    %2021 = vmatpush1.bf16.msra.mxu0 0
    %2022 = vmatprep.subr.bf16.mxu0 0
    %2023 = vmatpush1.bf16.msra.mxu0 0
    %2024 = vmatprep.subr.bf16.mxu0 0
    %2025 = vmatpush1.bf16.msra.mxu0 0
    %2026 = vmatprep.subr.bf16.mxu0 0
    %2027 = vmatpush1.bf16.msra.mxu0 0
    %2028 = vmatprep.subr.bf16.mxu0 0
    %2029 = vmatpush1.bf16.msra.mxu0 0
    %2030 = vmatprep.mubr.bf16.mxu0 0
    %2031 = vmatmul.mubr.bf16.gmra.mrb[0].mxu0 %v1987
    %v2032 = vpop.f32.mrb[0].mxu0
    %v2033 = vadd.f32 0.0, %v2032
    %v2034 = vpop.f32.mrb[0].mxu0
    %v2035 = vpop.f32.mrb[0].mxu0
    %v2036 = vadd.f32 0.0, %v2035
    %v2037 = vpop.f32.mrb[0].mxu0
    %2038 = vmatprep.mubr.bf16.mxu0 0
    %2039 = vmatmul.mubr.bf16.gmra.mrb[0].mxu0 %v1990
    %v2040 = vpop.f32.mrb[0].mxu0
    %v2041 = vadd.f32 0.0, %v2040
    %v2042 = vpop.f32.mrb[0].mxu0
    %v2043 = vpop.f32.mrb[0].mxu0
    %v2044 = vadd.f32 0.0, %v2043
    %v2045 = vpop.f32.mrb[0].mxu0
    %2046 = vmatprep.mubr.bf16.mxu0 0
    %2047 = vmatmul.mubr.bf16.gmra.mrb[0].mxu0 %v1993
    %v2048 = vpop.f32.mrb[0].mxu0
    %v2049 = vadd.f32 0.0, %v2048
    %v2050 = vpop.f32.mrb[0].mxu0
    %v2051 = vpop.f32.mrb[0].mxu0
    %v2052 = vadd.f32 0.0, %v2051
    %v2053 = vpop.f32.mrb[0].mxu0
    %2054 = vmatprep.mubr.bf16.mxu0 0
    %2055 = vmatmul.mubr.bf16.gmra.mrb[0].mxu0 %v1996
    %v2056 = vpop.f32.mrb[0].mxu0
    %v2057 = vadd.f32 0.0, %v2056
    %v2058 = vpop.f32.mrb[0].mxu0
    %v2059 = vpop.f32.mrb[0].mxu0
    %v2060 = vadd.f32 0.0, %v2059
    %v2061 = vpop.f32.mrb[0].mxu0
    %2062 = vdwg.mxu0
    %v2063 = vpack.c.bf16 %v2036, %v2033
    %v2064 = vpack.c.bf16 %v2044, %v2041
    %v2065 = vpack.c.bf16 %v2052, %v2049
    %v2066 = vpack.c.bf16 %v2060, %v2057
    %v2071 = vunpack.c.l.b16 %v255
    %v2072 = vunpack.c.l.b16 %v256
    %v2073 = vunpack.c.l.b16 %v257
    %v2074 = vunpack.c.l.b16 %v258
    %v2075 = vpack.c.b16 %v2072, %v2071
    %v2076 = vpack.c.b16 %v2074, %v2073
    %v2080 = vsel %vm646, %v2063, 0
    %v2083 = vsel %vm646, %v2064, 0
    %v2086 = vsel %vm646, %v2065, 0
    %v2089 = vsel %vm646, %v2066, 0
    %2091 = vmatprep.subr.bf16.mxu0 0
    %2092 = vmatpush1.bf16.msra.mxu0 %v2075
    %2093 = vmatprep.subr.bf16.mxu0 0
    %2094 = vmatpush1.bf16.msra.mxu0 %v2076
    %2095 = vmatprep.subr.bf16.mxu0 0
    %2096 = vmatpush1.bf16.msra.mxu0 0
    %2097 = vmatprep.subr.bf16.mxu0 0
    %2098 = vmatpush1.bf16.msra.mxu0 0
    %2099 = vmatprep.subr.bf16.mxu0 0
    %2100 = vmatpush1.bf16.msra.mxu0 0
    %2101 = vmatprep.subr.bf16.mxu0 0
    %2102 = vmatpush1.bf16.msra.mxu0 0
    %2103 = vmatprep.subr.bf16.mxu0 0
    %2104 = vmatpush1.bf16.msra.mxu0 0
    %2105 = vmatprep.subr.bf16.mxu0 0
    %2106 = vmatpush1.bf16.msra.mxu0 0
    %2107 = vmatprep.subr.bf16.mxu0 0
    %2108 = vmatpush1.bf16.msra.mxu0 0
    %2109 = vmatprep.subr.bf16.mxu0 0
    %2110 = vmatpush1.bf16.msra.mxu0 0
    %2111 = vmatprep.subr.bf16.mxu0 0
    %2112 = vmatpush1.bf16.msra.mxu0 0
    %2113 = vmatprep.subr.bf16.mxu0 0
    %2114 = vmatpush1.bf16.msra.mxu0 0
    %2115 = vmatprep.subr.bf16.mxu0 0
    %2116 = vmatpush1.bf16.msra.mxu0 0
    %2117 = vmatprep.subr.bf16.mxu0 0
    %2118 = vmatpush1.bf16.msra.mxu0 0
    %2119 = vmatprep.subr.bf16.mxu0 0
    %2120 = vmatpush1.bf16.msra.mxu0 0
    %2121 = vmatprep.subr.bf16.mxu0 0
    %2122 = vmatpush1.bf16.msra.mxu0 0
    %2123 = vmatprep.mubr.bf16.mxu0 0
    %2124 = vmatmul.mubr.bf16.gmra.mrb[0].mxu0 %v2080
    %v2125 = vpop.f32.mrb[0].mxu0
    %v2126 = vadd.f32 0.0, %v2125
    %v2127 = vpop.f32.mrb[0].mxu0
    %v2128 = vpop.f32.mrb[0].mxu0
    %v2129 = vadd.f32 0.0, %v2128
    %v2130 = vpop.f32.mrb[0].mxu0
    %2131 = vmatprep.mubr.bf16.mxu0 0
    %2132 = vmatmul.mubr.bf16.gmra.mrb[0].mxu0 %v2083
    %v2133 = vpop.f32.mrb[0].mxu0
    %v2134 = vadd.f32 0.0, %v2133
    %v2135 = vpop.f32.mrb[0].mxu0
    %v2136 = vpop.f32.mrb[0].mxu0
    %v2137 = vadd.f32 0.0, %v2136
    %v2138 = vpop.f32.mrb[0].mxu0
    %2139 = vmatprep.mubr.bf16.mxu0 0
    %2140 = vmatmul.mubr.bf16.gmra.mrb[0].mxu0 %v2086
    %v2141 = vpop.f32.mrb[0].mxu0
    %v2142 = vadd.f32 0.0, %v2141
    %v2143 = vpop.f32.mrb[0].mxu0
    %v2144 = vpop.f32.mrb[0].mxu0
    %v2145 = vadd.f32 0.0, %v2144
    %v2146 = vpop.f32.mrb[0].mxu0
    %2147 = vmatprep.mubr.bf16.mxu0 0
    %2148 = vmatmul.mubr.bf16.gmra.mrb[0].mxu0 %v2089
    %v2149 = vpop.f32.mrb[0].mxu0
    %v2150 = vadd.f32 0.0, %v2149
    %v2151 = vpop.f32.mrb[0].mxu0
    %v2152 = vpop.f32.mrb[0].mxu0
    %v2153 = vadd.f32 0.0, %v2152
    %v2154 = vpop.f32.mrb[0].mxu0
    %2155 = vdwg.mxu0
    %v2156 = vadd.f32 %v1769, %v2126
    %v2157 = vadd.f32 %v1770, %v2129
    %v2158 = vadd.f32 %v1771, %v2134
    %v2159 = vadd.f32 %v1772, %v2137
    %v2160 = vadd.f32 %v1773, %v2142
    %v2161 = vadd.f32 %v1774, %v2145
    %v2162 = vadd.f32 %v1775, %v2150
    %v2163 = vadd.f32 %v1776, %v2153
    %v2165 = vsel %vm646, %v626, 0
    %v2168 = vsel %vm646, %v627, 0
    %v2171 = vsel %vm646, %v628, 0
    %v2174 = vsel %vm646, %v629, 0
    %v2177 = vsel %vm646, %v634, 0
    %v2180 = vsel %vm646, %v635, 0
    %v2183 = vsel %vm646, %v636, 0
    %v2186 = vsel %vm646, %v637, 0
    %2188 = vmatprep.subr.bf16.mxu0 0
    %2189 = vmatpush1.bf16.xpose.msra.mxu0 %v2177
    %2190 = vmatprep.subr.bf16.mxu0 0
    %2191 = vmatpush1.bf16.xpose.msra.mxu0 %v2180
    %2192 = vmatprep.subr.bf16.mxu0 0
    %2193 = vmatpush1.bf16.xpose.msra.mxu0 %v2183
    %2194 = vmatprep.subr.bf16.mxu0 0
    %2195 = vmatpush1.bf16.xpose.msra.mxu0 %v2186
    %2196 = vmatprep.subr.bf16.mxu0 0
    %2197 = vmatpush1.bf16.xpose.msra.mxu0 0
    %2198 = vmatprep.subr.bf16.mxu0 0
    %2199 = vmatpush1.bf16.xpose.msra.mxu0 0
    %2200 = vmatprep.subr.bf16.mxu0 0
    %2201 = vmatpush1.bf16.xpose.msra.mxu0 0
    %2202 = vmatprep.subr.bf16.mxu0 0
    %2203 = vmatpush1.bf16.xpose.msra.mxu0 0
    %2204 = vmatprep.subr.bf16.mxu0 0
    %2205 = vmatpush1.bf16.xpose.msra.mxu0 0
    %2206 = vmatprep.subr.bf16.mxu0 0
    %2207 = vmatpush1.bf16.xpose.msra.mxu0 0
    %2208 = vmatprep.subr.bf16.mxu0 0
    %2209 = vmatpush1.bf16.xpose.msra.mxu0 0
    %2210 = vmatprep.subr.bf16.mxu0 0
    %2211 = vmatpush1.bf16.xpose.msra.mxu0 0
    %2212 = vmatprep.subr.bf16.mxu0 0
    %2213 = vmatpush1.bf16.xpose.msra.mxu0 0
    %2214 = vmatprep.subr.bf16.mxu0 0
    %2215 = vmatpush1.bf16.xpose.msra.mxu0 0
    %2216 = vmatprep.subr.bf16.mxu0 0
    %2217 = vmatpush1.bf16.xpose.msra.mxu0 0
    %2218 = vmatprep.subr.bf16.mxu0 0
    %2219 = vmatpush1.bf16.xpose.msra.mxu0 0
    %2220 = vmatprep.mubr.bf16.mxu0 0
    %2221 = vmatmul.mubr.bf16.gmra.mrb[0].mxu0 %v2165
    %v2222 = vpop.f32.mrb[0].mxu0
    %v2223 = vadd.f32 0.0, %v2222
    %v2224 = vpop.f32.mrb[0].mxu0
    %v2225 = vpop.f32.mrb[0].mxu0
    %v2226 = vadd.f32 0.0, %v2225
    %v2227 = vpop.f32.mrb[0].mxu0
    %2228 = vmatprep.mubr.bf16.mxu0 0
    %2229 = vmatmul.mubr.bf16.gmra.mrb[0].mxu0 %v2168
    %v2230 = vpop.f32.mrb[0].mxu0
    %v2231 = vadd.f32 0.0, %v2230
    %v2232 = vpop.f32.mrb[0].mxu0
    %v2233 = vpop.f32.mrb[0].mxu0
    %v2234 = vadd.f32 0.0, %v2233
    %v2235 = vpop.f32.mrb[0].mxu0
    %2236 = vmatprep.mubr.bf16.mxu0 0
    %2237 = vmatmul.mubr.bf16.gmra.mrb[0].mxu0 %v2171
    %v2238 = vpop.f32.mrb[0].mxu0
    %v2239 = vadd.f32 0.0, %v2238
    %v2240 = vpop.f32.mrb[0].mxu0
    %v2241 = vpop.f32.mrb[0].mxu0
    %v2242 = vadd.f32 0.0, %v2241
    %v2243 = vpop.f32.mrb[0].mxu0
    %2244 = vmatprep.mubr.bf16.mxu0 0
    %2245 = vmatmul.mubr.bf16.gmra.mrb[0].mxu0 %v2174
    %v2246 = vpop.f32.mrb[0].mxu0
    %v2247 = vadd.f32 0.0, %v2246
    %v2248 = vpop.f32.mrb[0].mxu0
    %v2249 = vpop.f32.mrb[0].mxu0
    %v2250 = vadd.f32 0.0, %v2249
    %v2251 = vpop.f32.mrb[0].mxu0
    %2252 = vdwg.mxu0
    %v2253 = vsel %vm736, %v2223, -inf
    %2254 = vmax.xlane.f32.xlu0 %v2253
    %v2255 = vpop.xlane.xlu0 %2254
    %v2256 = vsel %vm736, %v2226, -inf
    %2257 = vmax.xlane.f32.xlu0 %v2256
    %v2258 = vpop.xlane.xlu0 %2257
    %v2259 = vsel %vm736, %v2231, -inf
    %2260 = vmax.xlane.f32.xlu0 %v2259
    %v2261 = vpop.xlane.xlu0 %2260
    %v2262 = vsel %vm736, %v2234, -inf
    %2263 = vmax.xlane.f32.xlu0 %v2262
    %v2264 = vpop.xlane.xlu0 %2263
    %v2265 = vsel %vm736, %v2239, -inf
    %2266 = vmax.xlane.f32.xlu0 %v2265
    %v2267 = vpop.xlane.xlu0 %2266
    %v2268 = vsel %vm736, %v2242, -inf
    %2269 = vmax.xlane.f32.xlu0 %v2268
    %v2270 = vpop.xlane.xlu0 %2269
    %v2271 = vsel %vm736, %v2247, -inf
    %2272 = vmax.xlane.f32.xlu0 %v2271
    %v2273 = vpop.xlane.xlu0 %2272
    %v2274 = vsel %vm736, %v2250, -inf
    %2275 = vmax.xlane.f32.xlu0 %v2274
    %v2276 = vpop.xlane.xlu0 %2275
    %v2277 = vsub.f32 %v2223, %v2255
    %v2278 = vsub.f32 %v2226, %v2258
    %v2279 = vsub.f32 %v2231, %v2261
    %v2280 = vsub.f32 %v2234, %v2264
    %v2281 = vsub.f32 %v2239, %v2267
    %v2282 = vsub.f32 %v2242, %v2270
    %v2283 = vsub.f32 %v2247, %v2273
    %v2284 = vsub.f32 %v2250, %v2276
    %v2285 = vmul.f32 %v2277, 1.442695
    %v2286 = vpow.pop %v2285
    %v2287 = vmul.f32 %v2278, 1.442695
    %v2288 = vpow.pop %v2287
    %v2289 = vmul.f32 %v2279, 1.442695
    %v2290 = vpow.pop %v2289
    %v2291 = vmul.f32 %v2280, 1.442695
    %v2292 = vpow.pop %v2291
    %v2293 = vmul.f32 %v2281, 1.442695
    %v2294 = vpow.pop %v2293
    %v2295 = vmul.f32 %v2282, 1.442695
    %v2296 = vpow.pop %v2295
    %v2297 = vmul.f32 %v2283, 1.442695
    %v2298 = vpow.pop %v2297
    %v2299 = vmul.f32 %v2284, 1.442695
    %v2300 = vpow.pop %v2299
    %v2301 = vsel %vm736, %v2286, 0.0
    %2302 = vadd.xlane.f32.xlu0 %v2301
    %v2303 = vpop.xlane.xlu0 %2302
    %v2304 = vsel %vm736, %v2288, 0.0
    %2305 = vadd.xlane.f32.xlu0 %v2304
    %v2306 = vpop.xlane.xlu0 %2305
    %v2307 = vsel %vm736, %v2290, 0.0
    %2308 = vadd.xlane.f32.xlu0 %v2307
    %v2309 = vpop.xlane.xlu0 %2308
    %v2310 = vsel %vm736, %v2292, 0.0
    %2311 = vadd.xlane.f32.xlu0 %v2310
    %v2312 = vpop.xlane.xlu0 %2311
    %v2313 = vsel %vm736, %v2294, 0.0
    %2314 = vadd.xlane.f32.xlu0 %v2313
    %v2315 = vpop.xlane.xlu0 %2314
    %v2316 = vsel %vm736, %v2296, 0.0
    %2317 = vadd.xlane.f32.xlu0 %v2316
    %v2318 = vpop.xlane.xlu0 %2317
    %v2319 = vsel %vm736, %v2298, 0.0
    %2320 = vadd.xlane.f32.xlu0 %v2319
    %v2321 = vpop.xlane.xlu0 %2320
    %v2322 = vsel %vm736, %v2300, 0.0
    %2323 = vadd.xlane.f32.xlu0 %v2322
    %v2324 = vpop.xlane.xlu0 %2323
    %v2325 = vrcp.pop %v2303
    %v2326 = vrcp.pop %v2306
    %v2327 = vrcp.pop %v2309
    %v2328 = vrcp.pop %v2312
    %v2329 = vrcp.pop %v2315
    %v2330 = vrcp.pop %v2318
    %v2331 = vrcp.pop %v2321
    %v2332 = vrcp.pop %v2324
    %v2333 = vmul.f32 %v2286, %v2325
    %v2334 = vmul.f32 %v2288, %v2326
    %v2335 = vmul.f32 %v2290, %v2327
    %v2336 = vmul.f32 %v2292, %v2328
    %v2337 = vmul.f32 %v2294, %v2329
    %v2338 = vmul.f32 %v2296, %v2330
    %v2339 = vmul.f32 %v2298, %v2331
    %v2340 = vmul.f32 %v2300, %v2332
    %v2341 = vpack.c.bf16 %v2334, %v2333
    %v2342 = vpack.c.bf16 %v2336, %v2335
    %v2343 = vpack.c.bf16 %v2338, %v2337
    %v2344 = vpack.c.bf16 %v2340, %v2339
    %v2346 = vsel %vm736, %v2341, 0
    %v2349 = vsel %vm736, %v2342, 0
    %v2352 = vsel %vm736, %v2343, 0
    %v2355 = vsel %vm736, %v2344, 0
    %2357 = vmatprep.subr.bf16.mxu0 0
    %2358 = vmatpush1.bf16.msra.mxu0 %v642
    %2359 = vmatprep.subr.bf16.mxu0 0
    %2360 = vmatpush1.bf16.msra.mxu0 %v643
    %2361 = vmatprep.subr.bf16.mxu0 0
    %2362 = vmatpush1.bf16.msra.mxu0 %v644
    %2363 = vmatprep.subr.bf16.mxu0 0
    %2364 = vmatpush1.bf16.msra.mxu0 %v645
    %2365 = vmatprep.subr.bf16.mxu0 0
    %2366 = vmatpush1.bf16.msra.mxu0 0
    %2367 = vmatprep.subr.bf16.mxu0 0
    %2368 = vmatpush1.bf16.msra.mxu0 0
    %2369 = vmatprep.subr.bf16.mxu0 0
    %2370 = vmatpush1.bf16.msra.mxu0 0
    %2371 = vmatprep.subr.bf16.mxu0 0
    %2372 = vmatpush1.bf16.msra.mxu0 0
    %2373 = vmatprep.subr.bf16.mxu0 0
    %2374 = vmatpush1.bf16.msra.mxu0 0
    %2375 = vmatprep.subr.bf16.mxu0 0
    %2376 = vmatpush1.bf16.msra.mxu0 0
    %2377 = vmatprep.subr.bf16.mxu0 0
    %2378 = vmatpush1.bf16.msra.mxu0 0
    %2379 = vmatprep.subr.bf16.mxu0 0
    %2380 = vmatpush1.bf16.msra.mxu0 0
    %2381 = vmatprep.subr.bf16.mxu0 0
    %2382 = vmatpush1.bf16.msra.mxu0 0
    %2383 = vmatprep.subr.bf16.mxu0 0
    %2384 = vmatpush1.bf16.msra.mxu0 0
    %2385 = vmatprep.subr.bf16.mxu0 0
    %2386 = vmatpush1.bf16.msra.mxu0 0
    %2387 = vmatprep.subr.bf16.mxu0 0
    %2388 = vmatpush1.bf16.msra.mxu0 0
    %2389 = vmatprep.mubr.bf16.mxu0 0
    %2390 = vmatmul.mubr.bf16.gmra.mrb[0].mxu0 %v2346
    %v2391 = vpop.f32.mrb[0].mxu0
    %v2392 = vadd.f32 0.0, %v2391
    %v2393 = vpop.f32.mrb[0].mxu0
    %v2394 = vpop.f32.mrb[0].mxu0
    %v2395 = vadd.f32 0.0, %v2394
    %v2396 = vpop.f32.mrb[0].mxu0
    %2397 = vmatprep.mubr.bf16.mxu0 0
    %2398 = vmatmul.mubr.bf16.gmra.mrb[0].mxu0 %v2349
    %v2399 = vpop.f32.mrb[0].mxu0
    %v2400 = vadd.f32 0.0, %v2399
    %v2401 = vpop.f32.mrb[0].mxu0
    %v2402 = vpop.f32.mrb[0].mxu0
    %v2403 = vadd.f32 0.0, %v2402
    %v2404 = vpop.f32.mrb[0].mxu0
    %2405 = vmatprep.mubr.bf16.mxu0 0
    %2406 = vmatmul.mubr.bf16.gmra.mrb[0].mxu0 %v2352
    %v2407 = vpop.f32.mrb[0].mxu0
    %v2408 = vadd.f32 0.0, %v2407
    %v2409 = vpop.f32.mrb[0].mxu0
    %v2410 = vpop.f32.mrb[0].mxu0
    %v2411 = vadd.f32 0.0, %v2410
    %v2412 = vpop.f32.mrb[0].mxu0
    %2413 = vmatprep.mubr.bf16.mxu0 0
    %2414 = vmatmul.mubr.bf16.gmra.mrb[0].mxu0 %v2355
    %v2415 = vpop.f32.mrb[0].mxu0
    %v2416 = vadd.f32 0.0, %v2415
    %v2417 = vpop.f32.mrb[0].mxu0
    %v2418 = vpop.f32.mrb[0].mxu0
    %v2419 = vadd.f32 0.0, %v2418
    %v2420 = vpop.f32.mrb[0].mxu0
    %2421 = vdwg.mxu0
    %v2422 = vpack.c.bf16 %v2395, %v2392
    %v2423 = vpack.c.bf16 %v2403, %v2400
    %v2424 = vpack.c.bf16 %v2411, %v2408
    %v2425 = vpack.c.bf16 %v2419, %v2416
    %2430 = vrot.lane.b32.xlu0 %v626, 96
    %v2431 = vpop.permute.xlu0 %2430
    %2432 = vrot.lane.b32.xlu0 %v627, 96
    %v2433 = vpop.permute.xlu0 %2432
    %2434 = vrot.lane.b32.xlu0 %v628, 96
    %v2435 = vpop.permute.xlu0 %2434
    %2436 = vrot.lane.b32.xlu0 %v629, 96
    %v2437 = vpop.permute.xlu0 %2436
    %2442 = vrot.lane.b32.xlu0 %v634, 96
    %v2443 = vpop.permute.xlu0 %2442
    %2444 = vrot.lane.b32.xlu0 %v635, 96
    %v2445 = vpop.permute.xlu0 %2444
    %2446 = vrot.lane.b32.xlu0 %v636, 96
    %v2447 = vpop.permute.xlu0 %2446
    %2448 = vrot.lane.b32.xlu0 %v637, 96
    %v2449 = vpop.permute.xlu0 %2448
    %v2451 = vsel %vm646, %v2431, 0
    %v2454 = vsel %vm646, %v2433, 0
    %v2457 = vsel %vm646, %v2435, 0
    %v2460 = vsel %vm646, %v2437, 0
    %v2463 = vsel %vm646, %v2443, 0
    %v2466 = vsel %vm646, %v2445, 0
    %v2469 = vsel %vm646, %v2447, 0
    %v2472 = vsel %vm646, %v2449, 0
    %2474 = vmatprep.subr.bf16.mxu0 0
    %2475 = vmatpush1.bf16.xpose.msra.mxu0 %v2463
    %2476 = vmatprep.subr.bf16.mxu0 0
    %2477 = vmatpush1.bf16.xpose.msra.mxu0 %v2466
    %2478 = vmatprep.subr.bf16.mxu0 0
    %2479 = vmatpush1.bf16.xpose.msra.mxu0 %v2469
    %2480 = vmatprep.subr.bf16.mxu0 0
    %2481 = vmatpush1.bf16.xpose.msra.mxu0 %v2472
    %2482 = vmatprep.subr.bf16.mxu0 0
    %2483 = vmatpush1.bf16.xpose.msra.mxu0 0
    %2484 = vmatprep.subr.bf16.mxu0 0
    %2485 = vmatpush1.bf16.xpose.msra.mxu0 0
    %2486 = vmatprep.subr.bf16.mxu0 0
    %2487 = vmatpush1.bf16.xpose.msra.mxu0 0
    %2488 = vmatprep.subr.bf16.mxu0 0
    %2489 = vmatpush1.bf16.xpose.msra.mxu0 0
    %2490 = vmatprep.subr.bf16.mxu0 0
    %2491 = vmatpush1.bf16.xpose.msra.mxu0 0
    %2492 = vmatprep.subr.bf16.mxu0 0
    %2493 = vmatpush1.bf16.xpose.msra.mxu0 0
    %2494 = vmatprep.subr.bf16.mxu0 0
    %2495 = vmatpush1.bf16.xpose.msra.mxu0 0
    %2496 = vmatprep.subr.bf16.mxu0 0
    %2497 = vmatpush1.bf16.xpose.msra.mxu0 0
    %2498 = vmatprep.subr.bf16.mxu0 0
    %2499 = vmatpush1.bf16.xpose.msra.mxu0 0
    %2500 = vmatprep.subr.bf16.mxu0 0
    %2501 = vmatpush1.bf16.xpose.msra.mxu0 0
    %2502 = vmatprep.subr.bf16.mxu0 0
    %2503 = vmatpush1.bf16.xpose.msra.mxu0 0
    %2504 = vmatprep.subr.bf16.mxu0 0
    %2505 = vmatpush1.bf16.xpose.msra.mxu0 0
    %2506 = vmatprep.mubr.bf16.mxu0 0
    %2507 = vmatmul.mubr.bf16.gmra.mrb[0].mxu0 %v2451
    %v2508 = vpop.f32.mrb[0].mxu0
    %v2509 = vadd.f32 0.0, %v2508
    %v2510 = vpop.f32.mrb[0].mxu0
    %v2511 = vpop.f32.mrb[0].mxu0
    %v2512 = vadd.f32 0.0, %v2511
    %v2513 = vpop.f32.mrb[0].mxu0
    %2514 = vmatprep.mubr.bf16.mxu0 0
    %2515 = vmatmul.mubr.bf16.gmra.mrb[0].mxu0 %v2454
    %v2516 = vpop.f32.mrb[0].mxu0
    %v2517 = vadd.f32 0.0, %v2516
    %v2518 = vpop.f32.mrb[0].mxu0
    %v2519 = vpop.f32.mrb[0].mxu0
    %v2520 = vadd.f32 0.0, %v2519
    %v2521 = vpop.f32.mrb[0].mxu0
    %2522 = vmatprep.mubr.bf16.mxu0 0
    %2523 = vmatmul.mubr.bf16.gmra.mrb[0].mxu0 %v2457
    %v2524 = vpop.f32.mrb[0].mxu0
    %v2525 = vadd.f32 0.0, %v2524
    %v2526 = vpop.f32.mrb[0].mxu0
    %v2527 = vpop.f32.mrb[0].mxu0
    %v2528 = vadd.f32 0.0, %v2527
    %v2529 = vpop.f32.mrb[0].mxu0
    %2530 = vmatprep.mubr.bf16.mxu0 0
    %2531 = vmatmul.mubr.bf16.gmra.mrb[0].mxu0 %v2460
    %v2532 = vpop.f32.mrb[0].mxu0
    %v2533 = vadd.f32 0.0, %v2532
    %v2534 = vpop.f32.mrb[0].mxu0
    %v2535 = vpop.f32.mrb[0].mxu0
    %v2536 = vadd.f32 0.0, %v2535
    %v2537 = vpop.f32.mrb[0].mxu0
    %2538 = vdwg.mxu0
    %v2539 = vsel %vm736, %v2509, -inf
    %2540 = vmax.xlane.f32.xlu0 %v2539
    %v2541 = vpop.xlane.xlu0 %2540
    %v2542 = vsel %vm736, %v2512, -inf
    %2543 = vmax.xlane.f32.xlu0 %v2542
    %v2544 = vpop.xlane.xlu0 %2543
    %v2545 = vsel %vm736, %v2517, -inf
    %2546 = vmax.xlane.f32.xlu0 %v2545
    %v2547 = vpop.xlane.xlu0 %2546
    %v2548 = vsel %vm736, %v2520, -inf
    %2549 = vmax.xlane.f32.xlu0 %v2548
    %v2550 = vpop.xlane.xlu0 %2549
    %v2551 = vsel %vm736, %v2525, -inf
    %2552 = vmax.xlane.f32.xlu0 %v2551
    %v2553 = vpop.xlane.xlu0 %2552
    %v2554 = vsel %vm736, %v2528, -inf
    %2555 = vmax.xlane.f32.xlu0 %v2554
    %v2556 = vpop.xlane.xlu0 %2555
    %v2557 = vsel %vm736, %v2533, -inf
    %2558 = vmax.xlane.f32.xlu0 %v2557
    %v2559 = vpop.xlane.xlu0 %2558
    %v2560 = vsel %vm736, %v2536, -inf
    %2561 = vmax.xlane.f32.xlu0 %v2560
    %v2562 = vpop.xlane.xlu0 %2561
    %v2563 = vsub.f32 %v2509, %v2541
    %v2564 = vsub.f32 %v2512, %v2544
    %v2565 = vsub.f32 %v2517, %v2547
    %v2566 = vsub.f32 %v2520, %v2550
    %v2567 = vsub.f32 %v2525, %v2553
    %v2568 = vsub.f32 %v2528, %v2556
    %v2569 = vsub.f32 %v2533, %v2559
    %v2570 = vsub.f32 %v2536, %v2562
    %v2571 = vmul.f32 %v2563, 1.442695
    %v2572 = vpow.pop %v2571
    %v2573 = vmul.f32 %v2564, 1.442695
    %v2574 = vpow.pop %v2573
    %v2575 = vmul.f32 %v2565, 1.442695
    %v2576 = vpow.pop %v2575
    %v2577 = vmul.f32 %v2566, 1.442695
    %v2578 = vpow.pop %v2577
    %v2579 = vmul.f32 %v2567, 1.442695
    %v2580 = vpow.pop %v2579
    %v2581 = vmul.f32 %v2568, 1.442695
    %v2582 = vpow.pop %v2581
    %v2583 = vmul.f32 %v2569, 1.442695
    %v2584 = vpow.pop %v2583
    %v2585 = vmul.f32 %v2570, 1.442695
    %v2586 = vpow.pop %v2585
    %v2587 = vsel %vm736, %v2572, 0.0
    %2588 = vadd.xlane.f32.xlu0 %v2587
    %v2589 = vpop.xlane.xlu0 %2588
    %v2590 = vsel %vm736, %v2574, 0.0
    %2591 = vadd.xlane.f32.xlu0 %v2590
    %v2592 = vpop.xlane.xlu0 %2591
    %v2593 = vsel %vm736, %v2576, 0.0
    %2594 = vadd.xlane.f32.xlu0 %v2593
    %v2595 = vpop.xlane.xlu0 %2594
    %v2596 = vsel %vm736, %v2578, 0.0
    %2597 = vadd.xlane.f32.xlu0 %v2596
    %v2598 = vpop.xlane.xlu0 %2597
    %v2599 = vsel %vm736, %v2580, 0.0
    %2600 = vadd.xlane.f32.xlu0 %v2599
    %v2601 = vpop.xlane.xlu0 %2600
    %v2602 = vsel %vm736, %v2582, 0.0
    %2603 = vadd.xlane.f32.xlu0 %v2602
    %v2604 = vpop.xlane.xlu0 %2603
    %v2605 = vsel %vm736, %v2584, 0.0
    %2606 = vadd.xlane.f32.xlu0 %v2605
    %v2607 = vpop.xlane.xlu0 %2606
    %v2608 = vsel %vm736, %v2586, 0.0
    %2609 = vadd.xlane.f32.xlu0 %v2608
    %v2610 = vpop.xlane.xlu0 %2609
    %v2611 = vrcp.pop %v2589
    %v2612 = vrcp.pop %v2592
    %v2613 = vrcp.pop %v2595
    %v2614 = vrcp.pop %v2598
    %v2615 = vrcp.pop %v2601
    %v2616 = vrcp.pop %v2604
    %v2617 = vrcp.pop %v2607
    %v2618 = vrcp.pop %v2610
    %v2619 = vmul.f32 %v2572, %v2611
    %v2620 = vmul.f32 %v2574, %v2612
    %v2621 = vmul.f32 %v2576, %v2613
    %v2622 = vmul.f32 %v2578, %v2614
    %v2623 = vmul.f32 %v2580, %v2615
    %v2624 = vmul.f32 %v2582, %v2616
    %v2625 = vmul.f32 %v2584, %v2617
    %v2626 = vmul.f32 %v2586, %v2618
    %v2627 = vpack.c.bf16 %v2620, %v2619
    %v2628 = vpack.c.bf16 %v2622, %v2621
    %v2629 = vpack.c.bf16 %v2624, %v2623
    %v2630 = vpack.c.bf16 %v2626, %v2625
    %2635 = vrot.lane.b32.xlu0 %v642, 96
    %v2636 = vpop.permute.xlu0 %2635
    %2637 = vrot.lane.b32.xlu0 %v643, 96
    %v2638 = vpop.permute.xlu0 %2637
    %2639 = vrot.lane.b32.xlu0 %v644, 96
    %v2640 = vpop.permute.xlu0 %2639
    %2641 = vrot.lane.b32.xlu0 %v645, 96
    %v2642 = vpop.permute.xlu0 %2641
    %v2648 = vsel %vm736, %v2627, 0
    %v2651 = vsel %vm736, %v2628, 0
    %v2654 = vsel %vm736, %v2629, 0
    %v2657 = vsel %vm736, %v2630, 0
    %2659 = vmatprep.subr.bf16.mxu0 0
    %2660 = vmatpush1.bf16.msra.mxu0 %v2636
    %2661 = vmatprep.subr.bf16.mxu0 0
    %2662 = vmatpush1.bf16.msra.mxu0 %v2638
    %2663 = vmatprep.subr.bf16.mxu0 0
    %2664 = vmatpush1.bf16.msra.mxu0 %v2640
    %2665 = vmatprep.subr.bf16.mxu0 0
    %2666 = vmatpush1.bf16.msra.mxu0 %v2642
    %2667 = vmatprep.subr.bf16.mxu0 0
    %2668 = vmatpush1.bf16.msra.mxu0 0
    %2669 = vmatprep.subr.bf16.mxu0 0
    %2670 = vmatpush1.bf16.msra.mxu0 0
    %2671 = vmatprep.subr.bf16.mxu0 0
    %2672 = vmatpush1.bf16.msra.mxu0 0
    %2673 = vmatprep.subr.bf16.mxu0 0
    %2674 = vmatpush1.bf16.msra.mxu0 0
    %2675 = vmatprep.subr.bf16.mxu0 0
    %2676 = vmatpush1.bf16.msra.mxu0 0
    %2677 = vmatprep.subr.bf16.mxu0 0
    %2678 = vmatpush1.bf16.msra.mxu0 0
    %2679 = vmatprep.subr.bf16.mxu0 0
    %2680 = vmatpush1.bf16.msra.mxu0 0
    %2681 = vmatprep.subr.bf16.mxu0 0
    %2682 = vmatpush1.bf16.msra.mxu0 0
    %2683 = vmatprep.subr.bf16.mxu0 0
    %2684 = vmatpush1.bf16.msra.mxu0 0
    %2685 = vmatprep.subr.bf16.mxu0 0
    %2686 = vmatpush1.bf16.msra.mxu0 0
    %2687 = vmatprep.subr.bf16.mxu0 0
    %2688 = vmatpush1.bf16.msra.mxu0 0
    %2689 = vmatprep.subr.bf16.mxu0 0
    %2690 = vmatpush1.bf16.msra.mxu0 0
    %2691 = vmatprep.mubr.bf16.mxu0 0
    %2692 = vmatmul.mubr.bf16.gmra.mrb[0].mxu0 %v2648
    %v2693 = vpop.f32.mrb[0].mxu0
    %v2694 = vadd.f32 0.0, %v2693
    %v2695 = vpop.f32.mrb[0].mxu0
    %v2696 = vpop.f32.mrb[0].mxu0
    %v2697 = vadd.f32 0.0, %v2696
    %v2698 = vpop.f32.mrb[0].mxu0
    %2699 = vmatprep.mubr.bf16.mxu0 0
    %2700 = vmatmul.mubr.bf16.gmra.mrb[0].mxu0 %v2651
    %v2701 = vpop.f32.mrb[0].mxu0
    %v2702 = vadd.f32 0.0, %v2701
    %v2703 = vpop.f32.mrb[0].mxu0
    %v2704 = vpop.f32.mrb[0].mxu0
    %v2705 = vadd.f32 0.0, %v2704
    %v2706 = vpop.f32.mrb[0].mxu0
    %2707 = vmatprep.mubr.bf16.mxu0 0
    %2708 = vmatmul.mubr.bf16.gmra.mrb[0].mxu0 %v2654
    %v2709 = vpop.f32.mrb[0].mxu0
    %v2710 = vadd.f32 0.0, %v2709
    %v2711 = vpop.f32.mrb[0].mxu0
    %v2712 = vpop.f32.mrb[0].mxu0
    %v2713 = vadd.f32 0.0, %v2712
    %v2714 = vpop.f32.mrb[0].mxu0
    %2715 = vmatprep.mubr.bf16.mxu0 0
    %2716 = vmatmul.mubr.bf16.gmra.mrb[0].mxu0 %v2657
    %v2717 = vpop.f32.mrb[0].mxu0
    %v2718 = vadd.f32 0.0, %v2717
    %v2719 = vpop.f32.mrb[0].mxu0
    %v2720 = vpop.f32.mrb[0].mxu0
    %v2721 = vadd.f32 0.0, %v2720
    %v2722 = vpop.f32.mrb[0].mxu0
    %2723 = vdwg.mxu0
    %v2724 = vpack.c.bf16 %v2697, %v2694
    %v2725 = vpack.c.bf16 %v2705, %v2702
    %v2726 = vpack.c.bf16 %v2713, %v2710
    %v2727 = vpack.c.bf16 %v2721, %v2718
    %v2729 = vsel %vm646, %v2724, 0
    %v2732 = vsel %vm646, %v2725, 0
    %v2735 = vsel %vm646, %v2726, 0
    %v2738 = vsel %vm646, %v2727, 0
    %2740 = vmatprep.subr.bf16.mxu0 0
    %2741 = vmatpush1.bf16.msra.mxu0 %v1220
    %2742 = vmatprep.subr.bf16.mxu0 0
    %2743 = vmatpush1.bf16.msra.mxu0 %v1221
    %2744 = vmatprep.subr.bf16.mxu0 0
    %2745 = vmatpush1.bf16.msra.mxu0 0
    %2746 = vmatprep.subr.bf16.mxu0 0
    %2747 = vmatpush1.bf16.msra.mxu0 0
    %2748 = vmatprep.subr.bf16.mxu0 0
    %2749 = vmatpush1.bf16.msra.mxu0 0
    %2750 = vmatprep.subr.bf16.mxu0 0
    %2751 = vmatpush1.bf16.msra.mxu0 0
    %2752 = vmatprep.subr.bf16.mxu0 0
    %2753 = vmatpush1.bf16.msra.mxu0 0
    %2754 = vmatprep.subr.bf16.mxu0 0
    %2755 = vmatpush1.bf16.msra.mxu0 0
    %2756 = vmatprep.subr.bf16.mxu0 0
    %2757 = vmatpush1.bf16.msra.mxu0 0
    %2758 = vmatprep.subr.bf16.mxu0 0
    %2759 = vmatpush1.bf16.msra.mxu0 0
    %2760 = vmatprep.subr.bf16.mxu0 0
    %2761 = vmatpush1.bf16.msra.mxu0 0
    %2762 = vmatprep.subr.bf16.mxu0 0
    %2763 = vmatpush1.bf16.msra.mxu0 0
    %2764 = vmatprep.subr.bf16.mxu0 0
    %2765 = vmatpush1.bf16.msra.mxu0 0
    %2766 = vmatprep.subr.bf16.mxu0 0
    %2767 = vmatpush1.bf16.msra.mxu0 0
    %2768 = vmatprep.subr.bf16.mxu0 0
    %2769 = vmatpush1.bf16.msra.mxu0 0
    %2770 = vmatprep.subr.bf16.mxu0 0
    %2771 = vmatpush1.bf16.msra.mxu0 0
    %2772 = vmatprep.mubr.bf16.mxu0 0
    %2773 = vmatmul.mubr.bf16.gmra.mrb[0].mxu0 %v2729
    %v2774 = vpop.f32.mrb[0].mxu0
    %v2775 = vadd.f32 0.0, %v2774
    %v2776 = vpop.f32.mrb[0].mxu0
    %v2777 = vpop.f32.mrb[0].mxu0
    %v2778 = vadd.f32 0.0, %v2777
    %v2779 = vpop.f32.mrb[0].mxu0
    %2780 = vmatprep.mubr.bf16.mxu0 0
    %2781 = vmatmul.mubr.bf16.gmra.mrb[0].mxu0 %v2732
    %v2782 = vpop.f32.mrb[0].mxu0
    %v2783 = vadd.f32 0.0, %v2782
    %v2784 = vpop.f32.mrb[0].mxu0
    %v2785 = vpop.f32.mrb[0].mxu0
    %v2786 = vadd.f32 0.0, %v2785
    %v2787 = vpop.f32.mrb[0].mxu0
    %2788 = vmatprep.mubr.bf16.mxu0 0
    %2789 = vmatmul.mubr.bf16.gmra.mrb[0].mxu0 %v2735
    %v2790 = vpop.f32.mrb[0].mxu0
    %v2791 = vadd.f32 0.0, %v2790
    %v2792 = vpop.f32.mrb[0].mxu0
    %v2793 = vpop.f32.mrb[0].mxu0
    %v2794 = vadd.f32 0.0, %v2793
    %v2795 = vpop.f32.mrb[0].mxu0
    %2796 = vmatprep.mubr.bf16.mxu0 0
    %2797 = vmatmul.mubr.bf16.gmra.mrb[0].mxu0 %v2738
    %v2798 = vpop.f32.mrb[0].mxu0
    %v2799 = vadd.f32 0.0, %v2798
    %v2800 = vpop.f32.mrb[0].mxu0
    %v2801 = vpop.f32.mrb[0].mxu0
    %v2802 = vadd.f32 0.0, %v2801
    %v2803 = vpop.f32.mrb[0].mxu0
    %2804 = vdwg.mxu0
    %v2806 = vsel %vm646, %v2422, 0
    %v2809 = vsel %vm646, %v2423, 0
    %v2812 = vsel %vm646, %v2424, 0
    %v2815 = vsel %vm646, %v2425, 0
    %2817 = vmatprep.subr.bf16.mxu0 0
    %2818 = vmatpush1.bf16.msra.mxu0 %v1309
    %2819 = vmatprep.subr.bf16.mxu0 0
    %2820 = vmatpush1.bf16.msra.mxu0 %v1310
    %2821 = vmatprep.subr.bf16.mxu0 0
    %2822 = vmatpush1.bf16.msra.mxu0 0
    %2823 = vmatprep.subr.bf16.mxu0 0
    %2824 = vmatpush1.bf16.msra.mxu0 0
    %2825 = vmatprep.subr.bf16.mxu0 0
    %2826 = vmatpush1.bf16.msra.mxu0 0
    %2827 = vmatprep.subr.bf16.mxu0 0
    %2828 = vmatpush1.bf16.msra.mxu0 0
    %2829 = vmatprep.subr.bf16.mxu0 0
    %2830 = vmatpush1.bf16.msra.mxu0 0
    %2831 = vmatprep.subr.bf16.mxu0 0
    %2832 = vmatpush1.bf16.msra.mxu0 0
    %2833 = vmatprep.subr.bf16.mxu0 0
    %2834 = vmatpush1.bf16.msra.mxu0 0
    %2835 = vmatprep.subr.bf16.mxu0 0
    %2836 = vmatpush1.bf16.msra.mxu0 0
    %2837 = vmatprep.subr.bf16.mxu0 0
    %2838 = vmatpush1.bf16.msra.mxu0 0
    %2839 = vmatprep.subr.bf16.mxu0 0
    %2840 = vmatpush1.bf16.msra.mxu0 0
    %2841 = vmatprep.subr.bf16.mxu0 0
    %2842 = vmatpush1.bf16.msra.mxu0 0
    %2843 = vmatprep.subr.bf16.mxu0 0
    %2844 = vmatpush1.bf16.msra.mxu0 0
    %2845 = vmatprep.subr.bf16.mxu0 0
    %2846 = vmatpush1.bf16.msra.mxu0 0
    %2847 = vmatprep.subr.bf16.mxu0 0
    %2848 = vmatpush1.bf16.msra.mxu0 0
    %2849 = vmatprep.mubr.bf16.mxu0 0
    %2850 = vmatmul.mubr.bf16.gmra.mrb[0].mxu0 %v2806
    %v2851 = vpop.f32.mrb[0].mxu0
    %v2852 = vadd.f32 %v2775, %v2851
    %v2853 = vpop.f32.mrb[0].mxu0
    %v2854 = vpop.f32.mrb[0].mxu0
    %v2855 = vadd.f32 %v2778, %v2854
    %v2856 = vpop.f32.mrb[0].mxu0
    %2857 = vmatprep.mubr.bf16.mxu0 0
    %2858 = vmatmul.mubr.bf16.gmra.mrb[0].mxu0 %v2809
    %v2859 = vpop.f32.mrb[0].mxu0
    %v2860 = vadd.f32 %v2783, %v2859
    %v2861 = vpop.f32.mrb[0].mxu0
    %v2862 = vpop.f32.mrb[0].mxu0
    %v2863 = vadd.f32 %v2786, %v2862
    %v2864 = vpop.f32.mrb[0].mxu0
    %2865 = vmatprep.mubr.bf16.mxu0 0
    %2866 = vmatmul.mubr.bf16.gmra.mrb[0].mxu0 %v2812
    %v2867 = vpop.f32.mrb[0].mxu0
    %v2868 = vadd.f32 %v2791, %v2867
    %v2869 = vpop.f32.mrb[0].mxu0
    %v2870 = vpop.f32.mrb[0].mxu0
    %v2871 = vadd.f32 %v2794, %v2870
    %v2872 = vpop.f32.mrb[0].mxu0
    %2873 = vmatprep.mubr.bf16.mxu0 0
    %2874 = vmatmul.mubr.bf16.gmra.mrb[0].mxu0 %v2815
    %v2875 = vpop.f32.mrb[0].mxu0
    %v2876 = vadd.f32 %v2799, %v2875
    %v2877 = vpop.f32.mrb[0].mxu0
    %v2878 = vpop.f32.mrb[0].mxu0
    %v2879 = vadd.f32 %v2802, %v2878
    %v2880 = vpop.f32.mrb[0].mxu0
    %2881 = vdwg.mxu0
    %2882 = vrot.lane.b32.xlu0 %v626, 64
    %v2883 = vpop.permute.xlu0 %2882
    %2884 = vrot.lane.b32.xlu0 %v627, 64
    %v2885 = vpop.permute.xlu0 %2884
    %2886 = vrot.lane.b32.xlu0 %v628, 64
    %v2887 = vpop.permute.xlu0 %2886
    %2888 = vrot.lane.b32.xlu0 %v629, 64
    %v2889 = vpop.permute.xlu0 %2888
    %2890 = vrot.lane.b32.xlu0 %v634, 64
    %v2891 = vpop.permute.xlu0 %2890
    %2892 = vrot.lane.b32.xlu0 %v635, 64
    %v2893 = vpop.permute.xlu0 %2892
    %2894 = vrot.lane.b32.xlu0 %v636, 64
    %v2895 = vpop.permute.xlu0 %2894
    %2896 = vrot.lane.b32.xlu0 %v637, 64
    %v2897 = vpop.permute.xlu0 %2896
    %v2899 = vsel %vm646, %v2883, 0
    %v2902 = vsel %vm646, %v2885, 0
    %v2905 = vsel %vm646, %v2887, 0
    %v2908 = vsel %vm646, %v2889, 0
    %v2911 = vsel %vm646, %v2891, 0
    %v2914 = vsel %vm646, %v2893, 0
    %v2917 = vsel %vm646, %v2895, 0
    %v2920 = vsel %vm646, %v2897, 0
    %2922 = vmatprep.subr.bf16.mxu0 0
    %2923 = vmatpush1.bf16.xpose.msra.mxu0 %v2911
    %2924 = vmatprep.subr.bf16.mxu0 0
    %2925 = vmatpush1.bf16.xpose.msra.mxu0 %v2914
    %2926 = vmatprep.subr.bf16.mxu0 0
    %2927 = vmatpush1.bf16.xpose.msra.mxu0 %v2917
    %2928 = vmatprep.subr.bf16.mxu0 0
    %2929 = vmatpush1.bf16.xpose.msra.mxu0 %v2920
    %2930 = vmatprep.subr.bf16.mxu0 0
    %2931 = vmatpush1.bf16.xpose.msra.mxu0 0
    %2932 = vmatprep.subr.bf16.mxu0 0
    %2933 = vmatpush1.bf16.xpose.msra.mxu0 0
    %2934 = vmatprep.subr.bf16.mxu0 0
    %2935 = vmatpush1.bf16.xpose.msra.mxu0 0
    %2936 = vmatprep.subr.bf16.mxu0 0
    %2937 = vmatpush1.bf16.xpose.msra.mxu0 0
    %2938 = vmatprep.subr.bf16.mxu0 0
    %2939 = vmatpush1.bf16.xpose.msra.mxu0 0
    %2940 = vmatprep.subr.bf16.mxu0 0
    %2941 = vmatpush1.bf16.xpose.msra.mxu0 0
    %2942 = vmatprep.subr.bf16.mxu0 0
    %2943 = vmatpush1.bf16.xpose.msra.mxu0 0
    %2944 = vmatprep.subr.bf16.mxu0 0
    %2945 = vmatpush1.bf16.xpose.msra.mxu0 0
    %2946 = vmatprep.subr.bf16.mxu0 0
    %2947 = vmatpush1.bf16.xpose.msra.mxu0 0
    %2948 = vmatprep.subr.bf16.mxu0 0
    %2949 = vmatpush1.bf16.xpose.msra.mxu0 0
    %2950 = vmatprep.subr.bf16.mxu0 0
    %2951 = vmatpush1.bf16.xpose.msra.mxu0 0
    %2952 = vmatprep.subr.bf16.mxu0 0
    %2953 = vmatpush1.bf16.xpose.msra.mxu0 0
    %2954 = vmatprep.mubr.bf16.mxu0 0
    %2955 = vmatmul.mubr.bf16.gmra.mrb[0].mxu0 %v2899
    %v2956 = vpop.f32.mrb[0].mxu0
    %v2957 = vadd.f32 0.0, %v2956
    %v2958 = vpop.f32.mrb[0].mxu0
    %v2959 = vpop.f32.mrb[0].mxu0
    %v2960 = vadd.f32 0.0, %v2959
    %v2961 = vpop.f32.mrb[0].mxu0
    %2962 = vmatprep.mubr.bf16.mxu0 0
    %2963 = vmatmul.mubr.bf16.gmra.mrb[0].mxu0 %v2902
    %v2964 = vpop.f32.mrb[0].mxu0
    %v2965 = vadd.f32 0.0, %v2964
    %v2966 = vpop.f32.mrb[0].mxu0
    %v2967 = vpop.f32.mrb[0].mxu0
    %v2968 = vadd.f32 0.0, %v2967
    %v2969 = vpop.f32.mrb[0].mxu0
    %2970 = vmatprep.mubr.bf16.mxu0 0
    %2971 = vmatmul.mubr.bf16.gmra.mrb[0].mxu0 %v2905
    %v2972 = vpop.f32.mrb[0].mxu0
    %v2973 = vadd.f32 0.0, %v2972
    %v2974 = vpop.f32.mrb[0].mxu0
    %v2975 = vpop.f32.mrb[0].mxu0
    %v2976 = vadd.f32 0.0, %v2975
    %v2977 = vpop.f32.mrb[0].mxu0
    %2978 = vmatprep.mubr.bf16.mxu0 0
    %2979 = vmatmul.mubr.bf16.gmra.mrb[0].mxu0 %v2908
    %v2980 = vpop.f32.mrb[0].mxu0
    %v2981 = vadd.f32 0.0, %v2980
    %v2982 = vpop.f32.mrb[0].mxu0
    %v2983 = vpop.f32.mrb[0].mxu0
    %v2984 = vadd.f32 0.0, %v2983
    %v2985 = vpop.f32.mrb[0].mxu0
    %2986 = vdwg.mxu0
    %v2987 = vsel %vm736, %v2957, -inf
    %2988 = vmax.xlane.f32.xlu0 %v2987
    %v2989 = vpop.xlane.xlu0 %2988
    %v2990 = vsel %vm736, %v2960, -inf
    %2991 = vmax.xlane.f32.xlu0 %v2990
    %v2992 = vpop.xlane.xlu0 %2991
    %v2993 = vsel %vm736, %v2965, -inf
    %2994 = vmax.xlane.f32.xlu0 %v2993
    %v2995 = vpop.xlane.xlu0 %2994
    %v2996 = vsel %vm736, %v2968, -inf
    %2997 = vmax.xlane.f32.xlu0 %v2996
    %v2998 = vpop.xlane.xlu0 %2997
    %v2999 = vsel %vm736, %v2973, -inf
    %3000 = vmax.xlane.f32.xlu0 %v2999
    %v3001 = vpop.xlane.xlu0 %3000
    %v3002 = vsel %vm736, %v2976, -inf
    %3003 = vmax.xlane.f32.xlu0 %v3002
    %v3004 = vpop.xlane.xlu0 %3003
    %v3005 = vsel %vm736, %v2981, -inf
    %3006 = vmax.xlane.f32.xlu0 %v3005
    %v3007 = vpop.xlane.xlu0 %3006
    %v3008 = vsel %vm736, %v2984, -inf
    %3009 = vmax.xlane.f32.xlu0 %v3008
    %v3010 = vpop.xlane.xlu0 %3009
    %v3011 = vsub.f32 %v2957, %v2989
    %v3012 = vsub.f32 %v2960, %v2992
    %v3013 = vsub.f32 %v2965, %v2995
    %v3014 = vsub.f32 %v2968, %v2998
    %v3015 = vsub.f32 %v2973, %v3001
    %v3016 = vsub.f32 %v2976, %v3004
    %v3017 = vsub.f32 %v2981, %v3007
    %v3018 = vsub.f32 %v2984, %v3010
    %v3019 = vmul.f32 %v3011, 1.442695
    %v3020 = vpow.pop %v3019
    %v3021 = vmul.f32 %v3012, 1.442695
    %v3022 = vpow.pop %v3021
    %v3023 = vmul.f32 %v3013, 1.442695
    %v3024 = vpow.pop %v3023
    %v3025 = vmul.f32 %v3014, 1.442695
    %v3026 = vpow.pop %v3025
    %v3027 = vmul.f32 %v3015, 1.442695
    %v3028 = vpow.pop %v3027
    %v3029 = vmul.f32 %v3016, 1.442695
    %v3030 = vpow.pop %v3029
    %v3031 = vmul.f32 %v3017, 1.442695
    %v3032 = vpow.pop %v3031
    %v3033 = vmul.f32 %v3018, 1.442695
    %v3034 = vpow.pop %v3033
    %v3035 = vsel %vm736, %v3020, 0.0
    %3036 = vadd.xlane.f32.xlu0 %v3035
    %v3037 = vpop.xlane.xlu0 %3036
    %v3038 = vsel %vm736, %v3022, 0.0
    %3039 = vadd.xlane.f32.xlu0 %v3038
    %v3040 = vpop.xlane.xlu0 %3039
    %v3041 = vsel %vm736, %v3024, 0.0
    %3042 = vadd.xlane.f32.xlu0 %v3041
    %v3043 = vpop.xlane.xlu0 %3042
    %v3044 = vsel %vm736, %v3026, 0.0
    %3045 = vadd.xlane.f32.xlu0 %v3044
    %v3046 = vpop.xlane.xlu0 %3045
    %v3047 = vsel %vm736, %v3028, 0.0
    %3048 = vadd.xlane.f32.xlu0 %v3047
    %v3049 = vpop.xlane.xlu0 %3048
    %v3050 = vsel %vm736, %v3030, 0.0
    %3051 = vadd.xlane.f32.xlu0 %v3050
    %v3052 = vpop.xlane.xlu0 %3051
    %v3053 = vsel %vm736, %v3032, 0.0
    %3054 = vadd.xlane.f32.xlu0 %v3053
    %v3055 = vpop.xlane.xlu0 %3054
    %v3056 = vsel %vm736, %v3034, 0.0
    %3057 = vadd.xlane.f32.xlu0 %v3056
    %v3058 = vpop.xlane.xlu0 %3057
    %v3059 = vrcp.pop %v3037
    %v3060 = vrcp.pop %v3040
    %v3061 = vrcp.pop %v3043
    %v3062 = vrcp.pop %v3046
    %v3063 = vrcp.pop %v3049
    %v3064 = vrcp.pop %v3052
    %v3065 = vrcp.pop %v3055
    %v3066 = vrcp.pop %v3058
    %v3067 = vmul.f32 %v3020, %v3059
    %v3068 = vmul.f32 %v3022, %v3060
    %v3069 = vmul.f32 %v3024, %v3061
    %v3070 = vmul.f32 %v3026, %v3062
    %v3071 = vmul.f32 %v3028, %v3063
    %v3072 = vmul.f32 %v3030, %v3064
    %v3073 = vmul.f32 %v3032, %v3065
    %v3074 = vmul.f32 %v3034, %v3066
    %v3075 = vpack.c.bf16 %v3068, %v3067
    %v3076 = vpack.c.bf16 %v3070, %v3069
    %v3077 = vpack.c.bf16 %v3072, %v3071
    %v3078 = vpack.c.bf16 %v3074, %v3073
    %3079 = vrot.lane.b32.xlu0 %v642, 64
    %v3080 = vpop.permute.xlu0 %3079
    %3081 = vrot.lane.b32.xlu0 %v643, 64
    %v3082 = vpop.permute.xlu0 %3081
    %3083 = vrot.lane.b32.xlu0 %v644, 64
    %v3084 = vpop.permute.xlu0 %3083
    %3085 = vrot.lane.b32.xlu0 %v645, 64
    %v3086 = vpop.permute.xlu0 %3085
    %v3092 = vsel %vm736, %v3075, 0
    %v3095 = vsel %vm736, %v3076, 0
    %v3098 = vsel %vm736, %v3077, 0
    %v3101 = vsel %vm736, %v3078, 0
    %3103 = vmatprep.subr.bf16.mxu0 0
    %3104 = vmatpush1.bf16.msra.mxu0 %v3080
    %3105 = vmatprep.subr.bf16.mxu0 0
    %3106 = vmatpush1.bf16.msra.mxu0 %v3082
    %3107 = vmatprep.subr.bf16.mxu0 0
    %3108 = vmatpush1.bf16.msra.mxu0 %v3084
    %3109 = vmatprep.subr.bf16.mxu0 0
    %3110 = vmatpush1.bf16.msra.mxu0 %v3086
    %3111 = vmatprep.subr.bf16.mxu0 0
    %3112 = vmatpush1.bf16.msra.mxu0 0
    %3113 = vmatprep.subr.bf16.mxu0 0
    %3114 = vmatpush1.bf16.msra.mxu0 0
    %3115 = vmatprep.subr.bf16.mxu0 0
    %3116 = vmatpush1.bf16.msra.mxu0 0
    %3117 = vmatprep.subr.bf16.mxu0 0
    %3118 = vmatpush1.bf16.msra.mxu0 0
    %3119 = vmatprep.subr.bf16.mxu0 0
    %3120 = vmatpush1.bf16.msra.mxu0 0
    %3121 = vmatprep.subr.bf16.mxu0 0
    %3122 = vmatpush1.bf16.msra.mxu0 0
    %3123 = vmatprep.subr.bf16.mxu0 0
    %3124 = vmatpush1.bf16.msra.mxu0 0
    %3125 = vmatprep.subr.bf16.mxu0 0
    %3126 = vmatpush1.bf16.msra.mxu0 0
    %3127 = vmatprep.subr.bf16.mxu0 0
    %3128 = vmatpush1.bf16.msra.mxu0 0
    %3129 = vmatprep.subr.bf16.mxu0 0
    %3130 = vmatpush1.bf16.msra.mxu0 0
    %3131 = vmatprep.subr.bf16.mxu0 0
    %3132 = vmatpush1.bf16.msra.mxu0 0
    %3133 = vmatprep.subr.bf16.mxu0 0
    %3134 = vmatpush1.bf16.msra.mxu0 0
    %3135 = vmatprep.mubr.bf16.mxu0 0
    %3136 = vmatmul.mubr.bf16.gmra.mrb[0].mxu0 %v3092
    %v3137 = vpop.f32.mrb[0].mxu0
    %v3138 = vadd.f32 0.0, %v3137
    %v3139 = vpop.f32.mrb[0].mxu0
    %v3140 = vpop.f32.mrb[0].mxu0
    %v3141 = vadd.f32 0.0, %v3140
    %v3142 = vpop.f32.mrb[0].mxu0
    %3143 = vmatprep.mubr.bf16.mxu0 0
    %3144 = vmatmul.mubr.bf16.gmra.mrb[0].mxu0 %v3095
    %v3145 = vpop.f32.mrb[0].mxu0
    %v3146 = vadd.f32 0.0, %v3145
    %v3147 = vpop.f32.mrb[0].mxu0
    %v3148 = vpop.f32.mrb[0].mxu0
    %v3149 = vadd.f32 0.0, %v3148
    %v3150 = vpop.f32.mrb[0].mxu0
    %3151 = vmatprep.mubr.bf16.mxu0 0
    %3152 = vmatmul.mubr.bf16.gmra.mrb[0].mxu0 %v3098
    %v3153 = vpop.f32.mrb[0].mxu0
    %v3154 = vadd.f32 0.0, %v3153
    %v3155 = vpop.f32.mrb[0].mxu0
    %v3156 = vpop.f32.mrb[0].mxu0
    %v3157 = vadd.f32 0.0, %v3156
    %v3158 = vpop.f32.mrb[0].mxu0
    %3159 = vmatprep.mubr.bf16.mxu0 0
    %3160 = vmatmul.mubr.bf16.gmra.mrb[0].mxu0 %v3101
    %v3161 = vpop.f32.mrb[0].mxu0
    %v3162 = vadd.f32 0.0, %v3161
    %v3163 = vpop.f32.mrb[0].mxu0
    %v3164 = vpop.f32.mrb[0].mxu0
    %v3165 = vadd.f32 0.0, %v3164
    %v3166 = vpop.f32.mrb[0].mxu0
    %3167 = vdwg.mxu0
    %v3168 = vpack.c.bf16 %v3141, %v3138
    %v3169 = vpack.c.bf16 %v3149, %v3146
    %v3170 = vpack.c.bf16 %v3157, %v3154
    %v3171 = vpack.c.bf16 %v3165, %v3162
    %v3173 = vsel %vm646, %v3168, 0
    %v3176 = vsel %vm646, %v3169, 0
    %v3179 = vsel %vm646, %v3170, 0
    %v3182 = vsel %vm646, %v3171, 0
    %3184 = vmatprep.subr.bf16.mxu0 0
    %3185 = vmatpush1.bf16.msra.mxu0 %v1688
    %3186 = vmatprep.subr.bf16.mxu0 0
    %3187 = vmatpush1.bf16.msra.mxu0 %v1689
    %3188 = vmatprep.subr.bf16.mxu0 0
    %3189 = vmatpush1.bf16.msra.mxu0 0
    %3190 = vmatprep.subr.bf16.mxu0 0
    %3191 = vmatpush1.bf16.msra.mxu0 0
    %3192 = vmatprep.subr.bf16.mxu0 0
    %3193 = vmatpush1.bf16.msra.mxu0 0
    %3194 = vmatprep.subr.bf16.mxu0 0
    %3195 = vmatpush1.bf16.msra.mxu0 0
    %3196 = vmatprep.subr.bf16.mxu0 0
    %3197 = vmatpush1.bf16.msra.mxu0 0
    %3198 = vmatprep.subr.bf16.mxu0 0
    %3199 = vmatpush1.bf16.msra.mxu0 0
    %3200 = vmatprep.subr.bf16.mxu0 0
    %3201 = vmatpush1.bf16.msra.mxu0 0
    %3202 = vmatprep.subr.bf16.mxu0 0
    %3203 = vmatpush1.bf16.msra.mxu0 0
    %3204 = vmatprep.subr.bf16.mxu0 0
    %3205 = vmatpush1.bf16.msra.mxu0 0
    %3206 = vmatprep.subr.bf16.mxu0 0
    %3207 = vmatpush1.bf16.msra.mxu0 0
    %3208 = vmatprep.subr.bf16.mxu0 0
    %3209 = vmatpush1.bf16.msra.mxu0 0
    %3210 = vmatprep.subr.bf16.mxu0 0
    %3211 = vmatpush1.bf16.msra.mxu0 0
    %3212 = vmatprep.subr.bf16.mxu0 0
    %3213 = vmatpush1.bf16.msra.mxu0 0
    %3214 = vmatprep.subr.bf16.mxu0 0
    %3215 = vmatpush1.bf16.msra.mxu0 0
    %3216 = vmatprep.mubr.bf16.mxu0 0
    %3217 = vmatmul.mubr.bf16.gmra.mrb[0].mxu0 %v3173
    %v3218 = vpop.f32.mrb[0].mxu0
    %v3219 = vadd.f32 0.0, %v3218
    %v3220 = vpop.f32.mrb[0].mxu0
    %v3221 = vpop.f32.mrb[0].mxu0
    %v3222 = vadd.f32 0.0, %v3221
    %v3223 = vpop.f32.mrb[0].mxu0
    %3224 = vmatprep.mubr.bf16.mxu0 0
    %3225 = vmatmul.mubr.bf16.gmra.mrb[0].mxu0 %v3176
    %v3226 = vpop.f32.mrb[0].mxu0
    %v3227 = vadd.f32 0.0, %v3226
    %v3228 = vpop.f32.mrb[0].mxu0
    %v3229 = vpop.f32.mrb[0].mxu0
    %v3230 = vadd.f32 0.0, %v3229
    %v3231 = vpop.f32.mrb[0].mxu0
    %3232 = vmatprep.mubr.bf16.mxu0 0
    %3233 = vmatmul.mubr.bf16.gmra.mrb[0].mxu0 %v3179
    %v3234 = vpop.f32.mrb[0].mxu0
    %v3235 = vadd.f32 0.0, %v3234
    %v3236 = vpop.f32.mrb[0].mxu0
    %v3237 = vpop.f32.mrb[0].mxu0
    %v3238 = vadd.f32 0.0, %v3237
    %v3239 = vpop.f32.mrb[0].mxu0
    %3240 = vmatprep.mubr.bf16.mxu0 0
    %3241 = vmatmul.mubr.bf16.gmra.mrb[0].mxu0 %v3182
    %v3242 = vpop.f32.mrb[0].mxu0
    %v3243 = vadd.f32 0.0, %v3242
    %v3244 = vpop.f32.mrb[0].mxu0
    %v3245 = vpop.f32.mrb[0].mxu0
    %v3246 = vadd.f32 0.0, %v3245
    %v3247 = vpop.f32.mrb[0].mxu0
    %3248 = vdwg.mxu0
    %v3249 = vadd.f32 %v2852, %v3219
    %v3250 = vadd.f32 %v2855, %v3222
    %v3251 = vadd.f32 %v2860, %v3227
    %v3252 = vadd.f32 %v2863, %v3230
    %v3253 = vadd.f32 %v2868, %v3235
    %v3254 = vadd.f32 %v2871, %v3238
    %v3255 = vadd.f32 %v2876, %v3243
    %v3256 = vadd.f32 %v2879, %v3246
    %3257 = vrot.lane.b32.xlu0 %v626, 32
    %v3258 = vpop.permute.xlu0 %3257
    %3259 = vrot.lane.b32.xlu0 %v627, 32
    %v3260 = vpop.permute.xlu0 %3259
    %3261 = vrot.lane.b32.xlu0 %v628, 32
    %v3262 = vpop.permute.xlu0 %3261
    %3263 = vrot.lane.b32.xlu0 %v629, 32
    %v3264 = vpop.permute.xlu0 %3263
    %3265 = vrot.lane.b32.xlu0 %v634, 32
    %v3266 = vpop.permute.xlu0 %3265
    %3267 = vrot.lane.b32.xlu0 %v635, 32
    %v3268 = vpop.permute.xlu0 %3267
    %3269 = vrot.lane.b32.xlu0 %v636, 32
    %v3270 = vpop.permute.xlu0 %3269
    %3271 = vrot.lane.b32.xlu0 %v637, 32
    %v3272 = vpop.permute.xlu0 %3271
    %v3274 = vsel %vm646, %v3258, 0
    %v3277 = vsel %vm646, %v3260, 0
    %v3280 = vsel %vm646, %v3262, 0
    %v3283 = vsel %vm646, %v3264, 0
    %v3286 = vsel %vm646, %v3266, 0
    %v3289 = vsel %vm646, %v3268, 0
    %v3292 = vsel %vm646, %v3270, 0
    %v3295 = vsel %vm646, %v3272, 0
    %3297 = vmatprep.subr.bf16.mxu0 0
    %3298 = vmatpush1.bf16.xpose.msra.mxu0 %v3286
    %3299 = vmatprep.subr.bf16.mxu0 0
    %3300 = vmatpush1.bf16.xpose.msra.mxu0 %v3289
    %3301 = vmatprep.subr.bf16.mxu0 0
    %3302 = vmatpush1.bf16.xpose.msra.mxu0 %v3292
    %3303 = vmatprep.subr.bf16.mxu0 0
    %3304 = vmatpush1.bf16.xpose.msra.mxu0 %v3295
    %3305 = vmatprep.subr.bf16.mxu0 0
    %3306 = vmatpush1.bf16.xpose.msra.mxu0 0
    %3307 = vmatprep.subr.bf16.mxu0 0
    %3308 = vmatpush1.bf16.xpose.msra.mxu0 0
    %3309 = vmatprep.subr.bf16.mxu0 0
    %3310 = vmatpush1.bf16.xpose.msra.mxu0 0
    %3311 = vmatprep.subr.bf16.mxu0 0
    %3312 = vmatpush1.bf16.xpose.msra.mxu0 0
    %3313 = vmatprep.subr.bf16.mxu0 0
    %3314 = vmatpush1.bf16.xpose.msra.mxu0 0
    %3315 = vmatprep.subr.bf16.mxu0 0
    %3316 = vmatpush1.bf16.xpose.msra.mxu0 0
    %3317 = vmatprep.subr.bf16.mxu0 0
    %3318 = vmatpush1.bf16.xpose.msra.mxu0 0
    %3319 = vmatprep.subr.bf16.mxu0 0
    %3320 = vmatpush1.bf16.xpose.msra.mxu0 0
    %3321 = vmatprep.subr.bf16.mxu0 0
    %3322 = vmatpush1.bf16.xpose.msra.mxu0 0
    %3323 = vmatprep.subr.bf16.mxu0 0
    %3324 = vmatpush1.bf16.xpose.msra.mxu0 0
    %3325 = vmatprep.subr.bf16.mxu0 0
    %3326 = vmatpush1.bf16.xpose.msra.mxu0 0
    %3327 = vmatprep.subr.bf16.mxu0 0
    %3328 = vmatpush1.bf16.xpose.msra.mxu0 0
    %3329 = vmatprep.mubr.bf16.mxu0 0
    %3330 = vmatmul.mubr.bf16.gmra.mrb[0].mxu0 %v3274
    %v3331 = vpop.f32.mrb[0].mxu0
    %v3332 = vadd.f32 0.0, %v3331
    %v3333 = vpop.f32.mrb[0].mxu0
    %v3334 = vpop.f32.mrb[0].mxu0
    %v3335 = vadd.f32 0.0, %v3334
    %v3336 = vpop.f32.mrb[0].mxu0
    %3337 = vmatprep.mubr.bf16.mxu0 0
    %3338 = vmatmul.mubr.bf16.gmra.mrb[0].mxu0 %v3277
    %v3339 = vpop.f32.mrb[0].mxu0
    %v3340 = vadd.f32 0.0, %v3339
    %v3341 = vpop.f32.mrb[0].mxu0
    %v3342 = vpop.f32.mrb[0].mxu0
    %v3343 = vadd.f32 0.0, %v3342
    %v3344 = vpop.f32.mrb[0].mxu0
    %3345 = vmatprep.mubr.bf16.mxu0 0
    %3346 = vmatmul.mubr.bf16.gmra.mrb[0].mxu0 %v3280
    %v3347 = vpop.f32.mrb[0].mxu0
    %v3348 = vadd.f32 0.0, %v3347
    %v3349 = vpop.f32.mrb[0].mxu0
    %v3350 = vpop.f32.mrb[0].mxu0
    %v3351 = vadd.f32 0.0, %v3350
    %v3352 = vpop.f32.mrb[0].mxu0
    %3353 = vmatprep.mubr.bf16.mxu0 0
    %3354 = vmatmul.mubr.bf16.gmra.mrb[0].mxu0 %v3283
    %v3355 = vpop.f32.mrb[0].mxu0
    %v3356 = vadd.f32 0.0, %v3355
    %v3357 = vpop.f32.mrb[0].mxu0
    %v3358 = vpop.f32.mrb[0].mxu0
    %v3359 = vadd.f32 0.0, %v3358
    %v3360 = vpop.f32.mrb[0].mxu0
    %3361 = vdwg.mxu0
    %v3362 = vsel %vm736, %v3332, -inf
    %3363 = vmax.xlane.f32.xlu0 %v3362
    %v3364 = vpop.xlane.xlu0 %3363
    %v3365 = vsel %vm736, %v3335, -inf
    %3366 = vmax.xlane.f32.xlu0 %v3365
    %v3367 = vpop.xlane.xlu0 %3366
    %v3368 = vsel %vm736, %v3340, -inf
    %3369 = vmax.xlane.f32.xlu0 %v3368
    %v3370 = vpop.xlane.xlu0 %3369
    %v3371 = vsel %vm736, %v3343, -inf
    %3372 = vmax.xlane.f32.xlu0 %v3371
    %v3373 = vpop.xlane.xlu0 %3372
    %v3374 = vsel %vm736, %v3348, -inf
    %3375 = vmax.xlane.f32.xlu0 %v3374
    %v3376 = vpop.xlane.xlu0 %3375
    %v3377 = vsel %vm736, %v3351, -inf
    %3378 = vmax.xlane.f32.xlu0 %v3377
    %v3379 = vpop.xlane.xlu0 %3378
    %v3380 = vsel %vm736, %v3356, -inf
    %3381 = vmax.xlane.f32.xlu0 %v3380
    %v3382 = vpop.xlane.xlu0 %3381
    %v3383 = vsel %vm736, %v3359, -inf
    %3384 = vmax.xlane.f32.xlu0 %v3383
    %v3385 = vpop.xlane.xlu0 %3384
    %v3386 = vsub.f32 %v3332, %v3364
    %v3387 = vsub.f32 %v3335, %v3367
    %v3388 = vsub.f32 %v3340, %v3370
    %v3389 = vsub.f32 %v3343, %v3373
    %v3390 = vsub.f32 %v3348, %v3376
    %v3391 = vsub.f32 %v3351, %v3379
    %v3392 = vsub.f32 %v3356, %v3382
    %v3393 = vsub.f32 %v3359, %v3385
    %v3394 = vmul.f32 %v3386, 1.442695
    %v3395 = vpow.pop %v3394
    %v3396 = vmul.f32 %v3387, 1.442695
    %v3397 = vpow.pop %v3396
    %v3398 = vmul.f32 %v3388, 1.442695
    %v3399 = vpow.pop %v3398
    %v3400 = vmul.f32 %v3389, 1.442695
    %v3401 = vpow.pop %v3400
    %v3402 = vmul.f32 %v3390, 1.442695
    %v3403 = vpow.pop %v3402
    %v3404 = vmul.f32 %v3391, 1.442695
    %v3405 = vpow.pop %v3404
    %v3406 = vmul.f32 %v3392, 1.442695
    %v3407 = vpow.pop %v3406
    %v3408 = vmul.f32 %v3393, 1.442695
    %v3409 = vpow.pop %v3408
    %v3410 = vsel %vm736, %v3395, 0.0
    %3411 = vadd.xlane.f32.xlu0 %v3410
    %v3412 = vpop.xlane.xlu0 %3411
    %v3413 = vsel %vm736, %v3397, 0.0
    %3414 = vadd.xlane.f32.xlu0 %v3413
    %v3415 = vpop.xlane.xlu0 %3414
    %v3416 = vsel %vm736, %v3399, 0.0
    %3417 = vadd.xlane.f32.xlu0 %v3416
    %v3418 = vpop.xlane.xlu0 %3417
    %v3419 = vsel %vm736, %v3401, 0.0
    %3420 = vadd.xlane.f32.xlu0 %v3419
    %v3421 = vpop.xlane.xlu0 %3420
    %v3422 = vsel %vm736, %v3403, 0.0
    %3423 = vadd.xlane.f32.xlu0 %v3422
    %v3424 = vpop.xlane.xlu0 %3423
    %v3425 = vsel %vm736, %v3405, 0.0
    %3426 = vadd.xlane.f32.xlu0 %v3425
    %v3427 = vpop.xlane.xlu0 %3426
    %v3428 = vsel %vm736, %v3407, 0.0
    %3429 = vadd.xlane.f32.xlu0 %v3428
    %v3430 = vpop.xlane.xlu0 %3429
    %v3431 = vsel %vm736, %v3409, 0.0
    %3432 = vadd.xlane.f32.xlu0 %v3431
    %v3433 = vpop.xlane.xlu0 %3432
    %v3434 = vrcp.pop %v3412
    %v3435 = vrcp.pop %v3415
    %v3436 = vrcp.pop %v3418
    %v3437 = vrcp.pop %v3421
    %v3438 = vrcp.pop %v3424
    %v3439 = vrcp.pop %v3427
    %v3440 = vrcp.pop %v3430
    %v3441 = vrcp.pop %v3433
    %v3442 = vmul.f32 %v3395, %v3434
    %v3443 = vmul.f32 %v3397, %v3435
    %v3444 = vmul.f32 %v3399, %v3436
    %v3445 = vmul.f32 %v3401, %v3437
    %v3446 = vmul.f32 %v3403, %v3438
    %v3447 = vmul.f32 %v3405, %v3439
    %v3448 = vmul.f32 %v3407, %v3440
    %v3449 = vmul.f32 %v3409, %v3441
    %v3450 = vpack.c.bf16 %v3443, %v3442
    %v3451 = vpack.c.bf16 %v3445, %v3444
    %v3452 = vpack.c.bf16 %v3447, %v3446
    %v3453 = vpack.c.bf16 %v3449, %v3448
    %3454 = vrot.lane.b32.xlu0 %v642, 32
    %v3455 = vpop.permute.xlu0 %3454
    %3456 = vrot.lane.b32.xlu0 %v643, 32
    %v3457 = vpop.permute.xlu0 %3456
    %3458 = vrot.lane.b32.xlu0 %v644, 32
    %v3459 = vpop.permute.xlu0 %3458
    %3460 = vrot.lane.b32.xlu0 %v645, 32
    %v3461 = vpop.permute.xlu0 %3460
    %v3467 = vsel %vm736, %v3450, 0
    %v3470 = vsel %vm736, %v3451, 0
    %v3473 = vsel %vm736, %v3452, 0
    %v3476 = vsel %vm736, %v3453, 0
    %3478 = vmatprep.subr.bf16.mxu0 0
    %3479 = vmatpush1.bf16.msra.mxu0 %v3455
    %3480 = vmatprep.subr.bf16.mxu0 0
    %3481 = vmatpush1.bf16.msra.mxu0 %v3457
    %3482 = vmatprep.subr.bf16.mxu0 0
    %3483 = vmatpush1.bf16.msra.mxu0 %v3459
    %3484 = vmatprep.subr.bf16.mxu0 0
    %3485 = vmatpush1.bf16.msra.mxu0 %v3461
    %3486 = vmatprep.subr.bf16.mxu0 0
    %3487 = vmatpush1.bf16.msra.mxu0 0
    %3488 = vmatprep.subr.bf16.mxu0 0
    %3489 = vmatpush1.bf16.msra.mxu0 0
    %3490 = vmatprep.subr.bf16.mxu0 0
    %3491 = vmatpush1.bf16.msra.mxu0 0
    %3492 = vmatprep.subr.bf16.mxu0 0
    %3493 = vmatpush1.bf16.msra.mxu0 0
    %3494 = vmatprep.subr.bf16.mxu0 0
    %3495 = vmatpush1.bf16.msra.mxu0 0
    %3496 = vmatprep.subr.bf16.mxu0 0
    %3497 = vmatpush1.bf16.msra.mxu0 0
    %3498 = vmatprep.subr.bf16.mxu0 0
    %3499 = vmatpush1.bf16.msra.mxu0 0
    %3500 = vmatprep.subr.bf16.mxu0 0
    %3501 = vmatpush1.bf16.msra.mxu0 0
    %3502 = vmatprep.subr.bf16.mxu0 0
    %3503 = vmatpush1.bf16.msra.mxu0 0
    %3504 = vmatprep.subr.bf16.mxu0 0
    %3505 = vmatpush1.bf16.msra.mxu0 0
    %3506 = vmatprep.subr.bf16.mxu0 0
    %3507 = vmatpush1.bf16.msra.mxu0 0
    %3508 = vmatprep.subr.bf16.mxu0 0
    %3509 = vmatpush1.bf16.msra.mxu0 0
    %3510 = vmatprep.mubr.bf16.mxu0 0
    %3511 = vmatmul.mubr.bf16.gmra.mrb[0].mxu0 %v3467
    %v3512 = vpop.f32.mrb[0].mxu0
    %v3513 = vadd.f32 0.0, %v3512
    %v3514 = vpop.f32.mrb[0].mxu0
    %v3515 = vpop.f32.mrb[0].mxu0
    %v3516 = vadd.f32 0.0, %v3515
    %v3517 = vpop.f32.mrb[0].mxu0
    %3518 = vmatprep.mubr.bf16.mxu0 0
    %3519 = vmatmul.mubr.bf16.gmra.mrb[0].mxu0 %v3470
    %v3520 = vpop.f32.mrb[0].mxu0
    %v3521 = vadd.f32 0.0, %v3520
    %v3522 = vpop.f32.mrb[0].mxu0
    %v3523 = vpop.f32.mrb[0].mxu0
    %v3524 = vadd.f32 0.0, %v3523
    %v3525 = vpop.f32.mrb[0].mxu0
    %3526 = vmatprep.mubr.bf16.mxu0 0
    %3527 = vmatmul.mubr.bf16.gmra.mrb[0].mxu0 %v3473
    %v3528 = vpop.f32.mrb[0].mxu0
    %v3529 = vadd.f32 0.0, %v3528
    %v3530 = vpop.f32.mrb[0].mxu0
    %v3531 = vpop.f32.mrb[0].mxu0
    %v3532 = vadd.f32 0.0, %v3531
    %v3533 = vpop.f32.mrb[0].mxu0
    %3534 = vmatprep.mubr.bf16.mxu0 0
    %3535 = vmatmul.mubr.bf16.gmra.mrb[0].mxu0 %v3476
    %v3536 = vpop.f32.mrb[0].mxu0
    %v3537 = vadd.f32 0.0, %v3536
    %v3538 = vpop.f32.mrb[0].mxu0
    %v3539 = vpop.f32.mrb[0].mxu0
    %v3540 = vadd.f32 0.0, %v3539
    %v3541 = vpop.f32.mrb[0].mxu0
    %3542 = vdwg.mxu0
    %v3543 = vpack.c.bf16 %v3516, %v3513
    %v3544 = vpack.c.bf16 %v3524, %v3521
    %v3545 = vpack.c.bf16 %v3532, %v3529
    %v3546 = vpack.c.bf16 %v3540, %v3537
    %v3548 = vsel %vm646, %v3543, 0
    %v3551 = vsel %vm646, %v3544, 0
    %v3554 = vsel %vm646, %v3545, 0
    %v3557 = vsel %vm646, %v3546, 0
    %3559 = vmatprep.subr.bf16.mxu0 0
    %3560 = vmatpush1.bf16.msra.mxu0 %v2075
    %3561 = vmatprep.subr.bf16.mxu0 0
    %3562 = vmatpush1.bf16.msra.mxu0 %v2076
    %3563 = vmatprep.subr.bf16.mxu0 0
    %3564 = vmatpush1.bf16.msra.mxu0 0
    %3565 = vmatprep.subr.bf16.mxu0 0
    %3566 = vmatpush1.bf16.msra.mxu0 0
    %3567 = vmatprep.subr.bf16.mxu0 0
    %3568 = vmatpush1.bf16.msra.mxu0 0
    %3569 = vmatprep.subr.bf16.mxu0 0
    %3570 = vmatpush1.bf16.msra.mxu0 0
    %3571 = vmatprep.subr.bf16.mxu0 0
    %3572 = vmatpush1.bf16.msra.mxu0 0
    %3573 = vmatprep.subr.bf16.mxu0 0
    %3574 = vmatpush1.bf16.msra.mxu0 0
    %3575 = vmatprep.subr.bf16.mxu0 0
    %3576 = vmatpush1.bf16.msra.mxu0 0
    %3577 = vmatprep.subr.bf16.mxu0 0
    %3578 = vmatpush1.bf16.msra.mxu0 0
    %3579 = vmatprep.subr.bf16.mxu0 0
    %3580 = vmatpush1.bf16.msra.mxu0 0
    %3581 = vmatprep.subr.bf16.mxu0 0
    %3582 = vmatpush1.bf16.msra.mxu0 0
    %3583 = vmatprep.subr.bf16.mxu0 0
    %3584 = vmatpush1.bf16.msra.mxu0 0
    %3585 = vmatprep.subr.bf16.mxu0 0
    %3586 = vmatpush1.bf16.msra.mxu0 0
    %3587 = vmatprep.subr.bf16.mxu0 0
    %3588 = vmatpush1.bf16.msra.mxu0 0
    %3589 = vmatprep.subr.bf16.mxu0 0
    %3590 = vmatpush1.bf16.msra.mxu0 0
    %3591 = vmatprep.mubr.bf16.mxu0 0
    %3592 = vmatmul.mubr.bf16.gmra.mrb[0].mxu0 %v3548
    %v3593 = vpop.f32.mrb[0].mxu0
    %v3594 = vadd.f32 0.0, %v3593
    %v3595 = vpop.f32.mrb[0].mxu0
    %v3596 = vpop.f32.mrb[0].mxu0
    %v3597 = vadd.f32 0.0, %v3596
    %v3598 = vpop.f32.mrb[0].mxu0
    %3599 = vmatprep.mubr.bf16.mxu0 0
    %3600 = vmatmul.mubr.bf16.gmra.mrb[0].mxu0 %v3551
    %v3601 = vpop.f32.mrb[0].mxu0
    %v3602 = vadd.f32 0.0, %v3601
    %v3603 = vpop.f32.mrb[0].mxu0
    %v3604 = vpop.f32.mrb[0].mxu0
    %v3605 = vadd.f32 0.0, %v3604
    %v3606 = vpop.f32.mrb[0].mxu0
    %3607 = vmatprep.mubr.bf16.mxu0 0
    %3608 = vmatmul.mubr.bf16.gmra.mrb[0].mxu0 %v3554
    %v3609 = vpop.f32.mrb[0].mxu0
    %v3610 = vadd.f32 0.0, %v3609
    %v3611 = vpop.f32.mrb[0].mxu0
    %v3612 = vpop.f32.mrb[0].mxu0
    %v3613 = vadd.f32 0.0, %v3612
    %v3614 = vpop.f32.mrb[0].mxu0
    %3615 = vmatprep.mubr.bf16.mxu0 0
    %3616 = vmatmul.mubr.bf16.gmra.mrb[0].mxu0 %v3557
    %v3617 = vpop.f32.mrb[0].mxu0
    %v3618 = vadd.f32 0.0, %v3617
    %v3619 = vpop.f32.mrb[0].mxu0
    %v3620 = vpop.f32.mrb[0].mxu0
    %v3621 = vadd.f32 0.0, %v3620
    %v3622 = vpop.f32.mrb[0].mxu0
    %3623 = vdwg.mxu0
    %v3624 = vadd.f32 %v3249, %v3594
    %v3625 = vadd.f32 %v3250, %v3597
    %v3626 = vadd.f32 %v3251, %v3602
    %v3627 = vadd.f32 %v3252, %v3605
    %v3628 = vadd.f32 %v3253, %v3610
    %v3629 = vadd.f32 %v3254, %v3613
    %v3630 = vadd.f32 %v3255, %v3618
    %v3631 = vadd.f32 %v3256, %v3621
    %v3633 = vlaneseq
    %v3634 = vshrl.u32 %v3633, 7
    %v3635 = vsub.s32 0, %v3634
    %v3636 = vrot.slane %v259, %v3635
    %v3638 = vadd.f32 %v2156, %v3636
    %v3639 = vadd.f32 %v2157, %v3636
    %v3640 = vadd.f32 %v2158, %v3636
    %v3641 = vadd.f32 %v2159, %v3636
    %v3642 = vadd.f32 %v2160, %v3636
    %v3643 = vadd.f32 %v2161, %v3636
    %v3644 = vadd.f32 %v2162, %v3636
    %v3645 = vadd.f32 %v2163, %v3636
    %v3646 = vadd.f32 %v3624, %v3636
    %v3647 = vadd.f32 %v3625, %v3636
    %v3648 = vadd.f32 %v3626, %v3636
    %v3649 = vadd.f32 %v3627, %v3636
    %v3650 = vadd.f32 %v3628, %v3636
    %v3651 = vadd.f32 %v3629, %v3636
    %v3652 = vadd.f32 %v3630, %v3636
    %v3653 = vadd.f32 %v3631, %v3636
    %v3654 = vld [vmem:[%s6] sm:$0x1]
    %v3655 = vld [vmem:[%s7] sm:$0x1]
    %3656 = vadd.xlane.f32.xlu0 %v3638
    %v3657 = vpop.xlane.xlu0 %3656
    %3658 = vadd.xlane.f32.xlu0 %v3639
    %v3659 = vpop.xlane.xlu0 %3658
    %3660 = vadd.xlane.f32.xlu0 %v3640
    %v3661 = vpop.xlane.xlu0 %3660
    %3662 = vadd.xlane.f32.xlu0 %v3641
    %v3663 = vpop.xlane.xlu0 %3662
    %3664 = vadd.xlane.f32.xlu0 %v3642
    %v3665 = vpop.xlane.xlu0 %3664
    %3666 = vadd.xlane.f32.xlu0 %v3643
    %v3667 = vpop.xlane.xlu0 %3666
    %3668 = vadd.xlane.f32.xlu0 %v3644
    %v3669 = vpop.xlane.xlu0 %3668
    %3670 = vadd.xlane.f32.xlu0 %v3645
    %v3671 = vpop.xlane.xlu0 %3670
    %3672 = vadd.xlane.f32.xlu0 %v3646
    %v3673 = vpop.xlane.xlu0 %3672
    %3674 = vadd.xlane.f32.xlu0 %v3647
    %v3675 = vpop.xlane.xlu0 %3674
    %3676 = vadd.xlane.f32.xlu0 %v3648
    %v3677 = vpop.xlane.xlu0 %3676
    %3678 = vadd.xlane.f32.xlu0 %v3649
    %v3679 = vpop.xlane.xlu0 %3678
    %3680 = vadd.xlane.f32.xlu0 %v3650
    %v3681 = vpop.xlane.xlu0 %3680
    %3682 = vadd.xlane.f32.xlu0 %v3651
    %v3683 = vpop.xlane.xlu0 %3682
    %3684 = vadd.xlane.f32.xlu0 %v3652
    %v3685 = vpop.xlane.xlu0 %3684
    %3686 = vadd.xlane.f32.xlu0 %v3653
    %v3687 = vpop.xlane.xlu0 %3686
    %v3688 = vrcp.pop 128.0
    %v3689 = vmul.f32 %v3657, %v3688
    %v3690 = vmul.f32 %v3659, %v3688
    %v3691 = vmul.f32 %v3661, %v3688
    %v3692 = vmul.f32 %v3663, %v3688
    %v3693 = vmul.f32 %v3665, %v3688
    %v3694 = vmul.f32 %v3667, %v3688
    %v3695 = vmul.f32 %v3669, %v3688
    %v3696 = vmul.f32 %v3671, %v3688
    %v3697 = vmul.f32 %v3673, %v3688
    %v3698 = vmul.f32 %v3675, %v3688
    %v3699 = vmul.f32 %v3677, %v3688
    %v3700 = vmul.f32 %v3679, %v3688
    %v3701 = vmul.f32 %v3681, %v3688
    %v3702 = vmul.f32 %v3683, %v3688
    %v3703 = vmul.f32 %v3685, %v3688
    %v3704 = vmul.f32 %v3687, %v3688
    %v3705 = vsub.f32 %v3638, %v3689
    %v3706 = vsub.f32 %v3639, %v3690
    %v3707 = vsub.f32 %v3640, %v3691
    %v3708 = vsub.f32 %v3641, %v3692
    %v3709 = vsub.f32 %v3642, %v3693
    %v3710 = vsub.f32 %v3643, %v3694
    %v3711 = vsub.f32 %v3644, %v3695
    %v3712 = vsub.f32 %v3645, %v3696
    %v3713 = vsub.f32 %v3646, %v3697
    %v3714 = vsub.f32 %v3647, %v3698
    %v3715 = vsub.f32 %v3648, %v3699
    %v3716 = vsub.f32 %v3649, %v3700
    %v3717 = vsub.f32 %v3650, %v3701
    %v3718 = vsub.f32 %v3651, %v3702
    %v3719 = vsub.f32 %v3652, %v3703
    %v3720 = vsub.f32 %v3653, %v3704
    %v3721 = vmul.f32 %v3705, %v3705
    %v3722 = vmul.f32 %v3706, %v3706
    %v3723 = vmul.f32 %v3707, %v3707
    %v3724 = vmul.f32 %v3708, %v3708
    %v3725 = vmul.f32 %v3709, %v3709
    %v3726 = vmul.f32 %v3710, %v3710
    %v3727 = vmul.f32 %v3711, %v3711
    %v3728 = vmul.f32 %v3712, %v3712
    %v3729 = vmul.f32 %v3713, %v3713
    %v3730 = vmul.f32 %v3714, %v3714
    %v3731 = vmul.f32 %v3715, %v3715
    %v3732 = vmul.f32 %v3716, %v3716
    %v3733 = vmul.f32 %v3717, %v3717
    %v3734 = vmul.f32 %v3718, %v3718
    %v3735 = vmul.f32 %v3719, %v3719
    %v3736 = vmul.f32 %v3720, %v3720
    %3737 = vadd.xlane.f32.xlu0 %v3721
    %v3738 = vpop.xlane.xlu0 %3737
    %3739 = vadd.xlane.f32.xlu0 %v3722
    %v3740 = vpop.xlane.xlu0 %3739
    %3741 = vadd.xlane.f32.xlu0 %v3723
    %v3742 = vpop.xlane.xlu0 %3741
    %3743 = vadd.xlane.f32.xlu0 %v3724
    %v3744 = vpop.xlane.xlu0 %3743
    %3745 = vadd.xlane.f32.xlu0 %v3725
    %v3746 = vpop.xlane.xlu0 %3745
    %3747 = vadd.xlane.f32.xlu0 %v3726
    %v3748 = vpop.xlane.xlu0 %3747
    %3749 = vadd.xlane.f32.xlu0 %v3727
    %v3750 = vpop.xlane.xlu0 %3749
    %3751 = vadd.xlane.f32.xlu0 %v3728
    %v3752 = vpop.xlane.xlu0 %3751
    %3753 = vadd.xlane.f32.xlu0 %v3729
    %v3754 = vpop.xlane.xlu0 %3753
    %3755 = vadd.xlane.f32.xlu0 %v3730
    %v3756 = vpop.xlane.xlu0 %3755
    %3757 = vadd.xlane.f32.xlu0 %v3731
    %v3758 = vpop.xlane.xlu0 %3757
    %3759 = vadd.xlane.f32.xlu0 %v3732
    %v3760 = vpop.xlane.xlu0 %3759
    %3761 = vadd.xlane.f32.xlu0 %v3733
    %v3762 = vpop.xlane.xlu0 %3761
    %3763 = vadd.xlane.f32.xlu0 %v3734
    %v3764 = vpop.xlane.xlu0 %3763
    %3765 = vadd.xlane.f32.xlu0 %v3735
    %v3766 = vpop.xlane.xlu0 %3765
    %3767 = vadd.xlane.f32.xlu0 %v3736
    %v3768 = vpop.xlane.xlu0 %3767
    %v3769 = vmul.f32 %v3738, %v3688
    %v3770 = vmul.f32 %v3740, %v3688
    %v3771 = vmul.f32 %v3742, %v3688
    %v3772 = vmul.f32 %v3744, %v3688
    %v3773 = vmul.f32 %v3746, %v3688
    %v3774 = vmul.f32 %v3748, %v3688
    %v3775 = vmul.f32 %v3750, %v3688
    %v3776 = vmul.f32 %v3752, %v3688
    %v3777 = vmul.f32 %v3754, %v3688
    %v3778 = vmul.f32 %v3756, %v3688
    %v3779 = vmul.f32 %v3758, %v3688
    %v3780 = vmul.f32 %v3760, %v3688
    %v3781 = vmul.f32 %v3762, %v3688
    %v3782 = vmul.f32 %v3764, %v3688
    %v3783 = vmul.f32 %v3766, %v3688
    %v3784 = vmul.f32 %v3768, %v3688
    %v3785 = vadd.f32 %v3769, 1e-05
    %v3786 = vadd.f32 %v3770, 1e-05
    %v3787 = vadd.f32 %v3771, 1e-05
    %v3788 = vadd.f32 %v3772, 1e-05
    %v3789 = vadd.f32 %v3773, 1e-05
    %v3790 = vadd.f32 %v3774, 1e-05
    %v3791 = vadd.f32 %v3775, 1e-05
    %v3792 = vadd.f32 %v3776, 1e-05
    %v3793 = vadd.f32 %v3777, 1e-05
    %v3794 = vadd.f32 %v3778, 1e-05
    %v3795 = vadd.f32 %v3779, 1e-05
    %v3796 = vadd.f32 %v3780, 1e-05
    %v3797 = vadd.f32 %v3781, 1e-05
    %v3798 = vadd.f32 %v3782, 1e-05
    %v3799 = vadd.f32 %v3783, 1e-05
    %v3800 = vadd.f32 %v3784, 1e-05
    %v3801 = vrsqrt.pop %v3785
    %v3802 = vrsqrt.pop %v3786
    %v3803 = vrsqrt.pop %v3787
    %v3804 = vrsqrt.pop %v3788
    %v3805 = vrsqrt.pop %v3789
    %v3806 = vrsqrt.pop %v3790
    %v3807 = vrsqrt.pop %v3791
    %v3808 = vrsqrt.pop %v3792
    %v3809 = vrsqrt.pop %v3793
    %v3810 = vrsqrt.pop %v3794
    %v3811 = vrsqrt.pop %v3795
    %v3812 = vrsqrt.pop %v3796
    %v3813 = vrsqrt.pop %v3797
    %v3814 = vrsqrt.pop %v3798
    %v3815 = vrsqrt.pop %v3799
    %v3816 = vrsqrt.pop %v3800
    %v3817 = vmul.f32 %v3705, %v3801
    %v3818 = vmul.f32 %v3706, %v3802
    %v3819 = vmul.f32 %v3707, %v3803
    %v3820 = vmul.f32 %v3708, %v3804
    %v3821 = vmul.f32 %v3709, %v3805
    %v3822 = vmul.f32 %v3710, %v3806
    %v3823 = vmul.f32 %v3711, %v3807
    %v3824 = vmul.f32 %v3712, %v3808
    %v3825 = vmul.f32 %v3713, %v3809
    %v3826 = vmul.f32 %v3714, %v3810
    %v3827 = vmul.f32 %v3715, %v3811
    %v3828 = vmul.f32 %v3716, %v3812
    %v3829 = vmul.f32 %v3717, %v3813
    %v3830 = vmul.f32 %v3718, %v3814
    %v3831 = vmul.f32 %v3719, %v3815
    %v3832 = vmul.f32 %v3720, %v3816
    %v3834 = vlaneseq
    %v3835 = vshrl.u32 %v3834, 7
    %v3836 = vsub.s32 0, %v3835
    %v3837 = vrot.slane %v3654, %v3836
    %v3839 = vmul.f32 %v3817, %v3837
    %v3840 = vmul.f32 %v3818, %v3837
    %v3841 = vmul.f32 %v3819, %v3837
    %v3842 = vmul.f32 %v3820, %v3837
    %v3843 = vmul.f32 %v3821, %v3837
    %v3844 = vmul.f32 %v3822, %v3837
    %v3845 = vmul.f32 %v3823, %v3837
    %v3846 = vmul.f32 %v3824, %v3837
    %v3847 = vmul.f32 %v3825, %v3837
    %v3848 = vmul.f32 %v3826, %v3837
    %v3849 = vmul.f32 %v3827, %v3837
    %v3850 = vmul.f32 %v3828, %v3837
    %v3851 = vmul.f32 %v3829, %v3837
    %v3852 = vmul.f32 %v3830, %v3837
    %v3853 = vmul.f32 %v3831, %v3837
    %v3854 = vmul.f32 %v3832, %v3837
    %v3856 = vlaneseq
    %v3857 = vshrl.u32 %v3856, 7
    %v3858 = vsub.s32 0, %v3857
    %v3859 = vrot.slane %v3655, %v3858
    %v3861 = vadd.f32 %v3839, %v3859
    %v3862 = vadd.f32 %v3840, %v3859
    %v3863 = vadd.f32 %v3841, %v3859
    %v3864 = vadd.f32 %v3842, %v3859
    %v3865 = vadd.f32 %v3843, %v3859
    %v3866 = vadd.f32 %v3844, %v3859
    %v3867 = vadd.f32 %v3845, %v3859
    %v3868 = vadd.f32 %v3846, %v3859
    %v3869 = vadd.f32 %v3847, %v3859
    %v3870 = vadd.f32 %v3848, %v3859
    %v3871 = vadd.f32 %v3849, %v3859
    %v3872 = vadd.f32 %v3850, %v3859
    %v3873 = vadd.f32 %v3851, %v3859
    %v3874 = vadd.f32 %v3852, %v3859
    %v3875 = vadd.f32 %v3853, %v3859
    %v3876 = vadd.f32 %v3854, %v3859
    %v3877 = vld [vmem:[#allocation10] sm:$0xff]
    %v3878 = vld [vmem:[#allocation10 + $0x8] sm:$0xf]
    %v3879 = vld [vmem:[#allocation10 + $0xc] sm:$0xff]
    %v3880 = vld [vmem:[#allocation10 + $0x14] sm:$0xf]
    %v3881 = vld [vmem:[#allocation10 + $0x18] sm:$0xff]
    %v3882 = vld [vmem:[#allocation10 + $0x20] sm:$0xf]
    %v3883 = vld [vmem:[#allocation10 + $0x24] sm:$0xff]
    %v3884 = vld [vmem:[#allocation10 + $0x2c] sm:$0xf]
    %v3885 = vld [vmem:[#allocation10 + $0x30] sm:$0xff]
    %v3886 = vld [vmem:[#allocation10 + $0x38] sm:$0xf]
    %v3887 = vld [vmem:[#allocation10 + $0x3c] sm:$0xff]
    %v3888 = vld [vmem:[#allocation10 + $0x44] sm:$0xf]
    %v3889 = vld [vmem:[#allocation10 + $0x48] sm:$0xff]
    %v3890 = vld [vmem:[#allocation10 + $0x50] sm:$0xf]
    %v3891 = vld [vmem:[#allocation10 + $0x54] sm:$0xff]
    %v3892 = vld [vmem:[#allocation10 + $0x5c] sm:$0xf]
    %v3893 = vld [vmem:[#allocation10 + $0x60] sm:$0xff]
    %v3894 = vld [vmem:[#allocation10 + $0x68] sm:$0xf]
    %v3895 = vld [vmem:[#allocation10 + $0x6c] sm:$0xff]
    %v3896 = vld [vmem:[#allocation10 + $0x74] sm:$0xf]
    %v3897 = vld [vmem:[#allocation10 + $0x78] sm:$0xff]
    %v3898 = vld [vmem:[#allocation10 + $0x80] sm:$0xf]
    %v3899 = vld [vmem:[#allocation10 + $0x84] sm:$0xff]
    %v3900 = vld [vmem:[#allocation10 + $0x8c] sm:$0xf]
    %v3901 = vld [vmem:[#allocation10 + $0x90] sm:$0xff]
    %v3902 = vld [vmem:[#allocation10 + $0x98] sm:$0xf]
    %v3903 = vld [vmem:[#allocation10 + $0x9c] sm:$0xff]
    %v3904 = vld [vmem:[#allocation10 + $0xa4] sm:$0xf]
    %v3905 = vld [vmem:[#allocation10 + $0xa8] sm:$0xff]
    %v3906 = vld [vmem:[#allocation10 + $0xb0] sm:$0xf]
    %v3907 = vld [vmem:[#allocation10 + $0xb4] sm:$0xff]
    %v3908 = vld [vmem:[#allocation10 + $0xbc] sm:$0xf]
    %v3909 = vld [vmem:[%s9] sm:$0x7]
    %v3910 = vld [vmem:[#allocation11] sm:$0xf]
    %v3911 = vld [vmem:[#allocation11 + $0x4] sm:$0xf]
    %v3912 = vld [vmem:[#allocation11 + $0x8] sm:$0xf]
    %v3913 = vld [vmem:[#allocation11 + $0xc] sm:$0xf]
    %v3914 = vld [vmem:[#allocation11 + $0x10] sm:$0xf]
    %v3915 = vld [vmem:[#allocation11 + $0x14] sm:$0xf]
    %v3916 = vld [vmem:[#allocation11 + $0x18] sm:$0xf]
    %v3917 = vld [vmem:[#allocation11 + $0x1c] sm:$0xf]
    %v3918 = vld [vmem:[#allocation11 + $0x20] sm:$0xf]
    %v3919 = vld [vmem:[#allocation11 + $0x24] sm:$0xf]
    %v3920 = vld [vmem:[#allocation11 + $0x28] sm:$0xf]
    %v3921 = vld [vmem:[#allocation11 + $0x2c] sm:$0xf]
    %v3922 = vld [vmem:[#allocation11 + $0x30] sm:$0xf]
    %v3923 = vld [vmem:[#allocation11 + $0x34] sm:$0xf]
    %v3924 = vld [vmem:[#allocation11 + $0x38] sm:$0xf]
    %v3925 = vld [vmem:[#allocation11 + $0x3c] sm:$0xf]
    %v3926 = vld [vmem:[%s11] sm:$0x1]
    %v3927 = vpack.c.bf16 %v3862, %v3861
    %v3928 = vpack.c.bf16 %v3864, %v3863
    %v3929 = vpack.c.bf16 %v3866, %v3865
    %v3930 = vpack.c.bf16 %v3868, %v3867
    %v3931 = vpack.c.bf16 %v3870, %v3869
    %v3932 = vpack.c.bf16 %v3872, %v3871
    %v3933 = vpack.c.bf16 %v3874, %v3873
    %v3934 = vpack.c.bf16 %v3876, %v3875
    %v3936 = vlaneseq
    %v3937 = vshrl.u32 %v3936, 7
    %v3938 = vsub.s32 0, %v3937
    %v3939 = vrot.slane %v3909, %v3938
    %v3940 = vlaneseq
    %v3941 = vshrl.u32 %v3940, 7
    %v3942 = vsub.s32 1, %v3941
    %v3943 = vrot.slane %v3909, %v3942
    %v3944 = vlaneseq
    %v3945 = vshrl.u32 %v3944, 7
    %v3946 = vsub.s32 2, %v3945
    %v3947 = vrot.slane %v3909, %v3946
    %v3983 = vunpack.c.l.b16 %v3877
    %v3984 = vunpack.c.h.b16 %v3877
    %v3985 = vunpack.c.l.b16 %v3878
    %v3986 = vunpack.c.l.b16 %v3879
    %v3987 = vunpack.c.h.b16 %v3879
    %v3988 = vunpack.c.l.b16 %v3880
    %v3989 = vunpack.c.l.b16 %v3881
    %v3990 = vunpack.c.h.b16 %v3881
    %v3991 = vunpack.c.l.b16 %v3882
    %v3992 = vunpack.c.l.b16 %v3883
    %v3993 = vunpack.c.h.b16 %v3883
    %v3994 = vunpack.c.l.b16 %v3884
    %v3995 = vunpack.c.l.b16 %v3885
    %v3996 = vunpack.c.h.b16 %v3885
    %v3997 = vunpack.c.l.b16 %v3886
    %v3998 = vunpack.c.l.b16 %v3887
    %v3999 = vunpack.c.h.b16 %v3887
    %v4000 = vunpack.c.l.b16 %v3888
    %v4001 = vunpack.c.l.b16 %v3889
    %v4002 = vunpack.c.h.b16 %v3889
    %v4003 = vunpack.c.l.b16 %v3890
    %v4004 = vunpack.c.l.b16 %v3891
    %v4005 = vunpack.c.h.b16 %v3891
    %v4006 = vunpack.c.l.b16 %v3892
    %v4007 = vunpack.c.l.b16 %v3893
    %v4008 = vunpack.c.h.b16 %v3893
    %v4009 = vunpack.c.l.b16 %v3894
    %v4010 = vunpack.c.l.b16 %v3895
    %v4011 = vunpack.c.h.b16 %v3895
    %v4012 = vunpack.c.l.b16 %v3896
    %v4013 = vunpack.c.l.b16 %v3897
    %v4014 = vunpack.c.h.b16 %v3897
    %v4015 = vunpack.c.l.b16 %v3898
    %v4016 = vunpack.c.l.b16 %v3899
    %v4017 = vunpack.c.h.b16 %v3899
    %v4018 = vunpack.c.l.b16 %v3900
    %v4019 = vunpack.c.l.b16 %v3901
    %v4020 = vunpack.c.h.b16 %v3901
    %v4021 = vunpack.c.l.b16 %v3902
    %v4022 = vunpack.c.l.b16 %v3903
    %v4023 = vunpack.c.h.b16 %v3903
    %v4024 = vunpack.c.l.b16 %v3904
    %v4025 = vunpack.c.l.b16 %v3905
    %v4026 = vunpack.c.h.b16 %v3905
    %v4027 = vunpack.c.l.b16 %v3906
    %v4028 = vunpack.c.l.b16 %v3907
    %v4029 = vunpack.c.h.b16 %v3907
    %v4030 = vunpack.c.l.b16 %v3908
    %v4031 = vpack.c.b16 %v3986, %v3983
    %v4032 = vpack.c.b16 %v3987, %v3984
    %v4033 = vpack.c.b16 %v3988, %v3985
    %v4034 = vpack.c.b16 %v3992, %v3989
    %v4035 = vpack.c.b16 %v3993, %v3990
    %v4036 = vpack.c.b16 %v3994, %v3991
    %v4037 = vpack.c.b16 %v3998, %v3995
    %v4038 = vpack.c.b16 %v3999, %v3996
    %v4039 = vpack.c.b16 %v4000, %v3997
    %v4040 = vpack.c.b16 %v4004, %v4001
    %v4041 = vpack.c.b16 %v4005, %v4002
    %v4042 = vpack.c.b16 %v4006, %v4003
    %v4043 = vpack.c.b16 %v4010, %v4007
    %v4044 = vpack.c.b16 %v4011, %v4008
    %v4045 = vpack.c.b16 %v4012, %v4009
    %v4046 = vpack.c.b16 %v4016, %v4013
    %v4047 = vpack.c.b16 %v4017, %v4014
    %v4048 = vpack.c.b16 %v4018, %v4015
    %v4049 = vpack.c.b16 %v4022, %v4019
    %v4050 = vpack.c.b16 %v4023, %v4020
    %v4051 = vpack.c.b16 %v4024, %v4021
    %v4052 = vpack.c.b16 %v4028, %v4025
    %v4053 = vpack.c.b16 %v4029, %v4026
    %v4054 = vpack.c.b16 %v4030, %v4027
    %4079 = vmatprep.subr.bf16.mxu0 %v4032
    %4080 = vmatpush1.bf16.msra.mxu0 %v4031
    %4081 = vmatprep.subr.bf16.mxu0 %v4035
    %4082 = vmatpush1.bf16.msra.mxu0 %v4034
    %4083 = vmatprep.subr.bf16.mxu0 %v4038
    %4084 = vmatpush1.bf16.msra.mxu0 %v4037
    %4085 = vmatprep.subr.bf16.mxu0 %v4041
    %4086 = vmatpush1.bf16.msra.mxu0 %v4040
    %4087 = vmatprep.subr.bf16.mxu0 %v4044
    %4088 = vmatpush1.bf16.msra.mxu0 %v4043
    %4089 = vmatprep.subr.bf16.mxu0 %v4047
    %4090 = vmatpush1.bf16.msra.mxu0 %v4046
    %4091 = vmatprep.subr.bf16.mxu0 %v4050
    %4092 = vmatpush1.bf16.msra.mxu0 %v4049
    %4093 = vmatprep.subr.bf16.mxu0 %v4053
    %4094 = vmatpush1.bf16.msra.mxu0 %v4052
    %4095 = vmatprep.subr.bf16.mxu0 0
    %4096 = vmatpush1.bf16.msra.mxu0 0
    %4097 = vmatprep.subr.bf16.mxu0 0
    %4098 = vmatpush1.bf16.msra.mxu0 0
    %4099 = vmatprep.subr.bf16.mxu0 0
    %4100 = vmatpush1.bf16.msra.mxu0 0
    %4101 = vmatprep.subr.bf16.mxu0 0
    %4102 = vmatpush1.bf16.msra.mxu0 0
    %4103 = vmatprep.subr.bf16.mxu0 0
    %4104 = vmatpush1.bf16.msra.mxu0 0
    %4105 = vmatprep.subr.bf16.mxu0 0
    %4106 = vmatpush1.bf16.msra.mxu0 0
    %4107 = vmatprep.subr.bf16.mxu0 0
    %4108 = vmatpush1.bf16.msra.mxu0 0
    %4109 = vmatprep.subr.bf16.mxu0 0
    %4110 = vmatpush1.bf16.msra.mxu0 0
    %4111 = vmatprep.mubr.bf16.mxu0 0
    %4112 = vmatmul.mubr.bf16.gmra.mrb[0].mxu0 %v3927
    %v4113 = vpop.f32.mrb[0].mxu0
    %v4114 = vadd.f32 %v3939, %v4113
    %v4115 = vpop.f32.mrb[0].mxu0
    %v4116 = vadd.f32 %v3943, %v4115
    %v4117 = vpop.f32.mrb[0].mxu0
    %v4118 = vadd.f32 %v3939, %v4117
    %v4119 = vpop.f32.mrb[0].mxu0
    %v4120 = vadd.f32 %v3943, %v4119
    %4121 = vmatprep.mubr.bf16.mxu0 0
    %4122 = vmatmul.mubr.bf16.gmra.mrb[0].mxu0 %v3928
    %v4123 = vpop.f32.mrb[0].mxu0
    %v4124 = vadd.f32 %v3939, %v4123
    %v4125 = vpop.f32.mrb[0].mxu0
    %v4126 = vadd.f32 %v3943, %v4125
    %v4127 = vpop.f32.mrb[0].mxu0
    %v4128 = vadd.f32 %v3939, %v4127
    %v4129 = vpop.f32.mrb[0].mxu0
    %v4130 = vadd.f32 %v3943, %v4129
    %4131 = vmatprep.mubr.bf16.mxu0 0
    %4132 = vmatmul.mubr.bf16.gmra.mrb[0].mxu0 %v3929
    %v4133 = vpop.f32.mrb[0].mxu0
    %v4134 = vadd.f32 %v3939, %v4133
    %v4135 = vpop.f32.mrb[0].mxu0
    %v4136 = vadd.f32 %v3943, %v4135
    %v4137 = vpop.f32.mrb[0].mxu0
    %v4138 = vadd.f32 %v3939, %v4137
    %v4139 = vpop.f32.mrb[0].mxu0
    %v4140 = vadd.f32 %v3943, %v4139
    %4141 = vmatprep.mubr.bf16.mxu0 0
    %4142 = vmatmul.mubr.bf16.gmra.mrb[0].mxu0 %v3930
    %v4143 = vpop.f32.mrb[0].mxu0
    %v4144 = vadd.f32 %v3939, %v4143
    %v4145 = vpop.f32.mrb[0].mxu0
    %v4146 = vadd.f32 %v3943, %v4145
    %v4147 = vpop.f32.mrb[0].mxu0
    %v4148 = vadd.f32 %v3939, %v4147
    %v4149 = vpop.f32.mrb[0].mxu0
    %v4150 = vadd.f32 %v3943, %v4149
    %4151 = vmatprep.mubr.bf16.mxu0 0
    %4152 = vmatmul.mubr.bf16.gmra.mrb[0].mxu0 %v3931
    %v4153 = vpop.f32.mrb[0].mxu0
    %v4154 = vadd.f32 %v3939, %v4153
    %v4155 = vpop.f32.mrb[0].mxu0
    %v4156 = vadd.f32 %v3943, %v4155
    %v4157 = vpop.f32.mrb[0].mxu0
    %v4158 = vadd.f32 %v3939, %v4157
    %v4159 = vpop.f32.mrb[0].mxu0
    %v4160 = vadd.f32 %v3943, %v4159
    %4161 = vmatprep.mubr.bf16.mxu0 0
    %4162 = vmatmul.mubr.bf16.gmra.mrb[0].mxu0 %v3932
    %v4163 = vpop.f32.mrb[0].mxu0
    %v4164 = vadd.f32 %v3939, %v4163
    %v4165 = vpop.f32.mrb[0].mxu0
    %v4166 = vadd.f32 %v3943, %v4165
    %v4167 = vpop.f32.mrb[0].mxu0
    %v4168 = vadd.f32 %v3939, %v4167
    %v4169 = vpop.f32.mrb[0].mxu0
    %v4170 = vadd.f32 %v3943, %v4169
    %4171 = vmatprep.mubr.bf16.mxu0 0
    %4172 = vmatmul.mubr.bf16.gmra.mrb[0].mxu0 %v3933
    %v4173 = vpop.f32.mrb[0].mxu0
    %v4174 = vadd.f32 %v3939, %v4173
    %v4175 = vpop.f32.mrb[0].mxu0
    %v4176 = vadd.f32 %v3943, %v4175
    %v4177 = vpop.f32.mrb[0].mxu0
    %v4178 = vadd.f32 %v3939, %v4177
    %v4179 = vpop.f32.mrb[0].mxu0
    %v4180 = vadd.f32 %v3943, %v4179
    %4181 = vmatprep.mubr.bf16.mxu0 0
    %4182 = vmatmul.mubr.bf16.gmra.mrb[0].mxu0 %v3934
    %v4183 = vpop.f32.mrb[0].mxu0
    %v4184 = vadd.f32 %v3939, %v4183
    %v4185 = vpop.f32.mrb[0].mxu0
    %v4186 = vadd.f32 %v3943, %v4185
    %v4187 = vpop.f32.mrb[0].mxu0
    %v4188 = vadd.f32 %v3939, %v4187
    %v4189 = vpop.f32.mrb[0].mxu0
    %v4190 = vadd.f32 %v3943, %v4189
    %4191 = vdwg.mxu0
    %4192 = vmatprep.subr.bf16.mxu0 0
    %4193 = vmatpush1.bf16.msra.mxu0 %v4033
    %4194 = vmatprep.subr.bf16.mxu0 0
    %4195 = vmatpush1.bf16.msra.mxu0 %v4036
    %4196 = vmatprep.subr.bf16.mxu0 0
    %4197 = vmatpush1.bf16.msra.mxu0 %v4039
    %4198 = vmatprep.subr.bf16.mxu0 0
    %4199 = vmatpush1.bf16.msra.mxu0 %v4042
    %4200 = vmatprep.subr.bf16.mxu0 0
    %4201 = vmatpush1.bf16.msra.mxu0 %v4045
    %4202 = vmatprep.subr.bf16.mxu0 0
    %4203 = vmatpush1.bf16.msra.mxu0 %v4048
    %4204 = vmatprep.subr.bf16.mxu0 0
    %4205 = vmatpush1.bf16.msra.mxu0 %v4051
    %4206 = vmatprep.subr.bf16.mxu0 0
    %4207 = vmatpush1.bf16.msra.mxu0 %v4054
    %4208 = vmatprep.subr.bf16.mxu0 0
    %4209 = vmatpush1.bf16.msra.mxu0 0
    %4210 = vmatprep.subr.bf16.mxu0 0
    %4211 = vmatpush1.bf16.msra.mxu0 0
    %4212 = vmatprep.subr.bf16.mxu0 0
    %4213 = vmatpush1.bf16.msra.mxu0 0
    %4214 = vmatprep.subr.bf16.mxu0 0
    %4215 = vmatpush1.bf16.msra.mxu0 0
    %4216 = vmatprep.subr.bf16.mxu0 0
    %4217 = vmatpush1.bf16.msra.mxu0 0
    %4218 = vmatprep.subr.bf16.mxu0 0
    %4219 = vmatpush1.bf16.msra.mxu0 0
    %4220 = vmatprep.subr.bf16.mxu0 0
    %4221 = vmatpush1.bf16.msra.mxu0 0
    %4222 = vmatprep.subr.bf16.mxu0 0
    %4223 = vmatpush1.bf16.msra.mxu0 0
    %4224 = vmatprep.mubr.bf16.mxu0 0
    %4225 = vmatmul.mubr.bf16.gmra.mrb[0].mxu0 %v3927
    %v4226 = vpop.f32.mrb[0].mxu0
    %v4227 = vadd.f32 %v3947, %v4226
    %v4228 = vpop.f32.mrb[0].mxu0
    %v4229 = vpop.f32.mrb[0].mxu0
    %v4230 = vadd.f32 %v3947, %v4229
    %v4231 = vpop.f32.mrb[0].mxu0
    %4232 = vmatprep.mubr.bf16.mxu0 0
    %4233 = vmatmul.mubr.bf16.gmra.mrb[0].mxu0 %v3928
    %v4234 = vpop.f32.mrb[0].mxu0
    %v4235 = vadd.f32 %v3947, %v4234
    %v4236 = vpop.f32.mrb[0].mxu0
    %v4237 = vpop.f32.mrb[0].mxu0
    %v4238 = vadd.f32 %v3947, %v4237
    %v4239 = vpop.f32.mrb[0].mxu0
    %4240 = vmatprep.mubr.bf16.mxu0 0
    %4241 = vmatmul.mubr.bf16.gmra.mrb[0].mxu0 %v3929
    %v4242 = vpop.f32.mrb[0].mxu0
    %v4243 = vadd.f32 %v3947, %v4242
    %v4244 = vpop.f32.mrb[0].mxu0
    %v4245 = vpop.f32.mrb[0].mxu0
    %v4246 = vadd.f32 %v3947, %v4245
    %v4247 = vpop.f32.mrb[0].mxu0
    %4248 = vmatprep.mubr.bf16.mxu0 0
    %4249 = vmatmul.mubr.bf16.gmra.mrb[0].mxu0 %v3930
    %v4250 = vpop.f32.mrb[0].mxu0
    %v4251 = vadd.f32 %v3947, %v4250
    %v4252 = vpop.f32.mrb[0].mxu0
    %v4253 = vpop.f32.mrb[0].mxu0
    %v4254 = vadd.f32 %v3947, %v4253
    %v4255 = vpop.f32.mrb[0].mxu0
    %4256 = vmatprep.mubr.bf16.mxu0 0
    %4257 = vmatmul.mubr.bf16.gmra.mrb[0].mxu0 %v3931
    %v4258 = vpop.f32.mrb[0].mxu0
    %v4259 = vadd.f32 %v3947, %v4258
    %v4260 = vpop.f32.mrb[0].mxu0
    %v4261 = vpop.f32.mrb[0].mxu0
    %v4262 = vadd.f32 %v3947, %v4261
    %v4263 = vpop.f32.mrb[0].mxu0
    %4264 = vmatprep.mubr.bf16.mxu0 0
    %4265 = vmatmul.mubr.bf16.gmra.mrb[0].mxu0 %v3932
    %v4266 = vpop.f32.mrb[0].mxu0
    %v4267 = vadd.f32 %v3947, %v4266
    %v4268 = vpop.f32.mrb[0].mxu0
    %v4269 = vpop.f32.mrb[0].mxu0
    %v4270 = vadd.f32 %v3947, %v4269
    %v4271 = vpop.f32.mrb[0].mxu0
    %4272 = vmatprep.mubr.bf16.mxu0 0
    %4273 = vmatmul.mubr.bf16.gmra.mrb[0].mxu0 %v3933
    %v4274 = vpop.f32.mrb[0].mxu0
    %v4275 = vadd.f32 %v3947, %v4274
    %v4276 = vpop.f32.mrb[0].mxu0
    %v4277 = vpop.f32.mrb[0].mxu0
    %v4278 = vadd.f32 %v3947, %v4277
    %v4279 = vpop.f32.mrb[0].mxu0
    %4280 = vmatprep.mubr.bf16.mxu0 0
    %4281 = vmatmul.mubr.bf16.gmra.mrb[0].mxu0 %v3934
    %v4282 = vpop.f32.mrb[0].mxu0
    %v4283 = vadd.f32 %v3947, %v4282
    %v4284 = vpop.f32.mrb[0].mxu0
    %v4285 = vpop.f32.mrb[0].mxu0
    %v4286 = vadd.f32 %v3947, %v4285
    %v4287 = vpop.f32.mrb[0].mxu0
    %4288 = vdwg.mxu0
    %v4289 = vpack.c.bf16 %v4118, %v4114
    %v4290 = vpack.c.bf16 %v4128, %v4124
    %v4291 = vpack.c.bf16 %v4138, %v4134
    %v4292 = vpack.c.bf16 %v4148, %v4144
    %v4293 = vpack.c.bf16 %v4158, %v4154
    %v4294 = vpack.c.bf16 %v4168, %v4164
    %v4295 = vpack.c.bf16 %v4178, %v4174
    %v4296 = vpack.c.bf16 %v4188, %v4184
    %v4297 = vpack.c.bf16 %v4120, %v4116
    %v4298 = vpack.c.bf16 %v4130, %v4126
    %v4299 = vpack.c.bf16 %v4140, %v4136
    %v4300 = vpack.c.bf16 %v4150, %v4146
    %v4301 = vpack.c.bf16 %v4160, %v4156
    %v4302 = vpack.c.bf16 %v4170, %v4166
    %v4303 = vpack.c.bf16 %v4180, %v4176
    %v4304 = vpack.c.bf16 %v4190, %v4186
    %v4305 = vpack.c.bf16 %v4230, %v4227
    %v4306 = vpack.c.bf16 %v4238, %v4235
    %v4307 = vpack.c.bf16 %v4246, %v4243
    %v4308 = vpack.c.bf16 %v4254, %v4251
    %v4309 = vpack.c.bf16 %v4262, %v4259
    %v4310 = vpack.c.bf16 %v4270, %v4267
    %v4311 = vpack.c.bf16 %v4278, %v4275
    %v4312 = vpack.c.bf16 %v4286, %v4283
    %v4314 = vsel %vm646, %v4289, 0
    %v4317 = vsel %vm646, %v4290, 0
    %v4320 = vsel %vm646, %v4291, 0
    %v4323 = vsel %vm646, %v4292, 0
    %v4326 = vsel %vm646, %v4297, 0
    %v4329 = vsel %vm646, %v4298, 0
    %v4332 = vsel %vm646, %v4299, 0
    %v4335 = vsel %vm646, %v4300, 0
    %4337 = vmatprep.subr.bf16.mxu0 0
    %4338 = vmatpush1.bf16.xpose.msra.mxu0 %v4326
    %4339 = vmatprep.subr.bf16.mxu0 0
    %4340 = vmatpush1.bf16.xpose.msra.mxu0 %v4329
    %4341 = vmatprep.subr.bf16.mxu0 0
    %4342 = vmatpush1.bf16.xpose.msra.mxu0 %v4332
    %4343 = vmatprep.subr.bf16.mxu0 0
    %4344 = vmatpush1.bf16.xpose.msra.mxu0 %v4335
    %4345 = vmatprep.subr.bf16.mxu0 0
    %4346 = vmatpush1.bf16.xpose.msra.mxu0 0
    %4347 = vmatprep.subr.bf16.mxu0 0
    %4348 = vmatpush1.bf16.xpose.msra.mxu0 0
    %4349 = vmatprep.subr.bf16.mxu0 0
    %4350 = vmatpush1.bf16.xpose.msra.mxu0 0
    %4351 = vmatprep.subr.bf16.mxu0 0
    %4352 = vmatpush1.bf16.xpose.msra.mxu0 0
    %4353 = vmatprep.subr.bf16.mxu0 0
    %4354 = vmatpush1.bf16.xpose.msra.mxu0 0
    %4355 = vmatprep.subr.bf16.mxu0 0
    %4356 = vmatpush1.bf16.xpose.msra.mxu0 0
    %4357 = vmatprep.subr.bf16.mxu0 0
    %4358 = vmatpush1.bf16.xpose.msra.mxu0 0
    %4359 = vmatprep.subr.bf16.mxu0 0
    %4360 = vmatpush1.bf16.xpose.msra.mxu0 0
    %4361 = vmatprep.subr.bf16.mxu0 0
    %4362 = vmatpush1.bf16.xpose.msra.mxu0 0
    %4363 = vmatprep.subr.bf16.mxu0 0
    %4364 = vmatpush1.bf16.xpose.msra.mxu0 0
    %4365 = vmatprep.subr.bf16.mxu0 0
    %4366 = vmatpush1.bf16.xpose.msra.mxu0 0
    %4367 = vmatprep.subr.bf16.mxu0 0
    %4368 = vmatpush1.bf16.xpose.msra.mxu0 0
    %4369 = vmatprep.mubr.bf16.mxu0 0
    %4370 = vmatmul.mubr.bf16.gmra.mrb[0].mxu0 %v4314
    %v4371 = vpop.f32.mrb[0].mxu0
    %v4372 = vadd.f32 0.0, %v4371
    %v4373 = vpop.f32.mrb[0].mxu0
    %v4374 = vpop.f32.mrb[0].mxu0
    %v4375 = vadd.f32 0.0, %v4374
    %v4376 = vpop.f32.mrb[0].mxu0
    %4377 = vmatprep.mubr.bf16.mxu0 0
    %4378 = vmatmul.mubr.bf16.gmra.mrb[0].mxu0 %v4317
    %v4379 = vpop.f32.mrb[0].mxu0
    %v4380 = vadd.f32 0.0, %v4379
    %v4381 = vpop.f32.mrb[0].mxu0
    %v4382 = vpop.f32.mrb[0].mxu0
    %v4383 = vadd.f32 0.0, %v4382
    %v4384 = vpop.f32.mrb[0].mxu0
    %4385 = vmatprep.mubr.bf16.mxu0 0
    %4386 = vmatmul.mubr.bf16.gmra.mrb[0].mxu0 %v4320
    %v4387 = vpop.f32.mrb[0].mxu0
    %v4388 = vadd.f32 0.0, %v4387
    %v4389 = vpop.f32.mrb[0].mxu0
    %v4390 = vpop.f32.mrb[0].mxu0
    %v4391 = vadd.f32 0.0, %v4390
    %v4392 = vpop.f32.mrb[0].mxu0
    %4393 = vmatprep.mubr.bf16.mxu0 0
    %4394 = vmatmul.mubr.bf16.gmra.mrb[0].mxu0 %v4323
    %v4395 = vpop.f32.mrb[0].mxu0
    %v4396 = vadd.f32 0.0, %v4395
    %v4397 = vpop.f32.mrb[0].mxu0
    %v4398 = vpop.f32.mrb[0].mxu0
    %v4399 = vadd.f32 0.0, %v4398
    %v4400 = vpop.f32.mrb[0].mxu0
    %4401 = vdwg.mxu0
    %v4402 = vsel %vm736, %v4372, -inf
    %4403 = vmax.xlane.f32.xlu0 %v4402
    %v4404 = vpop.xlane.xlu0 %4403
    %v4405 = vsel %vm736, %v4375, -inf
    %4406 = vmax.xlane.f32.xlu0 %v4405
    %v4407 = vpop.xlane.xlu0 %4406
    %v4408 = vsel %vm736, %v4380, -inf
    %4409 = vmax.xlane.f32.xlu0 %v4408
    %v4410 = vpop.xlane.xlu0 %4409
    %v4411 = vsel %vm736, %v4383, -inf
    %4412 = vmax.xlane.f32.xlu0 %v4411
    %v4413 = vpop.xlane.xlu0 %4412
    %v4414 = vsel %vm736, %v4388, -inf
    %4415 = vmax.xlane.f32.xlu0 %v4414
    %v4416 = vpop.xlane.xlu0 %4415
    %v4417 = vsel %vm736, %v4391, -inf
    %4418 = vmax.xlane.f32.xlu0 %v4417
    %v4419 = vpop.xlane.xlu0 %4418
    %v4420 = vsel %vm736, %v4396, -inf
    %4421 = vmax.xlane.f32.xlu0 %v4420
    %v4422 = vpop.xlane.xlu0 %4421
    %v4423 = vsel %vm736, %v4399, -inf
    %4424 = vmax.xlane.f32.xlu0 %v4423
    %v4425 = vpop.xlane.xlu0 %4424
    %v4426 = vsub.f32 %v4372, %v4404
    %v4427 = vsub.f32 %v4375, %v4407
    %v4428 = vsub.f32 %v4380, %v4410
    %v4429 = vsub.f32 %v4383, %v4413
    %v4430 = vsub.f32 %v4388, %v4416
    %v4431 = vsub.f32 %v4391, %v4419
    %v4432 = vsub.f32 %v4396, %v4422
    %v4433 = vsub.f32 %v4399, %v4425
    %v4434 = vmul.f32 %v4426, 1.442695
    %v4435 = vpow.pop %v4434
    %v4436 = vmul.f32 %v4427, 1.442695
    %v4437 = vpow.pop %v4436
    %v4438 = vmul.f32 %v4428, 1.442695
    %v4439 = vpow.pop %v4438
    %v4440 = vmul.f32 %v4429, 1.442695
    %v4441 = vpow.pop %v4440
    %v4442 = vmul.f32 %v4430, 1.442695
    %v4443 = vpow.pop %v4442
    %v4444 = vmul.f32 %v4431, 1.442695
    %v4445 = vpow.pop %v4444
    %v4446 = vmul.f32 %v4432, 1.442695
    %v4447 = vpow.pop %v4446
    %v4448 = vmul.f32 %v4433, 1.442695
    %v4449 = vpow.pop %v4448
    %v4450 = vsel %vm736, %v4435, 0.0
    %4451 = vadd.xlane.f32.xlu0 %v4450
    %v4452 = vpop.xlane.xlu0 %4451
    %v4453 = vsel %vm736, %v4437, 0.0
    %4454 = vadd.xlane.f32.xlu0 %v4453
    %v4455 = vpop.xlane.xlu0 %4454
    %v4456 = vsel %vm736, %v4439, 0.0
    %4457 = vadd.xlane.f32.xlu0 %v4456
    %v4458 = vpop.xlane.xlu0 %4457
    %v4459 = vsel %vm736, %v4441, 0.0
    %4460 = vadd.xlane.f32.xlu0 %v4459
    %v4461 = vpop.xlane.xlu0 %4460
    %v4462 = vsel %vm736, %v4443, 0.0
    %4463 = vadd.xlane.f32.xlu0 %v4462
    %v4464 = vpop.xlane.xlu0 %4463
    %v4465 = vsel %vm736, %v4445, 0.0
    %4466 = vadd.xlane.f32.xlu0 %v4465
    %v4467 = vpop.xlane.xlu0 %4466
    %v4468 = vsel %vm736, %v4447, 0.0
    %4469 = vadd.xlane.f32.xlu0 %v4468
    %v4470 = vpop.xlane.xlu0 %4469
    %v4471 = vsel %vm736, %v4449, 0.0
    %4472 = vadd.xlane.f32.xlu0 %v4471
    %v4473 = vpop.xlane.xlu0 %4472
    %v4474 = vrcp.pop %v4452
    %v4475 = vrcp.pop %v4455
    %v4476 = vrcp.pop %v4458
    %v4477 = vrcp.pop %v4461
    %v4478 = vrcp.pop %v4464
    %v4479 = vrcp.pop %v4467
    %v4480 = vrcp.pop %v4470
    %v4481 = vrcp.pop %v4473
    %v4482 = vmul.f32 %v4435, %v4474
    %v4483 = vmul.f32 %v4437, %v4475
    %v4484 = vmul.f32 %v4439, %v4476
    %v4485 = vmul.f32 %v4441, %v4477
    %v4486 = vmul.f32 %v4443, %v4478
    %v4487 = vmul.f32 %v4445, %v4479
    %v4488 = vmul.f32 %v4447, %v4480
    %v4489 = vmul.f32 %v4449, %v4481
    %v4490 = vpack.c.bf16 %v4483, %v4482
    %v4491 = vpack.c.bf16 %v4485, %v4484
    %v4492 = vpack.c.bf16 %v4487, %v4486
    %v4493 = vpack.c.bf16 %v4489, %v4488
    %v4495 = vsel %vm736, %v4490, 0
    %v4498 = vsel %vm736, %v4491, 0
    %v4501 = vsel %vm736, %v4492, 0
    %v4504 = vsel %vm736, %v4493, 0
    %4506 = vmatprep.subr.bf16.mxu0 0
    %4507 = vmatpush1.bf16.msra.mxu0 %v4305
    %4508 = vmatprep.subr.bf16.mxu0 0
    %4509 = vmatpush1.bf16.msra.mxu0 %v4306
    %4510 = vmatprep.subr.bf16.mxu0 0
    %4511 = vmatpush1.bf16.msra.mxu0 %v4307
    %4512 = vmatprep.subr.bf16.mxu0 0
    %4513 = vmatpush1.bf16.msra.mxu0 %v4308
    %4514 = vmatprep.subr.bf16.mxu0 0
    %4515 = vmatpush1.bf16.msra.mxu0 0
    %4516 = vmatprep.subr.bf16.mxu0 0
    %4517 = vmatpush1.bf16.msra.mxu0 0
    %4518 = vmatprep.subr.bf16.mxu0 0
    %4519 = vmatpush1.bf16.msra.mxu0 0
    %4520 = vmatprep.subr.bf16.mxu0 0
    %4521 = vmatpush1.bf16.msra.mxu0 0
    %4522 = vmatprep.subr.bf16.mxu0 0
    %4523 = vmatpush1.bf16.msra.mxu0 0
    %4524 = vmatprep.subr.bf16.mxu0 0
    %4525 = vmatpush1.bf16.msra.mxu0 0
    %4526 = vmatprep.subr.bf16.mxu0 0
    %4527 = vmatpush1.bf16.msra.mxu0 0
    %4528 = vmatprep.subr.bf16.mxu0 0
    %4529 = vmatpush1.bf16.msra.mxu0 0
    %4530 = vmatprep.subr.bf16.mxu0 0
    %4531 = vmatpush1.bf16.msra.mxu0 0
    %4532 = vmatprep.subr.bf16.mxu0 0
    %4533 = vmatpush1.bf16.msra.mxu0 0
    %4534 = vmatprep.subr.bf16.mxu0 0
    %4535 = vmatpush1.bf16.msra.mxu0 0
    %4536 = vmatprep.subr.bf16.mxu0 0
    %4537 = vmatpush1.bf16.msra.mxu0 0
    %4538 = vmatprep.mubr.bf16.mxu0 0
    %4539 = vmatmul.mubr.bf16.gmra.mrb[0].mxu0 %v4495
    %v4540 = vpop.f32.mrb[0].mxu0
    %v4541 = vadd.f32 0.0, %v4540
    %v4542 = vpop.f32.mrb[0].mxu0
    %v4543 = vpop.f32.mrb[0].mxu0
    %v4544 = vadd.f32 0.0, %v4543
    %v4545 = vpop.f32.mrb[0].mxu0
    %4546 = vmatprep.mubr.bf16.mxu0 0
    %4547 = vmatmul.mubr.bf16.gmra.mrb[0].mxu0 %v4498
    %v4548 = vpop.f32.mrb[0].mxu0
    %v4549 = vadd.f32 0.0, %v4548
    %v4550 = vpop.f32.mrb[0].mxu0
    %v4551 = vpop.f32.mrb[0].mxu0
    %v4552 = vadd.f32 0.0, %v4551
    %v4553 = vpop.f32.mrb[0].mxu0
    %4554 = vmatprep.mubr.bf16.mxu0 0
    %4555 = vmatmul.mubr.bf16.gmra.mrb[0].mxu0 %v4501
    %v4556 = vpop.f32.mrb[0].mxu0
    %v4557 = vadd.f32 0.0, %v4556
    %v4558 = vpop.f32.mrb[0].mxu0
    %v4559 = vpop.f32.mrb[0].mxu0
    %v4560 = vadd.f32 0.0, %v4559
    %v4561 = vpop.f32.mrb[0].mxu0
    %4562 = vmatprep.mubr.bf16.mxu0 0
    %4563 = vmatmul.mubr.bf16.gmra.mrb[0].mxu0 %v4504
    %v4564 = vpop.f32.mrb[0].mxu0
    %v4565 = vadd.f32 0.0, %v4564
    %v4566 = vpop.f32.mrb[0].mxu0
    %v4567 = vpop.f32.mrb[0].mxu0
    %v4568 = vadd.f32 0.0, %v4567
    %v4569 = vpop.f32.mrb[0].mxu0
    %4570 = vdwg.mxu0
    %v4571 = vpack.c.bf16 %v4544, %v4541
    %v4572 = vpack.c.bf16 %v4552, %v4549
    %v4573 = vpack.c.bf16 %v4560, %v4557
    %v4574 = vpack.c.bf16 %v4568, %v4565
    %4579 = vrot.lane.b32.xlu0 %v4289, 96
    %v4580 = vpop.permute.xlu0 %4579
    %4581 = vrot.lane.b32.xlu0 %v4290, 96
    %v4582 = vpop.permute.xlu0 %4581
    %4583 = vrot.lane.b32.xlu0 %v4291, 96
    %v4584 = vpop.permute.xlu0 %4583
    %4585 = vrot.lane.b32.xlu0 %v4292, 96
    %v4586 = vpop.permute.xlu0 %4585
    %4591 = vrot.lane.b32.xlu0 %v4297, 96
    %v4592 = vpop.permute.xlu0 %4591
    %4593 = vrot.lane.b32.xlu0 %v4298, 96
    %v4594 = vpop.permute.xlu0 %4593
    %4595 = vrot.lane.b32.xlu0 %v4299, 96
    %v4596 = vpop.permute.xlu0 %4595
    %4597 = vrot.lane.b32.xlu0 %v4300, 96
    %v4598 = vpop.permute.xlu0 %4597
    %v4600 = vsel %vm646, %v4580, 0
    %v4603 = vsel %vm646, %v4582, 0
    %v4606 = vsel %vm646, %v4584, 0
    %v4609 = vsel %vm646, %v4586, 0
    %v4612 = vsel %vm646, %v4592, 0
    %v4615 = vsel %vm646, %v4594, 0
    %v4618 = vsel %vm646, %v4596, 0
    %v4621 = vsel %vm646, %v4598, 0
    %4623 = vmatprep.subr.bf16.mxu0 0
    %4624 = vmatpush1.bf16.xpose.msra.mxu0 %v4612
    %4625 = vmatprep.subr.bf16.mxu0 0
    %4626 = vmatpush1.bf16.xpose.msra.mxu0 %v4615
    %4627 = vmatprep.subr.bf16.mxu0 0
    %4628 = vmatpush1.bf16.xpose.msra.mxu0 %v4618
    %4629 = vmatprep.subr.bf16.mxu0 0
    %4630 = vmatpush1.bf16.xpose.msra.mxu0 %v4621
    %4631 = vmatprep.subr.bf16.mxu0 0
    %4632 = vmatpush1.bf16.xpose.msra.mxu0 0
    %4633 = vmatprep.subr.bf16.mxu0 0
    %4634 = vmatpush1.bf16.xpose.msra.mxu0 0
    %4635 = vmatprep.subr.bf16.mxu0 0
    %4636 = vmatpush1.bf16.xpose.msra.mxu0 0
    %4637 = vmatprep.subr.bf16.mxu0 0
    %4638 = vmatpush1.bf16.xpose.msra.mxu0 0
    %4639 = vmatprep.subr.bf16.mxu0 0
    %4640 = vmatpush1.bf16.xpose.msra.mxu0 0
    %4641 = vmatprep.subr.bf16.mxu0 0
    %4642 = vmatpush1.bf16.xpose.msra.mxu0 0
    %4643 = vmatprep.subr.bf16.mxu0 0
    %4644 = vmatpush1.bf16.xpose.msra.mxu0 0
    %4645 = vmatprep.subr.bf16.mxu0 0
    %4646 = vmatpush1.bf16.xpose.msra.mxu0 0
    %4647 = vmatprep.subr.bf16.mxu0 0
    %4648 = vmatpush1.bf16.xpose.msra.mxu0 0
    %4649 = vmatprep.subr.bf16.mxu0 0
    %4650 = vmatpush1.bf16.xpose.msra.mxu0 0
    %4651 = vmatprep.subr.bf16.mxu0 0
    %4652 = vmatpush1.bf16.xpose.msra.mxu0 0
    %4653 = vmatprep.subr.bf16.mxu0 0
    %4654 = vmatpush1.bf16.xpose.msra.mxu0 0
    %4655 = vmatprep.mubr.bf16.mxu0 0
    %4656 = vmatmul.mubr.bf16.gmra.mrb[0].mxu0 %v4600
    %v4657 = vpop.f32.mrb[0].mxu0
    %v4658 = vadd.f32 0.0, %v4657
    %v4659 = vpop.f32.mrb[0].mxu0
    %v4660 = vpop.f32.mrb[0].mxu0
    %v4661 = vadd.f32 0.0, %v4660
    %v4662 = vpop.f32.mrb[0].mxu0
    %4663 = vmatprep.mubr.bf16.mxu0 0
    %4664 = vmatmul.mubr.bf16.gmra.mrb[0].mxu0 %v4603
    %v4665 = vpop.f32.mrb[0].mxu0
    %v4666 = vadd.f32 0.0, %v4665
    %v4667 = vpop.f32.mrb[0].mxu0
    %v4668 = vpop.f32.mrb[0].mxu0
    %v4669 = vadd.f32 0.0, %v4668
    %v4670 = vpop.f32.mrb[0].mxu0
    %4671 = vmatprep.mubr.bf16.mxu0 0
    %4672 = vmatmul.mubr.bf16.gmra.mrb[0].mxu0 %v4606
    %v4673 = vpop.f32.mrb[0].mxu0
    %v4674 = vadd.f32 0.0, %v4673
    %v4675 = vpop.f32.mrb[0].mxu0
    %v4676 = vpop.f32.mrb[0].mxu0
    %v4677 = vadd.f32 0.0, %v4676
    %v4678 = vpop.f32.mrb[0].mxu0
    %4679 = vmatprep.mubr.bf16.mxu0 0
    %4680 = vmatmul.mubr.bf16.gmra.mrb[0].mxu0 %v4609
    %v4681 = vpop.f32.mrb[0].mxu0
    %v4682 = vadd.f32 0.0, %v4681
    %v4683 = vpop.f32.mrb[0].mxu0
    %v4684 = vpop.f32.mrb[0].mxu0
    %v4685 = vadd.f32 0.0, %v4684
    %v4686 = vpop.f32.mrb[0].mxu0
    %4687 = vdwg.mxu0
    %v4688 = vsel %vm736, %v4658, -inf
    %4689 = vmax.xlane.f32.xlu0 %v4688
    %v4690 = vpop.xlane.xlu0 %4689
    %v4691 = vsel %vm736, %v4661, -inf
    %4692 = vmax.xlane.f32.xlu0 %v4691
    %v4693 = vpop.xlane.xlu0 %4692
    %v4694 = vsel %vm736, %v4666, -inf
    %4695 = vmax.xlane.f32.xlu0 %v4694
    %v4696 = vpop.xlane.xlu0 %4695
    %v4697 = vsel %vm736, %v4669, -inf
    %4698 = vmax.xlane.f32.xlu0 %v4697
    %v4699 = vpop.xlane.xlu0 %4698
    %v4700 = vsel %vm736, %v4674, -inf
    %4701 = vmax.xlane.f32.xlu0 %v4700
    %v4702 = vpop.xlane.xlu0 %4701
    %v4703 = vsel %vm736, %v4677, -inf
    %4704 = vmax.xlane.f32.xlu0 %v4703
    %v4705 = vpop.xlane.xlu0 %4704
    %v4706 = vsel %vm736, %v4682, -inf
    %4707 = vmax.xlane.f32.xlu0 %v4706
    %v4708 = vpop.xlane.xlu0 %4707
    %v4709 = vsel %vm736, %v4685, -inf
    %4710 = vmax.xlane.f32.xlu0 %v4709
    %v4711 = vpop.xlane.xlu0 %4710
    %v4712 = vsub.f32 %v4658, %v4690
    %v4713 = vsub.f32 %v4661, %v4693
    %v4714 = vsub.f32 %v4666, %v4696
    %v4715 = vsub.f32 %v4669, %v4699
    %v4716 = vsub.f32 %v4674, %v4702
    %v4717 = vsub.f32 %v4677, %v4705
    %v4718 = vsub.f32 %v4682, %v4708
    %v4719 = vsub.f32 %v4685, %v4711
    %v4720 = vmul.f32 %v4712, 1.442695
    %v4721 = vpow.pop %v4720
    %v4722 = vmul.f32 %v4713, 1.442695
    %v4723 = vpow.pop %v4722
    %v4724 = vmul.f32 %v4714, 1.442695
    %v4725 = vpow.pop %v4724
    %v4726 = vmul.f32 %v4715, 1.442695
    %v4727 = vpow.pop %v4726
    %v4728 = vmul.f32 %v4716, 1.442695
    %v4729 = vpow.pop %v4728
    %v4730 = vmul.f32 %v4717, 1.442695
    %v4731 = vpow.pop %v4730
    %v4732 = vmul.f32 %v4718, 1.442695
    %v4733 = vpow.pop %v4732
    %v4734 = vmul.f32 %v4719, 1.442695
    %v4735 = vpow.pop %v4734
    %v4736 = vsel %vm736, %v4721, 0.0
    %4737 = vadd.xlane.f32.xlu0 %v4736
    %v4738 = vpop.xlane.xlu0 %4737
    %v4739 = vsel %vm736, %v4723, 0.0
    %4740 = vadd.xlane.f32.xlu0 %v4739
    %v4741 = vpop.xlane.xlu0 %4740
    %v4742 = vsel %vm736, %v4725, 0.0
    %4743 = vadd.xlane.f32.xlu0 %v4742
    %v4744 = vpop.xlane.xlu0 %4743
    %v4745 = vsel %vm736, %v4727, 0.0
    %4746 = vadd.xlane.f32.xlu0 %v4745
    %v4747 = vpop.xlane.xlu0 %4746
    %v4748 = vsel %vm736, %v4729, 0.0
    %4749 = vadd.xlane.f32.xlu0 %v4748
    %v4750 = vpop.xlane.xlu0 %4749
    %v4751 = vsel %vm736, %v4731, 0.0
    %4752 = vadd.xlane.f32.xlu0 %v4751
    %v4753 = vpop.xlane.xlu0 %4752
    %v4754 = vsel %vm736, %v4733, 0.0
    %4755 = vadd.xlane.f32.xlu0 %v4754
    %v4756 = vpop.xlane.xlu0 %4755
    %v4757 = vsel %vm736, %v4735, 0.0
    %4758 = vadd.xlane.f32.xlu0 %v4757
    %v4759 = vpop.xlane.xlu0 %4758
    %v4760 = vrcp.pop %v4738
    %v4761 = vrcp.pop %v4741
    %v4762 = vrcp.pop %v4744
    %v4763 = vrcp.pop %v4747
    %v4764 = vrcp.pop %v4750
    %v4765 = vrcp.pop %v4753
    %v4766 = vrcp.pop %v4756
    %v4767 = vrcp.pop %v4759
    %v4768 = vmul.f32 %v4721, %v4760
    %v4769 = vmul.f32 %v4723, %v4761
    %v4770 = vmul.f32 %v4725, %v4762
    %v4771 = vmul.f32 %v4727, %v4763
    %v4772 = vmul.f32 %v4729, %v4764
    %v4773 = vmul.f32 %v4731, %v4765
    %v4774 = vmul.f32 %v4733, %v4766
    %v4775 = vmul.f32 %v4735, %v4767
    %v4776 = vpack.c.bf16 %v4769, %v4768
    %v4777 = vpack.c.bf16 %v4771, %v4770
    %v4778 = vpack.c.bf16 %v4773, %v4772
    %v4779 = vpack.c.bf16 %v4775, %v4774
    %4784 = vrot.lane.b32.xlu0 %v4305, 96
    %v4785 = vpop.permute.xlu0 %4784
    %4786 = vrot.lane.b32.xlu0 %v4306, 96
    %v4787 = vpop.permute.xlu0 %4786
    %4788 = vrot.lane.b32.xlu0 %v4307, 96
    %v4789 = vpop.permute.xlu0 %4788
    %4790 = vrot.lane.b32.xlu0 %v4308, 96
    %v4791 = vpop.permute.xlu0 %4790
    %v4797 = vsel %vm736, %v4776, 0
    %v4800 = vsel %vm736, %v4777, 0
    %v4803 = vsel %vm736, %v4778, 0
    %v4806 = vsel %vm736, %v4779, 0
    %4808 = vmatprep.subr.bf16.mxu0 0
    %4809 = vmatpush1.bf16.msra.mxu0 %v4785
    %4810 = vmatprep.subr.bf16.mxu0 0
    %4811 = vmatpush1.bf16.msra.mxu0 %v4787
    %4812 = vmatprep.subr.bf16.mxu0 0
    %4813 = vmatpush1.bf16.msra.mxu0 %v4789
    %4814 = vmatprep.subr.bf16.mxu0 0
    %4815 = vmatpush1.bf16.msra.mxu0 %v4791
    %4816 = vmatprep.subr.bf16.mxu0 0
    %4817 = vmatpush1.bf16.msra.mxu0 0
    %4818 = vmatprep.subr.bf16.mxu0 0
    %4819 = vmatpush1.bf16.msra.mxu0 0
    %4820 = vmatprep.subr.bf16.mxu0 0
    %4821 = vmatpush1.bf16.msra.mxu0 0
    %4822 = vmatprep.subr.bf16.mxu0 0
    %4823 = vmatpush1.bf16.msra.mxu0 0
    %4824 = vmatprep.subr.bf16.mxu0 0
    %4825 = vmatpush1.bf16.msra.mxu0 0
    %4826 = vmatprep.subr.bf16.mxu0 0
    %4827 = vmatpush1.bf16.msra.mxu0 0
    %4828 = vmatprep.subr.bf16.mxu0 0
    %4829 = vmatpush1.bf16.msra.mxu0 0
    %4830 = vmatprep.subr.bf16.mxu0 0
    %4831 = vmatpush1.bf16.msra.mxu0 0
    %4832 = vmatprep.subr.bf16.mxu0 0
    %4833 = vmatpush1.bf16.msra.mxu0 0
    %4834 = vmatprep.subr.bf16.mxu0 0
    %4835 = vmatpush1.bf16.msra.mxu0 0
    %4836 = vmatprep.subr.bf16.mxu0 0
    %4837 = vmatpush1.bf16.msra.mxu0 0
    %4838 = vmatprep.subr.bf16.mxu0 0
    %4839 = vmatpush1.bf16.msra.mxu0 0
    %4840 = vmatprep.mubr.bf16.mxu0 0
    %4841 = vmatmul.mubr.bf16.gmra.mrb[0].mxu0 %v4797
    %v4842 = vpop.f32.mrb[0].mxu0
    %v4843 = vadd.f32 0.0, %v4842
    %v4844 = vpop.f32.mrb[0].mxu0
    %v4845 = vpop.f32.mrb[0].mxu0
    %v4846 = vadd.f32 0.0, %v4845
    %v4847 = vpop.f32.mrb[0].mxu0
    %4848 = vmatprep.mubr.bf16.mxu0 0
    %4849 = vmatmul.mubr.bf16.gmra.mrb[0].mxu0 %v4800
    %v4850 = vpop.f32.mrb[0].mxu0
    %v4851 = vadd.f32 0.0, %v4850
    %v4852 = vpop.f32.mrb[0].mxu0
    %v4853 = vpop.f32.mrb[0].mxu0
    %v4854 = vadd.f32 0.0, %v4853
    %v4855 = vpop.f32.mrb[0].mxu0
    %4856 = vmatprep.mubr.bf16.mxu0 0
    %4857 = vmatmul.mubr.bf16.gmra.mrb[0].mxu0 %v4803
    %v4858 = vpop.f32.mrb[0].mxu0
    %v4859 = vadd.f32 0.0, %v4858
    %v4860 = vpop.f32.mrb[0].mxu0
    %v4861 = vpop.f32.mrb[0].mxu0
    %v4862 = vadd.f32 0.0, %v4861
    %v4863 = vpop.f32.mrb[0].mxu0
    %4864 = vmatprep.mubr.bf16.mxu0 0
    %4865 = vmatmul.mubr.bf16.gmra.mrb[0].mxu0 %v4806
    %v4866 = vpop.f32.mrb[0].mxu0
    %v4867 = vadd.f32 0.0, %v4866
    %v4868 = vpop.f32.mrb[0].mxu0
    %v4869 = vpop.f32.mrb[0].mxu0
    %v4870 = vadd.f32 0.0, %v4869
    %v4871 = vpop.f32.mrb[0].mxu0
    %4872 = vdwg.mxu0
    %v4873 = vpack.c.bf16 %v4846, %v4843
    %v4874 = vpack.c.bf16 %v4854, %v4851
    %v4875 = vpack.c.bf16 %v4862, %v4859
    %v4876 = vpack.c.bf16 %v4870, %v4867
    %v4881 = vunpack.c.l.b16 %v3914
    %v4882 = vunpack.c.l.b16 %v3915
    %v4883 = vunpack.c.l.b16 %v3916
    %v4884 = vunpack.c.l.b16 %v3917
    %v4885 = vpack.c.b16 %v4882, %v4881
    %v4886 = vpack.c.b16 %v4884, %v4883
    %v4890 = vsel %vm646, %v4873, 0
    %v4893 = vsel %vm646, %v4874, 0
    %v4896 = vsel %vm646, %v4875, 0
    %v4899 = vsel %vm646, %v4876, 0
    %4901 = vmatprep.subr.bf16.mxu0 0
    %4902 = vmatpush1.bf16.msra.mxu0 %v4885
    %4903 = vmatprep.subr.bf16.mxu0 0
    %4904 = vmatpush1.bf16.msra.mxu0 %v4886
    %4905 = vmatprep.subr.bf16.mxu0 0
    %4906 = vmatpush1.bf16.msra.mxu0 0
    %4907 = vmatprep.subr.bf16.mxu0 0
    %4908 = vmatpush1.bf16.msra.mxu0 0
    %4909 = vmatprep.subr.bf16.mxu0 0
    %4910 = vmatpush1.bf16.msra.mxu0 0
    %4911 = vmatprep.subr.bf16.mxu0 0
    %4912 = vmatpush1.bf16.msra.mxu0 0
    %4913 = vmatprep.subr.bf16.mxu0 0
    %4914 = vmatpush1.bf16.msra.mxu0 0
    %4915 = vmatprep.subr.bf16.mxu0 0
    %4916 = vmatpush1.bf16.msra.mxu0 0
    %4917 = vmatprep.subr.bf16.mxu0 0
    %4918 = vmatpush1.bf16.msra.mxu0 0
    %4919 = vmatprep.subr.bf16.mxu0 0
    %4920 = vmatpush1.bf16.msra.mxu0 0
    %4921 = vmatprep.subr.bf16.mxu0 0
    %4922 = vmatpush1.bf16.msra.mxu0 0
    %4923 = vmatprep.subr.bf16.mxu0 0
    %4924 = vmatpush1.bf16.msra.mxu0 0
    %4925 = vmatprep.subr.bf16.mxu0 0
    %4926 = vmatpush1.bf16.msra.mxu0 0
    %4927 = vmatprep.subr.bf16.mxu0 0
    %4928 = vmatpush1.bf16.msra.mxu0 0
    %4929 = vmatprep.subr.bf16.mxu0 0
    %4930 = vmatpush1.bf16.msra.mxu0 0
    %4931 = vmatprep.subr.bf16.mxu0 0
    %4932 = vmatpush1.bf16.msra.mxu0 0
    %4933 = vmatprep.mubr.bf16.mxu0 0
    %4934 = vmatmul.mubr.bf16.gmra.mrb[0].mxu0 %v4890
    %v4935 = vpop.f32.mrb[0].mxu0
    %v4936 = vadd.f32 0.0, %v4935
    %v4937 = vpop.f32.mrb[0].mxu0
    %v4938 = vpop.f32.mrb[0].mxu0
    %v4939 = vadd.f32 0.0, %v4938
    %v4940 = vpop.f32.mrb[0].mxu0
    %4941 = vmatprep.mubr.bf16.mxu0 0
    %4942 = vmatmul.mubr.bf16.gmra.mrb[0].mxu0 %v4893
    %v4943 = vpop.f32.mrb[0].mxu0
    %v4944 = vadd.f32 0.0, %v4943
    %v4945 = vpop.f32.mrb[0].mxu0
    %v4946 = vpop.f32.mrb[0].mxu0
    %v4947 = vadd.f32 0.0, %v4946
    %v4948 = vpop.f32.mrb[0].mxu0
    %4949 = vmatprep.mubr.bf16.mxu0 0
    %4950 = vmatmul.mubr.bf16.gmra.mrb[0].mxu0 %v4896
    %v4951 = vpop.f32.mrb[0].mxu0
    %v4952 = vadd.f32 0.0, %v4951
    %v4953 = vpop.f32.mrb[0].mxu0
    %v4954 = vpop.f32.mrb[0].mxu0
    %v4955 = vadd.f32 0.0, %v4954
    %v4956 = vpop.f32.mrb[0].mxu0
    %4957 = vmatprep.mubr.bf16.mxu0 0
    %4958 = vmatmul.mubr.bf16.gmra.mrb[0].mxu0 %v4899
    %v4959 = vpop.f32.mrb[0].mxu0
    %v4960 = vadd.f32 0.0, %v4959
    %v4961 = vpop.f32.mrb[0].mxu0
    %v4962 = vpop.f32.mrb[0].mxu0
    %v4963 = vadd.f32 0.0, %v4962
    %v4964 = vpop.f32.mrb[0].mxu0
    %4965 = vdwg.mxu0
    %v4970 = vunpack.c.l.b16 %v3910
    %v4971 = vunpack.c.l.b16 %v3911
    %v4972 = vunpack.c.l.b16 %v3912
    %v4973 = vunpack.c.l.b16 %v3913
    %v4974 = vpack.c.b16 %v4971, %v4970
    %v4975 = vpack.c.b16 %v4973, %v4972
    %v4979 = vsel %vm646, %v4571, 0
    %v4982 = vsel %vm646, %v4572, 0
    %v4985 = vsel %vm646, %v4573, 0
    %v4988 = vsel %vm646, %v4574, 0
    %4990 = vmatprep.subr.bf16.mxu0 0
    %4991 = vmatpush1.bf16.msra.mxu0 %v4974
    %4992 = vmatprep.subr.bf16.mxu0 0
    %4993 = vmatpush1.bf16.msra.mxu0 %v4975
    %4994 = vmatprep.subr.bf16.mxu0 0
    %4995 = vmatpush1.bf16.msra.mxu0 0
    %4996 = vmatprep.subr.bf16.mxu0 0
    %4997 = vmatpush1.bf16.msra.mxu0 0
    %4998 = vmatprep.subr.bf16.mxu0 0
    %4999 = vmatpush1.bf16.msra.mxu0 0
    %5000 = vmatprep.subr.bf16.mxu0 0
    %5001 = vmatpush1.bf16.msra.mxu0 0
    %5002 = vmatprep.subr.bf16.mxu0 0
    %5003 = vmatpush1.bf16.msra.mxu0 0
    %5004 = vmatprep.subr.bf16.mxu0 0
    %5005 = vmatpush1.bf16.msra.mxu0 0
    %5006 = vmatprep.subr.bf16.mxu0 0
    %5007 = vmatpush1.bf16.msra.mxu0 0
    %5008 = vmatprep.subr.bf16.mxu0 0
    %5009 = vmatpush1.bf16.msra.mxu0 0
    %5010 = vmatprep.subr.bf16.mxu0 0
    %5011 = vmatpush1.bf16.msra.mxu0 0
    %5012 = vmatprep.subr.bf16.mxu0 0
    %5013 = vmatpush1.bf16.msra.mxu0 0
    %5014 = vmatprep.subr.bf16.mxu0 0
    %5015 = vmatpush1.bf16.msra.mxu0 0
    %5016 = vmatprep.subr.bf16.mxu0 0
    %5017 = vmatpush1.bf16.msra.mxu0 0
    %5018 = vmatprep.subr.bf16.mxu0 0
    %5019 = vmatpush1.bf16.msra.mxu0 0
    %5020 = vmatprep.subr.bf16.mxu0 0
    %5021 = vmatpush1.bf16.msra.mxu0 0
    %5022 = vmatprep.mubr.bf16.mxu0 0
    %5023 = vmatmul.mubr.bf16.gmra.mrb[0].mxu0 %v4979
    %v5024 = vpop.f32.mrb[0].mxu0
    %v5025 = vadd.f32 %v4936, %v5024
    %v5026 = vpop.f32.mrb[0].mxu0
    %v5027 = vpop.f32.mrb[0].mxu0
    %v5028 = vadd.f32 %v4939, %v5027
    %v5029 = vpop.f32.mrb[0].mxu0
    %5030 = vmatprep.mubr.bf16.mxu0 0
    %5031 = vmatmul.mubr.bf16.gmra.mrb[0].mxu0 %v4982
    %v5032 = vpop.f32.mrb[0].mxu0
    %v5033 = vadd.f32 %v4944, %v5032
    %v5034 = vpop.f32.mrb[0].mxu0
    %v5035 = vpop.f32.mrb[0].mxu0
    %v5036 = vadd.f32 %v4947, %v5035
    %v5037 = vpop.f32.mrb[0].mxu0
    %5038 = vmatprep.mubr.bf16.mxu0 0
    %5039 = vmatmul.mubr.bf16.gmra.mrb[0].mxu0 %v4985
    %v5040 = vpop.f32.mrb[0].mxu0
    %v5041 = vadd.f32 %v4952, %v5040
    %v5042 = vpop.f32.mrb[0].mxu0
    %v5043 = vpop.f32.mrb[0].mxu0
    %v5044 = vadd.f32 %v4955, %v5043
    %v5045 = vpop.f32.mrb[0].mxu0
    %5046 = vmatprep.mubr.bf16.mxu0 0
    %5047 = vmatmul.mubr.bf16.gmra.mrb[0].mxu0 %v4988
    %v5048 = vpop.f32.mrb[0].mxu0
    %v5049 = vadd.f32 %v4960, %v5048
    %v5050 = vpop.f32.mrb[0].mxu0
    %v5051 = vpop.f32.mrb[0].mxu0
    %v5052 = vadd.f32 %v4963, %v5051
    %v5053 = vpop.f32.mrb[0].mxu0
    %5054 = vdwg.mxu0
    %5055 = vrot.lane.b32.xlu0 %v4289, 64
    %v5056 = vpop.permute.xlu0 %5055
    %5057 = vrot.lane.b32.xlu0 %v4290, 64
    %v5058 = vpop.permute.xlu0 %5057
    %5059 = vrot.lane.b32.xlu0 %v4291, 64
    %v5060 = vpop.permute.xlu0 %5059
    %5061 = vrot.lane.b32.xlu0 %v4292, 64
    %v5062 = vpop.permute.xlu0 %5061
    %5063 = vrot.lane.b32.xlu0 %v4297, 64
    %v5064 = vpop.permute.xlu0 %5063
    %5065 = vrot.lane.b32.xlu0 %v4298, 64
    %v5066 = vpop.permute.xlu0 %5065
    %5067 = vrot.lane.b32.xlu0 %v4299, 64
    %v5068 = vpop.permute.xlu0 %5067
    %5069 = vrot.lane.b32.xlu0 %v4300, 64
    %v5070 = vpop.permute.xlu0 %5069
    %v5072 = vsel %vm646, %v5056, 0
    %v5075 = vsel %vm646, %v5058, 0
    %v5078 = vsel %vm646, %v5060, 0
    %v5081 = vsel %vm646, %v5062, 0
    %v5084 = vsel %vm646, %v5064, 0
    %v5087 = vsel %vm646, %v5066, 0
    %v5090 = vsel %vm646, %v5068, 0
    %v5093 = vsel %vm646, %v5070, 0
    %5095 = vmatprep.subr.bf16.mxu0 0
    %5096 = vmatpush1.bf16.xpose.msra.mxu0 %v5084
    %5097 = vmatprep.subr.bf16.mxu0 0
    %5098 = vmatpush1.bf16.xpose.msra.mxu0 %v5087
    %5099 = vmatprep.subr.bf16.mxu0 0
    %5100 = vmatpush1.bf16.xpose.msra.mxu0 %v5090
    %5101 = vmatprep.subr.bf16.mxu0 0
    %5102 = vmatpush1.bf16.xpose.msra.mxu0 %v5093
    %5103 = vmatprep.subr.bf16.mxu0 0
    %5104 = vmatpush1.bf16.xpose.msra.mxu0 0
    %5105 = vmatprep.subr.bf16.mxu0 0
    %5106 = vmatpush1.bf16.xpose.msra.mxu0 0
    %5107 = vmatprep.subr.bf16.mxu0 0
    %5108 = vmatpush1.bf16.xpose.msra.mxu0 0
    %5109 = vmatprep.subr.bf16.mxu0 0
    %5110 = vmatpush1.bf16.xpose.msra.mxu0 0
    %5111 = vmatprep.subr.bf16.mxu0 0
    %5112 = vmatpush1.bf16.xpose.msra.mxu0 0
    %5113 = vmatprep.subr.bf16.mxu0 0
    %5114 = vmatpush1.bf16.xpose.msra.mxu0 0
    %5115 = vmatprep.subr.bf16.mxu0 0
    %5116 = vmatpush1.bf16.xpose.msra.mxu0 0
    %5117 = vmatprep.subr.bf16.mxu0 0
    %5118 = vmatpush1.bf16.xpose.msra.mxu0 0
    %5119 = vmatprep.subr.bf16.mxu0 0
    %5120 = vmatpush1.bf16.xpose.msra.mxu0 0
    %5121 = vmatprep.subr.bf16.mxu0 0
    %5122 = vmatpush1.bf16.xpose.msra.mxu0 0
    %5123 = vmatprep.subr.bf16.mxu0 0
    %5124 = vmatpush1.bf16.xpose.msra.mxu0 0
    %5125 = vmatprep.subr.bf16.mxu0 0
    %5126 = vmatpush1.bf16.xpose.msra.mxu0 0
    %5127 = vmatprep.mubr.bf16.mxu0 0
    %5128 = vmatmul.mubr.bf16.gmra.mrb[0].mxu0 %v5072
    %v5129 = vpop.f32.mrb[0].mxu0
    %v5130 = vadd.f32 0.0, %v5129
    %v5131 = vpop.f32.mrb[0].mxu0
    %v5132 = vpop.f32.mrb[0].mxu0
    %v5133 = vadd.f32 0.0, %v5132
    %v5134 = vpop.f32.mrb[0].mxu0
    %5135 = vmatprep.mubr.bf16.mxu0 0
    %5136 = vmatmul.mubr.bf16.gmra.mrb[0].mxu0 %v5075
    %v5137 = vpop.f32.mrb[0].mxu0
    %v5138 = vadd.f32 0.0, %v5137
    %v5139 = vpop.f32.mrb[0].mxu0
    %v5140 = vpop.f32.mrb[0].mxu0
    %v5141 = vadd.f32 0.0, %v5140
    %v5142 = vpop.f32.mrb[0].mxu0
    %5143 = vmatprep.mubr.bf16.mxu0 0
    %5144 = vmatmul.mubr.bf16.gmra.mrb[0].mxu0 %v5078
    %v5145 = vpop.f32.mrb[0].mxu0
    %v5146 = vadd.f32 0.0, %v5145
    %v5147 = vpop.f32.mrb[0].mxu0
    %v5148 = vpop.f32.mrb[0].mxu0
    %v5149 = vadd.f32 0.0, %v5148
    %v5150 = vpop.f32.mrb[0].mxu0
    %5151 = vmatprep.mubr.bf16.mxu0 0
    %5152 = vmatmul.mubr.bf16.gmra.mrb[0].mxu0 %v5081
    %v5153 = vpop.f32.mrb[0].mxu0
    %v5154 = vadd.f32 0.0, %v5153
    %v5155 = vpop.f32.mrb[0].mxu0
    %v5156 = vpop.f32.mrb[0].mxu0
    %v5157 = vadd.f32 0.0, %v5156
    %v5158 = vpop.f32.mrb[0].mxu0
    %5159 = vdwg.mxu0
    %v5160 = vsel %vm736, %v5130, -inf
    %5161 = vmax.xlane.f32.xlu0 %v5160
    %v5162 = vpop.xlane.xlu0 %5161
    %v5163 = vsel %vm736, %v5133, -inf
    %5164 = vmax.xlane.f32.xlu0 %v5163
    %v5165 = vpop.xlane.xlu0 %5164
    %v5166 = vsel %vm736, %v5138, -inf
    %5167 = vmax.xlane.f32.xlu0 %v5166
    %v5168 = vpop.xlane.xlu0 %5167
    %v5169 = vsel %vm736, %v5141, -inf
    %5170 = vmax.xlane.f32.xlu0 %v5169
    %v5171 = vpop.xlane.xlu0 %5170
    %v5172 = vsel %vm736, %v5146, -inf
    %5173 = vmax.xlane.f32.xlu0 %v5172
    %v5174 = vpop.xlane.xlu0 %5173
    %v5175 = vsel %vm736, %v5149, -inf
    %5176 = vmax.xlane.f32.xlu0 %v5175
    %v5177 = vpop.xlane.xlu0 %5176
    %v5178 = vsel %vm736, %v5154, -inf
    %5179 = vmax.xlane.f32.xlu0 %v5178
    %v5180 = vpop.xlane.xlu0 %5179
    %v5181 = vsel %vm736, %v5157, -inf
    %5182 = vmax.xlane.f32.xlu0 %v5181
    %v5183 = vpop.xlane.xlu0 %5182
    %v5184 = vsub.f32 %v5130, %v5162
    %v5185 = vsub.f32 %v5133, %v5165
    %v5186 = vsub.f32 %v5138, %v5168
    %v5187 = vsub.f32 %v5141, %v5171
    %v5188 = vsub.f32 %v5146, %v5174
    %v5189 = vsub.f32 %v5149, %v5177
    %v5190 = vsub.f32 %v5154, %v5180
    %v5191 = vsub.f32 %v5157, %v5183
    %v5192 = vmul.f32 %v5184, 1.442695
    %v5193 = vpow.pop %v5192
    %v5194 = vmul.f32 %v5185, 1.442695
    %v5195 = vpow.pop %v5194
    %v5196 = vmul.f32 %v5186, 1.442695
    %v5197 = vpow.pop %v5196
    %v5198 = vmul.f32 %v5187, 1.442695
    %v5199 = vpow.pop %v5198
    %v5200 = vmul.f32 %v5188, 1.442695
    %v5201 = vpow.pop %v5200
    %v5202 = vmul.f32 %v5189, 1.442695
    %v5203 = vpow.pop %v5202
    %v5204 = vmul.f32 %v5190, 1.442695
    %v5205 = vpow.pop %v5204
    %v5206 = vmul.f32 %v5191, 1.442695
    %v5207 = vpow.pop %v5206
    %v5208 = vsel %vm736, %v5193, 0.0
    %5209 = vadd.xlane.f32.xlu0 %v5208
    %v5210 = vpop.xlane.xlu0 %5209
    %v5211 = vsel %vm736, %v5195, 0.0
    %5212 = vadd.xlane.f32.xlu0 %v5211
    %v5213 = vpop.xlane.xlu0 %5212
    %v5214 = vsel %vm736, %v5197, 0.0
    %5215 = vadd.xlane.f32.xlu0 %v5214
    %v5216 = vpop.xlane.xlu0 %5215
    %v5217 = vsel %vm736, %v5199, 0.0
    %5218 = vadd.xlane.f32.xlu0 %v5217
    %v5219 = vpop.xlane.xlu0 %5218
    %v5220 = vsel %vm736, %v5201, 0.0
    %5221 = vadd.xlane.f32.xlu0 %v5220
    %v5222 = vpop.xlane.xlu0 %5221
    %v5223 = vsel %vm736, %v5203, 0.0
    %5224 = vadd.xlane.f32.xlu0 %v5223
    %v5225 = vpop.xlane.xlu0 %5224
    %v5226 = vsel %vm736, %v5205, 0.0
    %5227 = vadd.xlane.f32.xlu0 %v5226
    %v5228 = vpop.xlane.xlu0 %5227
    %v5229 = vsel %vm736, %v5207, 0.0
    %5230 = vadd.xlane.f32.xlu0 %v5229
    %v5231 = vpop.xlane.xlu0 %5230
    %v5232 = vrcp.pop %v5210
    %v5233 = vrcp.pop %v5213
    %v5234 = vrcp.pop %v5216
    %v5235 = vrcp.pop %v5219
    %v5236 = vrcp.pop %v5222
    %v5237 = vrcp.pop %v5225
    %v5238 = vrcp.pop %v5228
    %v5239 = vrcp.pop %v5231
    %v5240 = vmul.f32 %v5193, %v5232
    %v5241 = vmul.f32 %v5195, %v5233
    %v5242 = vmul.f32 %v5197, %v5234
    %v5243 = vmul.f32 %v5199, %v5235
    %v5244 = vmul.f32 %v5201, %v5236
    %v5245 = vmul.f32 %v5203, %v5237
    %v5246 = vmul.f32 %v5205, %v5238
    %v5247 = vmul.f32 %v5207, %v5239
    %v5248 = vpack.c.bf16 %v5241, %v5240
    %v5249 = vpack.c.bf16 %v5243, %v5242
    %v5250 = vpack.c.bf16 %v5245, %v5244
    %v5251 = vpack.c.bf16 %v5247, %v5246
    %5252 = vrot.lane.b32.xlu0 %v4305, 64
    %v5253 = vpop.permute.xlu0 %5252
    %5254 = vrot.lane.b32.xlu0 %v4306, 64
    %v5255 = vpop.permute.xlu0 %5254
    %5256 = vrot.lane.b32.xlu0 %v4307, 64
    %v5257 = vpop.permute.xlu0 %5256
    %5258 = vrot.lane.b32.xlu0 %v4308, 64
    %v5259 = vpop.permute.xlu0 %5258
    %v5265 = vsel %vm736, %v5248, 0
    %v5268 = vsel %vm736, %v5249, 0
    %v5271 = vsel %vm736, %v5250, 0
    %v5274 = vsel %vm736, %v5251, 0
    %5276 = vmatprep.subr.bf16.mxu0 0
    %5277 = vmatpush1.bf16.msra.mxu0 %v5253
    %5278 = vmatprep.subr.bf16.mxu0 0
    %5279 = vmatpush1.bf16.msra.mxu0 %v5255
    %5280 = vmatprep.subr.bf16.mxu0 0
    %5281 = vmatpush1.bf16.msra.mxu0 %v5257
    %5282 = vmatprep.subr.bf16.mxu0 0
    %5283 = vmatpush1.bf16.msra.mxu0 %v5259
    %5284 = vmatprep.subr.bf16.mxu0 0
    %5285 = vmatpush1.bf16.msra.mxu0 0
    %5286 = vmatprep.subr.bf16.mxu0 0
    %5287 = vmatpush1.bf16.msra.mxu0 0
    %5288 = vmatprep.subr.bf16.mxu0 0
    %5289 = vmatpush1.bf16.msra.mxu0 0
    %5290 = vmatprep.subr.bf16.mxu0 0
    %5291 = vmatpush1.bf16.msra.mxu0 0
    %5292 = vmatprep.subr.bf16.mxu0 0
    %5293 = vmatpush1.bf16.msra.mxu0 0
    %5294 = vmatprep.subr.bf16.mxu0 0
    %5295 = vmatpush1.bf16.msra.mxu0 0
    %5296 = vmatprep.subr.bf16.mxu0 0
    %5297 = vmatpush1.bf16.msra.mxu0 0
    %5298 = vmatprep.subr.bf16.mxu0 0
    %5299 = vmatpush1.bf16.msra.mxu0 0
    %5300 = vmatprep.subr.bf16.mxu0 0
    %5301 = vmatpush1.bf16.msra.mxu0 0
    %5302 = vmatprep.subr.bf16.mxu0 0
    %5303 = vmatpush1.bf16.msra.mxu0 0
    %5304 = vmatprep.subr.bf16.mxu0 0
    %5305 = vmatpush1.bf16.msra.mxu0 0
    %5306 = vmatprep.subr.bf16.mxu0 0
    %5307 = vmatpush1.bf16.msra.mxu0 0
    %5308 = vmatprep.mubr.bf16.mxu0 0
    %5309 = vmatmul.mubr.bf16.gmra.mrb[0].mxu0 %v5265
    %v5310 = vpop.f32.mrb[0].mxu0
    %v5311 = vadd.f32 0.0, %v5310
    %v5312 = vpop.f32.mrb[0].mxu0
    %v5313 = vpop.f32.mrb[0].mxu0
    %v5314 = vadd.f32 0.0, %v5313
    %v5315 = vpop.f32.mrb[0].mxu0
    %5316 = vmatprep.mubr.bf16.mxu0 0
    %5317 = vmatmul.mubr.bf16.gmra.mrb[0].mxu0 %v5268
    %v5318 = vpop.f32.mrb[0].mxu0
    %v5319 = vadd.f32 0.0, %v5318
    %v5320 = vpop.f32.mrb[0].mxu0
    %v5321 = vpop.f32.mrb[0].mxu0
    %v5322 = vadd.f32 0.0, %v5321
    %v5323 = vpop.f32.mrb[0].mxu0
    %5324 = vmatprep.mubr.bf16.mxu0 0
    %5325 = vmatmul.mubr.bf16.gmra.mrb[0].mxu0 %v5271
    %v5326 = vpop.f32.mrb[0].mxu0
    %v5327 = vadd.f32 0.0, %v5326
    %v5328 = vpop.f32.mrb[0].mxu0
    %v5329 = vpop.f32.mrb[0].mxu0
    %v5330 = vadd.f32 0.0, %v5329
    %v5331 = vpop.f32.mrb[0].mxu0
    %5332 = vmatprep.mubr.bf16.mxu0 0
    %5333 = vmatmul.mubr.bf16.gmra.mrb[0].mxu0 %v5274
    %v5334 = vpop.f32.mrb[0].mxu0
    %v5335 = vadd.f32 0.0, %v5334
    %v5336 = vpop.f32.mrb[0].mxu0
    %v5337 = vpop.f32.mrb[0].mxu0
    %v5338 = vadd.f32 0.0, %v5337
    %v5339 = vpop.f32.mrb[0].mxu0
    %5340 = vdwg.mxu0
    %v5341 = vpack.c.bf16 %v5314, %v5311
    %v5342 = vpack.c.bf16 %v5322, %v5319
    %v5343 = vpack.c.bf16 %v5330, %v5327
    %v5344 = vpack.c.bf16 %v5338, %v5335
    %v5349 = vunpack.c.l.b16 %v3918
    %v5350 = vunpack.c.l.b16 %v3919
    %v5351 = vunpack.c.l.b16 %v3920
    %v5352 = vunpack.c.l.b16 %v3921
    %v5353 = vpack.c.b16 %v5350, %v5349
    %v5354 = vpack.c.b16 %v5352, %v5351
    %v5358 = vsel %vm646, %v5341, 0
    %v5361 = vsel %vm646, %v5342, 0
    %v5364 = vsel %vm646, %v5343, 0
    %v5367 = vsel %vm646, %v5344, 0
    %5369 = vmatprep.subr.bf16.mxu0 0
    %5370 = vmatpush1.bf16.msra.mxu0 %v5353
    %5371 = vmatprep.subr.bf16.mxu0 0
    %5372 = vmatpush1.bf16.msra.mxu0 %v5354
    %5373 = vmatprep.subr.bf16.mxu0 0
    %5374 = vmatpush1.bf16.msra.mxu0 0
    %5375 = vmatprep.subr.bf16.mxu0 0
    %5376 = vmatpush1.bf16.msra.mxu0 0
    %5377 = vmatprep.subr.bf16.mxu0 0
    %5378 = vmatpush1.bf16.msra.mxu0 0
    %5379 = vmatprep.subr.bf16.mxu0 0
    %5380 = vmatpush1.bf16.msra.mxu0 0
    %5381 = vmatprep.subr.bf16.mxu0 0
    %5382 = vmatpush1.bf16.msra.mxu0 0
    %5383 = vmatprep.subr.bf16.mxu0 0
    %5384 = vmatpush1.bf16.msra.mxu0 0
    %5385 = vmatprep.subr.bf16.mxu0 0
    %5386 = vmatpush1.bf16.msra.mxu0 0
    %5387 = vmatprep.subr.bf16.mxu0 0
    %5388 = vmatpush1.bf16.msra.mxu0 0
    %5389 = vmatprep.subr.bf16.mxu0 0
    %5390 = vmatpush1.bf16.msra.mxu0 0
    %5391 = vmatprep.subr.bf16.mxu0 0
    %5392 = vmatpush1.bf16.msra.mxu0 0
    %5393 = vmatprep.subr.bf16.mxu0 0
    %5394 = vmatpush1.bf16.msra.mxu0 0
    %5395 = vmatprep.subr.bf16.mxu0 0
    %5396 = vmatpush1.bf16.msra.mxu0 0
    %5397 = vmatprep.subr.bf16.mxu0 0
    %5398 = vmatpush1.bf16.msra.mxu0 0
    %5399 = vmatprep.subr.bf16.mxu0 0
    %5400 = vmatpush1.bf16.msra.mxu0 0
    %5401 = vmatprep.mubr.bf16.mxu0 0
    %5402 = vmatmul.mubr.bf16.gmra.mrb[0].mxu0 %v5358
    %v5403 = vpop.f32.mrb[0].mxu0
    %v5404 = vadd.f32 0.0, %v5403
    %v5405 = vpop.f32.mrb[0].mxu0
    %v5406 = vpop.f32.mrb[0].mxu0
    %v5407 = vadd.f32 0.0, %v5406
    %v5408 = vpop.f32.mrb[0].mxu0
    %5409 = vmatprep.mubr.bf16.mxu0 0
    %5410 = vmatmul.mubr.bf16.gmra.mrb[0].mxu0 %v5361
    %v5411 = vpop.f32.mrb[0].mxu0
    %v5412 = vadd.f32 0.0, %v5411
    %v5413 = vpop.f32.mrb[0].mxu0
    %v5414 = vpop.f32.mrb[0].mxu0
    %v5415 = vadd.f32 0.0, %v5414
    %v5416 = vpop.f32.mrb[0].mxu0
    %5417 = vmatprep.mubr.bf16.mxu0 0
    %5418 = vmatmul.mubr.bf16.gmra.mrb[0].mxu0 %v5364
    %v5419 = vpop.f32.mrb[0].mxu0
    %v5420 = vadd.f32 0.0, %v5419
    %v5421 = vpop.f32.mrb[0].mxu0
    %v5422 = vpop.f32.mrb[0].mxu0
    %v5423 = vadd.f32 0.0, %v5422
    %v5424 = vpop.f32.mrb[0].mxu0
    %5425 = vmatprep.mubr.bf16.mxu0 0
    %5426 = vmatmul.mubr.bf16.gmra.mrb[0].mxu0 %v5367
    %v5427 = vpop.f32.mrb[0].mxu0
    %v5428 = vadd.f32 0.0, %v5427
    %v5429 = vpop.f32.mrb[0].mxu0
    %v5430 = vpop.f32.mrb[0].mxu0
    %v5431 = vadd.f32 0.0, %v5430
    %v5432 = vpop.f32.mrb[0].mxu0
    %5433 = vdwg.mxu0
    %v5434 = vadd.f32 %v5025, %v5404
    %v5435 = vadd.f32 %v5028, %v5407
    %v5436 = vadd.f32 %v5033, %v5412
    %v5437 = vadd.f32 %v5036, %v5415
    %v5438 = vadd.f32 %v5041, %v5420
    %v5439 = vadd.f32 %v5044, %v5423
    %v5440 = vadd.f32 %v5049, %v5428
    %v5441 = vadd.f32 %v5052, %v5431
    %5442 = vrot.lane.b32.xlu0 %v4289, 32
    %v5443 = vpop.permute.xlu0 %5442
    %5444 = vrot.lane.b32.xlu0 %v4290, 32
    %v5445 = vpop.permute.xlu0 %5444
    %5446 = vrot.lane.b32.xlu0 %v4291, 32
    %v5447 = vpop.permute.xlu0 %5446
    %5448 = vrot.lane.b32.xlu0 %v4292, 32
    %v5449 = vpop.permute.xlu0 %5448
    %5450 = vrot.lane.b32.xlu0 %v4297, 32
    %v5451 = vpop.permute.xlu0 %5450
    %5452 = vrot.lane.b32.xlu0 %v4298, 32
    %v5453 = vpop.permute.xlu0 %5452
    %5454 = vrot.lane.b32.xlu0 %v4299, 32
    %v5455 = vpop.permute.xlu0 %5454
    %5456 = vrot.lane.b32.xlu0 %v4300, 32
    %v5457 = vpop.permute.xlu0 %5456
    %v5459 = vsel %vm646, %v5443, 0
    %v5462 = vsel %vm646, %v5445, 0
    %v5465 = vsel %vm646, %v5447, 0
    %v5468 = vsel %vm646, %v5449, 0
    %v5471 = vsel %vm646, %v5451, 0
    %v5474 = vsel %vm646, %v5453, 0
    %v5477 = vsel %vm646, %v5455, 0
    %v5480 = vsel %vm646, %v5457, 0
    %5482 = vmatprep.subr.bf16.mxu0 0
    %5483 = vmatpush1.bf16.xpose.msra.mxu0 %v5471
    %5484 = vmatprep.subr.bf16.mxu0 0
    %5485 = vmatpush1.bf16.xpose.msra.mxu0 %v5474
    %5486 = vmatprep.subr.bf16.mxu0 0
    %5487 = vmatpush1.bf16.xpose.msra.mxu0 %v5477
    %5488 = vmatprep.subr.bf16.mxu0 0
    %5489 = vmatpush1.bf16.xpose.msra.mxu0 %v5480
    %5490 = vmatprep.subr.bf16.mxu0 0
    %5491 = vmatpush1.bf16.xpose.msra.mxu0 0
    %5492 = vmatprep.subr.bf16.mxu0 0
    %5493 = vmatpush1.bf16.xpose.msra.mxu0 0
    %5494 = vmatprep.subr.bf16.mxu0 0
    %5495 = vmatpush1.bf16.xpose.msra.mxu0 0
    %5496 = vmatprep.subr.bf16.mxu0 0
    %5497 = vmatpush1.bf16.xpose.msra.mxu0 0
    %5498 = vmatprep.subr.bf16.mxu0 0
    %5499 = vmatpush1.bf16.xpose.msra.mxu0 0
    %5500 = vmatprep.subr.bf16.mxu0 0
    %5501 = vmatpush1.bf16.xpose.msra.mxu0 0
    %5502 = vmatprep.subr.bf16.mxu0 0
    %5503 = vmatpush1.bf16.xpose.msra.mxu0 0
    %5504 = vmatprep.subr.bf16.mxu0 0
    %5505 = vmatpush1.bf16.xpose.msra.mxu0 0
    %5506 = vmatprep.subr.bf16.mxu0 0
    %5507 = vmatpush1.bf16.xpose.msra.mxu0 0
    %5508 = vmatprep.subr.bf16.mxu0 0
    %5509 = vmatpush1.bf16.xpose.msra.mxu0 0
    %5510 = vmatprep.subr.bf16.mxu0 0
    %5511 = vmatpush1.bf16.xpose.msra.mxu0 0
    %5512 = vmatprep.subr.bf16.mxu0 0
    %5513 = vmatpush1.bf16.xpose.msra.mxu0 0
    %5514 = vmatprep.mubr.bf16.mxu0 0
    %5515 = vmatmul.mubr.bf16.gmra.mrb[0].mxu0 %v5459
    %v5516 = vpop.f32.mrb[0].mxu0
    %v5517 = vadd.f32 0.0, %v5516
    %v5518 = vpop.f32.mrb[0].mxu0
    %v5519 = vpop.f32.mrb[0].mxu0
    %v5520 = vadd.f32 0.0, %v5519
    %v5521 = vpop.f32.mrb[0].mxu0
    %5522 = vmatprep.mubr.bf16.mxu0 0
    %5523 = vmatmul.mubr.bf16.gmra.mrb[0].mxu0 %v5462
    %v5524 = vpop.f32.mrb[0].mxu0
    %v5525 = vadd.f32 0.0, %v5524
    %v5526 = vpop.f32.mrb[0].mxu0
    %v5527 = vpop.f32.mrb[0].mxu0
    %v5528 = vadd.f32 0.0, %v5527
    %v5529 = vpop.f32.mrb[0].mxu0
    %5530 = vmatprep.mubr.bf16.mxu0 0
    %5531 = vmatmul.mubr.bf16.gmra.mrb[0].mxu0 %v5465
    %v5532 = vpop.f32.mrb[0].mxu0
    %v5533 = vadd.f32 0.0, %v5532
    %v5534 = vpop.f32.mrb[0].mxu0
    %v5535 = vpop.f32.mrb[0].mxu0
    %v5536 = vadd.f32 0.0, %v5535
    %v5537 = vpop.f32.mrb[0].mxu0
    %5538 = vmatprep.mubr.bf16.mxu0 0
    %5539 = vmatmul.mubr.bf16.gmra.mrb[0].mxu0 %v5468
    %v5540 = vpop.f32.mrb[0].mxu0
    %v5541 = vadd.f32 0.0, %v5540
    %v5542 = vpop.f32.mrb[0].mxu0
    %v5543 = vpop.f32.mrb[0].mxu0
    %v5544 = vadd.f32 0.0, %v5543
    %v5545 = vpop.f32.mrb[0].mxu0
    %5546 = vdwg.mxu0
    %v5547 = vsel %vm736, %v5517, -inf
    %5548 = vmax.xlane.f32.xlu0 %v5547
    %v5549 = vpop.xlane.xlu0 %5548
    %v5550 = vsel %vm736, %v5520, -inf
    %5551 = vmax.xlane.f32.xlu0 %v5550
    %v5552 = vpop.xlane.xlu0 %5551
    %v5553 = vsel %vm736, %v5525, -inf
    %5554 = vmax.xlane.f32.xlu0 %v5553
    %v5555 = vpop.xlane.xlu0 %5554
    %v5556 = vsel %vm736, %v5528, -inf
    %5557 = vmax.xlane.f32.xlu0 %v5556
    %v5558 = vpop.xlane.xlu0 %5557
    %v5559 = vsel %vm736, %v5533, -inf
    %5560 = vmax.xlane.f32.xlu0 %v5559
    %v5561 = vpop.xlane.xlu0 %5560
    %v5562 = vsel %vm736, %v5536, -inf
    %5563 = vmax.xlane.f32.xlu0 %v5562
    %v5564 = vpop.xlane.xlu0 %5563
    %v5565 = vsel %vm736, %v5541, -inf
    %5566 = vmax.xlane.f32.xlu0 %v5565
    %v5567 = vpop.xlane.xlu0 %5566
    %v5568 = vsel %vm736, %v5544, -inf
    %5569 = vmax.xlane.f32.xlu0 %v5568
    %v5570 = vpop.xlane.xlu0 %5569
    %v5571 = vsub.f32 %v5517, %v5549
    %v5572 = vsub.f32 %v5520, %v5552
    %v5573 = vsub.f32 %v5525, %v5555
    %v5574 = vsub.f32 %v5528, %v5558
    %v5575 = vsub.f32 %v5533, %v5561
    %v5576 = vsub.f32 %v5536, %v5564
    %v5577 = vsub.f32 %v5541, %v5567
    %v5578 = vsub.f32 %v5544, %v5570
    %v5579 = vmul.f32 %v5571, 1.442695
    %v5580 = vpow.pop %v5579
    %v5581 = vmul.f32 %v5572, 1.442695
    %v5582 = vpow.pop %v5581
    %v5583 = vmul.f32 %v5573, 1.442695
    %v5584 = vpow.pop %v5583
    %v5585 = vmul.f32 %v5574, 1.442695
    %v5586 = vpow.pop %v5585
    %v5587 = vmul.f32 %v5575, 1.442695
    %v5588 = vpow.pop %v5587
    %v5589 = vmul.f32 %v5576, 1.442695
    %v5590 = vpow.pop %v5589
    %v5591 = vmul.f32 %v5577, 1.442695
    %v5592 = vpow.pop %v5591
    %v5593 = vmul.f32 %v5578, 1.442695
    %v5594 = vpow.pop %v5593
    %v5595 = vsel %vm736, %v5580, 0.0
    %5596 = vadd.xlane.f32.xlu0 %v5595
    %v5597 = vpop.xlane.xlu0 %5596
    %v5598 = vsel %vm736, %v5582, 0.0
    %5599 = vadd.xlane.f32.xlu0 %v5598
    %v5600 = vpop.xlane.xlu0 %5599
    %v5601 = vsel %vm736, %v5584, 0.0
    %5602 = vadd.xlane.f32.xlu0 %v5601
    %v5603 = vpop.xlane.xlu0 %5602
    %v5604 = vsel %vm736, %v5586, 0.0
    %5605 = vadd.xlane.f32.xlu0 %v5604
    %v5606 = vpop.xlane.xlu0 %5605
    %v5607 = vsel %vm736, %v5588, 0.0
    %5608 = vadd.xlane.f32.xlu0 %v5607
    %v5609 = vpop.xlane.xlu0 %5608
    %v5610 = vsel %vm736, %v5590, 0.0
    %5611 = vadd.xlane.f32.xlu0 %v5610
    %v5612 = vpop.xlane.xlu0 %5611
    %v5613 = vsel %vm736, %v5592, 0.0
    %5614 = vadd.xlane.f32.xlu0 %v5613
    %v5615 = vpop.xlane.xlu0 %5614
    %v5616 = vsel %vm736, %v5594, 0.0
    %5617 = vadd.xlane.f32.xlu0 %v5616
    %v5618 = vpop.xlane.xlu0 %5617
    %v5619 = vrcp.pop %v5597
    %v5620 = vrcp.pop %v5600
    %v5621 = vrcp.pop %v5603
    %v5622 = vrcp.pop %v5606
    %v5623 = vrcp.pop %v5609
    %v5624 = vrcp.pop %v5612
    %v5625 = vrcp.pop %v5615
    %v5626 = vrcp.pop %v5618
    %v5627 = vmul.f32 %v5580, %v5619
    %v5628 = vmul.f32 %v5582, %v5620
    %v5629 = vmul.f32 %v5584, %v5621
    %v5630 = vmul.f32 %v5586, %v5622
    %v5631 = vmul.f32 %v5588, %v5623
    %v5632 = vmul.f32 %v5590, %v5624
    %v5633 = vmul.f32 %v5592, %v5625
    %v5634 = vmul.f32 %v5594, %v5626
    %v5635 = vpack.c.bf16 %v5628, %v5627
    %v5636 = vpack.c.bf16 %v5630, %v5629
    %v5637 = vpack.c.bf16 %v5632, %v5631
    %v5638 = vpack.c.bf16 %v5634, %v5633
    %5639 = vrot.lane.b32.xlu0 %v4305, 32
    %v5640 = vpop.permute.xlu0 %5639
    %5641 = vrot.lane.b32.xlu0 %v4306, 32
    %v5642 = vpop.permute.xlu0 %5641
    %5643 = vrot.lane.b32.xlu0 %v4307, 32
    %v5644 = vpop.permute.xlu0 %5643
    %5645 = vrot.lane.b32.xlu0 %v4308, 32
    %v5646 = vpop.permute.xlu0 %5645
    %v5652 = vsel %vm736, %v5635, 0
    %v5655 = vsel %vm736, %v5636, 0
    %v5658 = vsel %vm736, %v5637, 0
    %v5661 = vsel %vm736, %v5638, 0
    %5663 = vmatprep.subr.bf16.mxu0 0
    %5664 = vmatpush1.bf16.msra.mxu0 %v5640
    %5665 = vmatprep.subr.bf16.mxu0 0
    %5666 = vmatpush1.bf16.msra.mxu0 %v5642
    %5667 = vmatprep.subr.bf16.mxu0 0
    %5668 = vmatpush1.bf16.msra.mxu0 %v5644
    %5669 = vmatprep.subr.bf16.mxu0 0
    %5670 = vmatpush1.bf16.msra.mxu0 %v5646
    %5671 = vmatprep.subr.bf16.mxu0 0
    %5672 = vmatpush1.bf16.msra.mxu0 0
    %5673 = vmatprep.subr.bf16.mxu0 0
    %5674 = vmatpush1.bf16.msra.mxu0 0
    %5675 = vmatprep.subr.bf16.mxu0 0
    %5676 = vmatpush1.bf16.msra.mxu0 0
    %5677 = vmatprep.subr.bf16.mxu0 0
    %5678 = vmatpush1.bf16.msra.mxu0 0
    %5679 = vmatprep.subr.bf16.mxu0 0
    %5680 = vmatpush1.bf16.msra.mxu0 0
    %5681 = vmatprep.subr.bf16.mxu0 0
    %5682 = vmatpush1.bf16.msra.mxu0 0
    %5683 = vmatprep.subr.bf16.mxu0 0
    %5684 = vmatpush1.bf16.msra.mxu0 0
    %5685 = vmatprep.subr.bf16.mxu0 0
    %5686 = vmatpush1.bf16.msra.mxu0 0
    %5687 = vmatprep.subr.bf16.mxu0 0
    %5688 = vmatpush1.bf16.msra.mxu0 0
    %5689 = vmatprep.subr.bf16.mxu0 0
    %5690 = vmatpush1.bf16.msra.mxu0 0
    %5691 = vmatprep.subr.bf16.mxu0 0
    %5692 = vmatpush1.bf16.msra.mxu0 0
    %5693 = vmatprep.subr.bf16.mxu0 0
    %5694 = vmatpush1.bf16.msra.mxu0 0
    %5695 = vmatprep.mubr.bf16.mxu0 0
    %5696 = vmatmul.mubr.bf16.gmra.mrb[0].mxu0 %v5652
    %v5697 = vpop.f32.mrb[0].mxu0
    %v5698 = vadd.f32 0.0, %v5697
    %v5699 = vpop.f32.mrb[0].mxu0
    %v5700 = vpop.f32.mrb[0].mxu0
    %v5701 = vadd.f32 0.0, %v5700
    %v5702 = vpop.f32.mrb[0].mxu0
    %5703 = vmatprep.mubr.bf16.mxu0 0
    %5704 = vmatmul.mubr.bf16.gmra.mrb[0].mxu0 %v5655
    %v5705 = vpop.f32.mrb[0].mxu0
    %v5706 = vadd.f32 0.0, %v5705
    %v5707 = vpop.f32.mrb[0].mxu0
    %v5708 = vpop.f32.mrb[0].mxu0
    %v5709 = vadd.f32 0.0, %v5708
    %v5710 = vpop.f32.mrb[0].mxu0
    %5711 = vmatprep.mubr.bf16.mxu0 0
    %5712 = vmatmul.mubr.bf16.gmra.mrb[0].mxu0 %v5658
    %v5713 = vpop.f32.mrb[0].mxu0
    %v5714 = vadd.f32 0.0, %v5713
    %v5715 = vpop.f32.mrb[0].mxu0
    %v5716 = vpop.f32.mrb[0].mxu0
    %v5717 = vadd.f32 0.0, %v5716
    %v5718 = vpop.f32.mrb[0].mxu0
    %5719 = vmatprep.mubr.bf16.mxu0 0
    %5720 = vmatmul.mubr.bf16.gmra.mrb[0].mxu0 %v5661
    %v5721 = vpop.f32.mrb[0].mxu0
    %v5722 = vadd.f32 0.0, %v5721
    %v5723 = vpop.f32.mrb[0].mxu0
    %v5724 = vpop.f32.mrb[0].mxu0
    %v5725 = vadd.f32 0.0, %v5724
    %v5726 = vpop.f32.mrb[0].mxu0
    %5727 = vdwg.mxu0
    %v5728 = vpack.c.bf16 %v5701, %v5698
    %v5729 = vpack.c.bf16 %v5709, %v5706
    %v5730 = vpack.c.bf16 %v5717, %v5714
    %v5731 = vpack.c.bf16 %v5725, %v5722
    %v5736 = vunpack.c.l.b16 %v3922
    %v5737 = vunpack.c.l.b16 %v3923
    %v5738 = vunpack.c.l.b16 %v3924
    %v5739 = vunpack.c.l.b16 %v3925
    %v5740 = vpack.c.b16 %v5737, %v5736
    %v5741 = vpack.c.b16 %v5739, %v5738
    %v5745 = vsel %vm646, %v5728, 0
    %v5748 = vsel %vm646, %v5729, 0
    %v5751 = vsel %vm646, %v5730, 0
    %v5754 = vsel %vm646, %v5731, 0
    %5756 = vmatprep.subr.bf16.mxu0 0
    %5757 = vmatpush1.bf16.msra.mxu0 %v5740
    %5758 = vmatprep.subr.bf16.mxu0 0
    %5759 = vmatpush1.bf16.msra.mxu0 %v5741
    %5760 = vmatprep.subr.bf16.mxu0 0
    %5761 = vmatpush1.bf16.msra.mxu0 0
    %5762 = vmatprep.subr.bf16.mxu0 0
    %5763 = vmatpush1.bf16.msra.mxu0 0
    %5764 = vmatprep.subr.bf16.mxu0 0
    %5765 = vmatpush1.bf16.msra.mxu0 0
    %5766 = vmatprep.subr.bf16.mxu0 0
    %5767 = vmatpush1.bf16.msra.mxu0 0
    %5768 = vmatprep.subr.bf16.mxu0 0
    %5769 = vmatpush1.bf16.msra.mxu0 0
    %5770 = vmatprep.subr.bf16.mxu0 0
    %5771 = vmatpush1.bf16.msra.mxu0 0
    %5772 = vmatprep.subr.bf16.mxu0 0
    %5773 = vmatpush1.bf16.msra.mxu0 0
    %5774 = vmatprep.subr.bf16.mxu0 0
    %5775 = vmatpush1.bf16.msra.mxu0 0
    %5776 = vmatprep.subr.bf16.mxu0 0
    %5777 = vmatpush1.bf16.msra.mxu0 0
    %5778 = vmatprep.subr.bf16.mxu0 0
    %5779 = vmatpush1.bf16.msra.mxu0 0
    %5780 = vmatprep.subr.bf16.mxu0 0
    %5781 = vmatpush1.bf16.msra.mxu0 0
    %5782 = vmatprep.subr.bf16.mxu0 0
    %5783 = vmatpush1.bf16.msra.mxu0 0
    %5784 = vmatprep.subr.bf16.mxu0 0
    %5785 = vmatpush1.bf16.msra.mxu0 0
    %5786 = vmatprep.subr.bf16.mxu0 0
    %5787 = vmatpush1.bf16.msra.mxu0 0
    %5788 = vmatprep.mubr.bf16.mxu0 0
    %5789 = vmatmul.mubr.bf16.gmra.mrb[0].mxu0 %v5745
    %v5790 = vpop.f32.mrb[0].mxu0
    %v5791 = vadd.f32 0.0, %v5790
    %v5792 = vpop.f32.mrb[0].mxu0
    %v5793 = vpop.f32.mrb[0].mxu0
    %v5794 = vadd.f32 0.0, %v5793
    %v5795 = vpop.f32.mrb[0].mxu0
    %5796 = vmatprep.mubr.bf16.mxu0 0
    %5797 = vmatmul.mubr.bf16.gmra.mrb[0].mxu0 %v5748
    %v5798 = vpop.f32.mrb[0].mxu0
    %v5799 = vadd.f32 0.0, %v5798
    %v5800 = vpop.f32.mrb[0].mxu0
    %v5801 = vpop.f32.mrb[0].mxu0
    %v5802 = vadd.f32 0.0, %v5801
    %v5803 = vpop.f32.mrb[0].mxu0
    %5804 = vmatprep.mubr.bf16.mxu0 0
    %5805 = vmatmul.mubr.bf16.gmra.mrb[0].mxu0 %v5751
    %v5806 = vpop.f32.mrb[0].mxu0
    %v5807 = vadd.f32 0.0, %v5806
    %v5808 = vpop.f32.mrb[0].mxu0
    %v5809 = vpop.f32.mrb[0].mxu0
    %v5810 = vadd.f32 0.0, %v5809
    %v5811 = vpop.f32.mrb[0].mxu0
    %5812 = vmatprep.mubr.bf16.mxu0 0
    %5813 = vmatmul.mubr.bf16.gmra.mrb[0].mxu0 %v5754
    %v5814 = vpop.f32.mrb[0].mxu0
    %v5815 = vadd.f32 0.0, %v5814
    %v5816 = vpop.f32.mrb[0].mxu0
    %v5817 = vpop.f32.mrb[0].mxu0
    %v5818 = vadd.f32 0.0, %v5817
    %v5819 = vpop.f32.mrb[0].mxu0
    %5820 = vdwg.mxu0
    %v5821 = vadd.f32 %v5434, %v5791
    %v5822 = vadd.f32 %v5435, %v5794
    %v5823 = vadd.f32 %v5436, %v5799
    %v5824 = vadd.f32 %v5437, %v5802
    %v5825 = vadd.f32 %v5438, %v5807
    %v5826 = vadd.f32 %v5439, %v5810
    %v5827 = vadd.f32 %v5440, %v5815
    %v5828 = vadd.f32 %v5441, %v5818
    %v5830 = vsel %vm646, %v4293, 0
    %v5833 = vsel %vm646, %v4294, 0
    %v5836 = vsel %vm646, %v4295, 0
    %v5839 = vsel %vm646, %v4296, 0
    %v5842 = vsel %vm646, %v4301, 0
    %v5845 = vsel %vm646, %v4302, 0
    %v5848 = vsel %vm646, %v4303, 0
    %v5851 = vsel %vm646, %v4304, 0
    %5853 = vmatprep.subr.bf16.mxu0 0
    %5854 = vmatpush1.bf16.xpose.msra.mxu0 %v5842
    %5855 = vmatprep.subr.bf16.mxu0 0
    %5856 = vmatpush1.bf16.xpose.msra.mxu0 %v5845
    %5857 = vmatprep.subr.bf16.mxu0 0
    %5858 = vmatpush1.bf16.xpose.msra.mxu0 %v5848
    %5859 = vmatprep.subr.bf16.mxu0 0
    %5860 = vmatpush1.bf16.xpose.msra.mxu0 %v5851
    %5861 = vmatprep.subr.bf16.mxu0 0
    %5862 = vmatpush1.bf16.xpose.msra.mxu0 0
    %5863 = vmatprep.subr.bf16.mxu0 0
    %5864 = vmatpush1.bf16.xpose.msra.mxu0 0
    %5865 = vmatprep.subr.bf16.mxu0 0
    %5866 = vmatpush1.bf16.xpose.msra.mxu0 0
    %5867 = vmatprep.subr.bf16.mxu0 0
    %5868 = vmatpush1.bf16.xpose.msra.mxu0 0
    %5869 = vmatprep.subr.bf16.mxu0 0
    %5870 = vmatpush1.bf16.xpose.msra.mxu0 0
    %5871 = vmatprep.subr.bf16.mxu0 0
    %5872 = vmatpush1.bf16.xpose.msra.mxu0 0
    %5873 = vmatprep.subr.bf16.mxu0 0
    %5874 = vmatpush1.bf16.xpose.msra.mxu0 0
    %5875 = vmatprep.subr.bf16.mxu0 0
    %5876 = vmatpush1.bf16.xpose.msra.mxu0 0
    %5877 = vmatprep.subr.bf16.mxu0 0
    %5878 = vmatpush1.bf16.xpose.msra.mxu0 0
    %5879 = vmatprep.subr.bf16.mxu0 0
    %5880 = vmatpush1.bf16.xpose.msra.mxu0 0
    %5881 = vmatprep.subr.bf16.mxu0 0
    %5882 = vmatpush1.bf16.xpose.msra.mxu0 0
    %5883 = vmatprep.subr.bf16.mxu0 0
    %5884 = vmatpush1.bf16.xpose.msra.mxu0 0
    %5885 = vmatprep.mubr.bf16.mxu0 0
    %5886 = vmatmul.mubr.bf16.gmra.mrb[0].mxu0 %v5830
    %v5887 = vpop.f32.mrb[0].mxu0
    %v5888 = vadd.f32 0.0, %v5887
    %v5889 = vpop.f32.mrb[0].mxu0
    %v5890 = vpop.f32.mrb[0].mxu0
    %v5891 = vadd.f32 0.0, %v5890
    %v5892 = vpop.f32.mrb[0].mxu0
    %5893 = vmatprep.mubr.bf16.mxu0 0
    %5894 = vmatmul.mubr.bf16.gmra.mrb[0].mxu0 %v5833
    %v5895 = vpop.f32.mrb[0].mxu0
    %v5896 = vadd.f32 0.0, %v5895
    %v5897 = vpop.f32.mrb[0].mxu0
    %v5898 = vpop.f32.mrb[0].mxu0
    %v5899 = vadd.f32 0.0, %v5898
    %v5900 = vpop.f32.mrb[0].mxu0
    %5901 = vmatprep.mubr.bf16.mxu0 0
    %5902 = vmatmul.mubr.bf16.gmra.mrb[0].mxu0 %v5836
    %v5903 = vpop.f32.mrb[0].mxu0
    %v5904 = vadd.f32 0.0, %v5903
    %v5905 = vpop.f32.mrb[0].mxu0
    %v5906 = vpop.f32.mrb[0].mxu0
    %v5907 = vadd.f32 0.0, %v5906
    %v5908 = vpop.f32.mrb[0].mxu0
    %5909 = vmatprep.mubr.bf16.mxu0 0
    %5910 = vmatmul.mubr.bf16.gmra.mrb[0].mxu0 %v5839
    %v5911 = vpop.f32.mrb[0].mxu0
    %v5912 = vadd.f32 0.0, %v5911
    %v5913 = vpop.f32.mrb[0].mxu0
    %v5914 = vpop.f32.mrb[0].mxu0
    %v5915 = vadd.f32 0.0, %v5914
    %v5916 = vpop.f32.mrb[0].mxu0
    %5917 = vdwg.mxu0
    %v5918 = vsel %vm736, %v5888, -inf
    %5919 = vmax.xlane.f32.xlu0 %v5918
    %v5920 = vpop.xlane.xlu0 %5919
    %v5921 = vsel %vm736, %v5891, -inf
    %5922 = vmax.xlane.f32.xlu0 %v5921
    %v5923 = vpop.xlane.xlu0 %5922
    %v5924 = vsel %vm736, %v5896, -inf
    %5925 = vmax.xlane.f32.xlu0 %v5924
    %v5926 = vpop.xlane.xlu0 %5925
    %v5927 = vsel %vm736, %v5899, -inf
    %5928 = vmax.xlane.f32.xlu0 %v5927
    %v5929 = vpop.xlane.xlu0 %5928
    %v5930 = vsel %vm736, %v5904, -inf
    %5931 = vmax.xlane.f32.xlu0 %v5930
    %v5932 = vpop.xlane.xlu0 %5931
    %v5933 = vsel %vm736, %v5907, -inf
    %5934 = vmax.xlane.f32.xlu0 %v5933
    %v5935 = vpop.xlane.xlu0 %5934
    %v5936 = vsel %vm736, %v5912, -inf
    %5937 = vmax.xlane.f32.xlu0 %v5936
    %v5938 = vpop.xlane.xlu0 %5937
    %v5939 = vsel %vm736, %v5915, -inf
    %5940 = vmax.xlane.f32.xlu0 %v5939
    %v5941 = vpop.xlane.xlu0 %5940
    %v5942 = vsub.f32 %v5888, %v5920
    %v5943 = vsub.f32 %v5891, %v5923
    %v5944 = vsub.f32 %v5896, %v5926
    %v5945 = vsub.f32 %v5899, %v5929
    %v5946 = vsub.f32 %v5904, %v5932
    %v5947 = vsub.f32 %v5907, %v5935
    %v5948 = vsub.f32 %v5912, %v5938
    %v5949 = vsub.f32 %v5915, %v5941
    %v5950 = vmul.f32 %v5942, 1.442695
    %v5951 = vpow.pop %v5950
    %v5952 = vmul.f32 %v5943, 1.442695
    %v5953 = vpow.pop %v5952
    %v5954 = vmul.f32 %v5944, 1.442695
    %v5955 = vpow.pop %v5954
    %v5956 = vmul.f32 %v5945, 1.442695
    %v5957 = vpow.pop %v5956
    %v5958 = vmul.f32 %v5946, 1.442695
    %v5959 = vpow.pop %v5958
    %v5960 = vmul.f32 %v5947, 1.442695
    %v5961 = vpow.pop %v5960
    %v5962 = vmul.f32 %v5948, 1.442695
    %v5963 = vpow.pop %v5962
    %v5964 = vmul.f32 %v5949, 1.442695
    %v5965 = vpow.pop %v5964
    %v5966 = vsel %vm736, %v5951, 0.0
    %5967 = vadd.xlane.f32.xlu0 %v5966
    %v5968 = vpop.xlane.xlu0 %5967
    %v5969 = vsel %vm736, %v5953, 0.0
    %5970 = vadd.xlane.f32.xlu0 %v5969
    %v5971 = vpop.xlane.xlu0 %5970
    %v5972 = vsel %vm736, %v5955, 0.0
    %5973 = vadd.xlane.f32.xlu0 %v5972
    %v5974 = vpop.xlane.xlu0 %5973
    %v5975 = vsel %vm736, %v5957, 0.0
    %5976 = vadd.xlane.f32.xlu0 %v5975
    %v5977 = vpop.xlane.xlu0 %5976
    %v5978 = vsel %vm736, %v5959, 0.0
    %5979 = vadd.xlane.f32.xlu0 %v5978
    %v5980 = vpop.xlane.xlu0 %5979
    %v5981 = vsel %vm736, %v5961, 0.0
    %5982 = vadd.xlane.f32.xlu0 %v5981
    %v5983 = vpop.xlane.xlu0 %5982
    %v5984 = vsel %vm736, %v5963, 0.0
    %5985 = vadd.xlane.f32.xlu0 %v5984
    %v5986 = vpop.xlane.xlu0 %5985
    %v5987 = vsel %vm736, %v5965, 0.0
    %5988 = vadd.xlane.f32.xlu0 %v5987
    %v5989 = vpop.xlane.xlu0 %5988
    %v5990 = vrcp.pop %v5968
    %v5991 = vrcp.pop %v5971
    %v5992 = vrcp.pop %v5974
    %v5993 = vrcp.pop %v5977
    %v5994 = vrcp.pop %v5980
    %v5995 = vrcp.pop %v5983
    %v5996 = vrcp.pop %v5986
    %v5997 = vrcp.pop %v5989
    %v5998 = vmul.f32 %v5951, %v5990
    %v5999 = vmul.f32 %v5953, %v5991
    %v6000 = vmul.f32 %v5955, %v5992
    %v6001 = vmul.f32 %v5957, %v5993
    %v6002 = vmul.f32 %v5959, %v5994
    %v6003 = vmul.f32 %v5961, %v5995
    %v6004 = vmul.f32 %v5963, %v5996
    %v6005 = vmul.f32 %v5965, %v5997
    %v6006 = vpack.c.bf16 %v5999, %v5998
    %v6007 = vpack.c.bf16 %v6001, %v6000
    %v6008 = vpack.c.bf16 %v6003, %v6002
    %v6009 = vpack.c.bf16 %v6005, %v6004
    %v6011 = vsel %vm736, %v6006, 0
    %v6014 = vsel %vm736, %v6007, 0
    %v6017 = vsel %vm736, %v6008, 0
    %v6020 = vsel %vm736, %v6009, 0
    %6022 = vmatprep.subr.bf16.mxu0 0
    %6023 = vmatpush1.bf16.msra.mxu0 %v4309
    %6024 = vmatprep.subr.bf16.mxu0 0
    %6025 = vmatpush1.bf16.msra.mxu0 %v4310
    %6026 = vmatprep.subr.bf16.mxu0 0
    %6027 = vmatpush1.bf16.msra.mxu0 %v4311
    %6028 = vmatprep.subr.bf16.mxu0 0
    %6029 = vmatpush1.bf16.msra.mxu0 %v4312
    %6030 = vmatprep.subr.bf16.mxu0 0
    %6031 = vmatpush1.bf16.msra.mxu0 0
    %6032 = vmatprep.subr.bf16.mxu0 0
    %6033 = vmatpush1.bf16.msra.mxu0 0
    %6034 = vmatprep.subr.bf16.mxu0 0
    %6035 = vmatpush1.bf16.msra.mxu0 0
    %6036 = vmatprep.subr.bf16.mxu0 0
    %6037 = vmatpush1.bf16.msra.mxu0 0
    %6038 = vmatprep.subr.bf16.mxu0 0
    %6039 = vmatpush1.bf16.msra.mxu0 0
    %6040 = vmatprep.subr.bf16.mxu0 0
    %6041 = vmatpush1.bf16.msra.mxu0 0
    %6042 = vmatprep.subr.bf16.mxu0 0
    %6043 = vmatpush1.bf16.msra.mxu0 0
    %6044 = vmatprep.subr.bf16.mxu0 0
    %6045 = vmatpush1.bf16.msra.mxu0 0
    %6046 = vmatprep.subr.bf16.mxu0 0
    %6047 = vmatpush1.bf16.msra.mxu0 0
    %6048 = vmatprep.subr.bf16.mxu0 0
    %6049 = vmatpush1.bf16.msra.mxu0 0
    %6050 = vmatprep.subr.bf16.mxu0 0
    %6051 = vmatpush1.bf16.msra.mxu0 0
    %6052 = vmatprep.subr.bf16.mxu0 0
    %6053 = vmatpush1.bf16.msra.mxu0 0
    %6054 = vmatprep.mubr.bf16.mxu0 0
    %6055 = vmatmul.mubr.bf16.gmra.mrb[0].mxu0 %v6011
    %v6056 = vpop.f32.mrb[0].mxu0
    %v6057 = vadd.f32 0.0, %v6056
    %v6058 = vpop.f32.mrb[0].mxu0
    %v6059 = vpop.f32.mrb[0].mxu0
    %v6060 = vadd.f32 0.0, %v6059
    %v6061 = vpop.f32.mrb[0].mxu0
    %6062 = vmatprep.mubr.bf16.mxu0 0
    %6063 = vmatmul.mubr.bf16.gmra.mrb[0].mxu0 %v6014
    %v6064 = vpop.f32.mrb[0].mxu0
    %v6065 = vadd.f32 0.0, %v6064
    %v6066 = vpop.f32.mrb[0].mxu0
    %v6067 = vpop.f32.mrb[0].mxu0
    %v6068 = vadd.f32 0.0, %v6067
    %v6069 = vpop.f32.mrb[0].mxu0
    %6070 = vmatprep.mubr.bf16.mxu0 0
    %6071 = vmatmul.mubr.bf16.gmra.mrb[0].mxu0 %v6017
    %v6072 = vpop.f32.mrb[0].mxu0
    %v6073 = vadd.f32 0.0, %v6072
    %v6074 = vpop.f32.mrb[0].mxu0
    %v6075 = vpop.f32.mrb[0].mxu0
    %v6076 = vadd.f32 0.0, %v6075
    %v6077 = vpop.f32.mrb[0].mxu0
    %6078 = vmatprep.mubr.bf16.mxu0 0
    %6079 = vmatmul.mubr.bf16.gmra.mrb[0].mxu0 %v6020
    %v6080 = vpop.f32.mrb[0].mxu0
    %v6081 = vadd.f32 0.0, %v6080
    %v6082 = vpop.f32.mrb[0].mxu0
    %v6083 = vpop.f32.mrb[0].mxu0
    %v6084 = vadd.f32 0.0, %v6083
    %v6085 = vpop.f32.mrb[0].mxu0
    %6086 = vdwg.mxu0
    %v6087 = vpack.c.bf16 %v6060, %v6057
    %v6088 = vpack.c.bf16 %v6068, %v6065
    %v6089 = vpack.c.bf16 %v6076, %v6073
    %v6090 = vpack.c.bf16 %v6084, %v6081
    %6095 = vrot.lane.b32.xlu0 %v4293, 96
    %v6096 = vpop.permute.xlu0 %6095
    %6097 = vrot.lane.b32.xlu0 %v4294, 96
    %v6098 = vpop.permute.xlu0 %6097
    %6099 = vrot.lane.b32.xlu0 %v4295, 96
    %v6100 = vpop.permute.xlu0 %6099
    %6101 = vrot.lane.b32.xlu0 %v4296, 96
    %v6102 = vpop.permute.xlu0 %6101
    %6107 = vrot.lane.b32.xlu0 %v4301, 96
    %v6108 = vpop.permute.xlu0 %6107
    %6109 = vrot.lane.b32.xlu0 %v4302, 96
    %v6110 = vpop.permute.xlu0 %6109
    %6111 = vrot.lane.b32.xlu0 %v4303, 96
    %v6112 = vpop.permute.xlu0 %6111
    %6113 = vrot.lane.b32.xlu0 %v4304, 96
    %v6114 = vpop.permute.xlu0 %6113
    %v6116 = vsel %vm646, %v6096, 0
    %v6119 = vsel %vm646, %v6098, 0
    %v6122 = vsel %vm646, %v6100, 0
    %v6125 = vsel %vm646, %v6102, 0
    %v6128 = vsel %vm646, %v6108, 0
    %v6131 = vsel %vm646, %v6110, 0
    %v6134 = vsel %vm646, %v6112, 0
    %v6137 = vsel %vm646, %v6114, 0
    %6139 = vmatprep.subr.bf16.mxu0 0
    %6140 = vmatpush1.bf16.xpose.msra.mxu0 %v6128
    %6141 = vmatprep.subr.bf16.mxu0 0
    %6142 = vmatpush1.bf16.xpose.msra.mxu0 %v6131
    %6143 = vmatprep.subr.bf16.mxu0 0
    %6144 = vmatpush1.bf16.xpose.msra.mxu0 %v6134
    %6145 = vmatprep.subr.bf16.mxu0 0
    %6146 = vmatpush1.bf16.xpose.msra.mxu0 %v6137
    %6147 = vmatprep.subr.bf16.mxu0 0
    %6148 = vmatpush1.bf16.xpose.msra.mxu0 0
    %6149 = vmatprep.subr.bf16.mxu0 0
    %6150 = vmatpush1.bf16.xpose.msra.mxu0 0
    %6151 = vmatprep.subr.bf16.mxu0 0
    %6152 = vmatpush1.bf16.xpose.msra.mxu0 0
    %6153 = vmatprep.subr.bf16.mxu0 0
    %6154 = vmatpush1.bf16.xpose.msra.mxu0 0
    %6155 = vmatprep.subr.bf16.mxu0 0
    %6156 = vmatpush1.bf16.xpose.msra.mxu0 0
    %6157 = vmatprep.subr.bf16.mxu0 0
    %6158 = vmatpush1.bf16.xpose.msra.mxu0 0
    %6159 = vmatprep.subr.bf16.mxu0 0
    %6160 = vmatpush1.bf16.xpose.msra.mxu0 0
    %6161 = vmatprep.subr.bf16.mxu0 0
    %6162 = vmatpush1.bf16.xpose.msra.mxu0 0
    %6163 = vmatprep.subr.bf16.mxu0 0
    %6164 = vmatpush1.bf16.xpose.msra.mxu0 0
    %6165 = vmatprep.subr.bf16.mxu0 0
    %6166 = vmatpush1.bf16.xpose.msra.mxu0 0
    %6167 = vmatprep.subr.bf16.mxu0 0
    %6168 = vmatpush1.bf16.xpose.msra.mxu0 0
    %6169 = vmatprep.subr.bf16.mxu0 0
    %6170 = vmatpush1.bf16.xpose.msra.mxu0 0
    %6171 = vmatprep.mubr.bf16.mxu0 0
    %6172 = vmatmul.mubr.bf16.gmra.mrb[0].mxu0 %v6116
    %v6173 = vpop.f32.mrb[0].mxu0
    %v6174 = vadd.f32 0.0, %v6173
    %v6175 = vpop.f32.mrb[0].mxu0
    %v6176 = vpop.f32.mrb[0].mxu0
    %v6177 = vadd.f32 0.0, %v6176
    %v6178 = vpop.f32.mrb[0].mxu0
    %6179 = vmatprep.mubr.bf16.mxu0 0
    %6180 = vmatmul.mubr.bf16.gmra.mrb[0].mxu0 %v6119
    %v6181 = vpop.f32.mrb[0].mxu0
    %v6182 = vadd.f32 0.0, %v6181
    %v6183 = vpop.f32.mrb[0].mxu0
    %v6184 = vpop.f32.mrb[0].mxu0
    %v6185 = vadd.f32 0.0, %v6184
    %v6186 = vpop.f32.mrb[0].mxu0
    %6187 = vmatprep.mubr.bf16.mxu0 0
    %6188 = vmatmul.mubr.bf16.gmra.mrb[0].mxu0 %v6122
    %v6189 = vpop.f32.mrb[0].mxu0
    %v6190 = vadd.f32 0.0, %v6189
    %v6191 = vpop.f32.mrb[0].mxu0
    %v6192 = vpop.f32.mrb[0].mxu0
    %v6193 = vadd.f32 0.0, %v6192
    %v6194 = vpop.f32.mrb[0].mxu0
    %6195 = vmatprep.mubr.bf16.mxu0 0
    %6196 = vmatmul.mubr.bf16.gmra.mrb[0].mxu0 %v6125
    %v6197 = vpop.f32.mrb[0].mxu0
    %v6198 = vadd.f32 0.0, %v6197
    %v6199 = vpop.f32.mrb[0].mxu0
    %v6200 = vpop.f32.mrb[0].mxu0
    %v6201 = vadd.f32 0.0, %v6200
    %v6202 = vpop.f32.mrb[0].mxu0
    %6203 = vdwg.mxu0
    %v6204 = vsel %vm736, %v6174, -inf
    %6205 = vmax.xlane.f32.xlu0 %v6204
    %v6206 = vpop.xlane.xlu0 %6205
    %v6207 = vsel %vm736, %v6177, -inf
    %6208 = vmax.xlane.f32.xlu0 %v6207
    %v6209 = vpop.xlane.xlu0 %6208
    %v6210 = vsel %vm736, %v6182, -inf
    %6211 = vmax.xlane.f32.xlu0 %v6210
    %v6212 = vpop.xlane.xlu0 %6211
    %v6213 = vsel %vm736, %v6185, -inf
    %6214 = vmax.xlane.f32.xlu0 %v6213
    %v6215 = vpop.xlane.xlu0 %6214
    %v6216 = vsel %vm736, %v6190, -inf
    %6217 = vmax.xlane.f32.xlu0 %v6216
    %v6218 = vpop.xlane.xlu0 %6217
    %v6219 = vsel %vm736, %v6193, -inf
    %6220 = vmax.xlane.f32.xlu0 %v6219
    %v6221 = vpop.xlane.xlu0 %6220
    %v6222 = vsel %vm736, %v6198, -inf
    %6223 = vmax.xlane.f32.xlu0 %v6222
    %v6224 = vpop.xlane.xlu0 %6223
    %v6225 = vsel %vm736, %v6201, -inf
    %6226 = vmax.xlane.f32.xlu0 %v6225
    %v6227 = vpop.xlane.xlu0 %6226
    %v6228 = vsub.f32 %v6174, %v6206
    %v6229 = vsub.f32 %v6177, %v6209
    %v6230 = vsub.f32 %v6182, %v6212
    %v6231 = vsub.f32 %v6185, %v6215
    %v6232 = vsub.f32 %v6190, %v6218
    %v6233 = vsub.f32 %v6193, %v6221
    %v6234 = vsub.f32 %v6198, %v6224
    %v6235 = vsub.f32 %v6201, %v6227
    %v6236 = vmul.f32 %v6228, 1.442695
    %v6237 = vpow.pop %v6236
    %v6238 = vmul.f32 %v6229, 1.442695
    %v6239 = vpow.pop %v6238
    %v6240 = vmul.f32 %v6230, 1.442695
    %v6241 = vpow.pop %v6240
    %v6242 = vmul.f32 %v6231, 1.442695
    %v6243 = vpow.pop %v6242
    %v6244 = vmul.f32 %v6232, 1.442695
    %v6245 = vpow.pop %v6244
    %v6246 = vmul.f32 %v6233, 1.442695
    %v6247 = vpow.pop %v6246
    %v6248 = vmul.f32 %v6234, 1.442695
    %v6249 = vpow.pop %v6248
    %v6250 = vmul.f32 %v6235, 1.442695
    %v6251 = vpow.pop %v6250
    %v6252 = vsel %vm736, %v6237, 0.0
    %6253 = vadd.xlane.f32.xlu0 %v6252
    %v6254 = vpop.xlane.xlu0 %6253
    %v6255 = vsel %vm736, %v6239, 0.0
    %6256 = vadd.xlane.f32.xlu0 %v6255
    %v6257 = vpop.xlane.xlu0 %6256
    %v6258 = vsel %vm736, %v6241, 0.0
    %6259 = vadd.xlane.f32.xlu0 %v6258
    %v6260 = vpop.xlane.xlu0 %6259
    %v6261 = vsel %vm736, %v6243, 0.0
    %6262 = vadd.xlane.f32.xlu0 %v6261
    %v6263 = vpop.xlane.xlu0 %6262
    %v6264 = vsel %vm736, %v6245, 0.0
    %6265 = vadd.xlane.f32.xlu0 %v6264
    %v6266 = vpop.xlane.xlu0 %6265
    %v6267 = vsel %vm736, %v6247, 0.0
    %6268 = vadd.xlane.f32.xlu0 %v6267
    %v6269 = vpop.xlane.xlu0 %6268
    %v6270 = vsel %vm736, %v6249, 0.0
    %6271 = vadd.xlane.f32.xlu0 %v6270
    %v6272 = vpop.xlane.xlu0 %6271
    %v6273 = vsel %vm736, %v6251, 0.0
    %6274 = vadd.xlane.f32.xlu0 %v6273
    %v6275 = vpop.xlane.xlu0 %6274
    %v6276 = vrcp.pop %v6254
    %v6277 = vrcp.pop %v6257
    %v6278 = vrcp.pop %v6260
    %v6279 = vrcp.pop %v6263
    %v6280 = vrcp.pop %v6266
    %v6281 = vrcp.pop %v6269
    %v6282 = vrcp.pop %v6272
    %v6283 = vrcp.pop %v6275
    %v6284 = vmul.f32 %v6237, %v6276
    %v6285 = vmul.f32 %v6239, %v6277
    %v6286 = vmul.f32 %v6241, %v6278
    %v6287 = vmul.f32 %v6243, %v6279
    %v6288 = vmul.f32 %v6245, %v6280
    %v6289 = vmul.f32 %v6247, %v6281
    %v6290 = vmul.f32 %v6249, %v6282
    %v6291 = vmul.f32 %v6251, %v6283
    %v6292 = vpack.c.bf16 %v6285, %v6284
    %v6293 = vpack.c.bf16 %v6287, %v6286
    %v6294 = vpack.c.bf16 %v6289, %v6288
    %v6295 = vpack.c.bf16 %v6291, %v6290
    %6300 = vrot.lane.b32.xlu0 %v4309, 96
    %v6301 = vpop.permute.xlu0 %6300
    %6302 = vrot.lane.b32.xlu0 %v4310, 96
    %v6303 = vpop.permute.xlu0 %6302
    %6304 = vrot.lane.b32.xlu0 %v4311, 96
    %v6305 = vpop.permute.xlu0 %6304
    %6306 = vrot.lane.b32.xlu0 %v4312, 96
    %v6307 = vpop.permute.xlu0 %6306
    %v6313 = vsel %vm736, %v6292, 0
    %v6316 = vsel %vm736, %v6293, 0
    %v6319 = vsel %vm736, %v6294, 0
    %v6322 = vsel %vm736, %v6295, 0
    %6324 = vmatprep.subr.bf16.mxu0 0
    %6325 = vmatpush1.bf16.msra.mxu0 %v6301
    %6326 = vmatprep.subr.bf16.mxu0 0
    %6327 = vmatpush1.bf16.msra.mxu0 %v6303
    %6328 = vmatprep.subr.bf16.mxu0 0
    %6329 = vmatpush1.bf16.msra.mxu0 %v6305
    %6330 = vmatprep.subr.bf16.mxu0 0
    %6331 = vmatpush1.bf16.msra.mxu0 %v6307
    %6332 = vmatprep.subr.bf16.mxu0 0
    %6333 = vmatpush1.bf16.msra.mxu0 0
    %6334 = vmatprep.subr.bf16.mxu0 0
    %6335 = vmatpush1.bf16.msra.mxu0 0
    %6336 = vmatprep.subr.bf16.mxu0 0
    %6337 = vmatpush1.bf16.msra.mxu0 0
    %6338 = vmatprep.subr.bf16.mxu0 0
    %6339 = vmatpush1.bf16.msra.mxu0 0
    %6340 = vmatprep.subr.bf16.mxu0 0
    %6341 = vmatpush1.bf16.msra.mxu0 0
    %6342 = vmatprep.subr.bf16.mxu0 0
    %6343 = vmatpush1.bf16.msra.mxu0 0
    %6344 = vmatprep.subr.bf16.mxu0 0
    %6345 = vmatpush1.bf16.msra.mxu0 0
    %6346 = vmatprep.subr.bf16.mxu0 0
    %6347 = vmatpush1.bf16.msra.mxu0 0
    %6348 = vmatprep.subr.bf16.mxu0 0
    %6349 = vmatpush1.bf16.msra.mxu0 0
    %6350 = vmatprep.subr.bf16.mxu0 0
    %6351 = vmatpush1.bf16.msra.mxu0 0
    %6352 = vmatprep.subr.bf16.mxu0 0
    %6353 = vmatpush1.bf16.msra.mxu0 0
    %6354 = vmatprep.subr.bf16.mxu0 0
    %6355 = vmatpush1.bf16.msra.mxu0 0
    %6356 = vmatprep.mubr.bf16.mxu0 0
    %6357 = vmatmul.mubr.bf16.gmra.mrb[0].mxu0 %v6313
    %v6358 = vpop.f32.mrb[0].mxu0
    %v6359 = vadd.f32 0.0, %v6358
    %v6360 = vpop.f32.mrb[0].mxu0
    %v6361 = vpop.f32.mrb[0].mxu0
    %v6362 = vadd.f32 0.0, %v6361
    %v6363 = vpop.f32.mrb[0].mxu0
    %6364 = vmatprep.mubr.bf16.mxu0 0
    %6365 = vmatmul.mubr.bf16.gmra.mrb[0].mxu0 %v6316
    %v6366 = vpop.f32.mrb[0].mxu0
    %v6367 = vadd.f32 0.0, %v6366
    %v6368 = vpop.f32.mrb[0].mxu0
    %v6369 = vpop.f32.mrb[0].mxu0
    %v6370 = vadd.f32 0.0, %v6369
    %v6371 = vpop.f32.mrb[0].mxu0
    %6372 = vmatprep.mubr.bf16.mxu0 0
    %6373 = vmatmul.mubr.bf16.gmra.mrb[0].mxu0 %v6319
    %v6374 = vpop.f32.mrb[0].mxu0
    %v6375 = vadd.f32 0.0, %v6374
    %v6376 = vpop.f32.mrb[0].mxu0
    %v6377 = vpop.f32.mrb[0].mxu0
    %v6378 = vadd.f32 0.0, %v6377
    %v6379 = vpop.f32.mrb[0].mxu0
    %6380 = vmatprep.mubr.bf16.mxu0 0
    %6381 = vmatmul.mubr.bf16.gmra.mrb[0].mxu0 %v6322
    %v6382 = vpop.f32.mrb[0].mxu0
    %v6383 = vadd.f32 0.0, %v6382
    %v6384 = vpop.f32.mrb[0].mxu0
    %v6385 = vpop.f32.mrb[0].mxu0
    %v6386 = vadd.f32 0.0, %v6385
    %v6387 = vpop.f32.mrb[0].mxu0
    %6388 = vdwg.mxu0
    %v6389 = vpack.c.bf16 %v6362, %v6359
    %v6390 = vpack.c.bf16 %v6370, %v6367
    %v6391 = vpack.c.bf16 %v6378, %v6375
    %v6392 = vpack.c.bf16 %v6386, %v6383
    %v6394 = vsel %vm646, %v6389, 0
    %v6397 = vsel %vm646, %v6390, 0
    %v6400 = vsel %vm646, %v6391, 0
    %v6403 = vsel %vm646, %v6392, 0
    %6405 = vmatprep.subr.bf16.mxu0 0
    %6406 = vmatpush1.bf16.msra.mxu0 %v4885
    %6407 = vmatprep.subr.bf16.mxu0 0
    %6408 = vmatpush1.bf16.msra.mxu0 %v4886
    %6409 = vmatprep.subr.bf16.mxu0 0
    %6410 = vmatpush1.bf16.msra.mxu0 0
    %6411 = vmatprep.subr.bf16.mxu0 0
    %6412 = vmatpush1.bf16.msra.mxu0 0
    %6413 = vmatprep.subr.bf16.mxu0 0
    %6414 = vmatpush1.bf16.msra.mxu0 0
    %6415 = vmatprep.subr.bf16.mxu0 0
    %6416 = vmatpush1.bf16.msra.mxu0 0
    %6417 = vmatprep.subr.bf16.mxu0 0
    %6418 = vmatpush1.bf16.msra.mxu0 0
    %6419 = vmatprep.subr.bf16.mxu0 0
    %6420 = vmatpush1.bf16.msra.mxu0 0
    %6421 = vmatprep.subr.bf16.mxu0 0
    %6422 = vmatpush1.bf16.msra.mxu0 0
    %6423 = vmatprep.subr.bf16.mxu0 0
    %6424 = vmatpush1.bf16.msra.mxu0 0
    %6425 = vmatprep.subr.bf16.mxu0 0
    %6426 = vmatpush1.bf16.msra.mxu0 0
    %6427 = vmatprep.subr.bf16.mxu0 0
    %6428 = vmatpush1.bf16.msra.mxu0 0
    %6429 = vmatprep.subr.bf16.mxu0 0
    %6430 = vmatpush1.bf16.msra.mxu0 0
    %6431 = vmatprep.subr.bf16.mxu0 0
    %6432 = vmatpush1.bf16.msra.mxu0 0
    %6433 = vmatprep.subr.bf16.mxu0 0
    %6434 = vmatpush1.bf16.msra.mxu0 0
    %6435 = vmatprep.subr.bf16.mxu0 0
    %6436 = vmatpush1.bf16.msra.mxu0 0
    %6437 = vmatprep.mubr.bf16.mxu0 0
    %6438 = vmatmul.mubr.bf16.gmra.mrb[0].mxu0 %v6394
    %v6439 = vpop.f32.mrb[0].mxu0
    %v6440 = vadd.f32 0.0, %v6439
    %v6441 = vpop.f32.mrb[0].mxu0
    %v6442 = vpop.f32.mrb[0].mxu0
    %v6443 = vadd.f32 0.0, %v6442
    %v6444 = vpop.f32.mrb[0].mxu0
    %6445 = vmatprep.mubr.bf16.mxu0 0
    %6446 = vmatmul.mubr.bf16.gmra.mrb[0].mxu0 %v6397
    %v6447 = vpop.f32.mrb[0].mxu0
    %v6448 = vadd.f32 0.0, %v6447
    %v6449 = vpop.f32.mrb[0].mxu0
    %v6450 = vpop.f32.mrb[0].mxu0
    %v6451 = vadd.f32 0.0, %v6450
    %v6452 = vpop.f32.mrb[0].mxu0
    %6453 = vmatprep.mubr.bf16.mxu0 0
    %6454 = vmatmul.mubr.bf16.gmra.mrb[0].mxu0 %v6400
    %v6455 = vpop.f32.mrb[0].mxu0
    %v6456 = vadd.f32 0.0, %v6455
    %v6457 = vpop.f32.mrb[0].mxu0
    %v6458 = vpop.f32.mrb[0].mxu0
    %v6459 = vadd.f32 0.0, %v6458
    %v6460 = vpop.f32.mrb[0].mxu0
    %6461 = vmatprep.mubr.bf16.mxu0 0
    %6462 = vmatmul.mubr.bf16.gmra.mrb[0].mxu0 %v6403
    %v6463 = vpop.f32.mrb[0].mxu0
    %v6464 = vadd.f32 0.0, %v6463
    %v6465 = vpop.f32.mrb[0].mxu0
    %v6466 = vpop.f32.mrb[0].mxu0
    %v6467 = vadd.f32 0.0, %v6466
    %v6468 = vpop.f32.mrb[0].mxu0
    %6469 = vdwg.mxu0
    %v6471 = vsel %vm646, %v6087, 0
    %v6474 = vsel %vm646, %v6088, 0
    %v6477 = vsel %vm646, %v6089, 0
    %v6480 = vsel %vm646, %v6090, 0
    %6482 = vmatprep.subr.bf16.mxu0 0
    %6483 = vmatpush1.bf16.msra.mxu0 %v4974
    %6484 = vmatprep.subr.bf16.mxu0 0
    %6485 = vmatpush1.bf16.msra.mxu0 %v4975
    %6486 = vmatprep.subr.bf16.mxu0 0
    %6487 = vmatpush1.bf16.msra.mxu0 0
    %6488 = vmatprep.subr.bf16.mxu0 0
    %6489 = vmatpush1.bf16.msra.mxu0 0
    %6490 = vmatprep.subr.bf16.mxu0 0
    %6491 = vmatpush1.bf16.msra.mxu0 0
    %6492 = vmatprep.subr.bf16.mxu0 0
    %6493 = vmatpush1.bf16.msra.mxu0 0
    %6494 = vmatprep.subr.bf16.mxu0 0
    %6495 = vmatpush1.bf16.msra.mxu0 0
    %6496 = vmatprep.subr.bf16.mxu0 0
    %6497 = vmatpush1.bf16.msra.mxu0 0
    %6498 = vmatprep.subr.bf16.mxu0 0
    %6499 = vmatpush1.bf16.msra.mxu0 0
    %6500 = vmatprep.subr.bf16.mxu0 0
    %6501 = vmatpush1.bf16.msra.mxu0 0
    %6502 = vmatprep.subr.bf16.mxu0 0
    %6503 = vmatpush1.bf16.msra.mxu0 0
    %6504 = vmatprep.subr.bf16.mxu0 0
    %6505 = vmatpush1.bf16.msra.mxu0 0
    %6506 = vmatprep.subr.bf16.mxu0 0
    %6507 = vmatpush1.bf16.msra.mxu0 0
    %6508 = vmatprep.subr.bf16.mxu0 0
    %6509 = vmatpush1.bf16.msra.mxu0 0
    %6510 = vmatprep.subr.bf16.mxu0 0
    %6511 = vmatpush1.bf16.msra.mxu0 0
    %6512 = vmatprep.subr.bf16.mxu0 0
    %6513 = vmatpush1.bf16.msra.mxu0 0
    %6514 = vmatprep.mubr.bf16.mxu0 0
    %6515 = vmatmul.mubr.bf16.gmra.mrb[0].mxu0 %v6471
    %v6516 = vpop.f32.mrb[0].mxu0
    %v6517 = vadd.f32 %v6440, %v6516
    %v6518 = vpop.f32.mrb[0].mxu0
    %v6519 = vpop.f32.mrb[0].mxu0
    %v6520 = vadd.f32 %v6443, %v6519
    %v6521 = vpop.f32.mrb[0].mxu0
    %6522 = vmatprep.mubr.bf16.mxu0 0
    %6523 = vmatmul.mubr.bf16.gmra.mrb[0].mxu0 %v6474
    %v6524 = vpop.f32.mrb[0].mxu0
    %v6525 = vadd.f32 %v6448, %v6524
    %v6526 = vpop.f32.mrb[0].mxu0
    %v6527 = vpop.f32.mrb[0].mxu0
    %v6528 = vadd.f32 %v6451, %v6527
    %v6529 = vpop.f32.mrb[0].mxu0
    %6530 = vmatprep.mubr.bf16.mxu0 0
    %6531 = vmatmul.mubr.bf16.gmra.mrb[0].mxu0 %v6477
    %v6532 = vpop.f32.mrb[0].mxu0
    %v6533 = vadd.f32 %v6456, %v6532
    %v6534 = vpop.f32.mrb[0].mxu0
    %v6535 = vpop.f32.mrb[0].mxu0
    %v6536 = vadd.f32 %v6459, %v6535
    %v6537 = vpop.f32.mrb[0].mxu0
    %6538 = vmatprep.mubr.bf16.mxu0 0
    %6539 = vmatmul.mubr.bf16.gmra.mrb[0].mxu0 %v6480
    %v6540 = vpop.f32.mrb[0].mxu0
    %v6541 = vadd.f32 %v6464, %v6540
    %v6542 = vpop.f32.mrb[0].mxu0
    %v6543 = vpop.f32.mrb[0].mxu0
    %v6544 = vadd.f32 %v6467, %v6543
    %v6545 = vpop.f32.mrb[0].mxu0
    %6546 = vdwg.mxu0
    %6547 = vrot.lane.b32.xlu0 %v4293, 64
    %v6548 = vpop.permute.xlu0 %6547
    %6549 = vrot.lane.b32.xlu0 %v4294, 64
    %v6550 = vpop.permute.xlu0 %6549
    %6551 = vrot.lane.b32.xlu0 %v4295, 64
    %v6552 = vpop.permute.xlu0 %6551
    %6553 = vrot.lane.b32.xlu0 %v4296, 64
    %v6554 = vpop.permute.xlu0 %6553
    %6555 = vrot.lane.b32.xlu0 %v4301, 64
    %v6556 = vpop.permute.xlu0 %6555
    %6557 = vrot.lane.b32.xlu0 %v4302, 64
    %v6558 = vpop.permute.xlu0 %6557
    %6559 = vrot.lane.b32.xlu0 %v4303, 64
    %v6560 = vpop.permute.xlu0 %6559
    %6561 = vrot.lane.b32.xlu0 %v4304, 64
    %v6562 = vpop.permute.xlu0 %6561
    %v6564 = vsel %vm646, %v6548, 0
    %v6567 = vsel %vm646, %v6550, 0
    %v6570 = vsel %vm646, %v6552, 0
    %v6573 = vsel %vm646, %v6554, 0
    %v6576 = vsel %vm646, %v6556, 0
    %v6579 = vsel %vm646, %v6558, 0
    %v6582 = vsel %vm646, %v6560, 0
    %v6585 = vsel %vm646, %v6562, 0
    %6587 = vmatprep.subr.bf16.mxu0 0
    %6588 = vmatpush1.bf16.xpose.msra.mxu0 %v6576
    %6589 = vmatprep.subr.bf16.mxu0 0
    %6590 = vmatpush1.bf16.xpose.msra.mxu0 %v6579
    %6591 = vmatprep.subr.bf16.mxu0 0
    %6592 = vmatpush1.bf16.xpose.msra.mxu0 %v6582
    %6593 = vmatprep.subr.bf16.mxu0 0
    %6594 = vmatpush1.bf16.xpose.msra.mxu0 %v6585
    %6595 = vmatprep.subr.bf16.mxu0 0
    %6596 = vmatpush1.bf16.xpose.msra.mxu0 0
    %6597 = vmatprep.subr.bf16.mxu0 0
    %6598 = vmatpush1.bf16.xpose.msra.mxu0 0
    %6599 = vmatprep.subr.bf16.mxu0 0
    %6600 = vmatpush1.bf16.xpose.msra.mxu0 0
    %6601 = vmatprep.subr.bf16.mxu0 0
    %6602 = vmatpush1.bf16.xpose.msra.mxu0 0
    %6603 = vmatprep.subr.bf16.mxu0 0
    %6604 = vmatpush1.bf16.xpose.msra.mxu0 0
    %6605 = vmatprep.subr.bf16.mxu0 0
    %6606 = vmatpush1.bf16.xpose.msra.mxu0 0
    %6607 = vmatprep.subr.bf16.mxu0 0
    %6608 = vmatpush1.bf16.xpose.msra.mxu0 0
    %6609 = vmatprep.subr.bf16.mxu0 0
    %6610 = vmatpush1.bf16.xpose.msra.mxu0 0
    %6611 = vmatprep.subr.bf16.mxu0 0
    %6612 = vmatpush1.bf16.xpose.msra.mxu0 0
    %6613 = vmatprep.subr.bf16.mxu0 0
    %6614 = vmatpush1.bf16.xpose.msra.mxu0 0
    %6615 = vmatprep.subr.bf16.mxu0 0
    %6616 = vmatpush1.bf16.xpose.msra.mxu0 0
    %6617 = vmatprep.subr.bf16.mxu0 0
    %6618 = vmatpush1.bf16.xpose.msra.mxu0 0
    %6619 = vmatprep.mubr.bf16.mxu0 0
    %6620 = vmatmul.mubr.bf16.gmra.mrb[0].mxu0 %v6564
    %v6621 = vpop.f32.mrb[0].mxu0
    %v6622 = vadd.f32 0.0, %v6621
    %v6623 = vpop.f32.mrb[0].mxu0
    %v6624 = vpop.f32.mrb[0].mxu0
    %v6625 = vadd.f32 0.0, %v6624
    %v6626 = vpop.f32.mrb[0].mxu0
    %6627 = vmatprep.mubr.bf16.mxu0 0
    %6628 = vmatmul.mubr.bf16.gmra.mrb[0].mxu0 %v6567
    %v6629 = vpop.f32.mrb[0].mxu0
    %v6630 = vadd.f32 0.0, %v6629
    %v6631 = vpop.f32.mrb[0].mxu0
    %v6632 = vpop.f32.mrb[0].mxu0
    %v6633 = vadd.f32 0.0, %v6632
    %v6634 = vpop.f32.mrb[0].mxu0
    %6635 = vmatprep.mubr.bf16.mxu0 0
    %6636 = vmatmul.mubr.bf16.gmra.mrb[0].mxu0 %v6570
    %v6637 = vpop.f32.mrb[0].mxu0
    %v6638 = vadd.f32 0.0, %v6637
    %v6639 = vpop.f32.mrb[0].mxu0
    %v6640 = vpop.f32.mrb[0].mxu0
    %v6641 = vadd.f32 0.0, %v6640
    %v6642 = vpop.f32.mrb[0].mxu0
    %6643 = vmatprep.mubr.bf16.mxu0 0
    %6644 = vmatmul.mubr.bf16.gmra.mrb[0].mxu0 %v6573
    %v6645 = vpop.f32.mrb[0].mxu0
    %v6646 = vadd.f32 0.0, %v6645
    %v6647 = vpop.f32.mrb[0].mxu0
    %v6648 = vpop.f32.mrb[0].mxu0
    %v6649 = vadd.f32 0.0, %v6648
    %v6650 = vpop.f32.mrb[0].mxu0
    %6651 = vdwg.mxu0
    %v6652 = vsel %vm736, %v6622, -inf
    %6653 = vmax.xlane.f32.xlu0 %v6652
    %v6654 = vpop.xlane.xlu0 %6653
    %v6655 = vsel %vm736, %v6625, -inf
    %6656 = vmax.xlane.f32.xlu0 %v6655
    %v6657 = vpop.xlane.xlu0 %6656
    %v6658 = vsel %vm736, %v6630, -inf
    %6659 = vmax.xlane.f32.xlu0 %v6658
    %v6660 = vpop.xlane.xlu0 %6659
    %v6661 = vsel %vm736, %v6633, -inf
    %6662 = vmax.xlane.f32.xlu0 %v6661
    %v6663 = vpop.xlane.xlu0 %6662
    %v6664 = vsel %vm736, %v6638, -inf
    %6665 = vmax.xlane.f32.xlu0 %v6664
    %v6666 = vpop.xlane.xlu0 %6665
    %v6667 = vsel %vm736, %v6641, -inf
    %6668 = vmax.xlane.f32.xlu0 %v6667
    %v6669 = vpop.xlane.xlu0 %6668
    %v6670 = vsel %vm736, %v6646, -inf
    %6671 = vmax.xlane.f32.xlu0 %v6670
    %v6672 = vpop.xlane.xlu0 %6671
    %v6673 = vsel %vm736, %v6649, -inf
    %6674 = vmax.xlane.f32.xlu0 %v6673
    %v6675 = vpop.xlane.xlu0 %6674
    %v6676 = vsub.f32 %v6622, %v6654
    %v6677 = vsub.f32 %v6625, %v6657
    %v6678 = vsub.f32 %v6630, %v6660
    %v6679 = vsub.f32 %v6633, %v6663
    %v6680 = vsub.f32 %v6638, %v6666
    %v6681 = vsub.f32 %v6641, %v6669
    %v6682 = vsub.f32 %v6646, %v6672
    %v6683 = vsub.f32 %v6649, %v6675
    %v6684 = vmul.f32 %v6676, 1.442695
    %v6685 = vpow.pop %v6684
    %v6686 = vmul.f32 %v6677, 1.442695
    %v6687 = vpow.pop %v6686
    %v6688 = vmul.f32 %v6678, 1.442695
    %v6689 = vpow.pop %v6688
    %v6690 = vmul.f32 %v6679, 1.442695
    %v6691 = vpow.pop %v6690
    %v6692 = vmul.f32 %v6680, 1.442695
    %v6693 = vpow.pop %v6692
    %v6694 = vmul.f32 %v6681, 1.442695
    %v6695 = vpow.pop %v6694
    %v6696 = vmul.f32 %v6682, 1.442695
    %v6697 = vpow.pop %v6696
    %v6698 = vmul.f32 %v6683, 1.442695
    %v6699 = vpow.pop %v6698
    %v6700 = vsel %vm736, %v6685, 0.0
    %6701 = vadd.xlane.f32.xlu0 %v6700
    %v6702 = vpop.xlane.xlu0 %6701
    %v6703 = vsel %vm736, %v6687, 0.0
    %6704 = vadd.xlane.f32.xlu0 %v6703
    %v6705 = vpop.xlane.xlu0 %6704
    %v6706 = vsel %vm736, %v6689, 0.0
    %6707 = vadd.xlane.f32.xlu0 %v6706
    %v6708 = vpop.xlane.xlu0 %6707
    %v6709 = vsel %vm736, %v6691, 0.0
    %6710 = vadd.xlane.f32.xlu0 %v6709
    %v6711 = vpop.xlane.xlu0 %6710
    %v6712 = vsel %vm736, %v6693, 0.0
    %6713 = vadd.xlane.f32.xlu0 %v6712
    %v6714 = vpop.xlane.xlu0 %6713
    %v6715 = vsel %vm736, %v6695, 0.0
    %6716 = vadd.xlane.f32.xlu0 %v6715
    %v6717 = vpop.xlane.xlu0 %6716
    %v6718 = vsel %vm736, %v6697, 0.0
    %6719 = vadd.xlane.f32.xlu0 %v6718
    %v6720 = vpop.xlane.xlu0 %6719
    %v6721 = vsel %vm736, %v6699, 0.0
    %6722 = vadd.xlane.f32.xlu0 %v6721
    %v6723 = vpop.xlane.xlu0 %6722
    %v6724 = vrcp.pop %v6702
    %v6725 = vrcp.pop %v6705
    %v6726 = vrcp.pop %v6708
    %v6727 = vrcp.pop %v6711
    %v6728 = vrcp.pop %v6714
    %v6729 = vrcp.pop %v6717
    %v6730 = vrcp.pop %v6720
    %v6731 = vrcp.pop %v6723
    %v6732 = vmul.f32 %v6685, %v6724
    %v6733 = vmul.f32 %v6687, %v6725
    %v6734 = vmul.f32 %v6689, %v6726
    %v6735 = vmul.f32 %v6691, %v6727
    %v6736 = vmul.f32 %v6693, %v6728
    %v6737 = vmul.f32 %v6695, %v6729
    %v6738 = vmul.f32 %v6697, %v6730
    %v6739 = vmul.f32 %v6699, %v6731
    %v6740 = vpack.c.bf16 %v6733, %v6732
    %v6741 = vpack.c.bf16 %v6735, %v6734
    %v6742 = vpack.c.bf16 %v6737, %v6736
    %v6743 = vpack.c.bf16 %v6739, %v6738
    %6744 = vrot.lane.b32.xlu0 %v4309, 64
    %v6745 = vpop.permute.xlu0 %6744
    %6746 = vrot.lane.b32.xlu0 %v4310, 64
    %v6747 = vpop.permute.xlu0 %6746
    %6748 = vrot.lane.b32.xlu0 %v4311, 64
    %v6749 = vpop.permute.xlu0 %6748
    %6750 = vrot.lane.b32.xlu0 %v4312, 64
    %v6751 = vpop.permute.xlu0 %6750
    %v6757 = vsel %vm736, %v6740, 0
    %v6760 = vsel %vm736, %v6741, 0
    %v6763 = vsel %vm736, %v6742, 0
    %v6766 = vsel %vm736, %v6743, 0
    %6768 = vmatprep.subr.bf16.mxu0 0
    %6769 = vmatpush1.bf16.msra.mxu0 %v6745
    %6770 = vmatprep.subr.bf16.mxu0 0
    %6771 = vmatpush1.bf16.msra.mxu0 %v6747
    %6772 = vmatprep.subr.bf16.mxu0 0
    %6773 = vmatpush1.bf16.msra.mxu0 %v6749
    %6774 = vmatprep.subr.bf16.mxu0 0
    %6775 = vmatpush1.bf16.msra.mxu0 %v6751
    %6776 = vmatprep.subr.bf16.mxu0 0
    %6777 = vmatpush1.bf16.msra.mxu0 0
    %6778 = vmatprep.subr.bf16.mxu0 0
    %6779 = vmatpush1.bf16.msra.mxu0 0
    %6780 = vmatprep.subr.bf16.mxu0 0
    %6781 = vmatpush1.bf16.msra.mxu0 0
    %6782 = vmatprep.subr.bf16.mxu0 0
    %6783 = vmatpush1.bf16.msra.mxu0 0
    %6784 = vmatprep.subr.bf16.mxu0 0
    %6785 = vmatpush1.bf16.msra.mxu0 0
    %6786 = vmatprep.subr.bf16.mxu0 0
    %6787 = vmatpush1.bf16.msra.mxu0 0
    %6788 = vmatprep.subr.bf16.mxu0 0
    %6789 = vmatpush1.bf16.msra.mxu0 0
    %6790 = vmatprep.subr.bf16.mxu0 0
    %6791 = vmatpush1.bf16.msra.mxu0 0
    %6792 = vmatprep.subr.bf16.mxu0 0
    %6793 = vmatpush1.bf16.msra.mxu0 0
    %6794 = vmatprep.subr.bf16.mxu0 0
    %6795 = vmatpush1.bf16.msra.mxu0 0
    %6796 = vmatprep.subr.bf16.mxu0 0
    %6797 = vmatpush1.bf16.msra.mxu0 0
    %6798 = vmatprep.subr.bf16.mxu0 0
    %6799 = vmatpush1.bf16.msra.mxu0 0
    %6800 = vmatprep.mubr.bf16.mxu0 0
    %6801 = vmatmul.mubr.bf16.gmra.mrb[0].mxu0 %v6757
    %v6802 = vpop.f32.mrb[0].mxu0
    %v6803 = vadd.f32 0.0, %v6802
    %v6804 = vpop.f32.mrb[0].mxu0
    %v6805 = vpop.f32.mrb[0].mxu0
    %v6806 = vadd.f32 0.0, %v6805
    %v6807 = vpop.f32.mrb[0].mxu0
    %6808 = vmatprep.mubr.bf16.mxu0 0
    %6809 = vmatmul.mubr.bf16.gmra.mrb[0].mxu0 %v6760
    %v6810 = vpop.f32.mrb[0].mxu0
    %v6811 = vadd.f32 0.0, %v6810
    %v6812 = vpop.f32.mrb[0].mxu0
    %v6813 = vpop.f32.mrb[0].mxu0
    %v6814 = vadd.f32 0.0, %v6813
    %v6815 = vpop.f32.mrb[0].mxu0
    %6816 = vmatprep.mubr.bf16.mxu0 0
    %6817 = vmatmul.mubr.bf16.gmra.mrb[0].mxu0 %v6763
    %v6818 = vpop.f32.mrb[0].mxu0
    %v6819 = vadd.f32 0.0, %v6818
    %v6820 = vpop.f32.mrb[0].mxu0
    %v6821 = vpop.f32.mrb[0].mxu0
    %v6822 = vadd.f32 0.0, %v6821
    %v6823 = vpop.f32.mrb[0].mxu0
    %6824 = vmatprep.mubr.bf16.mxu0 0
    %6825 = vmatmul.mubr.bf16.gmra.mrb[0].mxu0 %v6766
    %v6826 = vpop.f32.mrb[0].mxu0
    %v6827 = vadd.f32 0.0, %v6826
    %v6828 = vpop.f32.mrb[0].mxu0
    %v6829 = vpop.f32.mrb[0].mxu0
    %v6830 = vadd.f32 0.0, %v6829
    %v6831 = vpop.f32.mrb[0].mxu0
    %6832 = vdwg.mxu0
    %v6833 = vpack.c.bf16 %v6806, %v6803
    %v6834 = vpack.c.bf16 %v6814, %v6811
    %v6835 = vpack.c.bf16 %v6822, %v6819
    %v6836 = vpack.c.bf16 %v6830, %v6827
    %v6838 = vsel %vm646, %v6833, 0
    %v6841 = vsel %vm646, %v6834, 0
    %v6844 = vsel %vm646, %v6835, 0
    %v6847 = vsel %vm646, %v6836, 0
    %6849 = vmatprep.subr.bf16.mxu0 0
    %6850 = vmatpush1.bf16.msra.mxu0 %v5353
    %6851 = vmatprep.subr.bf16.mxu0 0
    %6852 = vmatpush1.bf16.msra.mxu0 %v5354
    %6853 = vmatprep.subr.bf16.mxu0 0
    %6854 = vmatpush1.bf16.msra.mxu0 0
    %6855 = vmatprep.subr.bf16.mxu0 0
    %6856 = vmatpush1.bf16.msra.mxu0 0
    %6857 = vmatprep.subr.bf16.mxu0 0
    %6858 = vmatpush1.bf16.msra.mxu0 0
    %6859 = vmatprep.subr.bf16.mxu0 0
    %6860 = vmatpush1.bf16.msra.mxu0 0
    %6861 = vmatprep.subr.bf16.mxu0 0
    %6862 = vmatpush1.bf16.msra.mxu0 0
    %6863 = vmatprep.subr.bf16.mxu0 0
    %6864 = vmatpush1.bf16.msra.mxu0 0
    %6865 = vmatprep.subr.bf16.mxu0 0
    %6866 = vmatpush1.bf16.msra.mxu0 0
    %6867 = vmatprep.subr.bf16.mxu0 0
    %6868 = vmatpush1.bf16.msra.mxu0 0
    %6869 = vmatprep.subr.bf16.mxu0 0
    %6870 = vmatpush1.bf16.msra.mxu0 0
    %6871 = vmatprep.subr.bf16.mxu0 0
    %6872 = vmatpush1.bf16.msra.mxu0 0
    %6873 = vmatprep.subr.bf16.mxu0 0
    %6874 = vmatpush1.bf16.msra.mxu0 0
    %6875 = vmatprep.subr.bf16.mxu0 0
    %6876 = vmatpush1.bf16.msra.mxu0 0
    %6877 = vmatprep.subr.bf16.mxu0 0
    %6878 = vmatpush1.bf16.msra.mxu0 0
    %6879 = vmatprep.subr.bf16.mxu0 0
    %6880 = vmatpush1.bf16.msra.mxu0 0
    %6881 = vmatprep.mubr.bf16.mxu0 0
    %6882 = vmatmul.mubr.bf16.gmra.mrb[0].mxu0 %v6838
    %v6883 = vpop.f32.mrb[0].mxu0
    %v6884 = vadd.f32 0.0, %v6883
    %v6885 = vpop.f32.mrb[0].mxu0
    %v6886 = vpop.f32.mrb[0].mxu0
    %v6887 = vadd.f32 0.0, %v6886
    %v6888 = vpop.f32.mrb[0].mxu0
    %6889 = vmatprep.mubr.bf16.mxu0 0
    %6890 = vmatmul.mubr.bf16.gmra.mrb[0].mxu0 %v6841
    %v6891 = vpop.f32.mrb[0].mxu0
    %v6892 = vadd.f32 0.0, %v6891
    %v6893 = vpop.f32.mrb[0].mxu0
    %v6894 = vpop.f32.mrb[0].mxu0
    %v6895 = vadd.f32 0.0, %v6894
    %v6896 = vpop.f32.mrb[0].mxu0
    %6897 = vmatprep.mubr.bf16.mxu0 0
    %6898 = vmatmul.mubr.bf16.gmra.mrb[0].mxu0 %v6844
    %v6899 = vpop.f32.mrb[0].mxu0
    %v6900 = vadd.f32 0.0, %v6899
    %v6901 = vpop.f32.mrb[0].mxu0
    %v6902 = vpop.f32.mrb[0].mxu0
    %v6903 = vadd.f32 0.0, %v6902
    %v6904 = vpop.f32.mrb[0].mxu0
    %6905 = vmatprep.mubr.bf16.mxu0 0
    %6906 = vmatmul.mubr.bf16.gmra.mrb[0].mxu0 %v6847
    %v6907 = vpop.f32.mrb[0].mxu0
    %v6908 = vadd.f32 0.0, %v6907
    %v6909 = vpop.f32.mrb[0].mxu0
    %v6910 = vpop.f32.mrb[0].mxu0
    %v6911 = vadd.f32 0.0, %v6910
    %v6912 = vpop.f32.mrb[0].mxu0
    %6913 = vdwg.mxu0
    %v6914 = vadd.f32 %v6517, %v6884
    %v6915 = vadd.f32 %v6520, %v6887
    %v6916 = vadd.f32 %v6525, %v6892
    %v6917 = vadd.f32 %v6528, %v6895
    %v6918 = vadd.f32 %v6533, %v6900
    %v6919 = vadd.f32 %v6536, %v6903
    %v6920 = vadd.f32 %v6541, %v6908
    %v6921 = vadd.f32 %v6544, %v6911
    %6922 = vrot.lane.b32.xlu0 %v4293, 32
    %v6923 = vpop.permute.xlu0 %6922
    %6924 = vrot.lane.b32.xlu0 %v4294, 32
    %v6925 = vpop.permute.xlu0 %6924
    %6926 = vrot.lane.b32.xlu0 %v4295, 32
    %v6927 = vpop.permute.xlu0 %6926
    %6928 = vrot.lane.b32.xlu0 %v4296, 32
    %v6929 = vpop.permute.xlu0 %6928
    %6930 = vrot.lane.b32.xlu0 %v4301, 32
    %v6931 = vpop.permute.xlu0 %6930
    %6932 = vrot.lane.b32.xlu0 %v4302, 32
    %v6933 = vpop.permute.xlu0 %6932
    %6934 = vrot.lane.b32.xlu0 %v4303, 32
    %v6935 = vpop.permute.xlu0 %6934
    %6936 = vrot.lane.b32.xlu0 %v4304, 32
    %v6937 = vpop.permute.xlu0 %6936
    %v6939 = vsel %vm646, %v6923, 0
    %v6942 = vsel %vm646, %v6925, 0
    %v6945 = vsel %vm646, %v6927, 0
    %v6948 = vsel %vm646, %v6929, 0
    %v6951 = vsel %vm646, %v6931, 0
    %v6954 = vsel %vm646, %v6933, 0
    %v6957 = vsel %vm646, %v6935, 0
    %v6960 = vsel %vm646, %v6937, 0
    %6962 = vmatprep.subr.bf16.mxu0 0
    %6963 = vmatpush1.bf16.xpose.msra.mxu0 %v6951
    %6964 = vmatprep.subr.bf16.mxu0 0
    %6965 = vmatpush1.bf16.xpose.msra.mxu0 %v6954
    %6966 = vmatprep.subr.bf16.mxu0 0
    %6967 = vmatpush1.bf16.xpose.msra.mxu0 %v6957
    %6968 = vmatprep.subr.bf16.mxu0 0
    %6969 = vmatpush1.bf16.xpose.msra.mxu0 %v6960
    %6970 = vmatprep.subr.bf16.mxu0 0
    %6971 = vmatpush1.bf16.xpose.msra.mxu0 0
    %6972 = vmatprep.subr.bf16.mxu0 0
    %6973 = vmatpush1.bf16.xpose.msra.mxu0 0
    %6974 = vmatprep.subr.bf16.mxu0 0
    %6975 = vmatpush1.bf16.xpose.msra.mxu0 0
    %6976 = vmatprep.subr.bf16.mxu0 0
    %6977 = vmatpush1.bf16.xpose.msra.mxu0 0
    %6978 = vmatprep.subr.bf16.mxu0 0
    %6979 = vmatpush1.bf16.xpose.msra.mxu0 0
    %6980 = vmatprep.subr.bf16.mxu0 0
    %6981 = vmatpush1.bf16.xpose.msra.mxu0 0
    %6982 = vmatprep.subr.bf16.mxu0 0
    %6983 = vmatpush1.bf16.xpose.msra.mxu0 0
    %6984 = vmatprep.subr.bf16.mxu0 0
    %6985 = vmatpush1.bf16.xpose.msra.mxu0 0
    %6986 = vmatprep.subr.bf16.mxu0 0
    %6987 = vmatpush1.bf16.xpose.msra.mxu0 0
    %6988 = vmatprep.subr.bf16.mxu0 0
    %6989 = vmatpush1.bf16.xpose.msra.mxu0 0
    %6990 = vmatprep.subr.bf16.mxu0 0
    %6991 = vmatpush1.bf16.xpose.msra.mxu0 0
    %6992 = vmatprep.subr.bf16.mxu0 0
    %6993 = vmatpush1.bf16.xpose.msra.mxu0 0
    %6994 = vmatprep.mubr.bf16.mxu0 0
    %6995 = vmatmul.mubr.bf16.gmra.mrb[0].mxu0 %v6939
    %v6996 = vpop.f32.mrb[0].mxu0
    %v6997 = vadd.f32 0.0, %v6996
    %v6998 = vpop.f32.mrb[0].mxu0
    %v6999 = vpop.f32.mrb[0].mxu0
    %v7000 = vadd.f32 0.0, %v6999
    %v7001 = vpop.f32.mrb[0].mxu0
    %7002 = vmatprep.mubr.bf16.mxu0 0
    %7003 = vmatmul.mubr.bf16.gmra.mrb[0].mxu0 %v6942
    %v7004 = vpop.f32.mrb[0].mxu0
    %v7005 = vadd.f32 0.0, %v7004
    %v7006 = vpop.f32.mrb[0].mxu0
    %v7007 = vpop.f32.mrb[0].mxu0
    %v7008 = vadd.f32 0.0, %v7007
    %v7009 = vpop.f32.mrb[0].mxu0
    %7010 = vmatprep.mubr.bf16.mxu0 0
    %7011 = vmatmul.mubr.bf16.gmra.mrb[0].mxu0 %v6945
    %v7012 = vpop.f32.mrb[0].mxu0
    %v7013 = vadd.f32 0.0, %v7012
    %v7014 = vpop.f32.mrb[0].mxu0
    %v7015 = vpop.f32.mrb[0].mxu0
    %v7016 = vadd.f32 0.0, %v7015
    %v7017 = vpop.f32.mrb[0].mxu0
    %7018 = vmatprep.mubr.bf16.mxu0 0
    %7019 = vmatmul.mubr.bf16.gmra.mrb[0].mxu0 %v6948
    %v7020 = vpop.f32.mrb[0].mxu0
    %v7021 = vadd.f32 0.0, %v7020
    %v7022 = vpop.f32.mrb[0].mxu0
    %v7023 = vpop.f32.mrb[0].mxu0
    %v7024 = vadd.f32 0.0, %v7023
    %v7025 = vpop.f32.mrb[0].mxu0
    %7026 = vdwg.mxu0
    %v7027 = vsel %vm736, %v6997, -inf
    %7028 = vmax.xlane.f32.xlu0 %v7027
    %v7029 = vpop.xlane.xlu0 %7028
    %v7030 = vsel %vm736, %v7000, -inf
    %7031 = vmax.xlane.f32.xlu0 %v7030
    %v7032 = vpop.xlane.xlu0 %7031
    %v7033 = vsel %vm736, %v7005, -inf
    %7034 = vmax.xlane.f32.xlu0 %v7033
    %v7035 = vpop.xlane.xlu0 %7034
    %v7036 = vsel %vm736, %v7008, -inf
    %7037 = vmax.xlane.f32.xlu0 %v7036
    %v7038 = vpop.xlane.xlu0 %7037
    %v7039 = vsel %vm736, %v7013, -inf
    %7040 = vmax.xlane.f32.xlu0 %v7039
    %v7041 = vpop.xlane.xlu0 %7040
    %v7042 = vsel %vm736, %v7016, -inf
    %7043 = vmax.xlane.f32.xlu0 %v7042
    %v7044 = vpop.xlane.xlu0 %7043
    %v7045 = vsel %vm736, %v7021, -inf
    %7046 = vmax.xlane.f32.xlu0 %v7045
    %v7047 = vpop.xlane.xlu0 %7046
    %v7048 = vsel %vm736, %v7024, -inf
    %7049 = vmax.xlane.f32.xlu0 %v7048
    %v7050 = vpop.xlane.xlu0 %7049
    %v7051 = vsub.f32 %v6997, %v7029
    %v7052 = vsub.f32 %v7000, %v7032
    %v7053 = vsub.f32 %v7005, %v7035
    %v7054 = vsub.f32 %v7008, %v7038
    %v7055 = vsub.f32 %v7013, %v7041
    %v7056 = vsub.f32 %v7016, %v7044
    %v7057 = vsub.f32 %v7021, %v7047
    %v7058 = vsub.f32 %v7024, %v7050
    %v7059 = vmul.f32 %v7051, 1.442695
    %v7060 = vpow.pop %v7059
    %v7061 = vmul.f32 %v7052, 1.442695
    %v7062 = vpow.pop %v7061
    %v7063 = vmul.f32 %v7053, 1.442695
    %v7064 = vpow.pop %v7063
    %v7065 = vmul.f32 %v7054, 1.442695
    %v7066 = vpow.pop %v7065
    %v7067 = vmul.f32 %v7055, 1.442695
    %v7068 = vpow.pop %v7067
    %v7069 = vmul.f32 %v7056, 1.442695
    %v7070 = vpow.pop %v7069
    %v7071 = vmul.f32 %v7057, 1.442695
    %v7072 = vpow.pop %v7071
    %v7073 = vmul.f32 %v7058, 1.442695
    %v7074 = vpow.pop %v7073
    %v7075 = vsel %vm736, %v7060, 0.0
    %7076 = vadd.xlane.f32.xlu0 %v7075
    %v7077 = vpop.xlane.xlu0 %7076
    %v7078 = vsel %vm736, %v7062, 0.0
    %7079 = vadd.xlane.f32.xlu0 %v7078
    %v7080 = vpop.xlane.xlu0 %7079
    %v7081 = vsel %vm736, %v7064, 0.0
    %7082 = vadd.xlane.f32.xlu0 %v7081
    %v7083 = vpop.xlane.xlu0 %7082
    %v7084 = vsel %vm736, %v7066, 0.0
    %7085 = vadd.xlane.f32.xlu0 %v7084
    %v7086 = vpop.xlane.xlu0 %7085
    %v7087 = vsel %vm736, %v7068, 0.0
    %7088 = vadd.xlane.f32.xlu0 %v7087
    %v7089 = vpop.xlane.xlu0 %7088
    %v7090 = vsel %vm736, %v7070, 0.0
    %7091 = vadd.xlane.f32.xlu0 %v7090
    %v7092 = vpop.xlane.xlu0 %7091
    %v7093 = vsel %vm736, %v7072, 0.0
    %7094 = vadd.xlane.f32.xlu0 %v7093
    %v7095 = vpop.xlane.xlu0 %7094
    %v7096 = vsel %vm736, %v7074, 0.0
    %7097 = vadd.xlane.f32.xlu0 %v7096
    %v7098 = vpop.xlane.xlu0 %7097
    %v7099 = vrcp.pop %v7077
    %v7100 = vrcp.pop %v7080
    %v7101 = vrcp.pop %v7083
    %v7102 = vrcp.pop %v7086
    %v7103 = vrcp.pop %v7089
    %v7104 = vrcp.pop %v7092
    %v7105 = vrcp.pop %v7095
    %v7106 = vrcp.pop %v7098
    %v7107 = vmul.f32 %v7060, %v7099
    %v7108 = vmul.f32 %v7062, %v7100
    %v7109 = vmul.f32 %v7064, %v7101
    %v7110 = vmul.f32 %v7066, %v7102
    %v7111 = vmul.f32 %v7068, %v7103
    %v7112 = vmul.f32 %v7070, %v7104
    %v7113 = vmul.f32 %v7072, %v7105
    %v7114 = vmul.f32 %v7074, %v7106
    %v7115 = vpack.c.bf16 %v7108, %v7107
    %v7116 = vpack.c.bf16 %v7110, %v7109
    %v7117 = vpack.c.bf16 %v7112, %v7111
    %v7118 = vpack.c.bf16 %v7114, %v7113
    %7119 = vrot.lane.b32.xlu0 %v4309, 32
    %v7120 = vpop.permute.xlu0 %7119
    %7121 = vrot.lane.b32.xlu0 %v4310, 32
    %v7122 = vpop.permute.xlu0 %7121
    %7123 = vrot.lane.b32.xlu0 %v4311, 32
    %v7124 = vpop.permute.xlu0 %7123
    %7125 = vrot.lane.b32.xlu0 %v4312, 32
    %v7126 = vpop.permute.xlu0 %7125
    %v7132 = vsel %vm736, %v7115, 0
    %v7135 = vsel %vm736, %v7116, 0
    %v7138 = vsel %vm736, %v7117, 0
    %v7141 = vsel %vm736, %v7118, 0
    %7143 = vmatprep.subr.bf16.mxu0 0
    %7144 = vmatpush1.bf16.msra.mxu0 %v7120
    %7145 = vmatprep.subr.bf16.mxu0 0
    %7146 = vmatpush1.bf16.msra.mxu0 %v7122
    %7147 = vmatprep.subr.bf16.mxu0 0
    %7148 = vmatpush1.bf16.msra.mxu0 %v7124
    %7149 = vmatprep.subr.bf16.mxu0 0
    %7150 = vmatpush1.bf16.msra.mxu0 %v7126
    %7151 = vmatprep.subr.bf16.mxu0 0
    %7152 = vmatpush1.bf16.msra.mxu0 0
    %7153 = vmatprep.subr.bf16.mxu0 0
    %7154 = vmatpush1.bf16.msra.mxu0 0
    %7155 = vmatprep.subr.bf16.mxu0 0
    %7156 = vmatpush1.bf16.msra.mxu0 0
    %7157 = vmatprep.subr.bf16.mxu0 0
    %7158 = vmatpush1.bf16.msra.mxu0 0
    %7159 = vmatprep.subr.bf16.mxu0 0
    %7160 = vmatpush1.bf16.msra.mxu0 0
    %7161 = vmatprep.subr.bf16.mxu0 0
    %7162 = vmatpush1.bf16.msra.mxu0 0
    %7163 = vmatprep.subr.bf16.mxu0 0
    %7164 = vmatpush1.bf16.msra.mxu0 0
    %7165 = vmatprep.subr.bf16.mxu0 0
    %7166 = vmatpush1.bf16.msra.mxu0 0
    %7167 = vmatprep.subr.bf16.mxu0 0
    %7168 = vmatpush1.bf16.msra.mxu0 0
    %7169 = vmatprep.subr.bf16.mxu0 0
    %7170 = vmatpush1.bf16.msra.mxu0 0
    %7171 = vmatprep.subr.bf16.mxu0 0
    %7172 = vmatpush1.bf16.msra.mxu0 0
    %7173 = vmatprep.subr.bf16.mxu0 0
    %7174 = vmatpush1.bf16.msra.mxu0 0
    %7175 = vmatprep.mubr.bf16.mxu0 0
    %7176 = vmatmul.mubr.bf16.gmra.mrb[0].mxu0 %v7132
    %v7177 = vpop.f32.mrb[0].mxu0
    %v7178 = vadd.f32 0.0, %v7177
    %v7179 = vpop.f32.mrb[0].mxu0
    %v7180 = vpop.f32.mrb[0].mxu0
    %v7181 = vadd.f32 0.0, %v7180
    %v7182 = vpop.f32.mrb[0].mxu0
    %7183 = vmatprep.mubr.bf16.mxu0 0
    %7184 = vmatmul.mubr.bf16.gmra.mrb[0].mxu0 %v7135
    %v7185 = vpop.f32.mrb[0].mxu0
    %v7186 = vadd.f32 0.0, %v7185
    %v7187 = vpop.f32.mrb[0].mxu0
    %v7188 = vpop.f32.mrb[0].mxu0
    %v7189 = vadd.f32 0.0, %v7188
    %v7190 = vpop.f32.mrb[0].mxu0
    %7191 = vmatprep.mubr.bf16.mxu0 0
    %7192 = vmatmul.mubr.bf16.gmra.mrb[0].mxu0 %v7138
    %v7193 = vpop.f32.mrb[0].mxu0
    %v7194 = vadd.f32 0.0, %v7193
    %v7195 = vpop.f32.mrb[0].mxu0
    %v7196 = vpop.f32.mrb[0].mxu0
    %v7197 = vadd.f32 0.0, %v7196
    %v7198 = vpop.f32.mrb[0].mxu0
    %7199 = vmatprep.mubr.bf16.mxu0 0
    %7200 = vmatmul.mubr.bf16.gmra.mrb[0].mxu0 %v7141
    %v7201 = vpop.f32.mrb[0].mxu0
    %v7202 = vadd.f32 0.0, %v7201
    %v7203 = vpop.f32.mrb[0].mxu0
    %v7204 = vpop.f32.mrb[0].mxu0
    %v7205 = vadd.f32 0.0, %v7204
    %v7206 = vpop.f32.mrb[0].mxu0
    %7207 = vdwg.mxu0
    %v7208 = vpack.c.bf16 %v7181, %v7178
    %v7209 = vpack.c.bf16 %v7189, %v7186
    %v7210 = vpack.c.bf16 %v7197, %v7194
    %v7211 = vpack.c.bf16 %v7205, %v7202
    %v7213 = vsel %vm646, %v7208, 0
    %v7216 = vsel %vm646, %v7209, 0
    %v7219 = vsel %vm646, %v7210, 0
    %v7222 = vsel %vm646, %v7211, 0
    %7224 = vmatprep.subr.bf16.mxu0 0
    %7225 = vmatpush1.bf16.msra.mxu0 %v5740
    %7226 = vmatprep.subr.bf16.mxu0 0
    %7227 = vmatpush1.bf16.msra.mxu0 %v5741
    %7228 = vmatprep.subr.bf16.mxu0 0
    %7229 = vmatpush1.bf16.msra.mxu0 0
    %7230 = vmatprep.subr.bf16.mxu0 0
    %7231 = vmatpush1.bf16.msra.mxu0 0
    %7232 = vmatprep.subr.bf16.mxu0 0
    %7233 = vmatpush1.bf16.msra.mxu0 0
    %7234 = vmatprep.subr.bf16.mxu0 0
    %7235 = vmatpush1.bf16.msra.mxu0 0
    %7236 = vmatprep.subr.bf16.mxu0 0
    %7237 = vmatpush1.bf16.msra.mxu0 0
    %7238 = vmatprep.subr.bf16.mxu0 0
    %7239 = vmatpush1.bf16.msra.mxu0 0
    %7240 = vmatprep.subr.bf16.mxu0 0
    %7241 = vmatpush1.bf16.msra.mxu0 0
    %7242 = vmatprep.subr.bf16.mxu0 0
    %7243 = vmatpush1.bf16.msra.mxu0 0
    %7244 = vmatprep.subr.bf16.mxu0 0
    %7245 = vmatpush1.bf16.msra.mxu0 0
    %7246 = vmatprep.subr.bf16.mxu0 0
    %7247 = vmatpush1.bf16.msra.mxu0 0
    %7248 = vmatprep.subr.bf16.mxu0 0
    %7249 = vmatpush1.bf16.msra.mxu0 0
    %7250 = vmatprep.subr.bf16.mxu0 0
    %7251 = vmatpush1.bf16.msra.mxu0 0
    %7252 = vmatprep.subr.bf16.mxu0 0
    %7253 = vmatpush1.bf16.msra.mxu0 0
    %7254 = vmatprep.subr.bf16.mxu0 0
    %7255 = vmatpush1.bf16.msra.mxu0 0
    %7256 = vmatprep.mubr.bf16.mxu0 0
    %7257 = vmatmul.mubr.bf16.gmra.mrb[0].mxu0 %v7213
    %v7258 = vpop.f32.mrb[0].mxu0
    %v7259 = vadd.f32 0.0, %v7258
    %v7260 = vpop.f32.mrb[0].mxu0
    %v7261 = vpop.f32.mrb[0].mxu0
    %v7262 = vadd.f32 0.0, %v7261
    %v7263 = vpop.f32.mrb[0].mxu0
    %7264 = vmatprep.mubr.bf16.mxu0 0
    %7265 = vmatmul.mubr.bf16.gmra.mrb[0].mxu0 %v7216
    %v7266 = vpop.f32.mrb[0].mxu0
    %v7267 = vadd.f32 0.0, %v7266
    %v7268 = vpop.f32.mrb[0].mxu0
    %v7269 = vpop.f32.mrb[0].mxu0
    %v7270 = vadd.f32 0.0, %v7269
    %v7271 = vpop.f32.mrb[0].mxu0
    %7272 = vmatprep.mubr.bf16.mxu0 0
    %7273 = vmatmul.mubr.bf16.gmra.mrb[0].mxu0 %v7219
    %v7274 = vpop.f32.mrb[0].mxu0
    %v7275 = vadd.f32 0.0, %v7274
    %v7276 = vpop.f32.mrb[0].mxu0
    %v7277 = vpop.f32.mrb[0].mxu0
    %v7278 = vadd.f32 0.0, %v7277
    %v7279 = vpop.f32.mrb[0].mxu0
    %7280 = vmatprep.mubr.bf16.mxu0 0
    %7281 = vmatmul.mubr.bf16.gmra.mrb[0].mxu0 %v7222
    %v7282 = vpop.f32.mrb[0].mxu0
    %v7283 = vadd.f32 0.0, %v7282
    %v7284 = vpop.f32.mrb[0].mxu0
    %v7285 = vpop.f32.mrb[0].mxu0
    %v7286 = vadd.f32 0.0, %v7285
    %v7287 = vpop.f32.mrb[0].mxu0
    %7288 = vdwg.mxu0
    %v7289 = vadd.f32 %v6914, %v7259
    %v7290 = vadd.f32 %v6915, %v7262
    %v7291 = vadd.f32 %v6916, %v7267
    %v7292 = vadd.f32 %v6917, %v7270
    %v7293 = vadd.f32 %v6918, %v7275
    %v7294 = vadd.f32 %v6919, %v7278
    %v7295 = vadd.f32 %v6920, %v7283
    %v7296 = vadd.f32 %v6921, %v7286
    %v7298 = vlaneseq
    %v7299 = vshrl.u32 %v7298, 7
    %v7300 = vsub.s32 0, %v7299
    %v7301 = vrot.slane %v3926, %v7300
    %v7303 = vadd.f32 %v5821, %v7301
    %v7304 = vadd.f32 %v5822, %v7301
    %v7305 = vadd.f32 %v5823, %v7301
    %v7306 = vadd.f32 %v5824, %v7301
    %v7307 = vadd.f32 %v5825, %v7301
    %v7308 = vadd.f32 %v5826, %v7301
    %v7309 = vadd.f32 %v5827, %v7301
    %v7310 = vadd.f32 %v5828, %v7301
    %v7311 = vadd.f32 %v7289, %v7301
    %v7312 = vadd.f32 %v7290, %v7301
    %v7313 = vadd.f32 %v7291, %v7301
    %v7314 = vadd.f32 %v7292, %v7301
    %v7315 = vadd.f32 %v7293, %v7301
    %v7316 = vadd.f32 %v7294, %v7301
    %v7317 = vadd.f32 %v7295, %v7301
    %v7318 = vadd.f32 %v7296, %v7301
    %v7319 = vld [vmem:[%s12] sm:$0x1]
    %v7320 = vld [vmem:[%s13] sm:$0x1]
    %7321 = vadd.xlane.f32.xlu0 %v7303
    %v7322 = vpop.xlane.xlu0 %7321
    %7323 = vadd.xlane.f32.xlu0 %v7304
    %v7324 = vpop.xlane.xlu0 %7323
    %7325 = vadd.xlane.f32.xlu0 %v7305
    %v7326 = vpop.xlane.xlu0 %7325
    %7327 = vadd.xlane.f32.xlu0 %v7306
    %v7328 = vpop.xlane.xlu0 %7327
    %7329 = vadd.xlane.f32.xlu0 %v7307
    %v7330 = vpop.xlane.xlu0 %7329
    %7331 = vadd.xlane.f32.xlu0 %v7308
    %v7332 = vpop.xlane.xlu0 %7331
    %7333 = vadd.xlane.f32.xlu0 %v7309
    %v7334 = vpop.xlane.xlu0 %7333
    %7335 = vadd.xlane.f32.xlu0 %v7310
    %v7336 = vpop.xlane.xlu0 %7335
    %7337 = vadd.xlane.f32.xlu0 %v7311
    %v7338 = vpop.xlane.xlu0 %7337
    %7339 = vadd.xlane.f32.xlu0 %v7312
    %v7340 = vpop.xlane.xlu0 %7339
    %7341 = vadd.xlane.f32.xlu0 %v7313
    %v7342 = vpop.xlane.xlu0 %7341
    %7343 = vadd.xlane.f32.xlu0 %v7314
    %v7344 = vpop.xlane.xlu0 %7343
    %7345 = vadd.xlane.f32.xlu0 %v7315
    %v7346 = vpop.xlane.xlu0 %7345
    %7347 = vadd.xlane.f32.xlu0 %v7316
    %v7348 = vpop.xlane.xlu0 %7347
    %7349 = vadd.xlane.f32.xlu0 %v7317
    %v7350 = vpop.xlane.xlu0 %7349
    %7351 = vadd.xlane.f32.xlu0 %v7318
    %v7352 = vpop.xlane.xlu0 %7351
    %v7353 = vmul.f32 %v7322, %v3688
    %v7354 = vmul.f32 %v7324, %v3688
    %v7355 = vmul.f32 %v7326, %v3688
    %v7356 = vmul.f32 %v7328, %v3688
    %v7357 = vmul.f32 %v7330, %v3688
    %v7358 = vmul.f32 %v7332, %v3688
    %v7359 = vmul.f32 %v7334, %v3688
    %v7360 = vmul.f32 %v7336, %v3688
    %v7361 = vmul.f32 %v7338, %v3688
    %v7362 = vmul.f32 %v7340, %v3688
    %v7363 = vmul.f32 %v7342, %v3688
    %v7364 = vmul.f32 %v7344, %v3688
    %v7365 = vmul.f32 %v7346, %v3688
    %v7366 = vmul.f32 %v7348, %v3688
    %v7367 = vmul.f32 %v7350, %v3688
    %v7368 = vmul.f32 %v7352, %v3688
    %v7369 = vsub.f32 %v7303, %v7353
    %v7370 = vsub.f32 %v7304, %v7354
    %v7371 = vsub.f32 %v7305, %v7355
    %v7372 = vsub.f32 %v7306, %v7356
    %v7373 = vsub.f32 %v7307, %v7357
    %v7374 = vsub.f32 %v7308, %v7358
    %v7375 = vsub.f32 %v7309, %v7359
    %v7376 = vsub.f32 %v7310, %v7360
    %v7377 = vsub.f32 %v7311, %v7361
    %v7378 = vsub.f32 %v7312, %v7362
    %v7379 = vsub.f32 %v7313, %v7363
    %v7380 = vsub.f32 %v7314, %v7364
    %v7381 = vsub.f32 %v7315, %v7365
    %v7382 = vsub.f32 %v7316, %v7366
    %v7383 = vsub.f32 %v7317, %v7367
    %v7384 = vsub.f32 %v7318, %v7368
    %v7385 = vmul.f32 %v7369, %v7369
    %v7386 = vmul.f32 %v7370, %v7370
    %v7387 = vmul.f32 %v7371, %v7371
    %v7388 = vmul.f32 %v7372, %v7372
    %v7389 = vmul.f32 %v7373, %v7373
    %v7390 = vmul.f32 %v7374, %v7374
    %v7391 = vmul.f32 %v7375, %v7375
    %v7392 = vmul.f32 %v7376, %v7376
    %v7393 = vmul.f32 %v7377, %v7377
    %v7394 = vmul.f32 %v7378, %v7378
    %v7395 = vmul.f32 %v7379, %v7379
    %v7396 = vmul.f32 %v7380, %v7380
    %v7397 = vmul.f32 %v7381, %v7381
    %v7398 = vmul.f32 %v7382, %v7382
    %v7399 = vmul.f32 %v7383, %v7383
    %v7400 = vmul.f32 %v7384, %v7384
    %7401 = vadd.xlane.f32.xlu0 %v7385
    %v7402 = vpop.xlane.xlu0 %7401
    %7403 = vadd.xlane.f32.xlu0 %v7386
    %v7404 = vpop.xlane.xlu0 %7403
    %7405 = vadd.xlane.f32.xlu0 %v7387
    %v7406 = vpop.xlane.xlu0 %7405
    %7407 = vadd.xlane.f32.xlu0 %v7388
    %v7408 = vpop.xlane.xlu0 %7407
    %7409 = vadd.xlane.f32.xlu0 %v7389
    %v7410 = vpop.xlane.xlu0 %7409
    %7411 = vadd.xlane.f32.xlu0 %v7390
    %v7412 = vpop.xlane.xlu0 %7411
    %7413 = vadd.xlane.f32.xlu0 %v7391
    %v7414 = vpop.xlane.xlu0 %7413
    %7415 = vadd.xlane.f32.xlu0 %v7392
    %v7416 = vpop.xlane.xlu0 %7415
    %7417 = vadd.xlane.f32.xlu0 %v7393
    %v7418 = vpop.xlane.xlu0 %7417
    %7419 = vadd.xlane.f32.xlu0 %v7394
    %v7420 = vpop.xlane.xlu0 %7419
    %7421 = vadd.xlane.f32.xlu0 %v7395
    %v7422 = vpop.xlane.xlu0 %7421
    %7423 = vadd.xlane.f32.xlu0 %v7396
    %v7424 = vpop.xlane.xlu0 %7423
    %7425 = vadd.xlane.f32.xlu0 %v7397
    %v7426 = vpop.xlane.xlu0 %7425
    %7427 = vadd.xlane.f32.xlu0 %v7398
    %v7428 = vpop.xlane.xlu0 %7427
    %7429 = vadd.xlane.f32.xlu0 %v7399
    %v7430 = vpop.xlane.xlu0 %7429
    %7431 = vadd.xlane.f32.xlu0 %v7400
    %v7432 = vpop.xlane.xlu0 %7431
    %v7433 = vmul.f32 %v7402, %v3688
    %v7434 = vmul.f32 %v7404, %v3688
    %v7435 = vmul.f32 %v7406, %v3688
    %v7436 = vmul.f32 %v7408, %v3688
    %v7437 = vmul.f32 %v7410, %v3688
    %v7438 = vmul.f32 %v7412, %v3688
    %v7439 = vmul.f32 %v7414, %v3688
    %v7440 = vmul.f32 %v7416, %v3688
    %v7441 = vmul.f32 %v7418, %v3688
    %v7442 = vmul.f32 %v7420, %v3688
    %v7443 = vmul.f32 %v7422, %v3688
    %v7444 = vmul.f32 %v7424, %v3688
    %v7445 = vmul.f32 %v7426, %v3688
    %v7446 = vmul.f32 %v7428, %v3688
    %v7447 = vmul.f32 %v7430, %v3688
    %v7448 = vmul.f32 %v7432, %v3688
    %v7449 = vadd.f32 %v7433, 1e-05
    %v7450 = vadd.f32 %v7434, 1e-05
    %v7451 = vadd.f32 %v7435, 1e-05
    %v7452 = vadd.f32 %v7436, 1e-05
    %v7453 = vadd.f32 %v7437, 1e-05
    %v7454 = vadd.f32 %v7438, 1e-05
    %v7455 = vadd.f32 %v7439, 1e-05
    %v7456 = vadd.f32 %v7440, 1e-05
    %v7457 = vadd.f32 %v7441, 1e-05
    %v7458 = vadd.f32 %v7442, 1e-05
    %v7459 = vadd.f32 %v7443, 1e-05
    %v7460 = vadd.f32 %v7444, 1e-05
    %v7461 = vadd.f32 %v7445, 1e-05
    %v7462 = vadd.f32 %v7446, 1e-05
    %v7463 = vadd.f32 %v7447, 1e-05
    %v7464 = vadd.f32 %v7448, 1e-05
    %v7465 = vrsqrt.pop %v7449
    %v7466 = vrsqrt.pop %v7450
    %v7467 = vrsqrt.pop %v7451
    %v7468 = vrsqrt.pop %v7452
    %v7469 = vrsqrt.pop %v7453
    %v7470 = vrsqrt.pop %v7454
    %v7471 = vrsqrt.pop %v7455
    %v7472 = vrsqrt.pop %v7456
    %v7473 = vrsqrt.pop %v7457
    %v7474 = vrsqrt.pop %v7458
    %v7475 = vrsqrt.pop %v7459
    %v7476 = vrsqrt.pop %v7460
    %v7477 = vrsqrt.pop %v7461
    %v7478 = vrsqrt.pop %v7462
    %v7479 = vrsqrt.pop %v7463
    %v7480 = vrsqrt.pop %v7464
    %v7481 = vmul.f32 %v7369, %v7465
    %v7482 = vmul.f32 %v7370, %v7466
    %v7483 = vmul.f32 %v7371, %v7467
    %v7484 = vmul.f32 %v7372, %v7468
    %v7485 = vmul.f32 %v7373, %v7469
    %v7486 = vmul.f32 %v7374, %v7470
    %v7487 = vmul.f32 %v7375, %v7471
    %v7488 = vmul.f32 %v7376, %v7472
    %v7489 = vmul.f32 %v7377, %v7473
    %v7490 = vmul.f32 %v7378, %v7474
    %v7491 = vmul.f32 %v7379, %v7475
    %v7492 = vmul.f32 %v7380, %v7476
    %v7493 = vmul.f32 %v7381, %v7477
    %v7494 = vmul.f32 %v7382, %v7478
    %v7495 = vmul.f32 %v7383, %v7479
    %v7496 = vmul.f32 %v7384, %v7480
    %v7498 = vlaneseq
    %v7499 = vshrl.u32 %v7498, 7
    %v7500 = vsub.s32 0, %v7499
    %v7501 = vrot.slane %v7319, %v7500
    %v7503 = vmul.f32 %v7481, %v7501
    %v7504 = vmul.f32 %v7482, %v7501
    %v7505 = vmul.f32 %v7483, %v7501
    %v7506 = vmul.f32 %v7484, %v7501
    %v7507 = vmul.f32 %v7485, %v7501
    %v7508 = vmul.f32 %v7486, %v7501
    %v7509 = vmul.f32 %v7487, %v7501
    %v7510 = vmul.f32 %v7488, %v7501
    %v7511 = vmul.f32 %v7489, %v7501
    %v7512 = vmul.f32 %v7490, %v7501
    %v7513 = vmul.f32 %v7491, %v7501
    %v7514 = vmul.f32 %v7492, %v7501
    %v7515 = vmul.f32 %v7493, %v7501
    %v7516 = vmul.f32 %v7494, %v7501
    %v7517 = vmul.f32 %v7495, %v7501
    %v7518 = vmul.f32 %v7496, %v7501
    %v7520 = vlaneseq
    %v7521 = vshrl.u32 %v7520, 7
    %v7522 = vsub.s32 0, %v7521
    %v7523 = vrot.slane %v7320, %v7522
    %v7525 = vadd.f32 %v7503, %v7523
    %v7526 = vadd.f32 %v7504, %v7523
    %v7527 = vadd.f32 %v7505, %v7523
    %v7528 = vadd.f32 %v7506, %v7523
    %v7529 = vadd.f32 %v7507, %v7523
    %v7530 = vadd.f32 %v7508, %v7523
    %v7531 = vadd.f32 %v7509, %v7523
    %v7532 = vadd.f32 %v7510, %v7523
    %v7533 = vadd.f32 %v7511, %v7523
    %v7534 = vadd.f32 %v7512, %v7523
    %v7535 = vadd.f32 %v7513, %v7523
    %v7536 = vadd.f32 %v7514, %v7523
    %v7537 = vadd.f32 %v7515, %v7523
    %v7538 = vadd.f32 %v7516, %v7523
    %v7539 = vadd.f32 %v7517, %v7523
    %v7540 = vadd.f32 %v7518, %v7523
    %v7541 = vpack.c.bf16 %v7526, %v7525
    %v7542 = vpack.c.bf16 %v7528, %v7527
    %v7543 = vpack.c.bf16 %v7530, %v7529
    %v7544 = vpack.c.bf16 %v7532, %v7531
    %v7545 = vpack.c.bf16 %v7534, %v7533
    %v7546 = vpack.c.bf16 %v7536, %v7535
    %v7547 = vpack.c.bf16 %v7538, %v7537
    %v7548 = vpack.c.bf16 %v7540, %v7539
    %v7549 = vld [vmem:[#allocation13] sm:$0xff]
    %v7550 = vld [vmem:[#allocation13 + $0x8] sm:$0xff]
    %v7551 = vld [vmem:[#allocation13 + $0x10] sm:$0xff]
    %v7552 = vld [vmem:[#allocation13 + $0x18] sm:$0xff]
    %v7553 = vld [vmem:[#allocation13 + $0x20] sm:$0xff]
    %v7554 = vld [vmem:[#allocation13 + $0x28] sm:$0xff]
    %v7555 = vld [vmem:[#allocation13 + $0x30] sm:$0xff]
    %v7556 = vld [vmem:[#allocation13 + $0x38] sm:$0xff]
    %v7557 = vld [vmem:[#allocation13 + $0x40] sm:$0xff]
    %v7558 = vld [vmem:[#allocation13 + $0x48] sm:$0xff]
    %v7559 = vld [vmem:[#allocation13 + $0x50] sm:$0xff]
    %v7560 = vld [vmem:[#allocation13 + $0x58] sm:$0xff]
    %v7561 = vld [vmem:[#allocation13 + $0x60] sm:$0xff]
    %v7562 = vld [vmem:[#allocation13 + $0x68] sm:$0xff]
    %v7563 = vld [vmem:[#allocation13 + $0x70] sm:$0xff]
    %v7564 = vld [vmem:[#allocation13 + $0x78] sm:$0xff]
    %v7565 = vld [vmem:[%s15] sm:$0x3]
    %v7567 = vlaneseq
    %v7568 = vshrl.u32 %v7567, 7
    %v7569 = vsub.s32 0, %v7568
    %v7570 = vrot.slane %v7565, %v7569
    %v7571 = vlaneseq
    %v7572 = vshrl.u32 %v7571, 7
    %v7573 = vsub.s32 1, %v7572
    %v7574 = vrot.slane %v7565, %v7573
    %v7593 = vunpack.c.l.b16 %v7549
    %v7594 = vunpack.c.h.b16 %v7549
    %v7595 = vunpack.c.l.b16 %v7550
    %v7596 = vunpack.c.h.b16 %v7550
    %v7597 = vunpack.c.l.b16 %v7551
    %v7598 = vunpack.c.h.b16 %v7551
    %v7599 = vunpack.c.l.b16 %v7552
    %v7600 = vunpack.c.h.b16 %v7552
    %v7601 = vunpack.c.l.b16 %v7553
    %v7602 = vunpack.c.h.b16 %v7553
    %v7603 = vunpack.c.l.b16 %v7554
    %v7604 = vunpack.c.h.b16 %v7554
    %v7605 = vunpack.c.l.b16 %v7555
    %v7606 = vunpack.c.h.b16 %v7555
    %v7607 = vunpack.c.l.b16 %v7556
    %v7608 = vunpack.c.h.b16 %v7556
    %v7609 = vunpack.c.l.b16 %v7557
    %v7610 = vunpack.c.h.b16 %v7557
    %v7611 = vunpack.c.l.b16 %v7558
    %v7612 = vunpack.c.h.b16 %v7558
    %v7613 = vunpack.c.l.b16 %v7559
    %v7614 = vunpack.c.h.b16 %v7559
    %v7615 = vunpack.c.l.b16 %v7560
    %v7616 = vunpack.c.h.b16 %v7560
    %v7617 = vunpack.c.l.b16 %v7561
    %v7618 = vunpack.c.h.b16 %v7561
    %v7619 = vunpack.c.l.b16 %v7562
    %v7620 = vunpack.c.h.b16 %v7562
    %v7621 = vunpack.c.l.b16 %v7563
    %v7622 = vunpack.c.h.b16 %v7563
    %v7623 = vunpack.c.l.b16 %v7564
    %v7624 = vunpack.c.h.b16 %v7564
    %v7625 = vpack.c.b16 %v7595, %v7593
    %v7626 = vpack.c.b16 %v7596, %v7594
    %v7627 = vpack.c.b16 %v7599, %v7597
    %v7628 = vpack.c.b16 %v7600, %v7598
    %v7629 = vpack.c.b16 %v7603, %v7601
    %v7630 = vpack.c.b16 %v7604, %v7602
    %v7631 = vpack.c.b16 %v7607, %v7605
    %v7632 = vpack.c.b16 %v7608, %v7606
    %v7633 = vpack.c.b16 %v7611, %v7609
    %v7634 = vpack.c.b16 %v7612, %v7610
    %v7635 = vpack.c.b16 %v7615, %v7613
    %v7636 = vpack.c.b16 %v7616, %v7614
    %v7637 = vpack.c.b16 %v7619, %v7617
    %v7638 = vpack.c.b16 %v7620, %v7618
    %v7639 = vpack.c.b16 %v7623, %v7621
    %v7640 = vpack.c.b16 %v7624, %v7622
    %7657 = vmatprep.subr.bf16.mxu0 %v7626
    %7658 = vmatpush1.bf16.msra.mxu0 %v7625
    %7659 = vmatprep.subr.bf16.mxu0 %v7628
    %7660 = vmatpush1.bf16.msra.mxu0 %v7627
    %7661 = vmatprep.subr.bf16.mxu0 %v7630
    %7662 = vmatpush1.bf16.msra.mxu0 %v7629
    %7663 = vmatprep.subr.bf16.mxu0 %v7632
    %7664 = vmatpush1.bf16.msra.mxu0 %v7631
    %7665 = vmatprep.subr.bf16.mxu0 %v7634
    %7666 = vmatpush1.bf16.msra.mxu0 %v7633
    %7667 = vmatprep.subr.bf16.mxu0 %v7636
    %7668 = vmatpush1.bf16.msra.mxu0 %v7635
    %7669 = vmatprep.subr.bf16.mxu0 %v7638
    %7670 = vmatpush1.bf16.msra.mxu0 %v7637
    %7671 = vmatprep.subr.bf16.mxu0 %v7640
    %7672 = vmatpush1.bf16.msra.mxu0 %v7639
    %7673 = vmatprep.subr.bf16.mxu0 0
    %7674 = vmatpush1.bf16.msra.mxu0 0
    %7675 = vmatprep.subr.bf16.mxu0 0
    %7676 = vmatpush1.bf16.msra.mxu0 0
    %7677 = vmatprep.subr.bf16.mxu0 0
    %7678 = vmatpush1.bf16.msra.mxu0 0
    %7679 = vmatprep.subr.bf16.mxu0 0
    %7680 = vmatpush1.bf16.msra.mxu0 0
    %7681 = vmatprep.subr.bf16.mxu0 0
    %7682 = vmatpush1.bf16.msra.mxu0 0
    %7683 = vmatprep.subr.bf16.mxu0 0
    %7684 = vmatpush1.bf16.msra.mxu0 0
    %7685 = vmatprep.subr.bf16.mxu0 0
    %7686 = vmatpush1.bf16.msra.mxu0 0
    %7687 = vmatprep.subr.bf16.mxu0 0
    %7688 = vmatpush1.bf16.msra.mxu0 0
    %7689 = vmatprep.mubr.bf16.mxu0 0
    %7690 = vmatmul.mubr.bf16.gmra.mrb[0].mxu0 %v7541
    %v7691 = vpop.f32.mrb[0].mxu0
    %v7692 = vadd.f32 %v7570, %v7691
    %v7693 = vpop.f32.mrb[0].mxu0
    %v7694 = vadd.f32 %v7574, %v7693
    %v7695 = vpop.f32.mrb[0].mxu0
    %v7696 = vadd.f32 %v7570, %v7695
    %v7697 = vpop.f32.mrb[0].mxu0
    %v7698 = vadd.f32 %v7574, %v7697
    %7699 = vmatprep.mubr.bf16.mxu0 0
    %7700 = vmatmul.mubr.bf16.gmra.mrb[0].mxu0 %v7542
    %v7701 = vpop.f32.mrb[0].mxu0
    %v7702 = vadd.f32 %v7570, %v7701
    %v7703 = vpop.f32.mrb[0].mxu0
    %v7704 = vadd.f32 %v7574, %v7703
    %v7705 = vpop.f32.mrb[0].mxu0
    %v7706 = vadd.f32 %v7570, %v7705
    %v7707 = vpop.f32.mrb[0].mxu0
    %v7708 = vadd.f32 %v7574, %v7707
    %7709 = vmatprep.mubr.bf16.mxu0 0
    %7710 = vmatmul.mubr.bf16.gmra.mrb[0].mxu0 %v7543
    %v7711 = vpop.f32.mrb[0].mxu0
    %v7712 = vadd.f32 %v7570, %v7711
    %v7713 = vpop.f32.mrb[0].mxu0
    %v7714 = vadd.f32 %v7574, %v7713
    %v7715 = vpop.f32.mrb[0].mxu0
    %v7716 = vadd.f32 %v7570, %v7715
    %v7717 = vpop.f32.mrb[0].mxu0
    %v7718 = vadd.f32 %v7574, %v7717
    %7719 = vmatprep.mubr.bf16.mxu0 0
    %7720 = vmatmul.mubr.bf16.gmra.mrb[0].mxu0 %v7544
    %v7721 = vpop.f32.mrb[0].mxu0
    %v7722 = vadd.f32 %v7570, %v7721
    %v7723 = vpop.f32.mrb[0].mxu0
    %v7724 = vadd.f32 %v7574, %v7723
    %v7725 = vpop.f32.mrb[0].mxu0
    %v7726 = vadd.f32 %v7570, %v7725
    %v7727 = vpop.f32.mrb[0].mxu0
    %v7728 = vadd.f32 %v7574, %v7727
    %7729 = vmatprep.mubr.bf16.mxu0 0
    %7730 = vmatmul.mubr.bf16.gmra.mrb[0].mxu0 %v7545
    %v7731 = vpop.f32.mrb[0].mxu0
    %v7732 = vadd.f32 %v7570, %v7731
    %v7733 = vpop.f32.mrb[0].mxu0
    %v7734 = vadd.f32 %v7574, %v7733
    %v7735 = vpop.f32.mrb[0].mxu0
    %v7736 = vadd.f32 %v7570, %v7735
    %v7737 = vpop.f32.mrb[0].mxu0
    %v7738 = vadd.f32 %v7574, %v7737
    %7739 = vmatprep.mubr.bf16.mxu0 0
    %7740 = vmatmul.mubr.bf16.gmra.mrb[0].mxu0 %v7546
    %v7741 = vpop.f32.mrb[0].mxu0
    %v7742 = vadd.f32 %v7570, %v7741
    %v7743 = vpop.f32.mrb[0].mxu0
    %v7744 = vadd.f32 %v7574, %v7743
    %v7745 = vpop.f32.mrb[0].mxu0
    %v7746 = vadd.f32 %v7570, %v7745
    %v7747 = vpop.f32.mrb[0].mxu0
    %v7748 = vadd.f32 %v7574, %v7747
    %7749 = vmatprep.mubr.bf16.mxu0 0
    %7750 = vmatmul.mubr.bf16.gmra.mrb[0].mxu0 %v7547
    %v7751 = vpop.f32.mrb[0].mxu0
    %v7752 = vadd.f32 %v7570, %v7751
    %v7753 = vpop.f32.mrb[0].mxu0
    %v7754 = vadd.f32 %v7574, %v7753
    %v7755 = vpop.f32.mrb[0].mxu0
    %v7756 = vadd.f32 %v7570, %v7755
    %v7757 = vpop.f32.mrb[0].mxu0
    %v7758 = vadd.f32 %v7574, %v7757
    %7759 = vmatprep.mubr.bf16.mxu0 0
    %7760 = vmatmul.mubr.bf16.gmra.mrb[0].mxu0 %v7548
    %v7761 = vpop.f32.mrb[0].mxu0
    %v7762 = vadd.f32 %v7570, %v7761
    %v7763 = vpop.f32.mrb[0].mxu0
    %v7764 = vadd.f32 %v7574, %v7763
    %v7765 = vpop.f32.mrb[0].mxu0
    %v7766 = vadd.f32 %v7570, %v7765
    %v7767 = vpop.f32.mrb[0].mxu0
    %v7768 = vadd.f32 %v7574, %v7767
    %7769 = vdwg.mxu0
    %v7770 = vmax.f32 %v7692, 0.0
    %v7771 = vmax.f32 %v7694, 0.0
    %v7772 = vmax.f32 %v7696, 0.0
    %v7773 = vmax.f32 %v7698, 0.0
    %v7774 = vmax.f32 %v7702, 0.0
    %v7775 = vmax.f32 %v7704, 0.0
    %v7776 = vmax.f32 %v7706, 0.0
    %v7777 = vmax.f32 %v7708, 0.0
    %v7778 = vmax.f32 %v7712, 0.0
    %v7779 = vmax.f32 %v7714, 0.0
    %v7780 = vmax.f32 %v7716, 0.0
    %v7781 = vmax.f32 %v7718, 0.0
    %v7782 = vmax.f32 %v7722, 0.0
    %v7783 = vmax.f32 %v7724, 0.0
    %v7784 = vmax.f32 %v7726, 0.0
    %v7785 = vmax.f32 %v7728, 0.0
    %v7786 = vmax.f32 %v7732, 0.0
    %v7787 = vmax.f32 %v7734, 0.0
    %v7788 = vmax.f32 %v7736, 0.0
    %v7789 = vmax.f32 %v7738, 0.0
    %v7790 = vmax.f32 %v7742, 0.0
    %v7791 = vmax.f32 %v7744, 0.0
    %v7792 = vmax.f32 %v7746, 0.0
    %v7793 = vmax.f32 %v7748, 0.0
    %v7794 = vmax.f32 %v7752, 0.0
    %v7795 = vmax.f32 %v7754, 0.0
    %v7796 = vmax.f32 %v7756, 0.0
    %v7797 = vmax.f32 %v7758, 0.0
    %v7798 = vmax.f32 %v7762, 0.0
    %v7799 = vmax.f32 %v7764, 0.0
    %v7800 = vmax.f32 %v7766, 0.0
    %v7801 = vmax.f32 %v7768, 0.0
    %v7802 = vpack.c.bf16 %v7772, %v7770
    %v7803 = vpack.c.bf16 %v7773, %v7771
    %v7804 = vpack.c.bf16 %v7776, %v7774
    %v7805 = vpack.c.bf16 %v7777, %v7775
    %v7806 = vpack.c.bf16 %v7780, %v7778
    %v7807 = vpack.c.bf16 %v7781, %v7779
    %v7808 = vpack.c.bf16 %v7784, %v7782
    %v7809 = vpack.c.bf16 %v7785, %v7783
    %v7810 = vpack.c.bf16 %v7788, %v7786
    %v7811 = vpack.c.bf16 %v7789, %v7787
    %v7812 = vpack.c.bf16 %v7792, %v7790
    %v7813 = vpack.c.bf16 %v7793, %v7791
    %v7814 = vpack.c.bf16 %v7796, %v7794
    %v7815 = vpack.c.bf16 %v7797, %v7795
    %v7816 = vpack.c.bf16 %v7800, %v7798
    %v7817 = vpack.c.bf16 %v7801, %v7799
    %v7818 = vld [vmem:[#allocation14] sm:$0xf]
    %v7819 = vld [vmem:[#allocation14 + $0x4] sm:$0xf]
    %v7820 = vld [vmem:[#allocation14 + $0x8] sm:$0xf]
    %v7821 = vld [vmem:[#allocation14 + $0xc] sm:$0xf]
    %v7822 = vld [vmem:[#allocation14 + $0x10] sm:$0xf]
    %v7823 = vld [vmem:[#allocation14 + $0x14] sm:$0xf]
    %v7824 = vld [vmem:[#allocation14 + $0x18] sm:$0xf]
    %v7825 = vld [vmem:[#allocation14 + $0x1c] sm:$0xf]
    %v7826 = vld [vmem:[#allocation14 + $0x20] sm:$0xf]
    %v7827 = vld [vmem:[#allocation14 + $0x24] sm:$0xf]
    %v7828 = vld [vmem:[#allocation14 + $0x28] sm:$0xf]
    %v7829 = vld [vmem:[#allocation14 + $0x2c] sm:$0xf]
    %v7830 = vld [vmem:[#allocation14 + $0x30] sm:$0xf]
    %v7831 = vld [vmem:[#allocation14 + $0x34] sm:$0xf]
    %v7832 = vld [vmem:[#allocation14 + $0x38] sm:$0xf]
    %v7833 = vld [vmem:[#allocation14 + $0x3c] sm:$0xf]
    %v7834 = vld [vmem:[#allocation14 + $0x40] sm:$0xf]
    %v7835 = vld [vmem:[#allocation14 + $0x44] sm:$0xf]
    %v7836 = vld [vmem:[#allocation14 + $0x48] sm:$0xf]
    %v7837 = vld [vmem:[#allocation14 + $0x4c] sm:$0xf]
    %v7838 = vld [vmem:[#allocation14 + $0x50] sm:$0xf]
    %v7839 = vld [vmem:[#allocation14 + $0x54] sm:$0xf]
    %v7840 = vld [vmem:[#allocation14 + $0x58] sm:$0xf]
    %v7841 = vld [vmem:[#allocation14 + $0x5c] sm:$0xf]
    %v7842 = vld [vmem:[#allocation14 + $0x60] sm:$0xf]
    %v7843 = vld [vmem:[#allocation14 + $0x64] sm:$0xf]
    %v7844 = vld [vmem:[#allocation14 + $0x68] sm:$0xf]
    %v7845 = vld [vmem:[#allocation14 + $0x6c] sm:$0xf]
    %v7846 = vld [vmem:[#allocation14 + $0x70] sm:$0xf]
    %v7847 = vld [vmem:[#allocation14 + $0x74] sm:$0xf]
    %v7848 = vld [vmem:[#allocation14 + $0x78] sm:$0xf]
    %v7849 = vld [vmem:[#allocation14 + $0x7c] sm:$0xf]
    %v7850 = vld [vmem:[%s17] sm:$0x1]
    %v7852 = vlaneseq
    %v7853 = vshrl.u32 %v7852, 7
    %v7854 = vsub.s32 0, %v7853
    %v7855 = vrot.slane %v7850, %v7854
    %v7889 = vunpack.c.l.b16 %v7818
    %v7890 = vunpack.c.l.b16 %v7819
    %v7891 = vunpack.c.l.b16 %v7820
    %v7892 = vunpack.c.l.b16 %v7821
    %v7893 = vunpack.c.l.b16 %v7822
    %v7894 = vunpack.c.l.b16 %v7823
    %v7895 = vunpack.c.l.b16 %v7824
    %v7896 = vunpack.c.l.b16 %v7825
    %v7897 = vunpack.c.l.b16 %v7826
    %v7898 = vunpack.c.l.b16 %v7827
    %v7899 = vunpack.c.l.b16 %v7828
    %v7900 = vunpack.c.l.b16 %v7829
    %v7901 = vunpack.c.l.b16 %v7830
    %v7902 = vunpack.c.l.b16 %v7831
    %v7903 = vunpack.c.l.b16 %v7832
    %v7904 = vunpack.c.l.b16 %v7833
    %v7905 = vunpack.c.l.b16 %v7834
    %v7906 = vunpack.c.l.b16 %v7835
    %v7907 = vunpack.c.l.b16 %v7836
    %v7908 = vunpack.c.l.b16 %v7837
    %v7909 = vunpack.c.l.b16 %v7838
    %v7910 = vunpack.c.l.b16 %v7839
    %v7911 = vunpack.c.l.b16 %v7840
    %v7912 = vunpack.c.l.b16 %v7841
    %v7913 = vunpack.c.l.b16 %v7842
    %v7914 = vunpack.c.l.b16 %v7843
    %v7915 = vunpack.c.l.b16 %v7844
    %v7916 = vunpack.c.l.b16 %v7845
    %v7917 = vunpack.c.l.b16 %v7846
    %v7918 = vunpack.c.l.b16 %v7847
    %v7919 = vunpack.c.l.b16 %v7848
    %v7920 = vunpack.c.l.b16 %v7849
    %v7921 = vpack.c.b16 %v7890, %v7889
    %v7922 = vpack.c.b16 %v7892, %v7891
    %v7923 = vpack.c.b16 %v7894, %v7893
    %v7924 = vpack.c.b16 %v7896, %v7895
    %v7925 = vpack.c.b16 %v7898, %v7897
    %v7926 = vpack.c.b16 %v7900, %v7899
    %v7927 = vpack.c.b16 %v7902, %v7901
    %v7928 = vpack.c.b16 %v7904, %v7903
    %v7929 = vpack.c.b16 %v7906, %v7905
    %v7930 = vpack.c.b16 %v7908, %v7907
    %v7931 = vpack.c.b16 %v7910, %v7909
    %v7932 = vpack.c.b16 %v7912, %v7911
    %v7933 = vpack.c.b16 %v7914, %v7913
    %v7934 = vpack.c.b16 %v7916, %v7915
    %v7935 = vpack.c.b16 %v7918, %v7917
    %v7936 = vpack.c.b16 %v7920, %v7919
    %7953 = vmatprep.subr.bf16.mxu0 0
    %7954 = vmatpush1.bf16.msra.mxu0 %v7921
    %7955 = vmatprep.subr.bf16.mxu0 0
    %7956 = vmatpush1.bf16.msra.mxu0 %v7922
    %7957 = vmatprep.subr.bf16.mxu0 0
    %7958 = vmatpush1.bf16.msra.mxu0 %v7923
    %7959 = vmatprep.subr.bf16.mxu0 0
    %7960 = vmatpush1.bf16.msra.mxu0 %v7924
    %7961 = vmatprep.subr.bf16.mxu0 0
    %7962 = vmatpush1.bf16.msra.mxu0 %v7925
    %7963 = vmatprep.subr.bf16.mxu0 0
    %7964 = vmatpush1.bf16.msra.mxu0 %v7926
    %7965 = vmatprep.subr.bf16.mxu0 0
    %7966 = vmatpush1.bf16.msra.mxu0 %v7927
    %7967 = vmatprep.subr.bf16.mxu0 0
    %7968 = vmatpush1.bf16.msra.mxu0 %v7928
    %7969 = vmatprep.subr.bf16.mxu0 0
    %7970 = vmatpush1.bf16.msra.mxu0 %v7929
    %7971 = vmatprep.subr.bf16.mxu0 0
    %7972 = vmatpush1.bf16.msra.mxu0 %v7930
    %7973 = vmatprep.subr.bf16.mxu0 0
    %7974 = vmatpush1.bf16.msra.mxu0 %v7931
    %7975 = vmatprep.subr.bf16.mxu0 0
    %7976 = vmatpush1.bf16.msra.mxu0 %v7932
    %7977 = vmatprep.subr.bf16.mxu0 0
    %7978 = vmatpush1.bf16.msra.mxu0 %v7933
    %7979 = vmatprep.subr.bf16.mxu0 0
    %7980 = vmatpush1.bf16.msra.mxu0 %v7934
    %7981 = vmatprep.subr.bf16.mxu0 0
    %7982 = vmatpush1.bf16.msra.mxu0 %v7935
    %7983 = vmatprep.subr.bf16.mxu0 0
    %7984 = vmatpush1.bf16.msra.mxu0 %v7936
    %7985 = vmatprep.mubr.bf16.mxu0 %v7803
    %7986 = vmatmul.mubr.bf16.gmra.mrb[0].mxu0 %v7802
    %v7987 = vpop.f32.mrb[0].mxu0
    %v7988 = vadd.f32 %v7855, %v7987
    %v7989 = vpop.f32.mrb[0].mxu0
    %v7990 = vpop.f32.mrb[0].mxu0
    %v7991 = vadd.f32 %v7855, %v7990
    %v7992 = vpop.f32.mrb[0].mxu0
    %7993 = vmatprep.mubr.bf16.mxu0 %v7805
    %7994 = vmatmul.mubr.bf16.gmra.mrb[0].mxu0 %v7804
    %v7995 = vpop.f32.mrb[0].mxu0
    %v7996 = vadd.f32 %v7855, %v7995
    %v7997 = vpop.f32.mrb[0].mxu0
    %v7998 = vpop.f32.mrb[0].mxu0
    %v7999 = vadd.f32 %v7855, %v7998
    %v8000 = vpop.f32.mrb[0].mxu0
    %8001 = vmatprep.mubr.bf16.mxu0 %v7807
    %8002 = vmatmul.mubr.bf16.gmra.mrb[0].mxu0 %v7806
    %v8003 = vpop.f32.mrb[0].mxu0
    %v8004 = vadd.f32 %v7855, %v8003
    %v8005 = vpop.f32.mrb[0].mxu0
    %v8006 = vpop.f32.mrb[0].mxu0
    %v8007 = vadd.f32 %v7855, %v8006
    %v8008 = vpop.f32.mrb[0].mxu0
    %8009 = vmatprep.mubr.bf16.mxu0 %v7809
    %8010 = vmatmul.mubr.bf16.gmra.mrb[0].mxu0 %v7808
    %v8011 = vpop.f32.mrb[0].mxu0
    %v8012 = vadd.f32 %v7855, %v8011
    %v8013 = vpop.f32.mrb[0].mxu0
    %v8014 = vpop.f32.mrb[0].mxu0
    %v8015 = vadd.f32 %v7855, %v8014
    %v8016 = vpop.f32.mrb[0].mxu0
    %8017 = vmatprep.mubr.bf16.mxu0 %v7811
    %8018 = vmatmul.mubr.bf16.gmra.mrb[0].mxu0 %v7810
    %v8019 = vpop.f32.mrb[0].mxu0
    %v8020 = vadd.f32 %v7855, %v8019
    %v8021 = vpop.f32.mrb[0].mxu0
    %v8022 = vpop.f32.mrb[0].mxu0
    %v8023 = vadd.f32 %v7855, %v8022
    %v8024 = vpop.f32.mrb[0].mxu0
    %8025 = vmatprep.mubr.bf16.mxu0 %v7813
    %8026 = vmatmul.mubr.bf16.gmra.mrb[0].mxu0 %v7812
    %v8027 = vpop.f32.mrb[0].mxu0
    %v8028 = vadd.f32 %v7855, %v8027
    %v8029 = vpop.f32.mrb[0].mxu0
    %v8030 = vpop.f32.mrb[0].mxu0
    %v8031 = vadd.f32 %v7855, %v8030
    %v8032 = vpop.f32.mrb[0].mxu0
    %8033 = vmatprep.mubr.bf16.mxu0 %v7815
    %8034 = vmatmul.mubr.bf16.gmra.mrb[0].mxu0 %v7814
    %v8035 = vpop.f32.mrb[0].mxu0
    %v8036 = vadd.f32 %v7855, %v8035
    %v8037 = vpop.f32.mrb[0].mxu0
    %v8038 = vpop.f32.mrb[0].mxu0
    %v8039 = vadd.f32 %v7855, %v8038
    %v8040 = vpop.f32.mrb[0].mxu0
    %8041 = vmatprep.mubr.bf16.mxu0 %v7817
    %8042 = vmatmul.mubr.bf16.gmra.mrb[0].mxu0 %v7816
    %v8043 = vpop.f32.mrb[0].mxu0
    %v8044 = vadd.f32 %v7855, %v8043
    %v8045 = vpop.f32.mrb[0].mxu0
    %v8046 = vpop.f32.mrb[0].mxu0
    %v8047 = vadd.f32 %v7855, %v8046
    %v8048 = vpop.f32.mrb[0].mxu0
    %8049 = vdwg.mxu0
    %v8050 = vadd.f32 %v7525, %v7988
    %v8051 = vadd.f32 %v7526, %v7991
    %v8052 = vadd.f32 %v7527, %v7996
    %v8053 = vadd.f32 %v7528, %v7999
    %v8054 = vadd.f32 %v7529, %v8004
    %v8055 = vadd.f32 %v7530, %v8007
    %v8056 = vadd.f32 %v7531, %v8012
    %v8057 = vadd.f32 %v7532, %v8015
    %v8058 = vadd.f32 %v7533, %v8020
    %v8059 = vadd.f32 %v7534, %v8023
    %v8060 = vadd.f32 %v7535, %v8028
    %v8061 = vadd.f32 %v7536, %v8031
    %v8062 = vadd.f32 %v7537, %v8036
    %v8063 = vadd.f32 %v7538, %v8039
    %v8064 = vadd.f32 %v7539, %v8044
    %v8065 = vadd.f32 %v7540, %v8047
    %8066 = vst [vmem:[#allocation16] sm:$0xff] %v8050
    %8067 = vst [vmem:[#allocation16 + $0x8] sm:$0xff] %v8051
    %8068 = vst [vmem:[#allocation16 + $0x10] sm:$0xff] %v8052
    %8069 = vst [vmem:[#allocation16 + $0x18] sm:$0xff] %v8053
    %8070 = vst [vmem:[#allocation16 + $0x20] sm:$0xff] %v8054
    %8071 = vst [vmem:[#allocation16 + $0x28] sm:$0xff] %v8055
    %8072 = vst [vmem:[#allocation16 + $0x30] sm:$0xff] %v8056
    %8073 = vst [vmem:[#allocation16 + $0x38] sm:$0xff] %v8057
    %8074 = vst [vmem:[#allocation16 + $0x40] sm:$0xff] %v8058
    %8075 = vst [vmem:[#allocation16 + $0x48] sm:$0xff] %v8059
    %8076 = vst [vmem:[#allocation16 + $0x50] sm:$0xff] %v8060
    %8077 = vst [vmem:[#allocation16 + $0x58] sm:$0xff] %v8061
    %8078 = vst [vmem:[#allocation16 + $0x60] sm:$0xff] %v8062
    %8079 = vst [vmem:[#allocation16 + $0x68] sm:$0xff] %v8063
    %8080 = vst [vmem:[#allocation16 + $0x70] sm:$0xff] %v8064
    %8081 = vst [vmem:[#allocation16 + $0x78] sm:$0xff] %v8065
    // Predicated region
    $region106: #{tpu_custom_call.1} parent=1 // pred_check
      _
    $region107: #{tpu_custom_call.1} parent=1 // pred_check_branch
      %8083 = sbr.rel (0) target = $region109
    $region108: #{tpu_custom_call.1} parent=1 // pred_region
      %s8085 = ssub.s32 2048, 2048
      %8086 = vsyncadd [#allocation4], %s8085
      %s8087 = sshll.u32 [#allocation16], 4
      %s8088 = int_to_ptr.vmem [resolvable:$true] %s8087
      %8093 = dma.vmem_to_hbm [thread:$0]  %s8088, 2048, %s18, [#allocation4], 128, 128, 8
    $region109: #{tpu_custom_call.1} parent=1 // pred_fallthru
      _
    // Predicated region
    $region110: #{tpu_custom_call.1} parent=1 // pred_check
      _
    $region111: #{tpu_custom_call.1} parent=1 // pred_check_branch
      %8095 = sbr.rel (0) target = $region113
    $region112: #{tpu_custom_call.1} parent=1 // pred_region
      %8096 = dma.done [#allocation4], 2048
    $region113: #{tpu_custom_call.1} parent=1 // pred_fallthru
      _
    %8097 = vsyncpa [#allocation3], 1
    %8098 = vsyncpa [#allocation6], 1
    %8099 = vsyncpa [#allocation9], 1
    %8100 = vsyncpa [#allocation12], 1
    %8101 = vsyncpa [#allocation15], 1
    %8102 = vsyncpa [#allocation4], 1

</llo_original>
